<compile_context>
chip_gen: v6e
topology: v6e:2x2x1
jax: 0.10.0
libtpu: 0.0.40
codegen_flags: <defaults>
</compile_context>

<pallas_src>
import functools

import jax
import jax.numpy as jnp
from jax.experimental import pallas as pl
from jax.experimental.pallas import tpu as pltpu


def _mlp2d_kernel(x_ref, w1_ref, w2_ref, b2_ref, o_ref, acc_ref, *, tk, n_chunks):
    # x_ref:   (tm, C_pad)     f32   real channels + constant 1.0 bias lane + zero pad
    # w1_ref:  (C_pad, inner)  f32   BN scale folded into rows; bias+BN shift in the 1.0 row
    # w2_ref:  (inner, C_out)  bf16
    # b2_ref:  (1, C_out)      f32
    # o_ref:   (tm, C_out)
    # acc_ref: (tm, C_out)     f32   scratch accumulator
    acc_ref[...] = jnp.broadcast_to(b2_ref[...], acc_ref.shape)   # fold b2 into the init
    x = x_ref[...]                                                # (tm, C_pad)

    for c in range(n_chunks):        # static unroll (n_chunks is small, LLO-visible)
        lo, hi = c * tk, (c + 1) * tk
        # Layer 1 on the MXU (K = C_pad is tiny but the MXU is otherwise near-idle).
        # conv1 bias + BN affine come for free through the constant 1.0 lane of x.
        h = jnp.dot(x, w1_ref[:, lo:hi], preferred_element_type=jnp.float32)
        # Only ReLU + bf16 cast remain on the VPU: one fused pass over (tm, tk).
        h = jnp.maximum(h, 0.0).astype(jnp.bfloat16)
        # Layer-2 chunk on the MXU with bf16 operands, f32 accumulation.
        acc_ref[...] += jnp.dot(h, w2_ref[lo:hi, :], preferred_element_type=jnp.float32)

    o_ref[...] = acc_ref[...].astype(o_ref.dtype)


def mlp2d_forward(x_nchw, params, *, tm=256, tk=512):
    """x_nchw: (N, C_in, H, W) float32. Returns (N, C_out, H, W)."""
    w1, b1, gamma, beta, run_mean, run_var, w2, b2 = (
        params["w1"], params["b1"], params["gamma"], params["beta"],
        params["run_mean"], params["run_var"], params["w2"], params["b2"],
    )
    eps = 1e-5
    # Fold BN (eval mode) + conv1 bias into layer-1 weights / a single shift row (exact math).
    scale = gamma / jnp.sqrt(run_var + eps)                 # (inner,)
    shift = b1 * scale + (beta - run_mean * scale)          # (inner,)

    N, C_in, H, W = x_nchw.shape
    inner = w1.shape[0]
    C_out = w2.shape[0]
    M = N * H * W

    if inner % tk != 0:
        tk = inner                                          # fall back to a single chunk
    n_chunks = inner // tk

    n_tiles = pl.cdiv(M, tm)
    M_pad = n_tiles * tm

    # Pad channels so (C_in real lanes + 1 bias lane) fills a multiple of 8 sublanes.
    C_pad = ((C_in + 1 + 7) // 8) * 8

    # NCHW -> (M, C_in) channels-last rows; append the 1.0 bias lane + zero pad lanes.
    x2d = jnp.transpose(x_nchw, (0, 2, 3, 1)).reshape(M, C_in)
    x_aug = jnp.concatenate(
        [x2d,
         jnp.ones((M, 1), x2d.dtype),
         jnp.zeros((M, C_pad - C_in - 1), x2d.dtype)], axis=1)           # (M, C_pad)
    if M_pad != M:
        x_aug = jnp.pad(x_aug, ((0, M_pad - M), (0, 0)))

    # Conv2d 1x1 weights (out, in, 1, 1) -> matmul operands.
    w1_rows = jnp.transpose(w1.reshape(inner, C_in), (1, 0)) * scale[None, :]   # (C_in, inner)
    w1_aug = jnp.concatenate(
        [w1_rows,
         shift.reshape(1, inner),
         jnp.zeros((C_pad - C_in - 1, inner), w1_rows.dtype)], axis=0)   # (C_pad, inner) f32
    w2_m = jnp.transpose(w2.reshape(C_out, inner), (1, 0)).astype(jnp.bfloat16)  # (inner, C_out)
    b2_m = b2.reshape(1, C_out)                                          # (1, C_out) f32

    kernel = functools.partial(_mlp2d_kernel, tk=tk, n_chunks=n_chunks)

    out2d = pl.pallas_call(
        kernel,
        out_shape=jax.ShapeDtypeStruct((M_pad, C_out), x_nchw.dtype),
        grid_spec=pltpu.PrefetchScalarGridSpec(
            num_scalar_prefetch=0,
            grid=(n_tiles,),
            in_specs=[
                pl.BlockSpec((tm, C_pad), lambda i: (i, 0)),       # x row-tile
                pl.BlockSpec((C_pad, inner), lambda i: (0, 0)),    # folded w1 (grid-invariant)
                pl.BlockSpec((inner, C_out), lambda i: (0, 0)),    # w2 bf16  (grid-invariant)
                pl.BlockSpec((1, C_out), lambda i: (0, 0)),        # b2       (grid-invariant)
            ],
            out_specs=pl.BlockSpec((tm, C_out), lambda i: (i, 0)),
            scratch_shapes=[pltpu.VMEM((tm, C_out), jnp.float32)],
        ),
        compiler_params=pltpu.CompilerParams(
            dimension_semantics=("parallel",),
            vmem_limit_bytes=32 * 1024 * 1024,   # footprint ~4-6 MiB; safe on v5e/v6e/v7x
        ),
    )(x_aug, w1_aug, w2_m, b2_m)

    out2d = out2d[:M]
    # (M, C_out) -> NCHW
    return jnp.transpose(out2d.reshape(N, H, W, C_out), (0, 3, 1, 2))


def _reference(x_nchw, params):
    """Pure-JAX f32 reference of the same eval-mode forward."""
    eps = 1e-5
    w1, b1 = params["w1"], params["b1"]
    w2, b2 = params["w2"], params["b2"]
    scale = params["gamma"] / jnp.sqrt(params["run_var"] + eps)
    shift = params["beta"] - params["run_mean"] * scale
    N, C_in, H, W = x_nchw.shape
    inner, C_out = w1.shape[0], w2.shape[0]
    x = jnp.transpose(x_nchw, (0, 2, 3, 1)).reshape(-1, C_in)
    h = x @ jnp.transpose(w1.reshape(inner, C_in)) + b1
    h = h * scale + shift
    h = jnp.maximum(h, 0.0)
    o = h @ jnp.transpose(w2.reshape(C_out, inner)) + b2
    return jnp.transpose(o.reshape(N, H, W, C_out), (0, 3, 1, 2))


def init_params(key, in_dim=4, inner_dim=2048, out_dim=256):
    ks = jax.random.split(key, 6)
    return {
        "w1": jax.random.normal(ks[0], (inner_dim, in_dim, 1, 1), jnp.float32) * 0.05,
        "b1": jax.random.normal(ks[1], (inner_dim,), jnp.float32) * 0.01,
        "gamma": 1.0 + 0.1 * jax.random.normal(ks[2], (inner_dim,), jnp.float32),
        "beta": 0.1 * jax.random.normal(ks[3], (inner_dim,), jnp.float32),
        "run_mean": 0.05 * jax.random.normal(ks[4], (inner_dim,), jnp.float32),
        "run_var": jnp.abs(jax.random.normal(ks[5], (inner_dim,), jnp.float32)) + 0.5,
        "w2": jax.random.normal(ks[0], (out_dim, inner_dim, 1, 1), jnp.float32) * 0.02,
        "b2": jax.random.normal(ks[1], (out_dim,), jnp.float32) * 0.01,
    }


if __name__ == "__main__":
    key = jax.random.PRNGKey(0)
    k_x, k_p = jax.random.split(key)

    N, C_in, H, W = 2, 4, 16, 16            # M = 512 -> grid = 2 with tm=256
    x = jax.random.normal(k_x, (N, C_in, H, W), jnp.float32)
    params = init_params(k_p, in_dim=C_in, inner_dim=2048, out_dim=256)

    out = jax.block_until_ready(mlp2d_forward(x, params))
    ref = jax.block_until_ready(_reference(x, params))

    assert out.shape == (N, 256, H, W)
    # bf16 MXU operands on the (inner=2048) contraction -> ~1e-2-level deviation vs f32 ref.
    assert jnp.allclose(out, ref, atol=2e-2, rtol=2e-2), float(jnp.max(jnp.abs(out - ref)))

    print("KERNEL_OK")
</pallas_src>

<mosaic_0001>
module attributes {stable_mosaic.version = 11 : i64} {
  func.func @_mlp2d_kernel(%arg0: i32, %arg1: memref<256x8xf32, #tpu.memory_space<vmem>>, %arg2: memref<8x2048xf32, #tpu.memory_space<vmem>>, %arg3: memref<2048x256xbf16, #tpu.memory_space<vmem>>, %arg4: memref<1x256xf32, #tpu.memory_space<vmem>>, %arg5: memref<256x256xf32, #tpu.memory_space<vmem>>, %arg6: memref<256x256xf32, #tpu.memory_space<vmem>>) attributes {dimension_semantics = [#tpu.dimension_semantics<parallel>], iteration_bounds = array<i64: 2>, scalar_prefetch = 0 : i64, scratch_operands = 1 : i64, tpu.core_type = #tpu.core_type<tc>, window_params = [{transform_indices = @transform_0, window_bounds = array<i64: 256, 8>}, {pipeline_mode = #tpu.pipeline_mode<synchronous>, transform_indices = @transform_1, window_bounds = array<i64: 8, 2048>}, {pipeline_mode = #tpu.pipeline_mode<synchronous>, transform_indices = @transform_2, window_bounds = array<i64: 2048, 256>}, {pipeline_mode = #tpu.pipeline_mode<synchronous>, transform_indices = @transform_3, window_bounds = array<i64: 1, 256>}, {transform_indices = @transform_4, window_bounds = array<i64: 256, 256>}]} {
    %c0 = arith.constant 0 : index
    %c0_0 = arith.constant 0 : index
    %0 = vector.load %arg4[%c0, %c0_0] : memref<1x256xf32, #tpu.memory_space<vmem>>, vector<1x256xf32>
    %1 = vector.shape_cast %0 : vector<1x256xf32> to vector<1x256xf32>
    %2 = vector.broadcast %1 : vector<1x256xf32> to vector<256x256xf32>
    %c0_1 = arith.constant 0 : index
    %c0_2 = arith.constant 0 : index
    %3 = vector.load %arg6[%c0_1, %c0_2] : memref<256x256xf32, #tpu.memory_space<vmem>>, vector<256x256xf32>
    tpu.vector_store %arg6[%c0_1, %c0_2], %2 {strides = array<i32>} : memref<256x256xf32, #tpu.memory_space<vmem>>, vector<256x256xf32>,
    %c0_3 = arith.constant 0 : index
    %c0_4 = arith.constant 0 : index
    %4 = vector.load %arg1[%c0_3, %c0_4] : memref<256x8xf32, #tpu.memory_space<vmem>>, vector<256x8xf32>
    %c0_5 = arith.constant 0 : index
    %c0_6 = arith.constant 0 : index
    %5 = vector.load %arg2[%c0_5, %c0_6] : memref<8x2048xf32, #tpu.memory_space<vmem>>, vector<8x512xf32>
    %cst = arith.constant dense<0.000000e+00> : vector<256x512xf32>
    %6 = tpu.matmul %4, %5, %cst {dimension_numbers = #tpu.dot_dimension_numbers<[1], [0], [0], [1], [0, 0, 1, 1], [], []>} : vector<256x8xf32>, vector<8x512xf32>, vector<256x512xf32> -> vector<256x512xf32>
    %cst_7 = arith.constant 0.000000e+00 : f32
    %7 = vector.broadcast %cst_7 : f32 to vector<256x512xf32>
    %8 = arith.maximumf %6, %7 : vector<256x512xf32>
    %9 = arith.truncf %8 : vector<256x512xf32> to vector<256x512xbf16>
    %c0_8 = arith.constant 0 : index
    %c0_9 = arith.constant 0 : index
    %10 = vector.load %arg6[%c0_8, %c0_9] : memref<256x256xf32, #tpu.memory_space<vmem>>, vector<256x256xf32>
    %c0_10 = arith.constant 0 : index
    %c0_11 = arith.constant 0 : index
    %11 = vector.load %arg3[%c0_10, %c0_11] : memref<2048x256xbf16, #tpu.memory_space<vmem>>, vector<512x256xbf16>
    %cst_12 = arith.constant dense<0.000000e+00> : vector<256x256xf32>
    %12 = tpu.matmul %9, %11, %cst_12 {dimension_numbers = #tpu.dot_dimension_numbers<[1], [0], [0], [1], [0, 0, 1, 1], [], []>} : vector<256x512xbf16>, vector<512x256xbf16>, vector<256x256xf32> -> vector<256x256xf32>
    %13 = arith.addf %10, %12 : vector<256x256xf32>
    %c0_13 = arith.constant 0 : index
    %c0_14 = arith.constant 0 : index
    %14 = vector.load %arg6[%c0_13, %c0_14] : memref<256x256xf32, #tpu.memory_space<vmem>>, vector<256x256xf32>
    tpu.vector_store %arg6[%c0_13, %c0_14], %13 {strides = array<i32>} : memref<256x256xf32, #tpu.memory_space<vmem>>, vector<256x256xf32>,
    %c0_15 = arith.constant 0 : index
    %c512 = arith.constant 512 : index
    %15 = vector.load %arg2[%c0_15, %c512] : memref<8x2048xf32, #tpu.memory_space<vmem>>, vector<8x512xf32>
    %cst_16 = arith.constant dense<0.000000e+00> : vector<256x512xf32>
    %16 = tpu.matmul %4, %15, %cst_16 {dimension_numbers = #tpu.dot_dimension_numbers<[1], [0], [0], [1], [0, 0, 1, 1], [], []>} : vector<256x8xf32>, vector<8x512xf32>, vector<256x512xf32> -> vector<256x512xf32>
    %cst_17 = arith.constant 0.000000e+00 : f32
    %17 = vector.broadcast %cst_17 : f32 to vector<256x512xf32>
    %18 = arith.maximumf %16, %17 : vector<256x512xf32>
    %19 = arith.truncf %18 : vector<256x512xf32> to vector<256x512xbf16>
    %c0_18 = arith.constant 0 : index
    %c0_19 = arith.constant 0 : index
    %20 = vector.load %arg6[%c0_18, %c0_19] : memref<256x256xf32, #tpu.memory_space<vmem>>, vector<256x256xf32>
    %c512_20 = arith.constant 512 : index
    %c0_21 = arith.constant 0 : index
    %21 = vector.load %arg3[%c512_20, %c0_21] : memref<2048x256xbf16, #tpu.memory_space<vmem>>, vector<512x256xbf16>
    %cst_22 = arith.constant dense<0.000000e+00> : vector<256x256xf32>
    %22 = tpu.matmul %19, %21, %cst_22 {dimension_numbers = #tpu.dot_dimension_numbers<[1], [0], [0], [1], [0, 0, 1, 1], [], []>} : vector<256x512xbf16>, vector<512x256xbf16>, vector<256x256xf32> -> vector<256x256xf32>
    %23 = arith.addf %20, %22 : vector<256x256xf32>
    %c0_23 = arith.constant 0 : index
    %c0_24 = arith.constant 0 : index
    %24 = vector.load %arg6[%c0_23, %c0_24] : memref<256x256xf32, #tpu.memory_space<vmem>>, vector<256x256xf32>
    tpu.vector_store %arg6[%c0_23, %c0_24], %23 {strides = array<i32>} : memref<256x256xf32, #tpu.memory_space<vmem>>, vector<256x256xf32>,
    %c0_25 = arith.constant 0 : index
    %c1024 = arith.constant 1024 : index
    %25 = vector.load %arg2[%c0_25, %c1024] : memref<8x2048xf32, #tpu.memory_space<vmem>>, vector<8x512xf32>
    %cst_26 = arith.constant dense<0.000000e+00> : vector<256x512xf32>
    %26 = tpu.matmul %4, %25, %cst_26 {dimension_numbers = #tpu.dot_dimension_numbers<[1], [0], [0], [1], [0, 0, 1, 1], [], []>} : vector<256x8xf32>, vector<8x512xf32>, vector<256x512xf32> -> vector<256x512xf32>
    %cst_27 = arith.constant 0.000000e+00 : f32
    %27 = vector.broadcast %cst_27 : f32 to vector<256x512xf32>
    %28 = arith.maximumf %26, %27 : vector<256x512xf32>
    %29 = arith.truncf %28 : vector<256x512xf32> to vector<256x512xbf16>
    %c0_28 = arith.constant 0 : index
    %c0_29 = arith.constant 0 : index
    %30 = vector.load %arg6[%c0_28, %c0_29] : memref<256x256xf32, #tpu.memory_space<vmem>>, vector<256x256xf32>
    %c1024_30 = arith.constant 1024 : index
    %c0_31 = arith.constant 0 : index
    %31 = vector.load %arg3[%c1024_30, %c0_31] : memref<2048x256xbf16, #tpu.memory_space<vmem>>, vector<512x256xbf16>
    %cst_32 = arith.constant dense<0.000000e+00> : vector<256x256xf32>
    %32 = tpu.matmul %29, %31, %cst_32 {dimension_numbers = #tpu.dot_dimension_numbers<[1], [0], [0], [1], [0, 0, 1, 1], [], []>} : vector<256x512xbf16>, vector<512x256xbf16>, vector<256x256xf32> -> vector<256x256xf32>
    %33 = arith.addf %30, %32 : vector<256x256xf32>
    %c0_33 = arith.constant 0 : index
    %c0_34 = arith.constant 0 : index
    %34 = vector.load %arg6[%c0_33, %c0_34] : memref<256x256xf32, #tpu.memory_space<vmem>>, vector<256x256xf32>
    tpu.vector_store %arg6[%c0_33, %c0_34], %33 {strides = array<i32>} : memref<256x256xf32, #tpu.memory_space<vmem>>, vector<256x256xf32>,
    %c0_35 = arith.constant 0 : index
    %c1536 = arith.constant 1536 : index
    %35 = vector.load %arg2[%c0_35, %c1536] : memref<8x2048xf32, #tpu.memory_space<vmem>>, vector<8x512xf32>
    %cst_36 = arith.constant dense<0.000000e+00> : vector<256x512xf32>
    %36 = tpu.matmul %4, %35, %cst_36 {dimension_numbers = #tpu.dot_dimension_numbers<[1], [0], [0], [1], [0, 0, 1, 1], [], []>} : vector<256x8xf32>, vector<8x512xf32>, vector<256x512xf32> -> vector<256x512xf32>
    %cst_37 = arith.constant 0.000000e+00 : f32
    %37 = vector.broadcast %cst_37 : f32 to vector<256x512xf32>
    %38 = arith.maximumf %36, %37 : vector<256x512xf32>
    %39 = arith.truncf %38 : vector<256x512xf32> to vector<256x512xbf16>
    %c0_38 = arith.constant 0 : index
    %c0_39 = arith.constant 0 : index
    %40 = vector.load %arg6[%c0_38, %c0_39] : memref<256x256xf32, #tpu.memory_space<vmem>>, vector<256x256xf32>
    %c1536_40 = arith.constant 1536 : index
    %c0_41 = arith.constant 0 : index
    %41 = vector.load %arg3[%c1536_40, %c0_41] : memref<2048x256xbf16, #tpu.memory_space<vmem>>, vector<512x256xbf16>
    %cst_42 = arith.constant dense<0.000000e+00> : vector<256x256xf32>
    %42 = tpu.matmul %39, %41, %cst_42 {dimension_numbers = #tpu.dot_dimension_numbers<[1], [0], [0], [1], [0, 0, 1, 1], [], []>} : vector<256x512xbf16>, vector<512x256xbf16>, vector<256x256xf32> -> vector<256x256xf32>
    %43 = arith.addf %40, %42 : vector<256x256xf32>
    %c0_43 = arith.constant 0 : index
    %c0_44 = arith.constant 0 : index
    %44 = vector.load %arg6[%c0_43, %c0_44] : memref<256x256xf32, #tpu.memory_space<vmem>>, vector<256x256xf32>
    tpu.vector_store %arg6[%c0_43, %c0_44], %43 {strides = array<i32>} : memref<256x256xf32, #tpu.memory_space<vmem>>, vector<256x256xf32>,
    %c0_45 = arith.constant 0 : index
    %c0_46 = arith.constant 0 : index
    %45 = vector.load %arg6[%c0_45, %c0_46] : memref<256x256xf32, #tpu.memory_space<vmem>>, vector<256x256xf32>
    %c0_47 = arith.constant 0 : index
    %c0_48 = arith.constant 0 : index
    %46 = vector.load %arg5[%c0_47, %c0_48] : memref<256x256xf32, #tpu.memory_space<vmem>>, vector<256x256xf32>
    tpu.vector_store %arg5[%c0_47, %c0_48], %45 {strides = array<i32>} : memref<256x256xf32, #tpu.memory_space<vmem>>, vector<256x256xf32>,
    return
  }
  func.func @transform_0(%arg0: i32) -> (i32, i32) {
    %c0_i32 = arith.constant 0 : i32
    %c0_i32_0 = arith.constant 0 : i32
    return %arg0, %c0_i32 : i32, i32
  }
  func.func @transform_1(%arg0: i32) -> (i32, i32) {
    %c0_i32 = arith.constant 0 : i32
    %c0_i32_0 = arith.constant 0 : i32
    %c0_i32_1 = arith.constant 0 : i32
    return %c0_i32, %c0_i32_0 : i32, i32
  }
  func.func @transform_2(%arg0: i32) -> (i32, i32) {
    %c0_i32 = arith.constant 0 : i32
    %c0_i32_0 = arith.constant 0 : i32
    %c0_i32_1 = arith.constant 0 : i32
    return %c0_i32, %c0_i32_0 : i32, i32
  }
  func.func @transform_3(%arg0: i32) -> (i32, i32) {
    %c0_i32 = arith.constant 0 : i32
    %c0_i32_0 = arith.constant 0 : i32
    %c0_i32_1 = arith.constant 0 : i32
    return %c0_i32, %c0_i32_0 : i32, i32
  }
  func.func @transform_4(%arg0: i32) -> (i32, i32) {
    %c0_i32 = arith.constant 0 : i32
    %c0_i32_0 = arith.constant 0 : i32
    return %arg0, %c0_i32 : i32, i32
  }
}

</mosaic_0001>

<llo_original>
// kernel: tpu_custom_call.1
$region0: #{tpu_custom_call.1}
  #allocation0 [shape = 'u32[]', space=smem, size = 0x4, offset = 0x4, fixed_abs, tag = 'smem constant byte address 0x4 - core index']
  #allocation1 [shape = 'u32[144,128]{1,0:T(1,128)}', space=vmem, size = 0x12000, scoped, tag = 'internal scratch']
  #allocation2 [shape = 'f32[256,256]{1,0:T(8,128)}', space=vmem, size = 0x40000, scoped, tag = 'scratch operand']
  %s0 = inlined_call_operand.vmem [shape: f32[512,8], index: 0, kind: input, shape index: {}]
  %s1 = inlined_call_operand.vmem [shape: f32[8,2048], index: 1, kind: input, shape index: {}]
  %s2 = inlined_call_operand.hbm [shape: bf16[2048,256], index: 2, kind: input, shape index: {}]
  %s3 = inlined_call_operand.vmem [shape: f32[1,256], index: 3, kind: input, shape index: {}]
  %s4 = inlined_call_operand.hbm [shape: f32[512,256], index: 4, kind: output, shape index: {}]
  %s5 = sld [smem:[#allocation0]]
  $region53: #{tpu_custom_call.1} parent=0
    _
  %s7 = ssub.s32 1, %s5
  %s8 = scalar_select 0, %s7, %s5
  $region1: #{tpu_custom_call.1} parent=0
    #allocation3 [shape = 'u8[1048576]{0}', space=vmem, size = 0x100000, scoped, tag = 'input window, operand 2, single buffered']
    #allocation4 [shape = 's32[2]{0}', space=sflag, size = 0x8, scoped, tag = 'scoped memory for tpu_custom_call.1']
    #allocation5 [shape = 's32[2]{0}', space=sflag, size = 0x8, scoped, tag = 'scoped memory for tpu_custom_call.1']
    #allocation6 [shape = 'u8[524288]{0}', space=vmem, size = 0x80000, scoped, tag = 'output window, operand 0']
    %9 = vsyncpa [#allocation4], 0
    %10 = vsyncpa [#allocation5], 0
    %s11 = scalar_lea.sflag [#allocation5], 1
    %12 = vsyncpa %s11, 0
    loop: start=0, step=1, limit=4
    $region2: #{tpu_custom_call.1} parent=1 // loop_pre_header
      _
    $region3: #{tpu_custom_call.1} parent=1 // loop_header
      %s14 = sphi 0, %s18
      %p15 = scmp.ge.s32.totalorder %s14, 4
      %s24 = sphi 0, %s26
      %s27 = sphi 0, %s24
      %s28 = sphi 0, %s27
      %s44 = sphi 0, %s28
      %s48 = sphi 0, %s48
      %s50 = sphi 0, %s48
      %s51 = sphi 0, %s50
      %s65 = sphi 0, %s51
      %s69 = sphi 0, %s69
      %s71 = sphi 0, %s69
      %s72 = sphi 0, %s71
      %s86 = sphi 0, %s72
      %s90 = sphi 0, %s90
      %s92 = sphi 0, %s90
      %s93 = sphi 0, %s92
      %s107 = sphi 0, %s93
      %s113 = sphi 0, %s115
      %s116 = sphi 0, %s113
      %s117 = sphi 0, %s116
      %s133 = sphi 0, %s117
    $region4: #{tpu_custom_call.1} parent=1 // loop_header_branch
      %17 = sbr.rel (%p15) target = $region8
    $region5: #{tpu_custom_call.1} parent=1 // loop_body
      %s19 = ssub.s32 %s14, 1
      %s20 = ssub.s32 %s14, 2
      %s21 = sadd.s32 %s14, 1
      %s22 = ssub.s32 %s14, %s21
      %p23 = scmp.eq.s32.totalorder %s22, 0
      %s25 = sadd.s32 %s24, 1
      %s26 = scalar_select %p23, %s24, %s25
      %p29 = pneg %p23
      %p30 = scmp.eq.s32.totalorder %s14, 1
      %p31 = por %p29, %p30
      %p32 = scmp.ne.s32.totalorder %s24, %s27
      %p33 = scmp.eq.s32.totalorder %s14, 0
      %p34 = por %p32, %p33
      %p35 = scmp.ne.s32.totalorder %s24, %s27
      %p36 = scmp.eq.s32.totalorder %s19, 1
      %p37 = por %p35, %p36
      %p38 = scmp.ne.s32.totalorder %s27, %s28
      %p39 = scmp.eq.s32.totalorder %s19, 0
      %p40 = por %p38, %p39
      %p41 = scmp.ne.s32.totalorder %s27, %s28
      %p42 = scmp.eq.s32.totalorder %s20, 1
      %p43 = por %p41, %p42
      %p45 = scmp.ne.s32.totalorder %s28, %s44
      %p46 = scmp.eq.s32.totalorder %s20, 0
      %p47 = por %p45, %p46
      %s49 = sadd.s32 %s48, 1
      %p52 = scmp.eq.s32.totalorder %s14, 1
      %p53 = scmp.ne.s32.totalorder %s48, %s50
      %p54 = scmp.eq.s32.totalorder %s14, 0
      %p55 = por %p53, %p54
      %p56 = scmp.ne.s32.totalorder %s48, %s50
      %p57 = scmp.eq.s32.totalorder %s19, 1
      %p58 = por %p56, %p57
      %p59 = scmp.ne.s32.totalorder %s50, %s51
      %p60 = scmp.eq.s32.totalorder %s19, 0
      %p61 = por %p59, %p60
      %p62 = scmp.ne.s32.totalorder %s50, %s51
      %p63 = scmp.eq.s32.totalorder %s20, 1
      %p64 = por %p62, %p63
      %p66 = scmp.ne.s32.totalorder %s51, %s65
      %p67 = scmp.eq.s32.totalorder %s20, 0
      %p68 = por %p66, %p67
      %s70 = sadd.s32 %s69, 1
      %p73 = scmp.eq.s32.totalorder %s14, 1
      %p74 = scmp.ne.s32.totalorder %s69, %s71
      %p75 = scmp.eq.s32.totalorder %s14, 0
      %p76 = por %p74, %p75
      %p77 = scmp.ne.s32.totalorder %s69, %s71
      %p78 = scmp.eq.s32.totalorder %s19, 1
      %p79 = por %p77, %p78
      %p80 = scmp.ne.s32.totalorder %s71, %s72
      %p81 = scmp.eq.s32.totalorder %s19, 0
      %p82 = por %p80, %p81
      %p83 = scmp.ne.s32.totalorder %s71, %s72
      %p84 = scmp.eq.s32.totalorder %s20, 1
      %p85 = por %p83, %p84
      %p87 = scmp.ne.s32.totalorder %s72, %s86
      %p88 = scmp.eq.s32.totalorder %s20, 0
      %p89 = por %p87, %p88
      %s91 = sadd.s32 %s90, 1
      %p94 = scmp.eq.s32.totalorder %s14, 1
      %p95 = scmp.ne.s32.totalorder %s90, %s92
      %p96 = scmp.eq.s32.totalorder %s14, 0
      %p97 = por %p95, %p96
      %p98 = scmp.ne.s32.totalorder %s90, %s92
      %p99 = scmp.eq.s32.totalorder %s19, 1
      %p100 = por %p98, %p99
      %p101 = scmp.ne.s32.totalorder %s92, %s93
      %p102 = scmp.eq.s32.totalorder %s19, 0
      %p103 = por %p101, %p102
      %p104 = scmp.ne.s32.totalorder %s92, %s93
      %p105 = scmp.eq.s32.totalorder %s20, 1
      %p106 = por %p104, %p105
      %p108 = scmp.ne.s32.totalorder %s93, %s107
      %p109 = scmp.eq.s32.totalorder %s20, 0
      %p110 = por %p108, %p109
      %s111 = ssub.s32 %s14, %s21
      %p112 = scmp.eq.s32.totalorder %s111, 0
      %s114 = sadd.s32 %s113, 1
      %s115 = scalar_select %p112, %s113, %s114
      %p118 = pneg %p112
      %p119 = scmp.eq.s32.totalorder %s14, 1
      %p120 = por %p118, %p119
      %p121 = scmp.ne.s32.totalorder %s113, %s116
      %p122 = scmp.eq.s32.totalorder %s14, 0
      %p123 = por %p121, %p122
      %p124 = scmp.ne.s32.totalorder %s113, %s116
      %p125 = scmp.eq.s32.totalorder %s19, 1
      %p126 = por %p124, %p125
      %p127 = scmp.ne.s32.totalorder %s116, %s117
      %p128 = scmp.eq.s32.totalorder %s19, 0
      %p129 = por %p127, %p128
      %p130 = scmp.ne.s32.totalorder %s116, %s117
      %p131 = scmp.eq.s32.totalorder %s20, 1
      %p132 = por %p130, %p131
      %p134 = scmp.ne.s32.totalorder %s117, %s133
      %p135 = scmp.eq.s32.totalorder %s20, 0
      %p136 = por %p134, %p135
      %p137 = scmp.le.s32.totalorder 1, %s14
      %p138 = scmp.lt.s32.totalorder %s14, 3
      %p139 = pnand %p137, %p138
      %p140 = pneg %p139
      // Predicated region
      $region9: #{tpu_custom_call.1} parent=5 // pred_check
        _
      $region10: #{tpu_custom_call.1} parent=5 // pred_check_branch
        %142 = sbr.rel (%p139) target = $region12
      $region11: #{tpu_custom_call.1} parent=5 // pred_region
        %s143 = ssub.s32 %s14, 1
        // Predicated region
        $region13: #{tpu_custom_call.1} parent=11 // pred_check
          %p144 = pneg %p61
        $region14: #{tpu_custom_call.1} parent=11 // pred_check_branch
          %146 = sbr.rel (%p144) target = $region16
        $region15: #{tpu_custom_call.1} parent=11 // pred_region
          _
        $region16: #{tpu_custom_call.1} parent=11 // pred_fallthru
          _
        // Predicated region
        $region17: #{tpu_custom_call.1} parent=11 // pred_check
          %p147 = pneg %p82
        $region18: #{tpu_custom_call.1} parent=11 // pred_check_branch
          %149 = sbr.rel (%p147) target = $region20
        $region19: #{tpu_custom_call.1} parent=11 // pred_region
          %s151 = ssub.s32 32768, 32768
          %152 = vsyncadd [#allocation4], %s151
          %s153 = sshll.u32 [#allocation3], 4
          %s154 = int_to_ptr.vmem [resolvable:$true] %s153
          %159 = dma.hbm_to_vmem [thread:$0]  %s2, 32768, %s154, [#allocation4], 128, 128, 8
        $region20: #{tpu_custom_call.1} parent=11 // pred_fallthru
          _
        // Predicated region
        $region21: #{tpu_custom_call.1} parent=11 // pred_check
          %p160 = pneg %p103
        $region22: #{tpu_custom_call.1} parent=11 // pred_check_branch
          %162 = sbr.rel (%p160) target = $region24
        $region23: #{tpu_custom_call.1} parent=11 // pred_region
          _
        $region24: #{tpu_custom_call.1} parent=11 // pred_fallthru
          _
      $region12: #{tpu_custom_call.1} parent=5 // pred_fallthru
        _
      %p163 = scmp.lt.s32.totalorder %s14, 2
      // Predicated region
      $region25: #{tpu_custom_call.1} parent=5 // pred_check
        %p164 = pneg %p163
      $region26: #{tpu_custom_call.1} parent=5 // pred_check_branch
        %166 = sbr.rel (%p164) target = $region28
      $region27: #{tpu_custom_call.1} parent=5 // pred_region
        // Predicated region
        $region29: #{tpu_custom_call.1} parent=27 // pred_check
          %p167 = pneg %p34
        $region30: #{tpu_custom_call.1} parent=27 // pred_check_branch
          %169 = sbr.rel (%p167) target = $region32
        $region31: #{tpu_custom_call.1} parent=27 // pred_region
          %s170 = smul.u32 32, %s14
          %p171 = scmp.lt.s32.totalorder %s170, 63
          %s172 = scalar_select %p171, %s170, 63
          %s173 = smul.addr %s172, 8
          %s174 = scalar_lea.vmem %s0, %s173
          %s175 = smul.u32 32, %s14
        $region32: #{tpu_custom_call.1} parent=27 // pred_fallthru
          _
      $region28: #{tpu_custom_call.1} parent=5 // pred_fallthru
        _
      %p176 = scmp.le.s32.totalorder 1, %s14
      %p177 = scmp.lt.s32.totalorder %s14, 3
      %p178 = pnand %p176, %p177
      %p179 = pneg %p178
      // Predicated region
      $region33: #{tpu_custom_call.1} parent=5 // pred_check
        _
      $region34: #{tpu_custom_call.1} parent=5 // pred_check_branch
        %181 = sbr.rel (%p178) target = $region36
      $region35: #{tpu_custom_call.1} parent=5 // pred_region
        %s182 = ssub.s32 %s14, 1
        // Predicated region
        $region37: #{tpu_custom_call.1} parent=35 // pred_check
          %p183 = pneg %p82
        $region38: #{tpu_custom_call.1} parent=35 // pred_check_branch
          %185 = sbr.rel (%p183) target = $region40
        $region39: #{tpu_custom_call.1} parent=35 // pred_region
          %186 = dma.done [#allocation4], 32768
        $region40: #{tpu_custom_call.1} parent=35 // pred_fallthru
          _
        %s187 = smul.u32 32, %s19
        %p188 = scmp.lt.s32.totalorder %s187, 63
        %s189 = scalar_select %p188, %s187, 63
        %s190 = smul.addr %s189, 8
        %s191 = scalar_lea.vmem %s0, %s190
        %p192 = pneg %p40
        %p193 = pneg %p37
        %p194 = pneg %p61
        %p195 = pneg %p58
        %p196 = pneg %p82
        %p197 = pneg %p79
        %p198 = pneg %p103
        %p199 = pneg %p100
        %p200 = pneg %p129
        %p201 = pneg %p126
        %s202 = sand.u32 %s116, 1
        %s203 = scalar_lea.sflag [#allocation5], %s202
        %s204 = sand.u32 %s116, 1
        %s205 = smul.addr %s204, 512
        %s206 = scalar_lea.vmem [#allocation6], %s205
        %s207 = smul.u32 32, %s19
        %p208 = scmp.lt.s32.totalorder %s207, 63
        %s209 = scalar_select %p208, %s207, 63
        %s210 = smul.addr %s209, 8
        %s211 = scalar_lea.vmem %s0, %s210
        %s212 = smul.u32 32, %s19
        %s213 = smul.u32 32, %s19
        %v214 = vld [vmem:[%s3] sm:$0x3]
        %v216 = vlaneseq
        %v217 = vshrl.u32 %v216, 7
        %v218 = vsub.s32 0, %v217
        %v219 = vrot.slane %v214, %v218
        %v220 = vlaneseq
        %v221 = vshrl.u32 %v220, 7
        %v222 = vsub.s32 1, %v221
        %v223 = vrot.slane %v214, %v222
        %226 = vst [vmem:[#allocation2] sm:$0xff] %v219
        %227 = vst [vmem:[#allocation2 + $0x8] sm:$0xff] %v223
        %228 = vst [vmem:[#allocation2 + $0x10] sm:$0xff] %v219
        %229 = vst [vmem:[#allocation2 + $0x18] sm:$0xff] %v223
        %230 = vst [vmem:[#allocation2 + $0x20] sm:$0xff] %v219
        %231 = vst [vmem:[#allocation2 + $0x28] sm:$0xff] %v223
        %232 = vst [vmem:[#allocation2 + $0x30] sm:$0xff] %v219
        %233 = vst [vmem:[#allocation2 + $0x38] sm:$0xff] %v223
        %234 = vst [vmem:[#allocation2 + $0x40] sm:$0xff] %v219
        %235 = vst [vmem:[#allocation2 + $0x48] sm:$0xff] %v223
        %236 = vst [vmem:[#allocation2 + $0x50] sm:$0xff] %v219
        %237 = vst [vmem:[#allocation2 + $0x58] sm:$0xff] %v223
        %238 = vst [vmem:[#allocation2 + $0x60] sm:$0xff] %v219
        %239 = vst [vmem:[#allocation2 + $0x68] sm:$0xff] %v223
        %240 = vst [vmem:[#allocation2 + $0x70] sm:$0xff] %v219
        %241 = vst [vmem:[#allocation2 + $0x78] sm:$0xff] %v223
        %242 = vst [vmem:[#allocation2 + $0x80] sm:$0xff] %v219
        %243 = vst [vmem:[#allocation2 + $0x88] sm:$0xff] %v223
        %244 = vst [vmem:[#allocation2 + $0x90] sm:$0xff] %v219
        %245 = vst [vmem:[#allocation2 + $0x98] sm:$0xff] %v223
        %246 = vst [vmem:[#allocation2 + $0xa0] sm:$0xff] %v219
        %247 = vst [vmem:[#allocation2 + $0xa8] sm:$0xff] %v223
        %248 = vst [vmem:[#allocation2 + $0xb0] sm:$0xff] %v219
        %249 = vst [vmem:[#allocation2 + $0xb8] sm:$0xff] %v223
        %250 = vst [vmem:[#allocation2 + $0xc0] sm:$0xff] %v219
        %251 = vst [vmem:[#allocation2 + $0xc8] sm:$0xff] %v223
        %252 = vst [vmem:[#allocation2 + $0xd0] sm:$0xff] %v219
        %253 = vst [vmem:[#allocation2 + $0xd8] sm:$0xff] %v223
        %254 = vst [vmem:[#allocation2 + $0xe0] sm:$0xff] %v219
        %255 = vst [vmem:[#allocation2 + $0xe8] sm:$0xff] %v223
        %256 = vst [vmem:[#allocation2 + $0xf0] sm:$0xff] %v219
        %257 = vst [vmem:[#allocation2 + $0xf8] sm:$0xff] %v223
        %258 = vst [vmem:[#allocation2 + $0x100] sm:$0xff] %v219
        %259 = vst [vmem:[#allocation2 + $0x108] sm:$0xff] %v223
        %260 = vst [vmem:[#allocation2 + $0x110] sm:$0xff] %v219
        %261 = vst [vmem:[#allocation2 + $0x118] sm:$0xff] %v223
        %262 = vst [vmem:[#allocation2 + $0x120] sm:$0xff] %v219
        %263 = vst [vmem:[#allocation2 + $0x128] sm:$0xff] %v223
        %264 = vst [vmem:[#allocation2 + $0x130] sm:$0xff] %v219
        %265 = vst [vmem:[#allocation2 + $0x138] sm:$0xff] %v223
        %266 = vst [vmem:[#allocation2 + $0x140] sm:$0xff] %v219
        %267 = vst [vmem:[#allocation2 + $0x148] sm:$0xff] %v223
        %268 = vst [vmem:[#allocation2 + $0x150] sm:$0xff] %v219
        %269 = vst [vmem:[#allocation2 + $0x158] sm:$0xff] %v223
        %270 = vst [vmem:[#allocation2 + $0x160] sm:$0xff] %v219
        %271 = vst [vmem:[#allocation2 + $0x168] sm:$0xff] %v223
        %272 = vst [vmem:[#allocation2 + $0x170] sm:$0xff] %v219
        %273 = vst [vmem:[#allocation2 + $0x178] sm:$0xff] %v223
        %274 = vst [vmem:[#allocation2 + $0x180] sm:$0xff] %v219
        %275 = vst [vmem:[#allocation2 + $0x188] sm:$0xff] %v223
        %276 = vst [vmem:[#allocation2 + $0x190] sm:$0xff] %v219
        %277 = vst [vmem:[#allocation2 + $0x198] sm:$0xff] %v223
        %278 = vst [vmem:[#allocation2 + $0x1a0] sm:$0xff] %v219
        %279 = vst [vmem:[#allocation2 + $0x1a8] sm:$0xff] %v223
        %280 = vst [vmem:[#allocation2 + $0x1b0] sm:$0xff] %v219
        %281 = vst [vmem:[#allocation2 + $0x1b8] sm:$0xff] %v223
        %282 = vst [vmem:[#allocation2 + $0x1c0] sm:$0xff] %v219
        %283 = vst [vmem:[#allocation2 + $0x1c8] sm:$0xff] %v223
        %284 = vst [vmem:[#allocation2 + $0x1d0] sm:$0xff] %v219
        %285 = vst [vmem:[#allocation2 + $0x1d8] sm:$0xff] %v223
        %286 = vst [vmem:[#allocation2 + $0x1e0] sm:$0xff] %v219
        %287 = vst [vmem:[#allocation2 + $0x1e8] sm:$0xff] %v223
        %288 = vst [vmem:[#allocation2 + $0x1f0] sm:$0xff] %v219
        %289 = vst [vmem:[#allocation2 + $0x1f8] sm:$0xff] %v223
        %v290 = vld [vmem:[%s211] sm:$0xff]
        %v291 = vld [vmem:[%s211 + $0x8] sm:$0xff]
        %v292 = vld [vmem:[%s211 + $0x10] sm:$0xff]
        %v293 = vld [vmem:[%s211 + $0x18] sm:$0xff]
        %v294 = vld [vmem:[%s211 + $0x20] sm:$0xff]
        %v295 = vld [vmem:[%s211 + $0x28] sm:$0xff]
        %v296 = vld [vmem:[%s211 + $0x30] sm:$0xff]
        %v297 = vld [vmem:[%s211 + $0x38] sm:$0xff]
        %v298 = vld [vmem:[%s211 + $0x40] sm:$0xff]
        %v299 = vld [vmem:[%s211 + $0x48] sm:$0xff]
        %v300 = vld [vmem:[%s211 + $0x50] sm:$0xff]
        %v301 = vld [vmem:[%s211 + $0x58] sm:$0xff]
        %v302 = vld [vmem:[%s211 + $0x60] sm:$0xff]
        %v303 = vld [vmem:[%s211 + $0x68] sm:$0xff]
        %v304 = vld [vmem:[%s211 + $0x70] sm:$0xff]
        %v305 = vld [vmem:[%s211 + $0x78] sm:$0xff]
        %v306 = vld [vmem:[%s211 + $0x80] sm:$0xff]
        %v307 = vld [vmem:[%s211 + $0x88] sm:$0xff]
        %v308 = vld [vmem:[%s211 + $0x90] sm:$0xff]
        %v309 = vld [vmem:[%s211 + $0x98] sm:$0xff]
        %v310 = vld [vmem:[%s211 + $0xa0] sm:$0xff]
        %v311 = vld [vmem:[%s211 + $0xa8] sm:$0xff]
        %v312 = vld [vmem:[%s211 + $0xb0] sm:$0xff]
        %v313 = vld [vmem:[%s211 + $0xb8] sm:$0xff]
        %v314 = vld [vmem:[%s211 + $0xc0] sm:$0xff]
        %v315 = vld [vmem:[%s211 + $0xc8] sm:$0xff]
        %v316 = vld [vmem:[%s211 + $0xd0] sm:$0xff]
        %v317 = vld [vmem:[%s211 + $0xd8] sm:$0xff]
        %v318 = vld [vmem:[%s211 + $0xe0] sm:$0xff]
        %v319 = vld [vmem:[%s211 + $0xe8] sm:$0xff]
        %v320 = vld [vmem:[%s211 + $0xf0] sm:$0xff]
        %v321 = vld [vmem:[%s211 + $0xf8] sm:$0xff]
        %v322 = vld [vmem:[%s1] sm:$0xff]
        %v323 = vld [vmem:[%s1 + $0x8] sm:$0xff]
        %v324 = vld [vmem:[%s1 + $0x10] sm:$0xff]
        %v325 = vld [vmem:[%s1 + $0x18] sm:$0xff]
        %vm326 = vcmask 64512
        %v328 = vsel %vm326, %v290, 0
        %v331 = vsel %vm326, %v291, 0
        %v334 = vsel %vm326, %v292, 0
        %v337 = vsel %vm326, %v293, 0
        %v340 = vsel %vm326, %v294, 0
        %v343 = vsel %vm326, %v295, 0
        %v346 = vsel %vm326, %v296, 0
        %v349 = vsel %vm326, %v297, 0
        %v352 = vsel %vm326, %v298, 0
        %v355 = vsel %vm326, %v299, 0
        %v358 = vsel %vm326, %v300, 0
        %v361 = vsel %vm326, %v301, 0
        %v364 = vsel %vm326, %v302, 0
        %v367 = vsel %vm326, %v303, 0
        %v370 = vsel %vm326, %v304, 0
        %v373 = vsel %vm326, %v305, 0
        %v376 = vsel %vm326, %v306, 0
        %v379 = vsel %vm326, %v307, 0
        %v382 = vsel %vm326, %v308, 0
        %v385 = vsel %vm326, %v309, 0
        %v388 = vsel %vm326, %v310, 0
        %v391 = vsel %vm326, %v311, 0
        %v394 = vsel %vm326, %v312, 0
        %v397 = vsel %vm326, %v313, 0
        %v400 = vsel %vm326, %v314, 0
        %v403 = vsel %vm326, %v315, 0
        %v406 = vsel %vm326, %v316, 0
        %v409 = vsel %vm326, %v317, 0
        %v412 = vsel %vm326, %v318, 0
        %v415 = vsel %vm326, %v319, 0
        %v418 = vsel %vm326, %v320, 0
        %v421 = vsel %vm326, %v321, 0
        %423 = vmatprep.subr.mxu0 0.0
        %424 = vmatpush1.msra.mxu0 0.0
        %425 = vmatprep.subr.mxu0 0.0
        %426 = vmatpush1.msra.mxu0 0.0
        %427 = vmatprep.subr.mxu0 0.0
        %428 = vmatpush1.msra.mxu0 0.0
        %429 = vmatprep.subr.mxu0 0.0
        %430 = vmatpush1.msra.mxu0 0.0
        %431 = vmatprep.subr.mxu0 0.0
        %432 = vmatpush1.msra.mxu0 0.0
        %433 = vmatprep.subr.mxu0 0.0
        %434 = vmatpush1.msra.mxu0 0.0
        %435 = vmatprep.subr.mxu0 0.0
        %436 = vmatpush1.msra.mxu0 0.0
        %437 = vmatprep.subr.mxu0 0.0
        %438 = vmatpush1.msra.mxu0 0.0
        %439 = vmatprep.subr.mxu0 0.0
        %440 = vmatpush1.msra.mxu0 0.0
        %441 = vmatprep.subr.mxu0 0.0
        %442 = vmatpush1.msra.mxu0 0.0
        %443 = vmatprep.subr.mxu0 0.0
        %444 = vmatpush1.msra.mxu0 0.0
        %445 = vmatprep.subr.mxu0 0.0
        %446 = vmatpush1.msra.mxu0 0.0
        %447 = vmatprep.subr.mxu0 0.0
        %448 = vmatpush1.msra.mxu0 0.0
        %449 = vmatprep.subr.mxu0 0.0
        %450 = vmatpush1.msra.mxu0 0.0
        %451 = vmatprep.subr.mxu0 0.0
        %452 = vmatpush1.msra.mxu0 0.0
        %453 = vmatprep.subr.mxu0 %v323
        %454 = vmatpush1.msra.mxu0 %v322
        %455 = vmatprep.subr.mxu0 0.0
        %456 = vmatpush2.msra.mxu0 0.0
        %457 = vmatprep.subr.mxu0 0.0
        %458 = vmatpush2.msra.mxu0 0.0
        %459 = vmatprep.subr.mxu0 0.0
        %460 = vmatpush2.msra.mxu0 0.0
        %461 = vmatprep.subr.mxu0 0.0
        %462 = vmatpush2.msra.mxu0 0.0
        %463 = vmatprep.subr.mxu0 0.0
        %464 = vmatpush2.msra.mxu0 0.0
        %465 = vmatprep.subr.mxu0 0.0
        %466 = vmatpush2.msra.mxu0 0.0
        %467 = vmatprep.subr.mxu0 0.0
        %468 = vmatpush2.msra.mxu0 0.0
        %469 = vmatprep.subr.mxu0 0.0
        %470 = vmatpush2.msra.mxu0 0.0
        %471 = vmatprep.subr.mxu0 0.0
        %472 = vmatpush2.msra.mxu0 0.0
        %473 = vmatprep.subr.mxu0 0.0
        %474 = vmatpush2.msra.mxu0 0.0
        %475 = vmatprep.subr.mxu0 0.0
        %476 = vmatpush2.msra.mxu0 0.0
        %477 = vmatprep.subr.mxu0 0.0
        %478 = vmatpush2.msra.mxu0 0.0
        %479 = vmatprep.subr.mxu0 0.0
        %480 = vmatpush2.msra.mxu0 0.0
        %481 = vmatprep.subr.mxu0 0.0
        %482 = vmatpush2.msra.mxu0 0.0
        %483 = vmatprep.subr.mxu0 0.0
        %484 = vmatpush2.msra.mxu0 0.0
        %485 = vmatprep.subr.mxu0 0.0
        %486 = vmatpush2.msra.mxu0 0.0
        %487 = vmatprep.mubr.f32.mxu0 0.0
        %488 = vmatmul.mubr.f32.gmra.mxu0 %v328
        %v489 = vpop.f32.mrf.mxu0
        %v490 = vadd.f32 0.0, %v489
        %v491 = vpop.f32.mrf.mxu0
        %v492 = vadd.f32 0.0, %v491
        %493 = vmatprep.mubr.f32.mxu0 0.0
        %494 = vmatmul.mubr.f32.gmra.mxu0 %v331
        %v495 = vpop.f32.mrf.mxu0
        %v496 = vadd.f32 0.0, %v495
        %v497 = vpop.f32.mrf.mxu0
        %v498 = vadd.f32 0.0, %v497
        %499 = vmatprep.mubr.f32.mxu0 0.0
        %500 = vmatmul.mubr.f32.gmra.mxu0 %v334
        %v501 = vpop.f32.mrf.mxu0
        %v502 = vadd.f32 0.0, %v501
        %v503 = vpop.f32.mrf.mxu0
        %v504 = vadd.f32 0.0, %v503
        %505 = vmatprep.mubr.f32.mxu0 0.0
        %506 = vmatmul.mubr.f32.gmra.mxu0 %v337
        %v507 = vpop.f32.mrf.mxu0
        %v508 = vadd.f32 0.0, %v507
        %v509 = vpop.f32.mrf.mxu0
        %v510 = vadd.f32 0.0, %v509
        %511 = vmatprep.mubr.f32.mxu0 0.0
        %512 = vmatmul.mubr.f32.gmra.mxu0 %v340
        %v513 = vpop.f32.mrf.mxu0
        %v514 = vadd.f32 0.0, %v513
        %v515 = vpop.f32.mrf.mxu0
        %v516 = vadd.f32 0.0, %v515
        %517 = vmatprep.mubr.f32.mxu0 0.0
        %518 = vmatmul.mubr.f32.gmra.mxu0 %v343
        %v519 = vpop.f32.mrf.mxu0
        %v520 = vadd.f32 0.0, %v519
        %v521 = vpop.f32.mrf.mxu0
        %v522 = vadd.f32 0.0, %v521
        %523 = vmatprep.mubr.f32.mxu0 0.0
        %524 = vmatmul.mubr.f32.gmra.mxu0 %v346
        %v525 = vpop.f32.mrf.mxu0
        %v526 = vadd.f32 0.0, %v525
        %v527 = vpop.f32.mrf.mxu0
        %v528 = vadd.f32 0.0, %v527
        %529 = vmatprep.mubr.f32.mxu0 0.0
        %530 = vmatmul.mubr.f32.gmra.mxu0 %v349
        %v531 = vpop.f32.mrf.mxu0
        %v532 = vadd.f32 0.0, %v531
        %v533 = vpop.f32.mrf.mxu0
        %v534 = vadd.f32 0.0, %v533
        %535 = vmatprep.mubr.f32.mxu0 0.0
        %536 = vmatmul.mubr.f32.gmra.mxu0 %v352
        %v537 = vpop.f32.mrf.mxu0
        %v538 = vadd.f32 0.0, %v537
        %v539 = vpop.f32.mrf.mxu0
        %v540 = vadd.f32 0.0, %v539
        %541 = vmatprep.mubr.f32.mxu0 0.0
        %542 = vmatmul.mubr.f32.gmra.mxu0 %v355
        %v543 = vpop.f32.mrf.mxu0
        %v544 = vadd.f32 0.0, %v543
        %v545 = vpop.f32.mrf.mxu0
        %v546 = vadd.f32 0.0, %v545
        %547 = vmatprep.mubr.f32.mxu0 0.0
        %548 = vmatmul.mubr.f32.gmra.mxu0 %v358
        %v549 = vpop.f32.mrf.mxu0
        %v550 = vadd.f32 0.0, %v549
        %v551 = vpop.f32.mrf.mxu0
        %v552 = vadd.f32 0.0, %v551
        %553 = vmatprep.mubr.f32.mxu0 0.0
        %554 = vmatmul.mubr.f32.gmra.mxu0 %v361
        %v555 = vpop.f32.mrf.mxu0
        %v556 = vadd.f32 0.0, %v555
        %v557 = vpop.f32.mrf.mxu0
        %v558 = vadd.f32 0.0, %v557
        %559 = vmatprep.mubr.f32.mxu0 0.0
        %560 = vmatmul.mubr.f32.gmra.mxu0 %v364
        %v561 = vpop.f32.mrf.mxu0
        %v562 = vadd.f32 0.0, %v561
        %v563 = vpop.f32.mrf.mxu0
        %v564 = vadd.f32 0.0, %v563
        %565 = vmatprep.mubr.f32.mxu0 0.0
        %566 = vmatmul.mubr.f32.gmra.mxu0 %v367
        %v567 = vpop.f32.mrf.mxu0
        %v568 = vadd.f32 0.0, %v567
        %v569 = vpop.f32.mrf.mxu0
        %v570 = vadd.f32 0.0, %v569
        %571 = vmatprep.mubr.f32.mxu0 0.0
        %572 = vmatmul.mubr.f32.gmra.mxu0 %v370
        %v573 = vpop.f32.mrf.mxu0
        %v574 = vadd.f32 0.0, %v573
        %v575 = vpop.f32.mrf.mxu0
        %v576 = vadd.f32 0.0, %v575
        %577 = vmatprep.mubr.f32.mxu0 0.0
        %578 = vmatmul.mubr.f32.gmra.mxu0 %v373
        %v579 = vpop.f32.mrf.mxu0
        %v580 = vadd.f32 0.0, %v579
        %v581 = vpop.f32.mrf.mxu0
        %v582 = vadd.f32 0.0, %v581
        %583 = vmatprep.mubr.f32.mxu0 0.0
        %584 = vmatmul.mubr.f32.gmra.mxu0 %v376
        %v585 = vpop.f32.mrf.mxu0
        %v586 = vadd.f32 0.0, %v585
        %v587 = vpop.f32.mrf.mxu0
        %v588 = vadd.f32 0.0, %v587
        %589 = vmatprep.mubr.f32.mxu0 0.0
        %590 = vmatmul.mubr.f32.gmra.mxu0 %v379
        %v591 = vpop.f32.mrf.mxu0
        %v592 = vadd.f32 0.0, %v591
        %v593 = vpop.f32.mrf.mxu0
        %v594 = vadd.f32 0.0, %v593
        %595 = vmatprep.mubr.f32.mxu0 0.0
        %596 = vmatmul.mubr.f32.gmra.mxu0 %v382
        %v597 = vpop.f32.mrf.mxu0
        %v598 = vadd.f32 0.0, %v597
        %v599 = vpop.f32.mrf.mxu0
        %v600 = vadd.f32 0.0, %v599
        %601 = vmatprep.mubr.f32.mxu0 0.0
        %602 = vmatmul.mubr.f32.gmra.mxu0 %v385
        %v603 = vpop.f32.mrf.mxu0
        %v604 = vadd.f32 0.0, %v603
        %v605 = vpop.f32.mrf.mxu0
        %v606 = vadd.f32 0.0, %v605
        %607 = vmatprep.mubr.f32.mxu0 0.0
        %608 = vmatmul.mubr.f32.gmra.mxu0 %v388
        %v609 = vpop.f32.mrf.mxu0
        %v610 = vadd.f32 0.0, %v609
        %v611 = vpop.f32.mrf.mxu0
        %v612 = vadd.f32 0.0, %v611
        %613 = vmatprep.mubr.f32.mxu0 0.0
        %614 = vmatmul.mubr.f32.gmra.mxu0 %v391
        %v615 = vpop.f32.mrf.mxu0
        %v616 = vadd.f32 0.0, %v615
        %v617 = vpop.f32.mrf.mxu0
        %v618 = vadd.f32 0.0, %v617
        %619 = vmatprep.mubr.f32.mxu0 0.0
        %620 = vmatmul.mubr.f32.gmra.mxu0 %v394
        %v621 = vpop.f32.mrf.mxu0
        %v622 = vadd.f32 0.0, %v621
        %v623 = vpop.f32.mrf.mxu0
        %v624 = vadd.f32 0.0, %v623
        %625 = vmatprep.mubr.f32.mxu0 0.0
        %626 = vmatmul.mubr.f32.gmra.mxu0 %v397
        %v627 = vpop.f32.mrf.mxu0
        %v628 = vadd.f32 0.0, %v627
        %v629 = vpop.f32.mrf.mxu0
        %v630 = vadd.f32 0.0, %v629
        %631 = vmatprep.mubr.f32.mxu0 0.0
        %632 = vmatmul.mubr.f32.gmra.mxu0 %v400
        %v633 = vpop.f32.mrf.mxu0
        %v634 = vadd.f32 0.0, %v633
        %v635 = vpop.f32.mrf.mxu0
        %v636 = vadd.f32 0.0, %v635
        %637 = vmatprep.mubr.f32.mxu0 0.0
        %638 = vmatmul.mubr.f32.gmra.mxu0 %v403
        %v639 = vpop.f32.mrf.mxu0
        %v640 = vadd.f32 0.0, %v639
        %v641 = vpop.f32.mrf.mxu0
        %v642 = vadd.f32 0.0, %v641
        %643 = vmatprep.mubr.f32.mxu0 0.0
        %644 = vmatmul.mubr.f32.gmra.mxu0 %v406
        %v645 = vpop.f32.mrf.mxu0
        %v646 = vadd.f32 0.0, %v645
        %v647 = vpop.f32.mrf.mxu0
        %v648 = vadd.f32 0.0, %v647
        %649 = vmatprep.mubr.f32.mxu0 0.0
        %650 = vmatmul.mubr.f32.gmra.mxu0 %v409
        %v651 = vpop.f32.mrf.mxu0
        %v652 = vadd.f32 0.0, %v651
        %v653 = vpop.f32.mrf.mxu0
        %v654 = vadd.f32 0.0, %v653
        %655 = vmatprep.mubr.f32.mxu0 0.0
        %656 = vmatmul.mubr.f32.gmra.mxu0 %v412
        %v657 = vpop.f32.mrf.mxu0
        %v658 = vadd.f32 0.0, %v657
        %v659 = vpop.f32.mrf.mxu0
        %v660 = vadd.f32 0.0, %v659
        %661 = vmatprep.mubr.f32.mxu0 0.0
        %662 = vmatmul.mubr.f32.gmra.mxu0 %v415
        %v663 = vpop.f32.mrf.mxu0
        %v664 = vadd.f32 0.0, %v663
        %v665 = vpop.f32.mrf.mxu0
        %v666 = vadd.f32 0.0, %v665
        %667 = vmatprep.mubr.f32.mxu0 0.0
        %668 = vmatmul.mubr.f32.gmra.mxu0 %v418
        %v669 = vpop.f32.mrf.mxu0
        %v670 = vadd.f32 0.0, %v669
        %v671 = vpop.f32.mrf.mxu0
        %v672 = vadd.f32 0.0, %v671
        %673 = vmatprep.mubr.f32.mxu0 0.0
        %674 = vmatmul.mubr.f32.gmra.mxu0 %v421
        %v675 = vpop.f32.mrf.mxu0
        %v676 = vadd.f32 0.0, %v675
        %v677 = vpop.f32.mrf.mxu0
        %v678 = vadd.f32 0.0, %v677
        %679 = vdwg.mxu0
        %680 = vmatprep.subr.mxu0 0.0
        %681 = vmatpush1.msra.mxu0 0.0
        %682 = vmatprep.subr.mxu0 0.0
        %683 = vmatpush1.msra.mxu0 0.0
        %684 = vmatprep.subr.mxu0 0.0
        %685 = vmatpush1.msra.mxu0 0.0
        %686 = vmatprep.subr.mxu0 0.0
        %687 = vmatpush1.msra.mxu0 0.0
        %688 = vmatprep.subr.mxu0 0.0
        %689 = vmatpush1.msra.mxu0 0.0
        %690 = vmatprep.subr.mxu0 0.0
        %691 = vmatpush1.msra.mxu0 0.0
        %692 = vmatprep.subr.mxu0 0.0
        %693 = vmatpush1.msra.mxu0 0.0
        %694 = vmatprep.subr.mxu0 0.0
        %695 = vmatpush1.msra.mxu0 0.0
        %696 = vmatprep.subr.mxu0 0.0
        %697 = vmatpush1.msra.mxu0 0.0
        %698 = vmatprep.subr.mxu0 0.0
        %699 = vmatpush1.msra.mxu0 0.0
        %700 = vmatprep.subr.mxu0 0.0
        %701 = vmatpush1.msra.mxu0 0.0
        %702 = vmatprep.subr.mxu0 0.0
        %703 = vmatpush1.msra.mxu0 0.0
        %704 = vmatprep.subr.mxu0 0.0
        %705 = vmatpush1.msra.mxu0 0.0
        %706 = vmatprep.subr.mxu0 0.0
        %707 = vmatpush1.msra.mxu0 0.0
        %708 = vmatprep.subr.mxu0 0.0
        %709 = vmatpush1.msra.mxu0 0.0
        %710 = vmatprep.subr.mxu0 %v325
        %711 = vmatpush1.msra.mxu0 %v324
        %712 = vmatprep.subr.mxu0 0.0
        %713 = vmatpush2.msra.mxu0 0.0
        %714 = vmatprep.subr.mxu0 0.0
        %715 = vmatpush2.msra.mxu0 0.0
        %716 = vmatprep.subr.mxu0 0.0
        %717 = vmatpush2.msra.mxu0 0.0
        %718 = vmatprep.subr.mxu0 0.0
        %719 = vmatpush2.msra.mxu0 0.0
        %720 = vmatprep.subr.mxu0 0.0
        %721 = vmatpush2.msra.mxu0 0.0
        %722 = vmatprep.subr.mxu0 0.0
        %723 = vmatpush2.msra.mxu0 0.0
        %724 = vmatprep.subr.mxu0 0.0
        %725 = vmatpush2.msra.mxu0 0.0
        %726 = vmatprep.subr.mxu0 0.0
        %727 = vmatpush2.msra.mxu0 0.0
        %728 = vmatprep.subr.mxu0 0.0
        %729 = vmatpush2.msra.mxu0 0.0
        %730 = vmatprep.subr.mxu0 0.0
        %731 = vmatpush2.msra.mxu0 0.0
        %732 = vmatprep.subr.mxu0 0.0
        %733 = vmatpush2.msra.mxu0 0.0
        %734 = vmatprep.subr.mxu0 0.0
        %735 = vmatpush2.msra.mxu0 0.0
        %736 = vmatprep.subr.mxu0 0.0
        %737 = vmatpush2.msra.mxu0 0.0
        %738 = vmatprep.subr.mxu0 0.0
        %739 = vmatpush2.msra.mxu0 0.0
        %740 = vmatprep.subr.mxu0 0.0
        %741 = vmatpush2.msra.mxu0 0.0
        %742 = vmatprep.subr.mxu0 0.0
        %743 = vmatpush2.msra.mxu0 0.0
        %744 = vmatprep.mubr.f32.mxu0 0.0
        %745 = vmatmul.mubr.f32.gmra.mxu0 %v328
        %v746 = vpop.f32.mrf.mxu0
        %v747 = vadd.f32 0.0, %v746
        %v748 = vpop.f32.mrf.mxu0
        %v749 = vadd.f32 0.0, %v748
        %750 = vmatprep.mubr.f32.mxu0 0.0
        %751 = vmatmul.mubr.f32.gmra.mxu0 %v331
        %v752 = vpop.f32.mrf.mxu0
        %v753 = vadd.f32 0.0, %v752
        %v754 = vpop.f32.mrf.mxu0
        %v755 = vadd.f32 0.0, %v754
        %756 = vmatprep.mubr.f32.mxu0 0.0
        %757 = vmatmul.mubr.f32.gmra.mxu0 %v334
        %v758 = vpop.f32.mrf.mxu0
        %v759 = vadd.f32 0.0, %v758
        %v760 = vpop.f32.mrf.mxu0
        %v761 = vadd.f32 0.0, %v760
        %762 = vmatprep.mubr.f32.mxu0 0.0
        %763 = vmatmul.mubr.f32.gmra.mxu0 %v337
        %v764 = vpop.f32.mrf.mxu0
        %v765 = vadd.f32 0.0, %v764
        %v766 = vpop.f32.mrf.mxu0
        %v767 = vadd.f32 0.0, %v766
        %768 = vmatprep.mubr.f32.mxu0 0.0
        %769 = vmatmul.mubr.f32.gmra.mxu0 %v340
        %v770 = vpop.f32.mrf.mxu0
        %v771 = vadd.f32 0.0, %v770
        %v772 = vpop.f32.mrf.mxu0
        %v773 = vadd.f32 0.0, %v772
        %774 = vmatprep.mubr.f32.mxu0 0.0
        %775 = vmatmul.mubr.f32.gmra.mxu0 %v343
        %v776 = vpop.f32.mrf.mxu0
        %v777 = vadd.f32 0.0, %v776
        %v778 = vpop.f32.mrf.mxu0
        %v779 = vadd.f32 0.0, %v778
        %780 = vmatprep.mubr.f32.mxu0 0.0
        %781 = vmatmul.mubr.f32.gmra.mxu0 %v346
        %v782 = vpop.f32.mrf.mxu0
        %v783 = vadd.f32 0.0, %v782
        %v784 = vpop.f32.mrf.mxu0
        %v785 = vadd.f32 0.0, %v784
        %786 = vmatprep.mubr.f32.mxu0 0.0
        %787 = vmatmul.mubr.f32.gmra.mxu0 %v349
        %v788 = vpop.f32.mrf.mxu0
        %v789 = vadd.f32 0.0, %v788
        %v790 = vpop.f32.mrf.mxu0
        %v791 = vadd.f32 0.0, %v790
        %792 = vmatprep.mubr.f32.mxu0 0.0
        %793 = vmatmul.mubr.f32.gmra.mxu0 %v352
        %v794 = vpop.f32.mrf.mxu0
        %v795 = vadd.f32 0.0, %v794
        %v796 = vpop.f32.mrf.mxu0
        %v797 = vadd.f32 0.0, %v796
        %798 = vmatprep.mubr.f32.mxu0 0.0
        %799 = vmatmul.mubr.f32.gmra.mxu0 %v355
        %v800 = vpop.f32.mrf.mxu0
        %v801 = vadd.f32 0.0, %v800
        %v802 = vpop.f32.mrf.mxu0
        %v803 = vadd.f32 0.0, %v802
        %804 = vmatprep.mubr.f32.mxu0 0.0
        %805 = vmatmul.mubr.f32.gmra.mxu0 %v358
        %v806 = vpop.f32.mrf.mxu0
        %v807 = vadd.f32 0.0, %v806
        %v808 = vpop.f32.mrf.mxu0
        %v809 = vadd.f32 0.0, %v808
        %810 = vmatprep.mubr.f32.mxu0 0.0
        %811 = vmatmul.mubr.f32.gmra.mxu0 %v361
        %v812 = vpop.f32.mrf.mxu0
        %v813 = vadd.f32 0.0, %v812
        %v814 = vpop.f32.mrf.mxu0
        %v815 = vadd.f32 0.0, %v814
        %816 = vmatprep.mubr.f32.mxu0 0.0
        %817 = vmatmul.mubr.f32.gmra.mxu0 %v364
        %v818 = vpop.f32.mrf.mxu0
        %v819 = vadd.f32 0.0, %v818
        %v820 = vpop.f32.mrf.mxu0
        %v821 = vadd.f32 0.0, %v820
        %822 = vmatprep.mubr.f32.mxu0 0.0
        %823 = vmatmul.mubr.f32.gmra.mxu0 %v367
        %v824 = vpop.f32.mrf.mxu0
        %v825 = vadd.f32 0.0, %v824
        %v826 = vpop.f32.mrf.mxu0
        %v827 = vadd.f32 0.0, %v826
        %828 = vmatprep.mubr.f32.mxu0 0.0
        %829 = vmatmul.mubr.f32.gmra.mxu0 %v370
        %v830 = vpop.f32.mrf.mxu0
        %v831 = vadd.f32 0.0, %v830
        %v832 = vpop.f32.mrf.mxu0
        %v833 = vadd.f32 0.0, %v832
        %834 = vmatprep.mubr.f32.mxu0 0.0
        %835 = vmatmul.mubr.f32.gmra.mxu0 %v373
        %v836 = vpop.f32.mrf.mxu0
        %v837 = vadd.f32 0.0, %v836
        %v838 = vpop.f32.mrf.mxu0
        %v839 = vadd.f32 0.0, %v838
        %840 = vmatprep.mubr.f32.mxu0 0.0
        %841 = vmatmul.mubr.f32.gmra.mxu0 %v376
        %v842 = vpop.f32.mrf.mxu0
        %v843 = vadd.f32 0.0, %v842
        %v844 = vpop.f32.mrf.mxu0
        %v845 = vadd.f32 0.0, %v844
        %846 = vmatprep.mubr.f32.mxu0 0.0
        %847 = vmatmul.mubr.f32.gmra.mxu0 %v379
        %v848 = vpop.f32.mrf.mxu0
        %v849 = vadd.f32 0.0, %v848
        %v850 = vpop.f32.mrf.mxu0
        %v851 = vadd.f32 0.0, %v850
        %852 = vmatprep.mubr.f32.mxu0 0.0
        %853 = vmatmul.mubr.f32.gmra.mxu0 %v382
        %v854 = vpop.f32.mrf.mxu0
        %v855 = vadd.f32 0.0, %v854
        %v856 = vpop.f32.mrf.mxu0
        %v857 = vadd.f32 0.0, %v856
        %858 = vmatprep.mubr.f32.mxu0 0.0
        %859 = vmatmul.mubr.f32.gmra.mxu0 %v385
        %v860 = vpop.f32.mrf.mxu0
        %v861 = vadd.f32 0.0, %v860
        %v862 = vpop.f32.mrf.mxu0
        %v863 = vadd.f32 0.0, %v862
        %864 = vmatprep.mubr.f32.mxu0 0.0
        %865 = vmatmul.mubr.f32.gmra.mxu0 %v388
        %v866 = vpop.f32.mrf.mxu0
        %v867 = vadd.f32 0.0, %v866
        %v868 = vpop.f32.mrf.mxu0
        %v869 = vadd.f32 0.0, %v868
        %870 = vmatprep.mubr.f32.mxu0 0.0
        %871 = vmatmul.mubr.f32.gmra.mxu0 %v391
        %v872 = vpop.f32.mrf.mxu0
        %v873 = vadd.f32 0.0, %v872
        %v874 = vpop.f32.mrf.mxu0
        %v875 = vadd.f32 0.0, %v874
        %876 = vmatprep.mubr.f32.mxu0 0.0
        %877 = vmatmul.mubr.f32.gmra.mxu0 %v394
        %v878 = vpop.f32.mrf.mxu0
        %v879 = vadd.f32 0.0, %v878
        %v880 = vpop.f32.mrf.mxu0
        %v881 = vadd.f32 0.0, %v880
        %882 = vmatprep.mubr.f32.mxu0 0.0
        %883 = vmatmul.mubr.f32.gmra.mxu0 %v397
        %v884 = vpop.f32.mrf.mxu0
        %v885 = vadd.f32 0.0, %v884
        %v886 = vpop.f32.mrf.mxu0
        %v887 = vadd.f32 0.0, %v886
        %888 = vmatprep.mubr.f32.mxu0 0.0
        %889 = vmatmul.mubr.f32.gmra.mxu0 %v400
        %v890 = vpop.f32.mrf.mxu0
        %v891 = vadd.f32 0.0, %v890
        %v892 = vpop.f32.mrf.mxu0
        %v893 = vadd.f32 0.0, %v892
        %894 = vmatprep.mubr.f32.mxu0 0.0
        %895 = vmatmul.mubr.f32.gmra.mxu0 %v403
        %v896 = vpop.f32.mrf.mxu0
        %v897 = vadd.f32 0.0, %v896
        %v898 = vpop.f32.mrf.mxu0
        %v899 = vadd.f32 0.0, %v898
        %900 = vmatprep.mubr.f32.mxu0 0.0
        %901 = vmatmul.mubr.f32.gmra.mxu0 %v406
        %v902 = vpop.f32.mrf.mxu0
        %v903 = vadd.f32 0.0, %v902
        %v904 = vpop.f32.mrf.mxu0
        %v905 = vadd.f32 0.0, %v904
        %906 = vmatprep.mubr.f32.mxu0 0.0
        %907 = vmatmul.mubr.f32.gmra.mxu0 %v409
        %v908 = vpop.f32.mrf.mxu0
        %v909 = vadd.f32 0.0, %v908
        %v910 = vpop.f32.mrf.mxu0
        %v911 = vadd.f32 0.0, %v910
        %912 = vmatprep.mubr.f32.mxu0 0.0
        %913 = vmatmul.mubr.f32.gmra.mxu0 %v412
        %v914 = vpop.f32.mrf.mxu0
        %v915 = vadd.f32 0.0, %v914
        %v916 = vpop.f32.mrf.mxu0
        %v917 = vadd.f32 0.0, %v916
        %918 = vmatprep.mubr.f32.mxu0 0.0
        %919 = vmatmul.mubr.f32.gmra.mxu0 %v415
        %v920 = vpop.f32.mrf.mxu0
        %v921 = vadd.f32 0.0, %v920
        %v922 = vpop.f32.mrf.mxu0
        %v923 = vadd.f32 0.0, %v922
        %924 = vmatprep.mubr.f32.mxu0 0.0
        %925 = vmatmul.mubr.f32.gmra.mxu0 %v418
        %v926 = vpop.f32.mrf.mxu0
        %v927 = vadd.f32 0.0, %v926
        %v928 = vpop.f32.mrf.mxu0
        %v929 = vadd.f32 0.0, %v928
        %930 = vmatprep.mubr.f32.mxu0 0.0
        %931 = vmatmul.mubr.f32.gmra.mxu0 %v421
        %v932 = vpop.f32.mrf.mxu0
        %v933 = vadd.f32 0.0, %v932
        %v934 = vpop.f32.mrf.mxu0
        %v935 = vadd.f32 0.0, %v934
        %936 = vdwg.mxu0
        %v937 = vmax.f32 %v490, 0.0
        %v938 = vmax.f32 %v492, 0.0
        %v939 = vmax.f32 %v747, 0.0
        %v940 = vmax.f32 %v749, 0.0
        %v941 = vmax.f32 %v496, 0.0
        %v942 = vmax.f32 %v498, 0.0
        %v943 = vmax.f32 %v753, 0.0
        %v944 = vmax.f32 %v755, 0.0
        %v945 = vmax.f32 %v502, 0.0
        %v946 = vmax.f32 %v504, 0.0
        %v947 = vmax.f32 %v759, 0.0
        %v948 = vmax.f32 %v761, 0.0
        %v949 = vmax.f32 %v508, 0.0
        %v950 = vmax.f32 %v510, 0.0
        %v951 = vmax.f32 %v765, 0.0
        %v952 = vmax.f32 %v767, 0.0
        %v953 = vmax.f32 %v514, 0.0
        %v954 = vmax.f32 %v516, 0.0
        %v955 = vmax.f32 %v771, 0.0
        %v956 = vmax.f32 %v773, 0.0
        %v957 = vmax.f32 %v520, 0.0
        %v958 = vmax.f32 %v522, 0.0
        %v959 = vmax.f32 %v777, 0.0
        %v960 = vmax.f32 %v779, 0.0
        %v961 = vmax.f32 %v526, 0.0
        %v962 = vmax.f32 %v528, 0.0
        %v963 = vmax.f32 %v783, 0.0
        %v964 = vmax.f32 %v785, 0.0
        %v965 = vmax.f32 %v532, 0.0
        %v966 = vmax.f32 %v534, 0.0
        %v967 = vmax.f32 %v789, 0.0
        %v968 = vmax.f32 %v791, 0.0
        %v969 = vmax.f32 %v538, 0.0
        %v970 = vmax.f32 %v540, 0.0
        %v971 = vmax.f32 %v795, 0.0
        %v972 = vmax.f32 %v797, 0.0
        %v973 = vmax.f32 %v544, 0.0
        %v974 = vmax.f32 %v546, 0.0
        %v975 = vmax.f32 %v801, 0.0
        %v976 = vmax.f32 %v803, 0.0
        %v977 = vmax.f32 %v550, 0.0
        %v978 = vmax.f32 %v552, 0.0
        %v979 = vmax.f32 %v807, 0.0
        %v980 = vmax.f32 %v809, 0.0
        %v981 = vmax.f32 %v556, 0.0
        %v982 = vmax.f32 %v558, 0.0
        %v983 = vmax.f32 %v813, 0.0
        %v984 = vmax.f32 %v815, 0.0
        %v985 = vmax.f32 %v562, 0.0
        %v986 = vmax.f32 %v564, 0.0
        %v987 = vmax.f32 %v819, 0.0
        %v988 = vmax.f32 %v821, 0.0
        %v989 = vmax.f32 %v568, 0.0
        %v990 = vmax.f32 %v570, 0.0
        %v991 = vmax.f32 %v825, 0.0
        %v992 = vmax.f32 %v827, 0.0
        %v993 = vmax.f32 %v574, 0.0
        %v994 = vmax.f32 %v576, 0.0
        %v995 = vmax.f32 %v831, 0.0
        %v996 = vmax.f32 %v833, 0.0
        %v997 = vmax.f32 %v580, 0.0
        %v998 = vmax.f32 %v582, 0.0
        %v999 = vmax.f32 %v837, 0.0
        %v1000 = vmax.f32 %v839, 0.0
        %v1001 = vmax.f32 %v586, 0.0
        %v1002 = vmax.f32 %v588, 0.0
        %v1003 = vmax.f32 %v843, 0.0
        %v1004 = vmax.f32 %v845, 0.0
        %v1005 = vmax.f32 %v592, 0.0
        %v1006 = vmax.f32 %v594, 0.0
        %v1007 = vmax.f32 %v849, 0.0
        %v1008 = vmax.f32 %v851, 0.0
        %v1009 = vmax.f32 %v598, 0.0
        %v1010 = vmax.f32 %v600, 0.0
        %v1011 = vmax.f32 %v855, 0.0
        %v1012 = vmax.f32 %v857, 0.0
        %v1013 = vmax.f32 %v604, 0.0
        %v1014 = vmax.f32 %v606, 0.0
        %v1015 = vmax.f32 %v861, 0.0
        %v1016 = vmax.f32 %v863, 0.0
        %v1017 = vmax.f32 %v610, 0.0
        %v1018 = vmax.f32 %v612, 0.0
        %v1019 = vmax.f32 %v867, 0.0
        %v1020 = vmax.f32 %v869, 0.0
        %v1021 = vmax.f32 %v616, 0.0
        %v1022 = vmax.f32 %v618, 0.0
        %v1023 = vmax.f32 %v873, 0.0
        %v1024 = vmax.f32 %v875, 0.0
        %v1025 = vmax.f32 %v622, 0.0
        %v1026 = vmax.f32 %v624, 0.0
        %v1027 = vmax.f32 %v879, 0.0
        %v1028 = vmax.f32 %v881, 0.0
        %v1029 = vmax.f32 %v628, 0.0
        %v1030 = vmax.f32 %v630, 0.0
        %v1031 = vmax.f32 %v885, 0.0
        %v1032 = vmax.f32 %v887, 0.0
        %v1033 = vmax.f32 %v634, 0.0
        %v1034 = vmax.f32 %v636, 0.0
        %v1035 = vmax.f32 %v891, 0.0
        %v1036 = vmax.f32 %v893, 0.0
        %v1037 = vmax.f32 %v640, 0.0
        %v1038 = vmax.f32 %v642, 0.0
        %v1039 = vmax.f32 %v897, 0.0
        %v1040 = vmax.f32 %v899, 0.0
        %v1041 = vmax.f32 %v646, 0.0
        %v1042 = vmax.f32 %v648, 0.0
        %v1043 = vmax.f32 %v903, 0.0
        %v1044 = vmax.f32 %v905, 0.0
        %v1045 = vmax.f32 %v652, 0.0
        %v1046 = vmax.f32 %v654, 0.0
        %v1047 = vmax.f32 %v909, 0.0
        %v1048 = vmax.f32 %v911, 0.0
        %v1049 = vmax.f32 %v658, 0.0
        %v1050 = vmax.f32 %v660, 0.0
        %v1051 = vmax.f32 %v915, 0.0
        %v1052 = vmax.f32 %v917, 0.0
        %v1053 = vmax.f32 %v664, 0.0
        %v1054 = vmax.f32 %v666, 0.0
        %v1055 = vmax.f32 %v921, 0.0
        %v1056 = vmax.f32 %v923, 0.0
        %v1057 = vmax.f32 %v670, 0.0
        %v1058 = vmax.f32 %v672, 0.0
        %v1059 = vmax.f32 %v927, 0.0
        %v1060 = vmax.f32 %v929, 0.0
        %v1061 = vmax.f32 %v676, 0.0
        %v1062 = vmax.f32 %v678, 0.0
        %v1063 = vmax.f32 %v933, 0.0
        %v1064 = vmax.f32 %v935, 0.0
        %v1065 = vpack.c.bf16 %v941, %v937
        %v1066 = vpack.c.bf16 %v942, %v938
        %v1067 = vpack.c.bf16 %v943, %v939
        %v1068 = vpack.c.bf16 %v944, %v940
        %v1069 = vpack.c.bf16 %v949, %v945
        %v1070 = vpack.c.bf16 %v950, %v946
        %v1071 = vpack.c.bf16 %v951, %v947
        %v1072 = vpack.c.bf16 %v952, %v948
        %v1073 = vpack.c.bf16 %v957, %v953
        %v1074 = vpack.c.bf16 %v958, %v954
        %v1075 = vpack.c.bf16 %v959, %v955
        %v1076 = vpack.c.bf16 %v960, %v956
        %v1077 = vpack.c.bf16 %v965, %v961
        %v1078 = vpack.c.bf16 %v966, %v962
        %v1079 = vpack.c.bf16 %v967, %v963
        %v1080 = vpack.c.bf16 %v968, %v964
        %v1081 = vpack.c.bf16 %v973, %v969
        %v1082 = vpack.c.bf16 %v974, %v970
        %v1083 = vpack.c.bf16 %v975, %v971
        %v1084 = vpack.c.bf16 %v976, %v972
        %v1085 = vpack.c.bf16 %v981, %v977
        %v1086 = vpack.c.bf16 %v982, %v978
        %v1087 = vpack.c.bf16 %v983, %v979
        %v1088 = vpack.c.bf16 %v984, %v980
        %v1089 = vpack.c.bf16 %v989, %v985
        %v1090 = vpack.c.bf16 %v990, %v986
        %v1091 = vpack.c.bf16 %v991, %v987
        %v1092 = vpack.c.bf16 %v992, %v988
        %v1093 = vpack.c.bf16 %v997, %v993
        %v1094 = vpack.c.bf16 %v998, %v994
        %v1095 = vpack.c.bf16 %v999, %v995
        %v1096 = vpack.c.bf16 %v1000, %v996
        %v1097 = vpack.c.bf16 %v1005, %v1001
        %v1098 = vpack.c.bf16 %v1006, %v1002
        %v1099 = vpack.c.bf16 %v1007, %v1003
        %v1100 = vpack.c.bf16 %v1008, %v1004
        %v1101 = vpack.c.bf16 %v1013, %v1009
        %v1102 = vpack.c.bf16 %v1014, %v1010
        %v1103 = vpack.c.bf16 %v1015, %v1011
        %v1104 = vpack.c.bf16 %v1016, %v1012
        %v1105 = vpack.c.bf16 %v1021, %v1017
        %v1106 = vpack.c.bf16 %v1022, %v1018
        %v1107 = vpack.c.bf16 %v1023, %v1019
        %v1108 = vpack.c.bf16 %v1024, %v1020
        %v1109 = vpack.c.bf16 %v1029, %v1025
        %v1110 = vpack.c.bf16 %v1030, %v1026
        %v1111 = vpack.c.bf16 %v1031, %v1027
        %v1112 = vpack.c.bf16 %v1032, %v1028
        %v1113 = vpack.c.bf16 %v1037, %v1033
        %v1114 = vpack.c.bf16 %v1038, %v1034
        %v1115 = vpack.c.bf16 %v1039, %v1035
        %v1116 = vpack.c.bf16 %v1040, %v1036
        %v1117 = vpack.c.bf16 %v1045, %v1041
        %v1118 = vpack.c.bf16 %v1046, %v1042
        %v1119 = vpack.c.bf16 %v1047, %v1043
        %v1120 = vpack.c.bf16 %v1048, %v1044
        %v1121 = vpack.c.bf16 %v1053, %v1049
        %v1122 = vpack.c.bf16 %v1054, %v1050
        %v1123 = vpack.c.bf16 %v1055, %v1051
        %v1124 = vpack.c.bf16 %v1056, %v1052
        %v1125 = vpack.c.bf16 %v1061, %v1057
        %v1126 = vpack.c.bf16 %v1062, %v1058
        %v1127 = vpack.c.bf16 %v1063, %v1059
        %v1128 = vpack.c.bf16 %v1064, %v1060
        %v1129 = vld [vmem:[#allocation2] sm:$0xff]
        %v1130 = vld [vmem:[#allocation2 + $0x8] sm:$0xff]
        %v1131 = vld [vmem:[#allocation2 + $0x10] sm:$0xff]
        %v1132 = vld [vmem:[#allocation2 + $0x18] sm:$0xff]
        %v1133 = vld [vmem:[#allocation2 + $0x20] sm:$0xff]
        %v1134 = vld [vmem:[#allocation2 + $0x28] sm:$0xff]
        %v1135 = vld [vmem:[#allocation2 + $0x30] sm:$0xff]
        %v1136 = vld [vmem:[#allocation2 + $0x38] sm:$0xff]
        %v1137 = vld [vmem:[#allocation2 + $0x40] sm:$0xff]
        %v1138 = vld [vmem:[#allocation2 + $0x48] sm:$0xff]
        %v1139 = vld [vmem:[#allocation2 + $0x50] sm:$0xff]
        %v1140 = vld [vmem:[#allocation2 + $0x58] sm:$0xff]
        %v1141 = vld [vmem:[#allocation2 + $0x60] sm:$0xff]
        %v1142 = vld [vmem:[#allocation2 + $0x68] sm:$0xff]
        %v1143 = vld [vmem:[#allocation2 + $0x70] sm:$0xff]
        %v1144 = vld [vmem:[#allocation2 + $0x78] sm:$0xff]
        %v1145 = vld [vmem:[#allocation2 + $0x80] sm:$0xff]
        %v1146 = vld [vmem:[#allocation2 + $0x88] sm:$0xff]
        %v1147 = vld [vmem:[#allocation2 + $0x90] sm:$0xff]
        %v1148 = vld [vmem:[#allocation2 + $0x98] sm:$0xff]
        %v1149 = vld [vmem:[#allocation2 + $0xa0] sm:$0xff]
        %v1150 = vld [vmem:[#allocation2 + $0xa8] sm:$0xff]
        %v1151 = vld [vmem:[#allocation2 + $0xb0] sm:$0xff]
        %v1152 = vld [vmem:[#allocation2 + $0xb8] sm:$0xff]
        %v1153 = vld [vmem:[#allocation2 + $0xc0] sm:$0xff]
        %v1154 = vld [vmem:[#allocation2 + $0xc8] sm:$0xff]
        %v1155 = vld [vmem:[#allocation2 + $0xd0] sm:$0xff]
        %v1156 = vld [vmem:[#allocation2 + $0xd8] sm:$0xff]
        %v1157 = vld [vmem:[#allocation2 + $0xe0] sm:$0xff]
        %v1158 = vld [vmem:[#allocation2 + $0xe8] sm:$0xff]
        %v1159 = vld [vmem:[#allocation2 + $0xf0] sm:$0xff]
        %v1160 = vld [vmem:[#allocation2 + $0xf8] sm:$0xff]
        %v1161 = vld [vmem:[#allocation2 + $0x100] sm:$0xff]
        %v1162 = vld [vmem:[#allocation2 + $0x108] sm:$0xff]
        %v1163 = vld [vmem:[#allocation2 + $0x110] sm:$0xff]
        %v1164 = vld [vmem:[#allocation2 + $0x118] sm:$0xff]
        %v1165 = vld [vmem:[#allocation2 + $0x120] sm:$0xff]
        %v1166 = vld [vmem:[#allocation2 + $0x128] sm:$0xff]
        %v1167 = vld [vmem:[#allocation2 + $0x130] sm:$0xff]
        %v1168 = vld [vmem:[#allocation2 + $0x138] sm:$0xff]
        %v1169 = vld [vmem:[#allocation2 + $0x140] sm:$0xff]
        %v1170 = vld [vmem:[#allocation2 + $0x148] sm:$0xff]
        %v1171 = vld [vmem:[#allocation2 + $0x150] sm:$0xff]
        %v1172 = vld [vmem:[#allocation2 + $0x158] sm:$0xff]
        %v1173 = vld [vmem:[#allocation2 + $0x160] sm:$0xff]
        %v1174 = vld [vmem:[#allocation2 + $0x168] sm:$0xff]
        %v1175 = vld [vmem:[#allocation2 + $0x170] sm:$0xff]
        %v1176 = vld [vmem:[#allocation2 + $0x178] sm:$0xff]
        %v1177 = vld [vmem:[#allocation2 + $0x180] sm:$0xff]
        %v1178 = vld [vmem:[#allocation2 + $0x188] sm:$0xff]
        %v1179 = vld [vmem:[#allocation2 + $0x190] sm:$0xff]
        %v1180 = vld [vmem:[#allocation2 + $0x198] sm:$0xff]
        %v1181 = vld [vmem:[#allocation2 + $0x1a0] sm:$0xff]
        %v1182 = vld [vmem:[#allocation2 + $0x1a8] sm:$0xff]
        %v1183 = vld [vmem:[#allocation2 + $0x1b0] sm:$0xff]
        %v1184 = vld [vmem:[#allocation2 + $0x1b8] sm:$0xff]
        %v1185 = vld [vmem:[#allocation2 + $0x1c0] sm:$0xff]
        %v1186 = vld [vmem:[#allocation2 + $0x1c8] sm:$0xff]
        %v1187 = vld [vmem:[#allocation2 + $0x1d0] sm:$0xff]
        %v1188 = vld [vmem:[#allocation2 + $0x1d8] sm:$0xff]
        %v1189 = vld [vmem:[#allocation2 + $0x1e0] sm:$0xff]
        %v1190 = vld [vmem:[#allocation2 + $0x1e8] sm:$0xff]
        %v1191 = vld [vmem:[#allocation2 + $0x1f0] sm:$0xff]
        %v1192 = vld [vmem:[#allocation2 + $0x1f8] sm:$0xff]
        %v1193 = vld [vmem:[#allocation3] sm:$0xff]
        %v1194 = vld [vmem:[#allocation3 + $0x8] sm:$0xff]
        %v1195 = vld [vmem:[#allocation3 + $0x10] sm:$0xff]
        %v1196 = vld [vmem:[#allocation3 + $0x18] sm:$0xff]
        %v1197 = vld [vmem:[#allocation3 + $0x20] sm:$0xff]
        %v1198 = vld [vmem:[#allocation3 + $0x28] sm:$0xff]
        %v1199 = vld [vmem:[#allocation3 + $0x30] sm:$0xff]
        %v1200 = vld [vmem:[#allocation3 + $0x38] sm:$0xff]
        %v1201 = vld [vmem:[#allocation3 + $0x40] sm:$0xff]
        %v1202 = vld [vmem:[#allocation3 + $0x48] sm:$0xff]
        %v1203 = vld [vmem:[#allocation3 + $0x50] sm:$0xff]
        %v1204 = vld [vmem:[#allocation3 + $0x58] sm:$0xff]
        %v1205 = vld [vmem:[#allocation3 + $0x60] sm:$0xff]
        %v1206 = vld [vmem:[#allocation3 + $0x68] sm:$0xff]
        %v1207 = vld [vmem:[#allocation3 + $0x70] sm:$0xff]
        %v1208 = vld [vmem:[#allocation3 + $0x78] sm:$0xff]
        %v1209 = vld [vmem:[#allocation3 + $0x80] sm:$0xff]
        %v1210 = vld [vmem:[#allocation3 + $0x88] sm:$0xff]
        %v1211 = vld [vmem:[#allocation3 + $0x90] sm:$0xff]
        %v1212 = vld [vmem:[#allocation3 + $0x98] sm:$0xff]
        %v1213 = vld [vmem:[#allocation3 + $0xa0] sm:$0xff]
        %v1214 = vld [vmem:[#allocation3 + $0xa8] sm:$0xff]
        %v1215 = vld [vmem:[#allocation3 + $0xb0] sm:$0xff]
        %v1216 = vld [vmem:[#allocation3 + $0xb8] sm:$0xff]
        %v1217 = vld [vmem:[#allocation3 + $0xc0] sm:$0xff]
        %v1218 = vld [vmem:[#allocation3 + $0xc8] sm:$0xff]
        %v1219 = vld [vmem:[#allocation3 + $0xd0] sm:$0xff]
        %v1220 = vld [vmem:[#allocation3 + $0xd8] sm:$0xff]
        %v1221 = vld [vmem:[#allocation3 + $0xe0] sm:$0xff]
        %v1222 = vld [vmem:[#allocation3 + $0xe8] sm:$0xff]
        %v1223 = vld [vmem:[#allocation3 + $0xf0] sm:$0xff]
        %v1224 = vld [vmem:[#allocation3 + $0xf8] sm:$0xff]
        %v1225 = vld [vmem:[#allocation3 + $0x100] sm:$0xff]
        %v1226 = vld [vmem:[#allocation3 + $0x108] sm:$0xff]
        %v1227 = vld [vmem:[#allocation3 + $0x110] sm:$0xff]
        %v1228 = vld [vmem:[#allocation3 + $0x118] sm:$0xff]
        %v1229 = vld [vmem:[#allocation3 + $0x120] sm:$0xff]
        %v1230 = vld [vmem:[#allocation3 + $0x128] sm:$0xff]
        %v1231 = vld [vmem:[#allocation3 + $0x130] sm:$0xff]
        %v1232 = vld [vmem:[#allocation3 + $0x138] sm:$0xff]
        %v1233 = vld [vmem:[#allocation3 + $0x140] sm:$0xff]
        %v1234 = vld [vmem:[#allocation3 + $0x148] sm:$0xff]
        %v1235 = vld [vmem:[#allocation3 + $0x150] sm:$0xff]
        %v1236 = vld [vmem:[#allocation3 + $0x158] sm:$0xff]
        %v1237 = vld [vmem:[#allocation3 + $0x160] sm:$0xff]
        %v1238 = vld [vmem:[#allocation3 + $0x168] sm:$0xff]
        %v1239 = vld [vmem:[#allocation3 + $0x170] sm:$0xff]
        %v1240 = vld [vmem:[#allocation3 + $0x178] sm:$0xff]
        %v1241 = vld [vmem:[#allocation3 + $0x180] sm:$0xff]
        %v1242 = vld [vmem:[#allocation3 + $0x188] sm:$0xff]
        %v1243 = vld [vmem:[#allocation3 + $0x190] sm:$0xff]
        %v1244 = vld [vmem:[#allocation3 + $0x198] sm:$0xff]
        %v1245 = vld [vmem:[#allocation3 + $0x1a0] sm:$0xff]
        %v1246 = vld [vmem:[#allocation3 + $0x1a8] sm:$0xff]
        %v1247 = vld [vmem:[#allocation3 + $0x1b0] sm:$0xff]
        %v1248 = vld [vmem:[#allocation3 + $0x1b8] sm:$0xff]
        %v1249 = vld [vmem:[#allocation3 + $0x1c0] sm:$0xff]
        %v1250 = vld [vmem:[#allocation3 + $0x1c8] sm:$0xff]
        %v1251 = vld [vmem:[#allocation3 + $0x1d0] sm:$0xff]
        %v1252 = vld [vmem:[#allocation3 + $0x1d8] sm:$0xff]
        %v1253 = vld [vmem:[#allocation3 + $0x1e0] sm:$0xff]
        %v1254 = vld [vmem:[#allocation3 + $0x1e8] sm:$0xff]
        %v1255 = vld [vmem:[#allocation3 + $0x1f0] sm:$0xff]
        %v1256 = vld [vmem:[#allocation3 + $0x1f8] sm:$0xff]
        %v1321 = vunpack.c.l.b16 %v1193
        %v1322 = vunpack.c.h.b16 %v1193
        %v1323 = vunpack.c.l.b16 %v1194
        %v1324 = vunpack.c.h.b16 %v1194
        %v1325 = vunpack.c.l.b16 %v1195
        %v1326 = vunpack.c.h.b16 %v1195
        %v1327 = vunpack.c.l.b16 %v1196
        %v1328 = vunpack.c.h.b16 %v1196
        %v1329 = vunpack.c.l.b16 %v1197
        %v1330 = vunpack.c.h.b16 %v1197
        %v1331 = vunpack.c.l.b16 %v1198
        %v1332 = vunpack.c.h.b16 %v1198
        %v1333 = vunpack.c.l.b16 %v1199
        %v1334 = vunpack.c.h.b16 %v1199
        %v1335 = vunpack.c.l.b16 %v1200
        %v1336 = vunpack.c.h.b16 %v1200
        %v1337 = vunpack.c.l.b16 %v1201
        %v1338 = vunpack.c.h.b16 %v1201
        %v1339 = vunpack.c.l.b16 %v1202
        %v1340 = vunpack.c.h.b16 %v1202
        %v1341 = vunpack.c.l.b16 %v1203
        %v1342 = vunpack.c.h.b16 %v1203
        %v1343 = vunpack.c.l.b16 %v1204
        %v1344 = vunpack.c.h.b16 %v1204
        %v1345 = vunpack.c.l.b16 %v1205
        %v1346 = vunpack.c.h.b16 %v1205
        %v1347 = vunpack.c.l.b16 %v1206
        %v1348 = vunpack.c.h.b16 %v1206
        %v1349 = vunpack.c.l.b16 %v1207
        %v1350 = vunpack.c.h.b16 %v1207
        %v1351 = vunpack.c.l.b16 %v1208
        %v1352 = vunpack.c.h.b16 %v1208
        %v1353 = vunpack.c.l.b16 %v1209
        %v1354 = vunpack.c.h.b16 %v1209
        %v1355 = vunpack.c.l.b16 %v1210
        %v1356 = vunpack.c.h.b16 %v1210
        %v1357 = vunpack.c.l.b16 %v1211
        %v1358 = vunpack.c.h.b16 %v1211
        %v1359 = vunpack.c.l.b16 %v1212
        %v1360 = vunpack.c.h.b16 %v1212
        %v1361 = vunpack.c.l.b16 %v1213
        %v1362 = vunpack.c.h.b16 %v1213
        %v1363 = vunpack.c.l.b16 %v1214
        %v1364 = vunpack.c.h.b16 %v1214
        %v1365 = vunpack.c.l.b16 %v1215
        %v1366 = vunpack.c.h.b16 %v1215
        %v1367 = vunpack.c.l.b16 %v1216
        %v1368 = vunpack.c.h.b16 %v1216
        %v1369 = vunpack.c.l.b16 %v1217
        %v1370 = vunpack.c.h.b16 %v1217
        %v1371 = vunpack.c.l.b16 %v1218
        %v1372 = vunpack.c.h.b16 %v1218
        %v1373 = vunpack.c.l.b16 %v1219
        %v1374 = vunpack.c.h.b16 %v1219
        %v1375 = vunpack.c.l.b16 %v1220
        %v1376 = vunpack.c.h.b16 %v1220
        %v1377 = vunpack.c.l.b16 %v1221
        %v1378 = vunpack.c.h.b16 %v1221
        %v1379 = vunpack.c.l.b16 %v1222
        %v1380 = vunpack.c.h.b16 %v1222
        %v1381 = vunpack.c.l.b16 %v1223
        %v1382 = vunpack.c.h.b16 %v1223
        %v1383 = vunpack.c.l.b16 %v1224
        %v1384 = vunpack.c.h.b16 %v1224
        %v1385 = vunpack.c.l.b16 %v1225
        %v1386 = vunpack.c.h.b16 %v1225
        %v1387 = vunpack.c.l.b16 %v1226
        %v1388 = vunpack.c.h.b16 %v1226
        %v1389 = vunpack.c.l.b16 %v1227
        %v1390 = vunpack.c.h.b16 %v1227
        %v1391 = vunpack.c.l.b16 %v1228
        %v1392 = vunpack.c.h.b16 %v1228
        %v1393 = vunpack.c.l.b16 %v1229
        %v1394 = vunpack.c.h.b16 %v1229
        %v1395 = vunpack.c.l.b16 %v1230
        %v1396 = vunpack.c.h.b16 %v1230
        %v1397 = vunpack.c.l.b16 %v1231
        %v1398 = vunpack.c.h.b16 %v1231
        %v1399 = vunpack.c.l.b16 %v1232
        %v1400 = vunpack.c.h.b16 %v1232
        %v1401 = vunpack.c.l.b16 %v1233
        %v1402 = vunpack.c.h.b16 %v1233
        %v1403 = vunpack.c.l.b16 %v1234
        %v1404 = vunpack.c.h.b16 %v1234
        %v1405 = vunpack.c.l.b16 %v1235
        %v1406 = vunpack.c.h.b16 %v1235
        %v1407 = vunpack.c.l.b16 %v1236
        %v1408 = vunpack.c.h.b16 %v1236
        %v1409 = vunpack.c.l.b16 %v1237
        %v1410 = vunpack.c.h.b16 %v1237
        %v1411 = vunpack.c.l.b16 %v1238
        %v1412 = vunpack.c.h.b16 %v1238
        %v1413 = vunpack.c.l.b16 %v1239
        %v1414 = vunpack.c.h.b16 %v1239
        %v1415 = vunpack.c.l.b16 %v1240
        %v1416 = vunpack.c.h.b16 %v1240
        %v1417 = vunpack.c.l.b16 %v1241
        %v1418 = vunpack.c.h.b16 %v1241
        %v1419 = vunpack.c.l.b16 %v1242
        %v1420 = vunpack.c.h.b16 %v1242
        %v1421 = vunpack.c.l.b16 %v1243
        %v1422 = vunpack.c.h.b16 %v1243
        %v1423 = vunpack.c.l.b16 %v1244
        %v1424 = vunpack.c.h.b16 %v1244
        %v1425 = vunpack.c.l.b16 %v1245
        %v1426 = vunpack.c.h.b16 %v1245
        %v1427 = vunpack.c.l.b16 %v1246
        %v1428 = vunpack.c.h.b16 %v1246
        %v1429 = vunpack.c.l.b16 %v1247
        %v1430 = vunpack.c.h.b16 %v1247
        %v1431 = vunpack.c.l.b16 %v1248
        %v1432 = vunpack.c.h.b16 %v1248
        %v1433 = vunpack.c.l.b16 %v1249
        %v1434 = vunpack.c.h.b16 %v1249
        %v1435 = vunpack.c.l.b16 %v1250
        %v1436 = vunpack.c.h.b16 %v1250
        %v1437 = vunpack.c.l.b16 %v1251
        %v1438 = vunpack.c.h.b16 %v1251
        %v1439 = vunpack.c.l.b16 %v1252
        %v1440 = vunpack.c.h.b16 %v1252
        %v1441 = vunpack.c.l.b16 %v1253
        %v1442 = vunpack.c.h.b16 %v1253
        %v1443 = vunpack.c.l.b16 %v1254
        %v1444 = vunpack.c.h.b16 %v1254
        %v1445 = vunpack.c.l.b16 %v1255
        %v1446 = vunpack.c.h.b16 %v1255
        %v1447 = vunpack.c.l.b16 %v1256
        %v1448 = vunpack.c.h.b16 %v1256
        %v1449 = vpack.c.b16 %v1323, %v1321
        %v1450 = vpack.c.b16 %v1324, %v1322
        %v1451 = vpack.c.b16 %v1327, %v1325
        %v1452 = vpack.c.b16 %v1328, %v1326
        %v1453 = vpack.c.b16 %v1331, %v1329
        %v1454 = vpack.c.b16 %v1332, %v1330
        %v1455 = vpack.c.b16 %v1335, %v1333
        %v1456 = vpack.c.b16 %v1336, %v1334
        %v1457 = vpack.c.b16 %v1339, %v1337
        %v1458 = vpack.c.b16 %v1340, %v1338
        %v1459 = vpack.c.b16 %v1343, %v1341
        %v1460 = vpack.c.b16 %v1344, %v1342
        %v1461 = vpack.c.b16 %v1347, %v1345
        %v1462 = vpack.c.b16 %v1348, %v1346
        %v1463 = vpack.c.b16 %v1351, %v1349
        %v1464 = vpack.c.b16 %v1352, %v1350
        %v1465 = vpack.c.b16 %v1355, %v1353
        %v1466 = vpack.c.b16 %v1356, %v1354
        %v1467 = vpack.c.b16 %v1359, %v1357
        %v1468 = vpack.c.b16 %v1360, %v1358
        %v1469 = vpack.c.b16 %v1363, %v1361
        %v1470 = vpack.c.b16 %v1364, %v1362
        %v1471 = vpack.c.b16 %v1367, %v1365
        %v1472 = vpack.c.b16 %v1368, %v1366
        %v1473 = vpack.c.b16 %v1371, %v1369
        %v1474 = vpack.c.b16 %v1372, %v1370
        %v1475 = vpack.c.b16 %v1375, %v1373
        %v1476 = vpack.c.b16 %v1376, %v1374
        %v1477 = vpack.c.b16 %v1379, %v1377
        %v1478 = vpack.c.b16 %v1380, %v1378
        %v1479 = vpack.c.b16 %v1383, %v1381
        %v1480 = vpack.c.b16 %v1384, %v1382
        %v1481 = vpack.c.b16 %v1387, %v1385
        %v1482 = vpack.c.b16 %v1388, %v1386
        %v1483 = vpack.c.b16 %v1391, %v1389
        %v1484 = vpack.c.b16 %v1392, %v1390
        %v1485 = vpack.c.b16 %v1395, %v1393
        %v1486 = vpack.c.b16 %v1396, %v1394
        %v1487 = vpack.c.b16 %v1399, %v1397
        %v1488 = vpack.c.b16 %v1400, %v1398
        %v1489 = vpack.c.b16 %v1403, %v1401
        %v1490 = vpack.c.b16 %v1404, %v1402
        %v1491 = vpack.c.b16 %v1407, %v1405
        %v1492 = vpack.c.b16 %v1408, %v1406
        %v1493 = vpack.c.b16 %v1411, %v1409
        %v1494 = vpack.c.b16 %v1412, %v1410
        %v1495 = vpack.c.b16 %v1415, %v1413
        %v1496 = vpack.c.b16 %v1416, %v1414
        %v1497 = vpack.c.b16 %v1419, %v1417
        %v1498 = vpack.c.b16 %v1420, %v1418
        %v1499 = vpack.c.b16 %v1423, %v1421
        %v1500 = vpack.c.b16 %v1424, %v1422
        %v1501 = vpack.c.b16 %v1427, %v1425
        %v1502 = vpack.c.b16 %v1428, %v1426
        %v1503 = vpack.c.b16 %v1431, %v1429
        %v1504 = vpack.c.b16 %v1432, %v1430
        %v1505 = vpack.c.b16 %v1435, %v1433
        %v1506 = vpack.c.b16 %v1436, %v1434
        %v1507 = vpack.c.b16 %v1439, %v1437
        %v1508 = vpack.c.b16 %v1440, %v1438
        %v1509 = vpack.c.b16 %v1443, %v1441
        %v1510 = vpack.c.b16 %v1444, %v1442
        %v1511 = vpack.c.b16 %v1447, %v1445
        %v1512 = vpack.c.b16 %v1448, %v1446
        %1577 = vmatprep.subr.bf16.mxu0 %v1464
        %1578 = vmatpush1.bf16.msra.mxu0 %v1463
        %1579 = vmatprep.subr.bf16.mxu0 %v1462
        %1580 = vmatpush1.bf16.msra.mxu0 %v1461
        %1581 = vmatprep.subr.bf16.mxu0 %v1460
        %1582 = vmatpush1.bf16.msra.mxu0 %v1459
        %1583 = vmatprep.subr.bf16.mxu0 %v1458
        %1584 = vmatpush1.bf16.msra.mxu0 %v1457
        %1585 = vmatprep.subr.bf16.mxu0 %v1456
        %1586 = vmatpush1.bf16.msra.mxu0 %v1455
        %1587 = vmatprep.subr.bf16.mxu0 %v1454
        %1588 = vmatpush1.bf16.msra.mxu0 %v1453
        %1589 = vmatprep.subr.bf16.mxu0 %v1452
        %1590 = vmatpush1.bf16.msra.mxu0 %v1451
        %1591 = vmatprep.subr.bf16.mxu0 %v1450
        %1592 = vmatpush1.bf16.msra.mxu0 %v1449
        %1593 = vmatprep.subr.bf16.mxu0 %v1480
        %1594 = vmatpush2.bf16.msra.mxu0 %v1479
        %1595 = vmatprep.subr.bf16.mxu0 %v1478
        %1596 = vmatpush2.bf16.msra.mxu0 %v1477
        %1597 = vmatprep.subr.bf16.mxu0 %v1476
        %1598 = vmatpush2.bf16.msra.mxu0 %v1475
        %1599 = vmatprep.subr.bf16.mxu0 %v1474
        %1600 = vmatpush2.bf16.msra.mxu0 %v1473
        %1601 = vmatprep.subr.bf16.mxu0 %v1472
        %1602 = vmatpush2.bf16.msra.mxu0 %v1471
        %1603 = vmatprep.subr.bf16.mxu0 %v1470
        %1604 = vmatpush2.bf16.msra.mxu0 %v1469
        %1605 = vmatprep.subr.bf16.mxu0 %v1468
        %1606 = vmatpush2.bf16.msra.mxu0 %v1467
        %1607 = vmatprep.subr.bf16.mxu0 %v1466
        %1608 = vmatpush2.bf16.msra.mxu0 %v1465
        %1609 = vmatprep.mubr.bf16.mxu0 %v1066
        %1610 = vmatmul.mubr.bf16.gmra.mxu0 %v1065
        %v1611 = vpop.f32.mrf.mxu0
        %v1612 = vadd.f32 0.0, %v1611
        %v1613 = vpop.f32.mrf.mxu0
        %v1614 = vadd.f32 0.0, %v1613
        %v1615 = vpop.f32.mrf.mxu0
        %v1616 = vadd.f32 0.0, %v1615
        %v1617 = vpop.f32.mrf.mxu0
        %v1618 = vadd.f32 0.0, %v1617
        %1619 = vmatprep.mubr.bf16.mxu0 %v1070
        %1620 = vmatmul.mubr.bf16.gmra.mxu0 %v1069
        %v1621 = vpop.f32.mrf.mxu0
        %v1622 = vadd.f32 0.0, %v1621
        %v1623 = vpop.f32.mrf.mxu0
        %v1624 = vadd.f32 0.0, %v1623
        %v1625 = vpop.f32.mrf.mxu0
        %v1626 = vadd.f32 0.0, %v1625
        %v1627 = vpop.f32.mrf.mxu0
        %v1628 = vadd.f32 0.0, %v1627
        %1629 = vmatprep.mubr.bf16.mxu0 %v1074
        %1630 = vmatmul.mubr.bf16.gmra.mxu0 %v1073
        %v1631 = vpop.f32.mrf.mxu0
        %v1632 = vadd.f32 0.0, %v1631
        %v1633 = vpop.f32.mrf.mxu0
        %v1634 = vadd.f32 0.0, %v1633
        %v1635 = vpop.f32.mrf.mxu0
        %v1636 = vadd.f32 0.0, %v1635
        %v1637 = vpop.f32.mrf.mxu0
        %v1638 = vadd.f32 0.0, %v1637
        %1639 = vmatprep.mubr.bf16.mxu0 %v1078
        %1640 = vmatmul.mubr.bf16.gmra.mxu0 %v1077
        %v1641 = vpop.f32.mrf.mxu0
        %v1642 = vadd.f32 0.0, %v1641
        %v1643 = vpop.f32.mrf.mxu0
        %v1644 = vadd.f32 0.0, %v1643
        %v1645 = vpop.f32.mrf.mxu0
        %v1646 = vadd.f32 0.0, %v1645
        %v1647 = vpop.f32.mrf.mxu0
        %v1648 = vadd.f32 0.0, %v1647
        %1649 = vmatprep.mubr.bf16.mxu0 %v1082
        %1650 = vmatmul.mubr.bf16.gmra.mxu0 %v1081
        %v1651 = vpop.f32.mrf.mxu0
        %v1652 = vadd.f32 0.0, %v1651
        %v1653 = vpop.f32.mrf.mxu0
        %v1654 = vadd.f32 0.0, %v1653
        %v1655 = vpop.f32.mrf.mxu0
        %v1656 = vadd.f32 0.0, %v1655
        %v1657 = vpop.f32.mrf.mxu0
        %v1658 = vadd.f32 0.0, %v1657
        %1659 = vmatprep.mubr.bf16.mxu0 %v1086
        %1660 = vmatmul.mubr.bf16.gmra.mxu0 %v1085
        %v1661 = vpop.f32.mrf.mxu0
        %v1662 = vadd.f32 0.0, %v1661
        %v1663 = vpop.f32.mrf.mxu0
        %v1664 = vadd.f32 0.0, %v1663
        %v1665 = vpop.f32.mrf.mxu0
        %v1666 = vadd.f32 0.0, %v1665
        %v1667 = vpop.f32.mrf.mxu0
        %v1668 = vadd.f32 0.0, %v1667
        %1669 = vmatprep.mubr.bf16.mxu0 %v1090
        %1670 = vmatmul.mubr.bf16.gmra.mxu0 %v1089
        %v1671 = vpop.f32.mrf.mxu0
        %v1672 = vadd.f32 0.0, %v1671
        %v1673 = vpop.f32.mrf.mxu0
        %v1674 = vadd.f32 0.0, %v1673
        %v1675 = vpop.f32.mrf.mxu0
        %v1676 = vadd.f32 0.0, %v1675
        %v1677 = vpop.f32.mrf.mxu0
        %v1678 = vadd.f32 0.0, %v1677
        %1679 = vmatprep.mubr.bf16.mxu0 %v1094
        %1680 = vmatmul.mubr.bf16.gmra.mxu0 %v1093
        %v1681 = vpop.f32.mrf.mxu0
        %v1682 = vadd.f32 0.0, %v1681
        %v1683 = vpop.f32.mrf.mxu0
        %v1684 = vadd.f32 0.0, %v1683
        %v1685 = vpop.f32.mrf.mxu0
        %v1686 = vadd.f32 0.0, %v1685
        %v1687 = vpop.f32.mrf.mxu0
        %v1688 = vadd.f32 0.0, %v1687
        %1689 = vmatprep.mubr.bf16.mxu0 %v1098
        %1690 = vmatmul.mubr.bf16.gmra.mxu0 %v1097
        %v1691 = vpop.f32.mrf.mxu0
        %v1692 = vadd.f32 0.0, %v1691
        %v1693 = vpop.f32.mrf.mxu0
        %v1694 = vadd.f32 0.0, %v1693
        %v1695 = vpop.f32.mrf.mxu0
        %v1696 = vadd.f32 0.0, %v1695
        %v1697 = vpop.f32.mrf.mxu0
        %v1698 = vadd.f32 0.0, %v1697
        %1699 = vmatprep.mubr.bf16.mxu0 %v1102
        %1700 = vmatmul.mubr.bf16.gmra.mxu0 %v1101
        %v1701 = vpop.f32.mrf.mxu0
        %v1702 = vadd.f32 0.0, %v1701
        %v1703 = vpop.f32.mrf.mxu0
        %v1704 = vadd.f32 0.0, %v1703
        %v1705 = vpop.f32.mrf.mxu0
        %v1706 = vadd.f32 0.0, %v1705
        %v1707 = vpop.f32.mrf.mxu0
        %v1708 = vadd.f32 0.0, %v1707
        %1709 = vmatprep.mubr.bf16.mxu0 %v1106
        %1710 = vmatmul.mubr.bf16.gmra.mxu0 %v1105
        %v1711 = vpop.f32.mrf.mxu0
        %v1712 = vadd.f32 0.0, %v1711
        %v1713 = vpop.f32.mrf.mxu0
        %v1714 = vadd.f32 0.0, %v1713
        %v1715 = vpop.f32.mrf.mxu0
        %v1716 = vadd.f32 0.0, %v1715
        %v1717 = vpop.f32.mrf.mxu0
        %v1718 = vadd.f32 0.0, %v1717
        %1719 = vmatprep.mubr.bf16.mxu0 %v1110
        %1720 = vmatmul.mubr.bf16.gmra.mxu0 %v1109
        %v1721 = vpop.f32.mrf.mxu0
        %v1722 = vadd.f32 0.0, %v1721
        %v1723 = vpop.f32.mrf.mxu0
        %v1724 = vadd.f32 0.0, %v1723
        %v1725 = vpop.f32.mrf.mxu0
        %v1726 = vadd.f32 0.0, %v1725
        %v1727 = vpop.f32.mrf.mxu0
        %v1728 = vadd.f32 0.0, %v1727
        %1729 = vmatprep.mubr.bf16.mxu0 %v1114
        %1730 = vmatmul.mubr.bf16.gmra.mxu0 %v1113
        %v1731 = vpop.f32.mrf.mxu0
        %v1732 = vadd.f32 0.0, %v1731
        %v1733 = vpop.f32.mrf.mxu0
        %v1734 = vadd.f32 0.0, %v1733
        %v1735 = vpop.f32.mrf.mxu0
        %v1736 = vadd.f32 0.0, %v1735
        %v1737 = vpop.f32.mrf.mxu0
        %v1738 = vadd.f32 0.0, %v1737
        %1739 = vmatprep.mubr.bf16.mxu0 %v1118
        %1740 = vmatmul.mubr.bf16.gmra.mxu0 %v1117
        %v1741 = vpop.f32.mrf.mxu0
        %v1742 = vadd.f32 0.0, %v1741
        %v1743 = vpop.f32.mrf.mxu0
        %v1744 = vadd.f32 0.0, %v1743
        %v1745 = vpop.f32.mrf.mxu0
        %v1746 = vadd.f32 0.0, %v1745
        %v1747 = vpop.f32.mrf.mxu0
        %v1748 = vadd.f32 0.0, %v1747
        %1749 = vmatprep.mubr.bf16.mxu0 %v1122
        %1750 = vmatmul.mubr.bf16.gmra.mxu0 %v1121
        %v1751 = vpop.f32.mrf.mxu0
        %v1752 = vadd.f32 0.0, %v1751
        %v1753 = vpop.f32.mrf.mxu0
        %v1754 = vadd.f32 0.0, %v1753
        %v1755 = vpop.f32.mrf.mxu0
        %v1756 = vadd.f32 0.0, %v1755
        %v1757 = vpop.f32.mrf.mxu0
        %v1758 = vadd.f32 0.0, %v1757
        %1759 = vmatprep.mubr.bf16.mxu0 %v1126
        %1760 = vmatmul.mubr.bf16.gmra.mxu0 %v1125
        %v1761 = vpop.f32.mrf.mxu0
        %v1762 = vadd.f32 0.0, %v1761
        %v1763 = vpop.f32.mrf.mxu0
        %v1764 = vadd.f32 0.0, %v1763
        %v1765 = vpop.f32.mrf.mxu0
        %v1766 = vadd.f32 0.0, %v1765
        %v1767 = vpop.f32.mrf.mxu0
        %v1768 = vadd.f32 0.0, %v1767
        %1769 = vdwg.mxu0
        %1770 = vmatprep.subr.bf16.mxu0 %v1496
        %1771 = vmatpush1.bf16.msra.mxu0 %v1495
        %1772 = vmatprep.subr.bf16.mxu0 %v1494
        %1773 = vmatpush1.bf16.msra.mxu0 %v1493
        %1774 = vmatprep.subr.bf16.mxu0 %v1492
        %1775 = vmatpush1.bf16.msra.mxu0 %v1491
        %1776 = vmatprep.subr.bf16.mxu0 %v1490
        %1777 = vmatpush1.bf16.msra.mxu0 %v1489
        %1778 = vmatprep.subr.bf16.mxu0 %v1488
        %1779 = vmatpush1.bf16.msra.mxu0 %v1487
        %1780 = vmatprep.subr.bf16.mxu0 %v1486
        %1781 = vmatpush1.bf16.msra.mxu0 %v1485
        %1782 = vmatprep.subr.bf16.mxu0 %v1484
        %1783 = vmatpush1.bf16.msra.mxu0 %v1483
        %1784 = vmatprep.subr.bf16.mxu0 %v1482
        %1785 = vmatpush1.bf16.msra.mxu0 %v1481
        %1786 = vmatprep.subr.bf16.mxu0 %v1512
        %1787 = vmatpush2.bf16.msra.mxu0 %v1511
        %1788 = vmatprep.subr.bf16.mxu0 %v1510
        %1789 = vmatpush2.bf16.msra.mxu0 %v1509
        %1790 = vmatprep.subr.bf16.mxu0 %v1508
        %1791 = vmatpush2.bf16.msra.mxu0 %v1507
        %1792 = vmatprep.subr.bf16.mxu0 %v1506
        %1793 = vmatpush2.bf16.msra.mxu0 %v1505
        %1794 = vmatprep.subr.bf16.mxu0 %v1504
        %1795 = vmatpush2.bf16.msra.mxu0 %v1503
        %1796 = vmatprep.subr.bf16.mxu0 %v1502
        %1797 = vmatpush2.bf16.msra.mxu0 %v1501
        %1798 = vmatprep.subr.bf16.mxu0 %v1500
        %1799 = vmatpush2.bf16.msra.mxu0 %v1499
        %1800 = vmatprep.subr.bf16.mxu0 %v1498
        %1801 = vmatpush2.bf16.msra.mxu0 %v1497
        %1802 = vmatprep.mubr.bf16.mxu0 %v1068
        %1803 = vmatmul.mubr.bf16.gmra.mxu0 %v1067
        %v1804 = vpop.f32.mrf.mxu0
        %v1805 = vadd.f32 %v1612, %v1804
        %v1806 = vpop.f32.mrf.mxu0
        %v1807 = vadd.f32 %v1614, %v1806
        %v1808 = vpop.f32.mrf.mxu0
        %v1809 = vadd.f32 %v1616, %v1808
        %v1810 = vpop.f32.mrf.mxu0
        %v1811 = vadd.f32 %v1618, %v1810
        %1812 = vmatprep.mubr.bf16.mxu0 %v1072
        %1813 = vmatmul.mubr.bf16.gmra.mxu0 %v1071
        %v1814 = vpop.f32.mrf.mxu0
        %v1815 = vadd.f32 %v1622, %v1814
        %v1816 = vpop.f32.mrf.mxu0
        %v1817 = vadd.f32 %v1624, %v1816
        %v1818 = vpop.f32.mrf.mxu0
        %v1819 = vadd.f32 %v1626, %v1818
        %v1820 = vpop.f32.mrf.mxu0
        %v1821 = vadd.f32 %v1628, %v1820
        %1822 = vmatprep.mubr.bf16.mxu0 %v1076
        %1823 = vmatmul.mubr.bf16.gmra.mxu0 %v1075
        %v1824 = vpop.f32.mrf.mxu0
        %v1825 = vadd.f32 %v1632, %v1824
        %v1826 = vpop.f32.mrf.mxu0
        %v1827 = vadd.f32 %v1634, %v1826
        %v1828 = vpop.f32.mrf.mxu0
        %v1829 = vadd.f32 %v1636, %v1828
        %v1830 = vpop.f32.mrf.mxu0
        %v1831 = vadd.f32 %v1638, %v1830
        %1832 = vmatprep.mubr.bf16.mxu0 %v1080
        %1833 = vmatmul.mubr.bf16.gmra.mxu0 %v1079
        %v1834 = vpop.f32.mrf.mxu0
        %v1835 = vadd.f32 %v1642, %v1834
        %v1836 = vpop.f32.mrf.mxu0
        %v1837 = vadd.f32 %v1644, %v1836
        %v1838 = vpop.f32.mrf.mxu0
        %v1839 = vadd.f32 %v1646, %v1838
        %v1840 = vpop.f32.mrf.mxu0
        %v1841 = vadd.f32 %v1648, %v1840
        %1842 = vmatprep.mubr.bf16.mxu0 %v1084
        %1843 = vmatmul.mubr.bf16.gmra.mxu0 %v1083
        %v1844 = vpop.f32.mrf.mxu0
        %v1845 = vadd.f32 %v1652, %v1844
        %v1846 = vpop.f32.mrf.mxu0
        %v1847 = vadd.f32 %v1654, %v1846
        %v1848 = vpop.f32.mrf.mxu0
        %v1849 = vadd.f32 %v1656, %v1848
        %v1850 = vpop.f32.mrf.mxu0
        %v1851 = vadd.f32 %v1658, %v1850
        %1852 = vmatprep.mubr.bf16.mxu0 %v1088
        %1853 = vmatmul.mubr.bf16.gmra.mxu0 %v1087
        %v1854 = vpop.f32.mrf.mxu0
        %v1855 = vadd.f32 %v1662, %v1854
        %v1856 = vpop.f32.mrf.mxu0
        %v1857 = vadd.f32 %v1664, %v1856
        %v1858 = vpop.f32.mrf.mxu0
        %v1859 = vadd.f32 %v1666, %v1858
        %v1860 = vpop.f32.mrf.mxu0
        %v1861 = vadd.f32 %v1668, %v1860
        %1862 = vmatprep.mubr.bf16.mxu0 %v1092
        %1863 = vmatmul.mubr.bf16.gmra.mxu0 %v1091
        %v1864 = vpop.f32.mrf.mxu0
        %v1865 = vadd.f32 %v1672, %v1864
        %v1866 = vpop.f32.mrf.mxu0
        %v1867 = vadd.f32 %v1674, %v1866
        %v1868 = vpop.f32.mrf.mxu0
        %v1869 = vadd.f32 %v1676, %v1868
        %v1870 = vpop.f32.mrf.mxu0
        %v1871 = vadd.f32 %v1678, %v1870
        %1872 = vmatprep.mubr.bf16.mxu0 %v1096
        %1873 = vmatmul.mubr.bf16.gmra.mxu0 %v1095
        %v1874 = vpop.f32.mrf.mxu0
        %v1875 = vadd.f32 %v1682, %v1874
        %v1876 = vpop.f32.mrf.mxu0
        %v1877 = vadd.f32 %v1684, %v1876
        %v1878 = vpop.f32.mrf.mxu0
        %v1879 = vadd.f32 %v1686, %v1878
        %v1880 = vpop.f32.mrf.mxu0
        %v1881 = vadd.f32 %v1688, %v1880
        %1882 = vmatprep.mubr.bf16.mxu0 %v1100
        %1883 = vmatmul.mubr.bf16.gmra.mxu0 %v1099
        %v1884 = vpop.f32.mrf.mxu0
        %v1885 = vadd.f32 %v1692, %v1884
        %v1886 = vpop.f32.mrf.mxu0
        %v1887 = vadd.f32 %v1694, %v1886
        %v1888 = vpop.f32.mrf.mxu0
        %v1889 = vadd.f32 %v1696, %v1888
        %v1890 = vpop.f32.mrf.mxu0
        %v1891 = vadd.f32 %v1698, %v1890
        %1892 = vmatprep.mubr.bf16.mxu0 %v1104
        %1893 = vmatmul.mubr.bf16.gmra.mxu0 %v1103
        %v1894 = vpop.f32.mrf.mxu0
        %v1895 = vadd.f32 %v1702, %v1894
        %v1896 = vpop.f32.mrf.mxu0
        %v1897 = vadd.f32 %v1704, %v1896
        %v1898 = vpop.f32.mrf.mxu0
        %v1899 = vadd.f32 %v1706, %v1898
        %v1900 = vpop.f32.mrf.mxu0
        %v1901 = vadd.f32 %v1708, %v1900
        %1902 = vmatprep.mubr.bf16.mxu0 %v1108
        %1903 = vmatmul.mubr.bf16.gmra.mxu0 %v1107
        %v1904 = vpop.f32.mrf.mxu0
        %v1905 = vadd.f32 %v1712, %v1904
        %v1906 = vpop.f32.mrf.mxu0
        %v1907 = vadd.f32 %v1714, %v1906
        %v1908 = vpop.f32.mrf.mxu0
        %v1909 = vadd.f32 %v1716, %v1908
        %v1910 = vpop.f32.mrf.mxu0
        %v1911 = vadd.f32 %v1718, %v1910
        %1912 = vmatprep.mubr.bf16.mxu0 %v1112
        %1913 = vmatmul.mubr.bf16.gmra.mxu0 %v1111
        %v1914 = vpop.f32.mrf.mxu0
        %v1915 = vadd.f32 %v1722, %v1914
        %v1916 = vpop.f32.mrf.mxu0
        %v1917 = vadd.f32 %v1724, %v1916
        %v1918 = vpop.f32.mrf.mxu0
        %v1919 = vadd.f32 %v1726, %v1918
        %v1920 = vpop.f32.mrf.mxu0
        %v1921 = vadd.f32 %v1728, %v1920
        %1922 = vmatprep.mubr.bf16.mxu0 %v1116
        %1923 = vmatmul.mubr.bf16.gmra.mxu0 %v1115
        %v1924 = vpop.f32.mrf.mxu0
        %v1925 = vadd.f32 %v1732, %v1924
        %v1926 = vpop.f32.mrf.mxu0
        %v1927 = vadd.f32 %v1734, %v1926
        %v1928 = vpop.f32.mrf.mxu0
        %v1929 = vadd.f32 %v1736, %v1928
        %v1930 = vpop.f32.mrf.mxu0
        %v1931 = vadd.f32 %v1738, %v1930
        %1932 = vmatprep.mubr.bf16.mxu0 %v1120
        %1933 = vmatmul.mubr.bf16.gmra.mxu0 %v1119
        %v1934 = vpop.f32.mrf.mxu0
        %v1935 = vadd.f32 %v1742, %v1934
        %v1936 = vpop.f32.mrf.mxu0
        %v1937 = vadd.f32 %v1744, %v1936
        %v1938 = vpop.f32.mrf.mxu0
        %v1939 = vadd.f32 %v1746, %v1938
        %v1940 = vpop.f32.mrf.mxu0
        %v1941 = vadd.f32 %v1748, %v1940
        %1942 = vmatprep.mubr.bf16.mxu0 %v1124
        %1943 = vmatmul.mubr.bf16.gmra.mxu0 %v1123
        %v1944 = vpop.f32.mrf.mxu0
        %v1945 = vadd.f32 %v1752, %v1944
        %v1946 = vpop.f32.mrf.mxu0
        %v1947 = vadd.f32 %v1754, %v1946
        %v1948 = vpop.f32.mrf.mxu0
        %v1949 = vadd.f32 %v1756, %v1948
        %v1950 = vpop.f32.mrf.mxu0
        %v1951 = vadd.f32 %v1758, %v1950
        %1952 = vmatprep.mubr.bf16.mxu0 %v1128
        %1953 = vmatmul.mubr.bf16.gmra.mxu0 %v1127
        %v1954 = vpop.f32.mrf.mxu0
        %v1955 = vadd.f32 %v1762, %v1954
        %v1956 = vpop.f32.mrf.mxu0
        %v1957 = vadd.f32 %v1764, %v1956
        %v1958 = vpop.f32.mrf.mxu0
        %v1959 = vadd.f32 %v1766, %v1958
        %v1960 = vpop.f32.mrf.mxu0
        %v1961 = vadd.f32 %v1768, %v1960
        %1962 = vdwg.mxu0
        %v1963 = vadd.f32 %v1129, %v1805
        %v1964 = vadd.f32 %v1130, %v1807
        %v1965 = vadd.f32 %v1131, %v1809
        %v1966 = vadd.f32 %v1132, %v1811
        %v1967 = vadd.f32 %v1133, %v1815
        %v1968 = vadd.f32 %v1134, %v1817
        %v1969 = vadd.f32 %v1135, %v1819
        %v1970 = vadd.f32 %v1136, %v1821
        %v1971 = vadd.f32 %v1137, %v1825
        %v1972 = vadd.f32 %v1138, %v1827
        %v1973 = vadd.f32 %v1139, %v1829
        %v1974 = vadd.f32 %v1140, %v1831
        %v1975 = vadd.f32 %v1141, %v1835
        %v1976 = vadd.f32 %v1142, %v1837
        %v1977 = vadd.f32 %v1143, %v1839
        %v1978 = vadd.f32 %v1144, %v1841
        %v1979 = vadd.f32 %v1145, %v1845
        %v1980 = vadd.f32 %v1146, %v1847
        %v1981 = vadd.f32 %v1147, %v1849
        %v1982 = vadd.f32 %v1148, %v1851
        %v1983 = vadd.f32 %v1149, %v1855
        %v1984 = vadd.f32 %v1150, %v1857
        %v1985 = vadd.f32 %v1151, %v1859
        %v1986 = vadd.f32 %v1152, %v1861
        %v1987 = vadd.f32 %v1153, %v1865
        %v1988 = vadd.f32 %v1154, %v1867
        %v1989 = vadd.f32 %v1155, %v1869
        %v1990 = vadd.f32 %v1156, %v1871
        %v1991 = vadd.f32 %v1157, %v1875
        %v1992 = vadd.f32 %v1158, %v1877
        %v1993 = vadd.f32 %v1159, %v1879
        %v1994 = vadd.f32 %v1160, %v1881
        %v1995 = vadd.f32 %v1161, %v1885
        %v1996 = vadd.f32 %v1162, %v1887
        %v1997 = vadd.f32 %v1163, %v1889
        %v1998 = vadd.f32 %v1164, %v1891
        %v1999 = vadd.f32 %v1165, %v1895
        %v2000 = vadd.f32 %v1166, %v1897
        %v2001 = vadd.f32 %v1167, %v1899
        %v2002 = vadd.f32 %v1168, %v1901
        %v2003 = vadd.f32 %v1169, %v1905
        %v2004 = vadd.f32 %v1170, %v1907
        %v2005 = vadd.f32 %v1171, %v1909
        %v2006 = vadd.f32 %v1172, %v1911
        %v2007 = vadd.f32 %v1173, %v1915
        %v2008 = vadd.f32 %v1174, %v1917
        %v2009 = vadd.f32 %v1175, %v1919
        %v2010 = vadd.f32 %v1176, %v1921
        %v2011 = vadd.f32 %v1177, %v1925
        %v2012 = vadd.f32 %v1178, %v1927
        %v2013 = vadd.f32 %v1179, %v1929
        %v2014 = vadd.f32 %v1180, %v1931
        %v2015 = vadd.f32 %v1181, %v1935
        %v2016 = vadd.f32 %v1182, %v1937
        %v2017 = vadd.f32 %v1183, %v1939
        %v2018 = vadd.f32 %v1184, %v1941
        %v2019 = vadd.f32 %v1185, %v1945
        %v2020 = vadd.f32 %v1186, %v1947
        %v2021 = vadd.f32 %v1187, %v1949
        %v2022 = vadd.f32 %v1188, %v1951
        %v2023 = vadd.f32 %v1189, %v1955
        %v2024 = vadd.f32 %v1190, %v1957
        %v2025 = vadd.f32 %v1191, %v1959
        %v2026 = vadd.f32 %v1192, %v1961
        %2027 = vst [vmem:[#allocation2] sm:$0xff] %v1963
        %2028 = vst [vmem:[#allocation2 + $0x8] sm:$0xff] %v1964
        %2029 = vst [vmem:[#allocation2 + $0x10] sm:$0xff] %v1965
        %2030 = vst [vmem:[#allocation2 + $0x18] sm:$0xff] %v1966
        %2031 = vst [vmem:[#allocation2 + $0x20] sm:$0xff] %v1967
        %2032 = vst [vmem:[#allocation2 + $0x28] sm:$0xff] %v1968
        %2033 = vst [vmem:[#allocation2 + $0x30] sm:$0xff] %v1969
        %2034 = vst [vmem:[#allocation2 + $0x38] sm:$0xff] %v1970
        %2035 = vst [vmem:[#allocation2 + $0x40] sm:$0xff] %v1971
        %2036 = vst [vmem:[#allocation2 + $0x48] sm:$0xff] %v1972
        %2037 = vst [vmem:[#allocation2 + $0x50] sm:$0xff] %v1973
        %2038 = vst [vmem:[#allocation2 + $0x58] sm:$0xff] %v1974
        %2039 = vst [vmem:[#allocation2 + $0x60] sm:$0xff] %v1975
        %2040 = vst [vmem:[#allocation2 + $0x68] sm:$0xff] %v1976
        %2041 = vst [vmem:[#allocation2 + $0x70] sm:$0xff] %v1977
        %2042 = vst [vmem:[#allocation2 + $0x78] sm:$0xff] %v1978
        %2043 = vst [vmem:[#allocation2 + $0x80] sm:$0xff] %v1979
        %2044 = vst [vmem:[#allocation2 + $0x88] sm:$0xff] %v1980
        %2045 = vst [vmem:[#allocation2 + $0x90] sm:$0xff] %v1981
        %2046 = vst [vmem:[#allocation2 + $0x98] sm:$0xff] %v1982
        %2047 = vst [vmem:[#allocation2 + $0xa0] sm:$0xff] %v1983
        %2048 = vst [vmem:[#allocation2 + $0xa8] sm:$0xff] %v1984
        %2049 = vst [vmem:[#allocation2 + $0xb0] sm:$0xff] %v1985
        %2050 = vst [vmem:[#allocation2 + $0xb8] sm:$0xff] %v1986
        %2051 = vst [vmem:[#allocation2 + $0xc0] sm:$0xff] %v1987
        %2052 = vst [vmem:[#allocation2 + $0xc8] sm:$0xff] %v1988
        %2053 = vst [vmem:[#allocation2 + $0xd0] sm:$0xff] %v1989
        %2054 = vst [vmem:[#allocation2 + $0xd8] sm:$0xff] %v1990
        %2055 = vst [vmem:[#allocation2 + $0xe0] sm:$0xff] %v1991
        %2056 = vst [vmem:[#allocation2 + $0xe8] sm:$0xff] %v1992
        %2057 = vst [vmem:[#allocation2 + $0xf0] sm:$0xff] %v1993
        %2058 = vst [vmem:[#allocation2 + $0xf8] sm:$0xff] %v1994
        %2059 = vst [vmem:[#allocation2 + $0x100] sm:$0xff] %v1995
        %2060 = vst [vmem:[#allocation2 + $0x108] sm:$0xff] %v1996
        %2061 = vst [vmem:[#allocation2 + $0x110] sm:$0xff] %v1997
        %2062 = vst [vmem:[#allocation2 + $0x118] sm:$0xff] %v1998
        %2063 = vst [vmem:[#allocation2 + $0x120] sm:$0xff] %v1999
        %2064 = vst [vmem:[#allocation2 + $0x128] sm:$0xff] %v2000
        %2065 = vst [vmem:[#allocation2 + $0x130] sm:$0xff] %v2001
        %2066 = vst [vmem:[#allocation2 + $0x138] sm:$0xff] %v2002
        %2067 = vst [vmem:[#allocation2 + $0x140] sm:$0xff] %v2003
        %2068 = vst [vmem:[#allocation2 + $0x148] sm:$0xff] %v2004
        %2069 = vst [vmem:[#allocation2 + $0x150] sm:$0xff] %v2005
        %2070 = vst [vmem:[#allocation2 + $0x158] sm:$0xff] %v2006
        %2071 = vst [vmem:[#allocation2 + $0x160] sm:$0xff] %v2007
        %2072 = vst [vmem:[#allocation2 + $0x168] sm:$0xff] %v2008
        %2073 = vst [vmem:[#allocation2 + $0x170] sm:$0xff] %v2009
        %2074 = vst [vmem:[#allocation2 + $0x178] sm:$0xff] %v2010
        %2075 = vst [vmem:[#allocation2 + $0x180] sm:$0xff] %v2011
        %2076 = vst [vmem:[#allocation2 + $0x188] sm:$0xff] %v2012
        %2077 = vst [vmem:[#allocation2 + $0x190] sm:$0xff] %v2013
        %2078 = vst [vmem:[#allocation2 + $0x198] sm:$0xff] %v2014
        %2079 = vst [vmem:[#allocation2 + $0x1a0] sm:$0xff] %v2015
        %2080 = vst [vmem:[#allocation2 + $0x1a8] sm:$0xff] %v2016
        %2081 = vst [vmem:[#allocation2 + $0x1b0] sm:$0xff] %v2017
        %2082 = vst [vmem:[#allocation2 + $0x1b8] sm:$0xff] %v2018
        %2083 = vst [vmem:[#allocation2 + $0x1c0] sm:$0xff] %v2019
        %2084 = vst [vmem:[#allocation2 + $0x1c8] sm:$0xff] %v2020
        %2085 = vst [vmem:[#allocation2 + $0x1d0] sm:$0xff] %v2021
        %2086 = vst [vmem:[#allocation2 + $0x1d8] sm:$0xff] %v2022
        %2087 = vst [vmem:[#allocation2 + $0x1e0] sm:$0xff] %v2023
        %2088 = vst [vmem:[#allocation2 + $0x1e8] sm:$0xff] %v2024
        %2089 = vst [vmem:[#allocation2 + $0x1f0] sm:$0xff] %v2025
        %2090 = vst [vmem:[#allocation2 + $0x1f8] sm:$0xff] %v2026
        %v2091 = vld [vmem:[%s1 + $0x20] sm:$0xff]
        %v2092 = vld [vmem:[%s1 + $0x28] sm:$0xff]
        %v2093 = vld [vmem:[%s1 + $0x30] sm:$0xff]
        %v2094 = vld [vmem:[%s1 + $0x38] sm:$0xff]
        %2095 = vmatprep.subr.mxu0 0.0
        %2096 = vmatpush1.msra.mxu0 0.0
        %2097 = vmatprep.subr.mxu0 0.0
        %2098 = vmatpush1.msra.mxu0 0.0
        %2099 = vmatprep.subr.mxu0 0.0
        %2100 = vmatpush1.msra.mxu0 0.0
        %2101 = vmatprep.subr.mxu0 0.0
        %2102 = vmatpush1.msra.mxu0 0.0
        %2103 = vmatprep.subr.mxu0 0.0
        %2104 = vmatpush1.msra.mxu0 0.0
        %2105 = vmatprep.subr.mxu0 0.0
        %2106 = vmatpush1.msra.mxu0 0.0
        %2107 = vmatprep.subr.mxu0 0.0
        %2108 = vmatpush1.msra.mxu0 0.0
        %2109 = vmatprep.subr.mxu0 0.0
        %2110 = vmatpush1.msra.mxu0 0.0
        %2111 = vmatprep.subr.mxu0 0.0
        %2112 = vmatpush1.msra.mxu0 0.0
        %2113 = vmatprep.subr.mxu0 0.0
        %2114 = vmatpush1.msra.mxu0 0.0
        %2115 = vmatprep.subr.mxu0 0.0
        %2116 = vmatpush1.msra.mxu0 0.0
        %2117 = vmatprep.subr.mxu0 0.0
        %2118 = vmatpush1.msra.mxu0 0.0
        %2119 = vmatprep.subr.mxu0 0.0
        %2120 = vmatpush1.msra.mxu0 0.0
        %2121 = vmatprep.subr.mxu0 0.0
        %2122 = vmatpush1.msra.mxu0 0.0
        %2123 = vmatprep.subr.mxu0 0.0
        %2124 = vmatpush1.msra.mxu0 0.0
        %2125 = vmatprep.subr.mxu0 %v2092
        %2126 = vmatpush1.msra.mxu0 %v2091
        %2127 = vmatprep.subr.mxu0 0.0
        %2128 = vmatpush2.msra.mxu0 0.0
        %2129 = vmatprep.subr.mxu0 0.0
        %2130 = vmatpush2.msra.mxu0 0.0
        %2131 = vmatprep.subr.mxu0 0.0
        %2132 = vmatpush2.msra.mxu0 0.0
        %2133 = vmatprep.subr.mxu0 0.0
        %2134 = vmatpush2.msra.mxu0 0.0
        %2135 = vmatprep.subr.mxu0 0.0
        %2136 = vmatpush2.msra.mxu0 0.0
        %2137 = vmatprep.subr.mxu0 0.0
        %2138 = vmatpush2.msra.mxu0 0.0
        %2139 = vmatprep.subr.mxu0 0.0
        %2140 = vmatpush2.msra.mxu0 0.0
        %2141 = vmatprep.subr.mxu0 0.0
        %2142 = vmatpush2.msra.mxu0 0.0
        %2143 = vmatprep.subr.mxu0 0.0
        %2144 = vmatpush2.msra.mxu0 0.0
        %2145 = vmatprep.subr.mxu0 0.0
        %2146 = vmatpush2.msra.mxu0 0.0
        %2147 = vmatprep.subr.mxu0 0.0
        %2148 = vmatpush2.msra.mxu0 0.0
        %2149 = vmatprep.subr.mxu0 0.0
        %2150 = vmatpush2.msra.mxu0 0.0
        %2151 = vmatprep.subr.mxu0 0.0
        %2152 = vmatpush2.msra.mxu0 0.0
        %2153 = vmatprep.subr.mxu0 0.0
        %2154 = vmatpush2.msra.mxu0 0.0
        %2155 = vmatprep.subr.mxu0 0.0
        %2156 = vmatpush2.msra.mxu0 0.0
        %2157 = vmatprep.subr.mxu0 0.0
        %2158 = vmatpush2.msra.mxu0 0.0
        %2159 = vmatprep.mubr.f32.mxu0 0.0
        %2160 = vmatmul.mubr.f32.gmra.mxu0 %v328
        %v2161 = vpop.f32.mrf.mxu0
        %v2162 = vadd.f32 0.0, %v2161
        %v2163 = vpop.f32.mrf.mxu0
        %v2164 = vadd.f32 0.0, %v2163
        %2165 = vmatprep.mubr.f32.mxu0 0.0
        %2166 = vmatmul.mubr.f32.gmra.mxu0 %v331
        %v2167 = vpop.f32.mrf.mxu0
        %v2168 = vadd.f32 0.0, %v2167
        %v2169 = vpop.f32.mrf.mxu0
        %v2170 = vadd.f32 0.0, %v2169
        %2171 = vmatprep.mubr.f32.mxu0 0.0
        %2172 = vmatmul.mubr.f32.gmra.mxu0 %v334
        %v2173 = vpop.f32.mrf.mxu0
        %v2174 = vadd.f32 0.0, %v2173
        %v2175 = vpop.f32.mrf.mxu0
        %v2176 = vadd.f32 0.0, %v2175
        %2177 = vmatprep.mubr.f32.mxu0 0.0
        %2178 = vmatmul.mubr.f32.gmra.mxu0 %v337
        %v2179 = vpop.f32.mrf.mxu0
        %v2180 = vadd.f32 0.0, %v2179
        %v2181 = vpop.f32.mrf.mxu0
        %v2182 = vadd.f32 0.0, %v2181
        %2183 = vmatprep.mubr.f32.mxu0 0.0
        %2184 = vmatmul.mubr.f32.gmra.mxu0 %v340
        %v2185 = vpop.f32.mrf.mxu0
        %v2186 = vadd.f32 0.0, %v2185
        %v2187 = vpop.f32.mrf.mxu0
        %v2188 = vadd.f32 0.0, %v2187
        %2189 = vmatprep.mubr.f32.mxu0 0.0
        %2190 = vmatmul.mubr.f32.gmra.mxu0 %v343
        %v2191 = vpop.f32.mrf.mxu0
        %v2192 = vadd.f32 0.0, %v2191
        %v2193 = vpop.f32.mrf.mxu0
        %v2194 = vadd.f32 0.0, %v2193
        %2195 = vmatprep.mubr.f32.mxu0 0.0
        %2196 = vmatmul.mubr.f32.gmra.mxu0 %v346
        %v2197 = vpop.f32.mrf.mxu0
        %v2198 = vadd.f32 0.0, %v2197
        %v2199 = vpop.f32.mrf.mxu0
        %v2200 = vadd.f32 0.0, %v2199
        %2201 = vmatprep.mubr.f32.mxu0 0.0
        %2202 = vmatmul.mubr.f32.gmra.mxu0 %v349
        %v2203 = vpop.f32.mrf.mxu0
        %v2204 = vadd.f32 0.0, %v2203
        %v2205 = vpop.f32.mrf.mxu0
        %v2206 = vadd.f32 0.0, %v2205
        %2207 = vmatprep.mubr.f32.mxu0 0.0
        %2208 = vmatmul.mubr.f32.gmra.mxu0 %v352
        %v2209 = vpop.f32.mrf.mxu0
        %v2210 = vadd.f32 0.0, %v2209
        %v2211 = vpop.f32.mrf.mxu0
        %v2212 = vadd.f32 0.0, %v2211
        %2213 = vmatprep.mubr.f32.mxu0 0.0
        %2214 = vmatmul.mubr.f32.gmra.mxu0 %v355
        %v2215 = vpop.f32.mrf.mxu0
        %v2216 = vadd.f32 0.0, %v2215
        %v2217 = vpop.f32.mrf.mxu0
        %v2218 = vadd.f32 0.0, %v2217
        %2219 = vmatprep.mubr.f32.mxu0 0.0
        %2220 = vmatmul.mubr.f32.gmra.mxu0 %v358
        %v2221 = vpop.f32.mrf.mxu0
        %v2222 = vadd.f32 0.0, %v2221
        %v2223 = vpop.f32.mrf.mxu0
        %v2224 = vadd.f32 0.0, %v2223
        %2225 = vmatprep.mubr.f32.mxu0 0.0
        %2226 = vmatmul.mubr.f32.gmra.mxu0 %v361
        %v2227 = vpop.f32.mrf.mxu0
        %v2228 = vadd.f32 0.0, %v2227
        %v2229 = vpop.f32.mrf.mxu0
        %v2230 = vadd.f32 0.0, %v2229
        %2231 = vmatprep.mubr.f32.mxu0 0.0
        %2232 = vmatmul.mubr.f32.gmra.mxu0 %v364
        %v2233 = vpop.f32.mrf.mxu0
        %v2234 = vadd.f32 0.0, %v2233
        %v2235 = vpop.f32.mrf.mxu0
        %v2236 = vadd.f32 0.0, %v2235
        %2237 = vmatprep.mubr.f32.mxu0 0.0
        %2238 = vmatmul.mubr.f32.gmra.mxu0 %v367
        %v2239 = vpop.f32.mrf.mxu0
        %v2240 = vadd.f32 0.0, %v2239
        %v2241 = vpop.f32.mrf.mxu0
        %v2242 = vadd.f32 0.0, %v2241
        %2243 = vmatprep.mubr.f32.mxu0 0.0
        %2244 = vmatmul.mubr.f32.gmra.mxu0 %v370
        %v2245 = vpop.f32.mrf.mxu0
        %v2246 = vadd.f32 0.0, %v2245
        %v2247 = vpop.f32.mrf.mxu0
        %v2248 = vadd.f32 0.0, %v2247
        %2249 = vmatprep.mubr.f32.mxu0 0.0
        %2250 = vmatmul.mubr.f32.gmra.mxu0 %v373
        %v2251 = vpop.f32.mrf.mxu0
        %v2252 = vadd.f32 0.0, %v2251
        %v2253 = vpop.f32.mrf.mxu0
        %v2254 = vadd.f32 0.0, %v2253
        %2255 = vmatprep.mubr.f32.mxu0 0.0
        %2256 = vmatmul.mubr.f32.gmra.mxu0 %v376
        %v2257 = vpop.f32.mrf.mxu0
        %v2258 = vadd.f32 0.0, %v2257
        %v2259 = vpop.f32.mrf.mxu0
        %v2260 = vadd.f32 0.0, %v2259
        %2261 = vmatprep.mubr.f32.mxu0 0.0
        %2262 = vmatmul.mubr.f32.gmra.mxu0 %v379
        %v2263 = vpop.f32.mrf.mxu0
        %v2264 = vadd.f32 0.0, %v2263
        %v2265 = vpop.f32.mrf.mxu0
        %v2266 = vadd.f32 0.0, %v2265
        %2267 = vmatprep.mubr.f32.mxu0 0.0
        %2268 = vmatmul.mubr.f32.gmra.mxu0 %v382
        %v2269 = vpop.f32.mrf.mxu0
        %v2270 = vadd.f32 0.0, %v2269
        %v2271 = vpop.f32.mrf.mxu0
        %v2272 = vadd.f32 0.0, %v2271
        %2273 = vmatprep.mubr.f32.mxu0 0.0
        %2274 = vmatmul.mubr.f32.gmra.mxu0 %v385
        %v2275 = vpop.f32.mrf.mxu0
        %v2276 = vadd.f32 0.0, %v2275
        %v2277 = vpop.f32.mrf.mxu0
        %v2278 = vadd.f32 0.0, %v2277
        %2279 = vmatprep.mubr.f32.mxu0 0.0
        %2280 = vmatmul.mubr.f32.gmra.mxu0 %v388
        %v2281 = vpop.f32.mrf.mxu0
        %v2282 = vadd.f32 0.0, %v2281
        %v2283 = vpop.f32.mrf.mxu0
        %v2284 = vadd.f32 0.0, %v2283
        %2285 = vmatprep.mubr.f32.mxu0 0.0
        %2286 = vmatmul.mubr.f32.gmra.mxu0 %v391
        %v2287 = vpop.f32.mrf.mxu0
        %v2288 = vadd.f32 0.0, %v2287
        %v2289 = vpop.f32.mrf.mxu0
        %v2290 = vadd.f32 0.0, %v2289
        %2291 = vmatprep.mubr.f32.mxu0 0.0
        %2292 = vmatmul.mubr.f32.gmra.mxu0 %v394
        %v2293 = vpop.f32.mrf.mxu0
        %v2294 = vadd.f32 0.0, %v2293
        %v2295 = vpop.f32.mrf.mxu0
        %v2296 = vadd.f32 0.0, %v2295
        %2297 = vmatprep.mubr.f32.mxu0 0.0
        %2298 = vmatmul.mubr.f32.gmra.mxu0 %v397
        %v2299 = vpop.f32.mrf.mxu0
        %v2300 = vadd.f32 0.0, %v2299
        %v2301 = vpop.f32.mrf.mxu0
        %v2302 = vadd.f32 0.0, %v2301
        %2303 = vmatprep.mubr.f32.mxu0 0.0
        %2304 = vmatmul.mubr.f32.gmra.mxu0 %v400
        %v2305 = vpop.f32.mrf.mxu0
        %v2306 = vadd.f32 0.0, %v2305
        %v2307 = vpop.f32.mrf.mxu0
        %v2308 = vadd.f32 0.0, %v2307
        %2309 = vmatprep.mubr.f32.mxu0 0.0
        %2310 = vmatmul.mubr.f32.gmra.mxu0 %v403
        %v2311 = vpop.f32.mrf.mxu0
        %v2312 = vadd.f32 0.0, %v2311
        %v2313 = vpop.f32.mrf.mxu0
        %v2314 = vadd.f32 0.0, %v2313
        %2315 = vmatprep.mubr.f32.mxu0 0.0
        %2316 = vmatmul.mubr.f32.gmra.mxu0 %v406
        %v2317 = vpop.f32.mrf.mxu0
        %v2318 = vadd.f32 0.0, %v2317
        %v2319 = vpop.f32.mrf.mxu0
        %v2320 = vadd.f32 0.0, %v2319
        %2321 = vmatprep.mubr.f32.mxu0 0.0
        %2322 = vmatmul.mubr.f32.gmra.mxu0 %v409
        %v2323 = vpop.f32.mrf.mxu0
        %v2324 = vadd.f32 0.0, %v2323
        %v2325 = vpop.f32.mrf.mxu0
        %v2326 = vadd.f32 0.0, %v2325
        %2327 = vmatprep.mubr.f32.mxu0 0.0
        %2328 = vmatmul.mubr.f32.gmra.mxu0 %v412
        %v2329 = vpop.f32.mrf.mxu0
        %v2330 = vadd.f32 0.0, %v2329
        %v2331 = vpop.f32.mrf.mxu0
        %v2332 = vadd.f32 0.0, %v2331
        %2333 = vmatprep.mubr.f32.mxu0 0.0
        %2334 = vmatmul.mubr.f32.gmra.mxu0 %v415
        %v2335 = vpop.f32.mrf.mxu0
        %v2336 = vadd.f32 0.0, %v2335
        %v2337 = vpop.f32.mrf.mxu0
        %v2338 = vadd.f32 0.0, %v2337
        %2339 = vmatprep.mubr.f32.mxu0 0.0
        %2340 = vmatmul.mubr.f32.gmra.mxu0 %v418
        %v2341 = vpop.f32.mrf.mxu0
        %v2342 = vadd.f32 0.0, %v2341
        %v2343 = vpop.f32.mrf.mxu0
        %v2344 = vadd.f32 0.0, %v2343
        %2345 = vmatprep.mubr.f32.mxu0 0.0
        %2346 = vmatmul.mubr.f32.gmra.mxu0 %v421
        %v2347 = vpop.f32.mrf.mxu0
        %v2348 = vadd.f32 0.0, %v2347
        %v2349 = vpop.f32.mrf.mxu0
        %v2350 = vadd.f32 0.0, %v2349
        %2351 = vdwg.mxu0
        %2352 = vmatprep.subr.mxu0 0.0
        %2353 = vmatpush1.msra.mxu0 0.0
        %2354 = vmatprep.subr.mxu0 0.0
        %2355 = vmatpush1.msra.mxu0 0.0
        %2356 = vmatprep.subr.mxu0 0.0
        %2357 = vmatpush1.msra.mxu0 0.0
        %2358 = vmatprep.subr.mxu0 0.0
        %2359 = vmatpush1.msra.mxu0 0.0
        %2360 = vmatprep.subr.mxu0 0.0
        %2361 = vmatpush1.msra.mxu0 0.0
        %2362 = vmatprep.subr.mxu0 0.0
        %2363 = vmatpush1.msra.mxu0 0.0
        %2364 = vmatprep.subr.mxu0 0.0
        %2365 = vmatpush1.msra.mxu0 0.0
        %2366 = vmatprep.subr.mxu0 0.0
        %2367 = vmatpush1.msra.mxu0 0.0
        %2368 = vmatprep.subr.mxu0 0.0
        %2369 = vmatpush1.msra.mxu0 0.0
        %2370 = vmatprep.subr.mxu0 0.0
        %2371 = vmatpush1.msra.mxu0 0.0
        %2372 = vmatprep.subr.mxu0 0.0
        %2373 = vmatpush1.msra.mxu0 0.0
        %2374 = vmatprep.subr.mxu0 0.0
        %2375 = vmatpush1.msra.mxu0 0.0
        %2376 = vmatprep.subr.mxu0 0.0
        %2377 = vmatpush1.msra.mxu0 0.0
        %2378 = vmatprep.subr.mxu0 0.0
        %2379 = vmatpush1.msra.mxu0 0.0
        %2380 = vmatprep.subr.mxu0 0.0
        %2381 = vmatpush1.msra.mxu0 0.0
        %2382 = vmatprep.subr.mxu0 %v2094
        %2383 = vmatpush1.msra.mxu0 %v2093
        %2384 = vmatprep.subr.mxu0 0.0
        %2385 = vmatpush2.msra.mxu0 0.0
        %2386 = vmatprep.subr.mxu0 0.0
        %2387 = vmatpush2.msra.mxu0 0.0
        %2388 = vmatprep.subr.mxu0 0.0
        %2389 = vmatpush2.msra.mxu0 0.0
        %2390 = vmatprep.subr.mxu0 0.0
        %2391 = vmatpush2.msra.mxu0 0.0
        %2392 = vmatprep.subr.mxu0 0.0
        %2393 = vmatpush2.msra.mxu0 0.0
        %2394 = vmatprep.subr.mxu0 0.0
        %2395 = vmatpush2.msra.mxu0 0.0
        %2396 = vmatprep.subr.mxu0 0.0
        %2397 = vmatpush2.msra.mxu0 0.0
        %2398 = vmatprep.subr.mxu0 0.0
        %2399 = vmatpush2.msra.mxu0 0.0
        %2400 = vmatprep.subr.mxu0 0.0
        %2401 = vmatpush2.msra.mxu0 0.0
        %2402 = vmatprep.subr.mxu0 0.0
        %2403 = vmatpush2.msra.mxu0 0.0
        %2404 = vmatprep.subr.mxu0 0.0
        %2405 = vmatpush2.msra.mxu0 0.0
        %2406 = vmatprep.subr.mxu0 0.0
        %2407 = vmatpush2.msra.mxu0 0.0
        %2408 = vmatprep.subr.mxu0 0.0
        %2409 = vmatpush2.msra.mxu0 0.0
        %2410 = vmatprep.subr.mxu0 0.0
        %2411 = vmatpush2.msra.mxu0 0.0
        %2412 = vmatprep.subr.mxu0 0.0
        %2413 = vmatpush2.msra.mxu0 0.0
        %2414 = vmatprep.subr.mxu0 0.0
        %2415 = vmatpush2.msra.mxu0 0.0
        %2416 = vmatprep.mubr.f32.mxu0 0.0
        %2417 = vmatmul.mubr.f32.gmra.mxu0 %v328
        %v2418 = vpop.f32.mrf.mxu0
        %v2419 = vadd.f32 0.0, %v2418
        %v2420 = vpop.f32.mrf.mxu0
        %v2421 = vadd.f32 0.0, %v2420
        %2422 = vmatprep.mubr.f32.mxu0 0.0
        %2423 = vmatmul.mubr.f32.gmra.mxu0 %v331
        %v2424 = vpop.f32.mrf.mxu0
        %v2425 = vadd.f32 0.0, %v2424
        %v2426 = vpop.f32.mrf.mxu0
        %v2427 = vadd.f32 0.0, %v2426
        %2428 = vmatprep.mubr.f32.mxu0 0.0
        %2429 = vmatmul.mubr.f32.gmra.mxu0 %v334
        %v2430 = vpop.f32.mrf.mxu0
        %v2431 = vadd.f32 0.0, %v2430
        %v2432 = vpop.f32.mrf.mxu0
        %v2433 = vadd.f32 0.0, %v2432
        %2434 = vmatprep.mubr.f32.mxu0 0.0
        %2435 = vmatmul.mubr.f32.gmra.mxu0 %v337
        %v2436 = vpop.f32.mrf.mxu0
        %v2437 = vadd.f32 0.0, %v2436
        %v2438 = vpop.f32.mrf.mxu0
        %v2439 = vadd.f32 0.0, %v2438
        %2440 = vmatprep.mubr.f32.mxu0 0.0
        %2441 = vmatmul.mubr.f32.gmra.mxu0 %v340
        %v2442 = vpop.f32.mrf.mxu0
        %v2443 = vadd.f32 0.0, %v2442
        %v2444 = vpop.f32.mrf.mxu0
        %v2445 = vadd.f32 0.0, %v2444
        %2446 = vmatprep.mubr.f32.mxu0 0.0
        %2447 = vmatmul.mubr.f32.gmra.mxu0 %v343
        %v2448 = vpop.f32.mrf.mxu0
        %v2449 = vadd.f32 0.0, %v2448
        %v2450 = vpop.f32.mrf.mxu0
        %v2451 = vadd.f32 0.0, %v2450
        %2452 = vmatprep.mubr.f32.mxu0 0.0
        %2453 = vmatmul.mubr.f32.gmra.mxu0 %v346
        %v2454 = vpop.f32.mrf.mxu0
        %v2455 = vadd.f32 0.0, %v2454
        %v2456 = vpop.f32.mrf.mxu0
        %v2457 = vadd.f32 0.0, %v2456
        %2458 = vmatprep.mubr.f32.mxu0 0.0
        %2459 = vmatmul.mubr.f32.gmra.mxu0 %v349
        %v2460 = vpop.f32.mrf.mxu0
        %v2461 = vadd.f32 0.0, %v2460
        %v2462 = vpop.f32.mrf.mxu0
        %v2463 = vadd.f32 0.0, %v2462
        %2464 = vmatprep.mubr.f32.mxu0 0.0
        %2465 = vmatmul.mubr.f32.gmra.mxu0 %v352
        %v2466 = vpop.f32.mrf.mxu0
        %v2467 = vadd.f32 0.0, %v2466
        %v2468 = vpop.f32.mrf.mxu0
        %v2469 = vadd.f32 0.0, %v2468
        %2470 = vmatprep.mubr.f32.mxu0 0.0
        %2471 = vmatmul.mubr.f32.gmra.mxu0 %v355
        %v2472 = vpop.f32.mrf.mxu0
        %v2473 = vadd.f32 0.0, %v2472
        %v2474 = vpop.f32.mrf.mxu0
        %v2475 = vadd.f32 0.0, %v2474
        %2476 = vmatprep.mubr.f32.mxu0 0.0
        %2477 = vmatmul.mubr.f32.gmra.mxu0 %v358
        %v2478 = vpop.f32.mrf.mxu0
        %v2479 = vadd.f32 0.0, %v2478
        %v2480 = vpop.f32.mrf.mxu0
        %v2481 = vadd.f32 0.0, %v2480
        %2482 = vmatprep.mubr.f32.mxu0 0.0
        %2483 = vmatmul.mubr.f32.gmra.mxu0 %v361
        %v2484 = vpop.f32.mrf.mxu0
        %v2485 = vadd.f32 0.0, %v2484
        %v2486 = vpop.f32.mrf.mxu0
        %v2487 = vadd.f32 0.0, %v2486
        %2488 = vmatprep.mubr.f32.mxu0 0.0
        %2489 = vmatmul.mubr.f32.gmra.mxu0 %v364
        %v2490 = vpop.f32.mrf.mxu0
        %v2491 = vadd.f32 0.0, %v2490
        %v2492 = vpop.f32.mrf.mxu0
        %v2493 = vadd.f32 0.0, %v2492
        %2494 = vmatprep.mubr.f32.mxu0 0.0
        %2495 = vmatmul.mubr.f32.gmra.mxu0 %v367
        %v2496 = vpop.f32.mrf.mxu0
        %v2497 = vadd.f32 0.0, %v2496
        %v2498 = vpop.f32.mrf.mxu0
        %v2499 = vadd.f32 0.0, %v2498
        %2500 = vmatprep.mubr.f32.mxu0 0.0
        %2501 = vmatmul.mubr.f32.gmra.mxu0 %v370
        %v2502 = vpop.f32.mrf.mxu0
        %v2503 = vadd.f32 0.0, %v2502
        %v2504 = vpop.f32.mrf.mxu0
        %v2505 = vadd.f32 0.0, %v2504
        %2506 = vmatprep.mubr.f32.mxu0 0.0
        %2507 = vmatmul.mubr.f32.gmra.mxu0 %v373
        %v2508 = vpop.f32.mrf.mxu0
        %v2509 = vadd.f32 0.0, %v2508
        %v2510 = vpop.f32.mrf.mxu0
        %v2511 = vadd.f32 0.0, %v2510
        %2512 = vmatprep.mubr.f32.mxu0 0.0
        %2513 = vmatmul.mubr.f32.gmra.mxu0 %v376
        %v2514 = vpop.f32.mrf.mxu0
        %v2515 = vadd.f32 0.0, %v2514
        %v2516 = vpop.f32.mrf.mxu0
        %v2517 = vadd.f32 0.0, %v2516
        %2518 = vmatprep.mubr.f32.mxu0 0.0
        %2519 = vmatmul.mubr.f32.gmra.mxu0 %v379
        %v2520 = vpop.f32.mrf.mxu0
        %v2521 = vadd.f32 0.0, %v2520
        %v2522 = vpop.f32.mrf.mxu0
        %v2523 = vadd.f32 0.0, %v2522
        %2524 = vmatprep.mubr.f32.mxu0 0.0
        %2525 = vmatmul.mubr.f32.gmra.mxu0 %v382
        %v2526 = vpop.f32.mrf.mxu0
        %v2527 = vadd.f32 0.0, %v2526
        %v2528 = vpop.f32.mrf.mxu0
        %v2529 = vadd.f32 0.0, %v2528
        %2530 = vmatprep.mubr.f32.mxu0 0.0
        %2531 = vmatmul.mubr.f32.gmra.mxu0 %v385
        %v2532 = vpop.f32.mrf.mxu0
        %v2533 = vadd.f32 0.0, %v2532
        %v2534 = vpop.f32.mrf.mxu0
        %v2535 = vadd.f32 0.0, %v2534
        %2536 = vmatprep.mubr.f32.mxu0 0.0
        %2537 = vmatmul.mubr.f32.gmra.mxu0 %v388
        %v2538 = vpop.f32.mrf.mxu0
        %v2539 = vadd.f32 0.0, %v2538
        %v2540 = vpop.f32.mrf.mxu0
        %v2541 = vadd.f32 0.0, %v2540
        %2542 = vmatprep.mubr.f32.mxu0 0.0
        %2543 = vmatmul.mubr.f32.gmra.mxu0 %v391
        %v2544 = vpop.f32.mrf.mxu0
        %v2545 = vadd.f32 0.0, %v2544
        %v2546 = vpop.f32.mrf.mxu0
        %v2547 = vadd.f32 0.0, %v2546
        %2548 = vmatprep.mubr.f32.mxu0 0.0
        %2549 = vmatmul.mubr.f32.gmra.mxu0 %v394
        %v2550 = vpop.f32.mrf.mxu0
        %v2551 = vadd.f32 0.0, %v2550
        %v2552 = vpop.f32.mrf.mxu0
        %v2553 = vadd.f32 0.0, %v2552
        %2554 = vmatprep.mubr.f32.mxu0 0.0
        %2555 = vmatmul.mubr.f32.gmra.mxu0 %v397
        %v2556 = vpop.f32.mrf.mxu0
        %v2557 = vadd.f32 0.0, %v2556
        %v2558 = vpop.f32.mrf.mxu0
        %v2559 = vadd.f32 0.0, %v2558
        %2560 = vmatprep.mubr.f32.mxu0 0.0
        %2561 = vmatmul.mubr.f32.gmra.mxu0 %v400
        %v2562 = vpop.f32.mrf.mxu0
        %v2563 = vadd.f32 0.0, %v2562
        %v2564 = vpop.f32.mrf.mxu0
        %v2565 = vadd.f32 0.0, %v2564
        %2566 = vmatprep.mubr.f32.mxu0 0.0
        %2567 = vmatmul.mubr.f32.gmra.mxu0 %v403
        %v2568 = vpop.f32.mrf.mxu0
        %v2569 = vadd.f32 0.0, %v2568
        %v2570 = vpop.f32.mrf.mxu0
        %v2571 = vadd.f32 0.0, %v2570
        %2572 = vmatprep.mubr.f32.mxu0 0.0
        %2573 = vmatmul.mubr.f32.gmra.mxu0 %v406
        %v2574 = vpop.f32.mrf.mxu0
        %v2575 = vadd.f32 0.0, %v2574
        %v2576 = vpop.f32.mrf.mxu0
        %v2577 = vadd.f32 0.0, %v2576
        %2578 = vmatprep.mubr.f32.mxu0 0.0
        %2579 = vmatmul.mubr.f32.gmra.mxu0 %v409
        %v2580 = vpop.f32.mrf.mxu0
        %v2581 = vadd.f32 0.0, %v2580
        %v2582 = vpop.f32.mrf.mxu0
        %v2583 = vadd.f32 0.0, %v2582
        %2584 = vmatprep.mubr.f32.mxu0 0.0
        %2585 = vmatmul.mubr.f32.gmra.mxu0 %v412
        %v2586 = vpop.f32.mrf.mxu0
        %v2587 = vadd.f32 0.0, %v2586
        %v2588 = vpop.f32.mrf.mxu0
        %v2589 = vadd.f32 0.0, %v2588
        %2590 = vmatprep.mubr.f32.mxu0 0.0
        %2591 = vmatmul.mubr.f32.gmra.mxu0 %v415
        %v2592 = vpop.f32.mrf.mxu0
        %v2593 = vadd.f32 0.0, %v2592
        %v2594 = vpop.f32.mrf.mxu0
        %v2595 = vadd.f32 0.0, %v2594
        %2596 = vmatprep.mubr.f32.mxu0 0.0
        %2597 = vmatmul.mubr.f32.gmra.mxu0 %v418
        %v2598 = vpop.f32.mrf.mxu0
        %v2599 = vadd.f32 0.0, %v2598
        %v2600 = vpop.f32.mrf.mxu0
        %v2601 = vadd.f32 0.0, %v2600
        %2602 = vmatprep.mubr.f32.mxu0 0.0
        %2603 = vmatmul.mubr.f32.gmra.mxu0 %v421
        %v2604 = vpop.f32.mrf.mxu0
        %v2605 = vadd.f32 0.0, %v2604
        %v2606 = vpop.f32.mrf.mxu0
        %v2607 = vadd.f32 0.0, %v2606
        %2608 = vdwg.mxu0
        %v2609 = vmax.f32 %v2162, 0.0
        %v2610 = vmax.f32 %v2164, 0.0
        %v2611 = vmax.f32 %v2419, 0.0
        %v2612 = vmax.f32 %v2421, 0.0
        %v2613 = vmax.f32 %v2168, 0.0
        %v2614 = vmax.f32 %v2170, 0.0
        %v2615 = vmax.f32 %v2425, 0.0
        %v2616 = vmax.f32 %v2427, 0.0
        %v2617 = vmax.f32 %v2174, 0.0
        %v2618 = vmax.f32 %v2176, 0.0
        %v2619 = vmax.f32 %v2431, 0.0
        %v2620 = vmax.f32 %v2433, 0.0
        %v2621 = vmax.f32 %v2180, 0.0
        %v2622 = vmax.f32 %v2182, 0.0
        %v2623 = vmax.f32 %v2437, 0.0
        %v2624 = vmax.f32 %v2439, 0.0
        %v2625 = vmax.f32 %v2186, 0.0
        %v2626 = vmax.f32 %v2188, 0.0
        %v2627 = vmax.f32 %v2443, 0.0
        %v2628 = vmax.f32 %v2445, 0.0
        %v2629 = vmax.f32 %v2192, 0.0
        %v2630 = vmax.f32 %v2194, 0.0
        %v2631 = vmax.f32 %v2449, 0.0
        %v2632 = vmax.f32 %v2451, 0.0
        %v2633 = vmax.f32 %v2198, 0.0
        %v2634 = vmax.f32 %v2200, 0.0
        %v2635 = vmax.f32 %v2455, 0.0
        %v2636 = vmax.f32 %v2457, 0.0
        %v2637 = vmax.f32 %v2204, 0.0
        %v2638 = vmax.f32 %v2206, 0.0
        %v2639 = vmax.f32 %v2461, 0.0
        %v2640 = vmax.f32 %v2463, 0.0
        %v2641 = vmax.f32 %v2210, 0.0
        %v2642 = vmax.f32 %v2212, 0.0
        %v2643 = vmax.f32 %v2467, 0.0
        %v2644 = vmax.f32 %v2469, 0.0
        %v2645 = vmax.f32 %v2216, 0.0
        %v2646 = vmax.f32 %v2218, 0.0
        %v2647 = vmax.f32 %v2473, 0.0
        %v2648 = vmax.f32 %v2475, 0.0
        %v2649 = vmax.f32 %v2222, 0.0
        %v2650 = vmax.f32 %v2224, 0.0
        %v2651 = vmax.f32 %v2479, 0.0
        %v2652 = vmax.f32 %v2481, 0.0
        %v2653 = vmax.f32 %v2228, 0.0
        %v2654 = vmax.f32 %v2230, 0.0
        %v2655 = vmax.f32 %v2485, 0.0
        %v2656 = vmax.f32 %v2487, 0.0
        %v2657 = vmax.f32 %v2234, 0.0
        %v2658 = vmax.f32 %v2236, 0.0
        %v2659 = vmax.f32 %v2491, 0.0
        %v2660 = vmax.f32 %v2493, 0.0
        %v2661 = vmax.f32 %v2240, 0.0
        %v2662 = vmax.f32 %v2242, 0.0
        %v2663 = vmax.f32 %v2497, 0.0
        %v2664 = vmax.f32 %v2499, 0.0
        %v2665 = vmax.f32 %v2246, 0.0
        %v2666 = vmax.f32 %v2248, 0.0
        %v2667 = vmax.f32 %v2503, 0.0
        %v2668 = vmax.f32 %v2505, 0.0
        %v2669 = vmax.f32 %v2252, 0.0
        %v2670 = vmax.f32 %v2254, 0.0
        %v2671 = vmax.f32 %v2509, 0.0
        %v2672 = vmax.f32 %v2511, 0.0
        %v2673 = vmax.f32 %v2258, 0.0
        %v2674 = vmax.f32 %v2260, 0.0
        %v2675 = vmax.f32 %v2515, 0.0
        %v2676 = vmax.f32 %v2517, 0.0
        %v2677 = vmax.f32 %v2264, 0.0
        %v2678 = vmax.f32 %v2266, 0.0
        %v2679 = vmax.f32 %v2521, 0.0
        %v2680 = vmax.f32 %v2523, 0.0
        %v2681 = vmax.f32 %v2270, 0.0
        %v2682 = vmax.f32 %v2272, 0.0
        %v2683 = vmax.f32 %v2527, 0.0
        %v2684 = vmax.f32 %v2529, 0.0
        %v2685 = vmax.f32 %v2276, 0.0
        %v2686 = vmax.f32 %v2278, 0.0
        %v2687 = vmax.f32 %v2533, 0.0
        %v2688 = vmax.f32 %v2535, 0.0
        %v2689 = vmax.f32 %v2282, 0.0
        %v2690 = vmax.f32 %v2284, 0.0
        %v2691 = vmax.f32 %v2539, 0.0
        %v2692 = vmax.f32 %v2541, 0.0
        %v2693 = vmax.f32 %v2288, 0.0
        %v2694 = vmax.f32 %v2290, 0.0
        %v2695 = vmax.f32 %v2545, 0.0
        %v2696 = vmax.f32 %v2547, 0.0
        %v2697 = vmax.f32 %v2294, 0.0
        %v2698 = vmax.f32 %v2296, 0.0
        %v2699 = vmax.f32 %v2551, 0.0
        %v2700 = vmax.f32 %v2553, 0.0
        %v2701 = vmax.f32 %v2300, 0.0
        %v2702 = vmax.f32 %v2302, 0.0
        %v2703 = vmax.f32 %v2557, 0.0
        %v2704 = vmax.f32 %v2559, 0.0
        %v2705 = vmax.f32 %v2306, 0.0
        %v2706 = vmax.f32 %v2308, 0.0
        %v2707 = vmax.f32 %v2563, 0.0
        %v2708 = vmax.f32 %v2565, 0.0
        %v2709 = vmax.f32 %v2312, 0.0
        %v2710 = vmax.f32 %v2314, 0.0
        %v2711 = vmax.f32 %v2569, 0.0
        %v2712 = vmax.f32 %v2571, 0.0
        %v2713 = vmax.f32 %v2318, 0.0
        %v2714 = vmax.f32 %v2320, 0.0
        %v2715 = vmax.f32 %v2575, 0.0
        %v2716 = vmax.f32 %v2577, 0.0
        %v2717 = vmax.f32 %v2324, 0.0
        %v2718 = vmax.f32 %v2326, 0.0
        %v2719 = vmax.f32 %v2581, 0.0
        %v2720 = vmax.f32 %v2583, 0.0
        %v2721 = vmax.f32 %v2330, 0.0
        %v2722 = vmax.f32 %v2332, 0.0
        %v2723 = vmax.f32 %v2587, 0.0
        %v2724 = vmax.f32 %v2589, 0.0
        %v2725 = vmax.f32 %v2336, 0.0
        %v2726 = vmax.f32 %v2338, 0.0
        %v2727 = vmax.f32 %v2593, 0.0
        %v2728 = vmax.f32 %v2595, 0.0
        %v2729 = vmax.f32 %v2342, 0.0
        %v2730 = vmax.f32 %v2344, 0.0
        %v2731 = vmax.f32 %v2599, 0.0
        %v2732 = vmax.f32 %v2601, 0.0
        %v2733 = vmax.f32 %v2348, 0.0
        %v2734 = vmax.f32 %v2350, 0.0
        %v2735 = vmax.f32 %v2605, 0.0
        %v2736 = vmax.f32 %v2607, 0.0
        %v2737 = vpack.c.bf16 %v2613, %v2609
        %v2738 = vpack.c.bf16 %v2614, %v2610
        %v2739 = vpack.c.bf16 %v2615, %v2611
        %v2740 = vpack.c.bf16 %v2616, %v2612
        %v2741 = vpack.c.bf16 %v2621, %v2617
        %v2742 = vpack.c.bf16 %v2622, %v2618
        %v2743 = vpack.c.bf16 %v2623, %v2619
        %v2744 = vpack.c.bf16 %v2624, %v2620
        %v2745 = vpack.c.bf16 %v2629, %v2625
        %v2746 = vpack.c.bf16 %v2630, %v2626
        %v2747 = vpack.c.bf16 %v2631, %v2627
        %v2748 = vpack.c.bf16 %v2632, %v2628
        %v2749 = vpack.c.bf16 %v2637, %v2633
        %v2750 = vpack.c.bf16 %v2638, %v2634
        %v2751 = vpack.c.bf16 %v2639, %v2635
        %v2752 = vpack.c.bf16 %v2640, %v2636
        %v2753 = vpack.c.bf16 %v2645, %v2641
        %v2754 = vpack.c.bf16 %v2646, %v2642
        %v2755 = vpack.c.bf16 %v2647, %v2643
        %v2756 = vpack.c.bf16 %v2648, %v2644
        %v2757 = vpack.c.bf16 %v2653, %v2649
        %v2758 = vpack.c.bf16 %v2654, %v2650
        %v2759 = vpack.c.bf16 %v2655, %v2651
        %v2760 = vpack.c.bf16 %v2656, %v2652
        %v2761 = vpack.c.bf16 %v2661, %v2657
        %v2762 = vpack.c.bf16 %v2662, %v2658
        %v2763 = vpack.c.bf16 %v2663, %v2659
        %v2764 = vpack.c.bf16 %v2664, %v2660
        %v2765 = vpack.c.bf16 %v2669, %v2665
        %v2766 = vpack.c.bf16 %v2670, %v2666
        %v2767 = vpack.c.bf16 %v2671, %v2667
        %v2768 = vpack.c.bf16 %v2672, %v2668
        %v2769 = vpack.c.bf16 %v2677, %v2673
        %v2770 = vpack.c.bf16 %v2678, %v2674
        %v2771 = vpack.c.bf16 %v2679, %v2675
        %v2772 = vpack.c.bf16 %v2680, %v2676
        %v2773 = vpack.c.bf16 %v2685, %v2681
        %v2774 = vpack.c.bf16 %v2686, %v2682
        %v2775 = vpack.c.bf16 %v2687, %v2683
        %v2776 = vpack.c.bf16 %v2688, %v2684
        %v2777 = vpack.c.bf16 %v2693, %v2689
        %v2778 = vpack.c.bf16 %v2694, %v2690
        %v2779 = vpack.c.bf16 %v2695, %v2691
        %v2780 = vpack.c.bf16 %v2696, %v2692
        %v2781 = vpack.c.bf16 %v2701, %v2697
        %v2782 = vpack.c.bf16 %v2702, %v2698
        %v2783 = vpack.c.bf16 %v2703, %v2699
        %v2784 = vpack.c.bf16 %v2704, %v2700
        %v2785 = vpack.c.bf16 %v2709, %v2705
        %v2786 = vpack.c.bf16 %v2710, %v2706
        %v2787 = vpack.c.bf16 %v2711, %v2707
        %v2788 = vpack.c.bf16 %v2712, %v2708
        %v2789 = vpack.c.bf16 %v2717, %v2713
        %v2790 = vpack.c.bf16 %v2718, %v2714
        %v2791 = vpack.c.bf16 %v2719, %v2715
        %v2792 = vpack.c.bf16 %v2720, %v2716
        %v2793 = vpack.c.bf16 %v2725, %v2721
        %v2794 = vpack.c.bf16 %v2726, %v2722
        %v2795 = vpack.c.bf16 %v2727, %v2723
        %v2796 = vpack.c.bf16 %v2728, %v2724
        %v2797 = vpack.c.bf16 %v2733, %v2729
        %v2798 = vpack.c.bf16 %v2734, %v2730
        %v2799 = vpack.c.bf16 %v2735, %v2731
        %v2800 = vpack.c.bf16 %v2736, %v2732
        %v2801 = vld [vmem:[#allocation2] sm:$0xff]
        %v2802 = vld [vmem:[#allocation2 + $0x8] sm:$0xff]
        %v2803 = vld [vmem:[#allocation2 + $0x10] sm:$0xff]
        %v2804 = vld [vmem:[#allocation2 + $0x18] sm:$0xff]
        %v2805 = vld [vmem:[#allocation2 + $0x20] sm:$0xff]
        %v2806 = vld [vmem:[#allocation2 + $0x28] sm:$0xff]
        %v2807 = vld [vmem:[#allocation2 + $0x30] sm:$0xff]
        %v2808 = vld [vmem:[#allocation2 + $0x38] sm:$0xff]
        %v2809 = vld [vmem:[#allocation2 + $0x40] sm:$0xff]
        %v2810 = vld [vmem:[#allocation2 + $0x48] sm:$0xff]
        %v2811 = vld [vmem:[#allocation2 + $0x50] sm:$0xff]
        %v2812 = vld [vmem:[#allocation2 + $0x58] sm:$0xff]
        %v2813 = vld [vmem:[#allocation2 + $0x60] sm:$0xff]
        %v2814 = vld [vmem:[#allocation2 + $0x68] sm:$0xff]
        %v2815 = vld [vmem:[#allocation2 + $0x70] sm:$0xff]
        %v2816 = vld [vmem:[#allocation2 + $0x78] sm:$0xff]
        %v2817 = vld [vmem:[#allocation2 + $0x80] sm:$0xff]
        %v2818 = vld [vmem:[#allocation2 + $0x88] sm:$0xff]
        %v2819 = vld [vmem:[#allocation2 + $0x90] sm:$0xff]
        %v2820 = vld [vmem:[#allocation2 + $0x98] sm:$0xff]
        %v2821 = vld [vmem:[#allocation2 + $0xa0] sm:$0xff]
        %v2822 = vld [vmem:[#allocation2 + $0xa8] sm:$0xff]
        %v2823 = vld [vmem:[#allocation2 + $0xb0] sm:$0xff]
        %v2824 = vld [vmem:[#allocation2 + $0xb8] sm:$0xff]
        %v2825 = vld [vmem:[#allocation2 + $0xc0] sm:$0xff]
        %v2826 = vld [vmem:[#allocation2 + $0xc8] sm:$0xff]
        %v2827 = vld [vmem:[#allocation2 + $0xd0] sm:$0xff]
        %v2828 = vld [vmem:[#allocation2 + $0xd8] sm:$0xff]
        %v2829 = vld [vmem:[#allocation2 + $0xe0] sm:$0xff]
        %v2830 = vld [vmem:[#allocation2 + $0xe8] sm:$0xff]
        %v2831 = vld [vmem:[#allocation2 + $0xf0] sm:$0xff]
        %v2832 = vld [vmem:[#allocation2 + $0xf8] sm:$0xff]
        %v2833 = vld [vmem:[#allocation2 + $0x100] sm:$0xff]
        %v2834 = vld [vmem:[#allocation2 + $0x108] sm:$0xff]
        %v2835 = vld [vmem:[#allocation2 + $0x110] sm:$0xff]
        %v2836 = vld [vmem:[#allocation2 + $0x118] sm:$0xff]
        %v2837 = vld [vmem:[#allocation2 + $0x120] sm:$0xff]
        %v2838 = vld [vmem:[#allocation2 + $0x128] sm:$0xff]
        %v2839 = vld [vmem:[#allocation2 + $0x130] sm:$0xff]
        %v2840 = vld [vmem:[#allocation2 + $0x138] sm:$0xff]
        %v2841 = vld [vmem:[#allocation2 + $0x140] sm:$0xff]
        %v2842 = vld [vmem:[#allocation2 + $0x148] sm:$0xff]
        %v2843 = vld [vmem:[#allocation2 + $0x150] sm:$0xff]
        %v2844 = vld [vmem:[#allocation2 + $0x158] sm:$0xff]
        %v2845 = vld [vmem:[#allocation2 + $0x160] sm:$0xff]
        %v2846 = vld [vmem:[#allocation2 + $0x168] sm:$0xff]
        %v2847 = vld [vmem:[#allocation2 + $0x170] sm:$0xff]
        %v2848 = vld [vmem:[#allocation2 + $0x178] sm:$0xff]
        %v2849 = vld [vmem:[#allocation2 + $0x180] sm:$0xff]
        %v2850 = vld [vmem:[#allocation2 + $0x188] sm:$0xff]
        %v2851 = vld [vmem:[#allocation2 + $0x190] sm:$0xff]
        %v2852 = vld [vmem:[#allocation2 + $0x198] sm:$0xff]
        %v2853 = vld [vmem:[#allocation2 + $0x1a0] sm:$0xff]
        %v2854 = vld [vmem:[#allocation2 + $0x1a8] sm:$0xff]
        %v2855 = vld [vmem:[#allocation2 + $0x1b0] sm:$0xff]
        %v2856 = vld [vmem:[#allocation2 + $0x1b8] sm:$0xff]
        %v2857 = vld [vmem:[#allocation2 + $0x1c0] sm:$0xff]
        %v2858 = vld [vmem:[#allocation2 + $0x1c8] sm:$0xff]
        %v2859 = vld [vmem:[#allocation2 + $0x1d0] sm:$0xff]
        %v2860 = vld [vmem:[#allocation2 + $0x1d8] sm:$0xff]
        %v2861 = vld [vmem:[#allocation2 + $0x1e0] sm:$0xff]
        %v2862 = vld [vmem:[#allocation2 + $0x1e8] sm:$0xff]
        %v2863 = vld [vmem:[#allocation2 + $0x1f0] sm:$0xff]
        %v2864 = vld [vmem:[#allocation2 + $0x1f8] sm:$0xff]
        %v2865 = vld [vmem:[#allocation3 + $0x200] sm:$0xff]
        %v2866 = vld [vmem:[#allocation3 + $0x208] sm:$0xff]
        %v2867 = vld [vmem:[#allocation3 + $0x210] sm:$0xff]
        %v2868 = vld [vmem:[#allocation3 + $0x218] sm:$0xff]
        %v2869 = vld [vmem:[#allocation3 + $0x220] sm:$0xff]
        %v2870 = vld [vmem:[#allocation3 + $0x228] sm:$0xff]
        %v2871 = vld [vmem:[#allocation3 + $0x230] sm:$0xff]
        %v2872 = vld [vmem:[#allocation3 + $0x238] sm:$0xff]
        %v2873 = vld [vmem:[#allocation3 + $0x240] sm:$0xff]
        %v2874 = vld [vmem:[#allocation3 + $0x248] sm:$0xff]
        %v2875 = vld [vmem:[#allocation3 + $0x250] sm:$0xff]
        %v2876 = vld [vmem:[#allocation3 + $0x258] sm:$0xff]
        %v2877 = vld [vmem:[#allocation3 + $0x260] sm:$0xff]
        %v2878 = vld [vmem:[#allocation3 + $0x268] sm:$0xff]
        %v2879 = vld [vmem:[#allocation3 + $0x270] sm:$0xff]
        %v2880 = vld [vmem:[#allocation3 + $0x278] sm:$0xff]
        %v2881 = vld [vmem:[#allocation3 + $0x280] sm:$0xff]
        %v2882 = vld [vmem:[#allocation3 + $0x288] sm:$0xff]
        %v2883 = vld [vmem:[#allocation3 + $0x290] sm:$0xff]
        %v2884 = vld [vmem:[#allocation3 + $0x298] sm:$0xff]
        %v2885 = vld [vmem:[#allocation3 + $0x2a0] sm:$0xff]
        %v2886 = vld [vmem:[#allocation3 + $0x2a8] sm:$0xff]
        %v2887 = vld [vmem:[#allocation3 + $0x2b0] sm:$0xff]
        %v2888 = vld [vmem:[#allocation3 + $0x2b8] sm:$0xff]
        %v2889 = vld [vmem:[#allocation3 + $0x2c0] sm:$0xff]
        %v2890 = vld [vmem:[#allocation3 + $0x2c8] sm:$0xff]
        %v2891 = vld [vmem:[#allocation3 + $0x2d0] sm:$0xff]
        %v2892 = vld [vmem:[#allocation3 + $0x2d8] sm:$0xff]
        %v2893 = vld [vmem:[#allocation3 + $0x2e0] sm:$0xff]
        %v2894 = vld [vmem:[#allocation3 + $0x2e8] sm:$0xff]
        %v2895 = vld [vmem:[#allocation3 + $0x2f0] sm:$0xff]
        %v2896 = vld [vmem:[#allocation3 + $0x2f8] sm:$0xff]
        %v2897 = vld [vmem:[#allocation3 + $0x300] sm:$0xff]
        %v2898 = vld [vmem:[#allocation3 + $0x308] sm:$0xff]
        %v2899 = vld [vmem:[#allocation3 + $0x310] sm:$0xff]
        %v2900 = vld [vmem:[#allocation3 + $0x318] sm:$0xff]
        %v2901 = vld [vmem:[#allocation3 + $0x320] sm:$0xff]
        %v2902 = vld [vmem:[#allocation3 + $0x328] sm:$0xff]
        %v2903 = vld [vmem:[#allocation3 + $0x330] sm:$0xff]
        %v2904 = vld [vmem:[#allocation3 + $0x338] sm:$0xff]
        %v2905 = vld [vmem:[#allocation3 + $0x340] sm:$0xff]
        %v2906 = vld [vmem:[#allocation3 + $0x348] sm:$0xff]
        %v2907 = vld [vmem:[#allocation3 + $0x350] sm:$0xff]
        %v2908 = vld [vmem:[#allocation3 + $0x358] sm:$0xff]
        %v2909 = vld [vmem:[#allocation3 + $0x360] sm:$0xff]
        %v2910 = vld [vmem:[#allocation3 + $0x368] sm:$0xff]
        %v2911 = vld [vmem:[#allocation3 + $0x370] sm:$0xff]
        %v2912 = vld [vmem:[#allocation3 + $0x378] sm:$0xff]
        %v2913 = vld [vmem:[#allocation3 + $0x380] sm:$0xff]
        %v2914 = vld [vmem:[#allocation3 + $0x388] sm:$0xff]
        %v2915 = vld [vmem:[#allocation3 + $0x390] sm:$0xff]
        %v2916 = vld [vmem:[#allocation3 + $0x398] sm:$0xff]
        %v2917 = vld [vmem:[#allocation3 + $0x3a0] sm:$0xff]
        %v2918 = vld [vmem:[#allocation3 + $0x3a8] sm:$0xff]
        %v2919 = vld [vmem:[#allocation3 + $0x3b0] sm:$0xff]
        %v2920 = vld [vmem:[#allocation3 + $0x3b8] sm:$0xff]
        %v2921 = vld [vmem:[#allocation3 + $0x3c0] sm:$0xff]
        %v2922 = vld [vmem:[#allocation3 + $0x3c8] sm:$0xff]
        %v2923 = vld [vmem:[#allocation3 + $0x3d0] sm:$0xff]
        %v2924 = vld [vmem:[#allocation3 + $0x3d8] sm:$0xff]
        %v2925 = vld [vmem:[#allocation3 + $0x3e0] sm:$0xff]
        %v2926 = vld [vmem:[#allocation3 + $0x3e8] sm:$0xff]
        %v2927 = vld [vmem:[#allocation3 + $0x3f0] sm:$0xff]
        %v2928 = vld [vmem:[#allocation3 + $0x3f8] sm:$0xff]
        %v2993 = vunpack.c.l.b16 %v2865
        %v2994 = vunpack.c.h.b16 %v2865
        %v2995 = vunpack.c.l.b16 %v2866
        %v2996 = vunpack.c.h.b16 %v2866
        %v2997 = vunpack.c.l.b16 %v2867
        %v2998 = vunpack.c.h.b16 %v2867
        %v2999 = vunpack.c.l.b16 %v2868
        %v3000 = vunpack.c.h.b16 %v2868
        %v3001 = vunpack.c.l.b16 %v2869
        %v3002 = vunpack.c.h.b16 %v2869
        %v3003 = vunpack.c.l.b16 %v2870
        %v3004 = vunpack.c.h.b16 %v2870
        %v3005 = vunpack.c.l.b16 %v2871
        %v3006 = vunpack.c.h.b16 %v2871
        %v3007 = vunpack.c.l.b16 %v2872
        %v3008 = vunpack.c.h.b16 %v2872
        %v3009 = vunpack.c.l.b16 %v2873
        %v3010 = vunpack.c.h.b16 %v2873
        %v3011 = vunpack.c.l.b16 %v2874
        %v3012 = vunpack.c.h.b16 %v2874
        %v3013 = vunpack.c.l.b16 %v2875
        %v3014 = vunpack.c.h.b16 %v2875
        %v3015 = vunpack.c.l.b16 %v2876
        %v3016 = vunpack.c.h.b16 %v2876
        %v3017 = vunpack.c.l.b16 %v2877
        %v3018 = vunpack.c.h.b16 %v2877
        %v3019 = vunpack.c.l.b16 %v2878
        %v3020 = vunpack.c.h.b16 %v2878
        %v3021 = vunpack.c.l.b16 %v2879
        %v3022 = vunpack.c.h.b16 %v2879
        %v3023 = vunpack.c.l.b16 %v2880
        %v3024 = vunpack.c.h.b16 %v2880
        %v3025 = vunpack.c.l.b16 %v2881
        %v3026 = vunpack.c.h.b16 %v2881
        %v3027 = vunpack.c.l.b16 %v2882
        %v3028 = vunpack.c.h.b16 %v2882
        %v3029 = vunpack.c.l.b16 %v2883
        %v3030 = vunpack.c.h.b16 %v2883
        %v3031 = vunpack.c.l.b16 %v2884
        %v3032 = vunpack.c.h.b16 %v2884
        %v3033 = vunpack.c.l.b16 %v2885
        %v3034 = vunpack.c.h.b16 %v2885
        %v3035 = vunpack.c.l.b16 %v2886
        %v3036 = vunpack.c.h.b16 %v2886
        %v3037 = vunpack.c.l.b16 %v2887
        %v3038 = vunpack.c.h.b16 %v2887
        %v3039 = vunpack.c.l.b16 %v2888
        %v3040 = vunpack.c.h.b16 %v2888
        %v3041 = vunpack.c.l.b16 %v2889
        %v3042 = vunpack.c.h.b16 %v2889
        %v3043 = vunpack.c.l.b16 %v2890
        %v3044 = vunpack.c.h.b16 %v2890
        %v3045 = vunpack.c.l.b16 %v2891
        %v3046 = vunpack.c.h.b16 %v2891
        %v3047 = vunpack.c.l.b16 %v2892
        %v3048 = vunpack.c.h.b16 %v2892
        %v3049 = vunpack.c.l.b16 %v2893
        %v3050 = vunpack.c.h.b16 %v2893
        %v3051 = vunpack.c.l.b16 %v2894
        %v3052 = vunpack.c.h.b16 %v2894
        %v3053 = vunpack.c.l.b16 %v2895
        %v3054 = vunpack.c.h.b16 %v2895
        %v3055 = vunpack.c.l.b16 %v2896
        %v3056 = vunpack.c.h.b16 %v2896
        %v3057 = vunpack.c.l.b16 %v2897
        %v3058 = vunpack.c.h.b16 %v2897
        %v3059 = vunpack.c.l.b16 %v2898
        %v3060 = vunpack.c.h.b16 %v2898
        %v3061 = vunpack.c.l.b16 %v2899
        %v3062 = vunpack.c.h.b16 %v2899
        %v3063 = vunpack.c.l.b16 %v2900
        %v3064 = vunpack.c.h.b16 %v2900
        %v3065 = vunpack.c.l.b16 %v2901
        %v3066 = vunpack.c.h.b16 %v2901
        %v3067 = vunpack.c.l.b16 %v2902
        %v3068 = vunpack.c.h.b16 %v2902
        %v3069 = vunpack.c.l.b16 %v2903
        %v3070 = vunpack.c.h.b16 %v2903
        %v3071 = vunpack.c.l.b16 %v2904
        %v3072 = vunpack.c.h.b16 %v2904
        %v3073 = vunpack.c.l.b16 %v2905
        %v3074 = vunpack.c.h.b16 %v2905
        %v3075 = vunpack.c.l.b16 %v2906
        %v3076 = vunpack.c.h.b16 %v2906
        %v3077 = vunpack.c.l.b16 %v2907
        %v3078 = vunpack.c.h.b16 %v2907
        %v3079 = vunpack.c.l.b16 %v2908
        %v3080 = vunpack.c.h.b16 %v2908
        %v3081 = vunpack.c.l.b16 %v2909
        %v3082 = vunpack.c.h.b16 %v2909
        %v3083 = vunpack.c.l.b16 %v2910
        %v3084 = vunpack.c.h.b16 %v2910
        %v3085 = vunpack.c.l.b16 %v2911
        %v3086 = vunpack.c.h.b16 %v2911
        %v3087 = vunpack.c.l.b16 %v2912
        %v3088 = vunpack.c.h.b16 %v2912
        %v3089 = vunpack.c.l.b16 %v2913
        %v3090 = vunpack.c.h.b16 %v2913
        %v3091 = vunpack.c.l.b16 %v2914
        %v3092 = vunpack.c.h.b16 %v2914
        %v3093 = vunpack.c.l.b16 %v2915
        %v3094 = vunpack.c.h.b16 %v2915
        %v3095 = vunpack.c.l.b16 %v2916
        %v3096 = vunpack.c.h.b16 %v2916
        %v3097 = vunpack.c.l.b16 %v2917
        %v3098 = vunpack.c.h.b16 %v2917
        %v3099 = vunpack.c.l.b16 %v2918
        %v3100 = vunpack.c.h.b16 %v2918
        %v3101 = vunpack.c.l.b16 %v2919
        %v3102 = vunpack.c.h.b16 %v2919
        %v3103 = vunpack.c.l.b16 %v2920
        %v3104 = vunpack.c.h.b16 %v2920
        %v3105 = vunpack.c.l.b16 %v2921
        %v3106 = vunpack.c.h.b16 %v2921
        %v3107 = vunpack.c.l.b16 %v2922
        %v3108 = vunpack.c.h.b16 %v2922
        %v3109 = vunpack.c.l.b16 %v2923
        %v3110 = vunpack.c.h.b16 %v2923
        %v3111 = vunpack.c.l.b16 %v2924
        %v3112 = vunpack.c.h.b16 %v2924
        %v3113 = vunpack.c.l.b16 %v2925
        %v3114 = vunpack.c.h.b16 %v2925
        %v3115 = vunpack.c.l.b16 %v2926
        %v3116 = vunpack.c.h.b16 %v2926
        %v3117 = vunpack.c.l.b16 %v2927
        %v3118 = vunpack.c.h.b16 %v2927
        %v3119 = vunpack.c.l.b16 %v2928
        %v3120 = vunpack.c.h.b16 %v2928
        %v3121 = vpack.c.b16 %v2995, %v2993
        %v3122 = vpack.c.b16 %v2996, %v2994
        %v3123 = vpack.c.b16 %v2999, %v2997
        %v3124 = vpack.c.b16 %v3000, %v2998
        %v3125 = vpack.c.b16 %v3003, %v3001
        %v3126 = vpack.c.b16 %v3004, %v3002
        %v3127 = vpack.c.b16 %v3007, %v3005
        %v3128 = vpack.c.b16 %v3008, %v3006
        %v3129 = vpack.c.b16 %v3011, %v3009
        %v3130 = vpack.c.b16 %v3012, %v3010
        %v3131 = vpack.c.b16 %v3015, %v3013
        %v3132 = vpack.c.b16 %v3016, %v3014
        %v3133 = vpack.c.b16 %v3019, %v3017
        %v3134 = vpack.c.b16 %v3020, %v3018
        %v3135 = vpack.c.b16 %v3023, %v3021
        %v3136 = vpack.c.b16 %v3024, %v3022
        %v3137 = vpack.c.b16 %v3027, %v3025
        %v3138 = vpack.c.b16 %v3028, %v3026
        %v3139 = vpack.c.b16 %v3031, %v3029
        %v3140 = vpack.c.b16 %v3032, %v3030
        %v3141 = vpack.c.b16 %v3035, %v3033
        %v3142 = vpack.c.b16 %v3036, %v3034
        %v3143 = vpack.c.b16 %v3039, %v3037
        %v3144 = vpack.c.b16 %v3040, %v3038
        %v3145 = vpack.c.b16 %v3043, %v3041
        %v3146 = vpack.c.b16 %v3044, %v3042
        %v3147 = vpack.c.b16 %v3047, %v3045
        %v3148 = vpack.c.b16 %v3048, %v3046
        %v3149 = vpack.c.b16 %v3051, %v3049
        %v3150 = vpack.c.b16 %v3052, %v3050
        %v3151 = vpack.c.b16 %v3055, %v3053
        %v3152 = vpack.c.b16 %v3056, %v3054
        %v3153 = vpack.c.b16 %v3059, %v3057
        %v3154 = vpack.c.b16 %v3060, %v3058
        %v3155 = vpack.c.b16 %v3063, %v3061
        %v3156 = vpack.c.b16 %v3064, %v3062
        %v3157 = vpack.c.b16 %v3067, %v3065
        %v3158 = vpack.c.b16 %v3068, %v3066
        %v3159 = vpack.c.b16 %v3071, %v3069
        %v3160 = vpack.c.b16 %v3072, %v3070
        %v3161 = vpack.c.b16 %v3075, %v3073
        %v3162 = vpack.c.b16 %v3076, %v3074
        %v3163 = vpack.c.b16 %v3079, %v3077
        %v3164 = vpack.c.b16 %v3080, %v3078
        %v3165 = vpack.c.b16 %v3083, %v3081
        %v3166 = vpack.c.b16 %v3084, %v3082
        %v3167 = vpack.c.b16 %v3087, %v3085
        %v3168 = vpack.c.b16 %v3088, %v3086
        %v3169 = vpack.c.b16 %v3091, %v3089
        %v3170 = vpack.c.b16 %v3092, %v3090
        %v3171 = vpack.c.b16 %v3095, %v3093
        %v3172 = vpack.c.b16 %v3096, %v3094
        %v3173 = vpack.c.b16 %v3099, %v3097
        %v3174 = vpack.c.b16 %v3100, %v3098
        %v3175 = vpack.c.b16 %v3103, %v3101
        %v3176 = vpack.c.b16 %v3104, %v3102
        %v3177 = vpack.c.b16 %v3107, %v3105
        %v3178 = vpack.c.b16 %v3108, %v3106
        %v3179 = vpack.c.b16 %v3111, %v3109
        %v3180 = vpack.c.b16 %v3112, %v3110
        %v3181 = vpack.c.b16 %v3115, %v3113
        %v3182 = vpack.c.b16 %v3116, %v3114
        %v3183 = vpack.c.b16 %v3119, %v3117
        %v3184 = vpack.c.b16 %v3120, %v3118
        %3249 = vmatprep.subr.bf16.mxu0 %v3136
        %3250 = vmatpush1.bf16.msra.mxu0 %v3135
        %3251 = vmatprep.subr.bf16.mxu0 %v3134
        %3252 = vmatpush1.bf16.msra.mxu0 %v3133
        %3253 = vmatprep.subr.bf16.mxu0 %v3132
        %3254 = vmatpush1.bf16.msra.mxu0 %v3131
        %3255 = vmatprep.subr.bf16.mxu0 %v3130
        %3256 = vmatpush1.bf16.msra.mxu0 %v3129
        %3257 = vmatprep.subr.bf16.mxu0 %v3128
        %3258 = vmatpush1.bf16.msra.mxu0 %v3127
        %3259 = vmatprep.subr.bf16.mxu0 %v3126
        %3260 = vmatpush1.bf16.msra.mxu0 %v3125
        %3261 = vmatprep.subr.bf16.mxu0 %v3124
        %3262 = vmatpush1.bf16.msra.mxu0 %v3123
        %3263 = vmatprep.subr.bf16.mxu0 %v3122
        %3264 = vmatpush1.bf16.msra.mxu0 %v3121
        %3265 = vmatprep.subr.bf16.mxu0 %v3152
        %3266 = vmatpush2.bf16.msra.mxu0 %v3151
        %3267 = vmatprep.subr.bf16.mxu0 %v3150
        %3268 = vmatpush2.bf16.msra.mxu0 %v3149
        %3269 = vmatprep.subr.bf16.mxu0 %v3148
        %3270 = vmatpush2.bf16.msra.mxu0 %v3147
        %3271 = vmatprep.subr.bf16.mxu0 %v3146
        %3272 = vmatpush2.bf16.msra.mxu0 %v3145
        %3273 = vmatprep.subr.bf16.mxu0 %v3144
        %3274 = vmatpush2.bf16.msra.mxu0 %v3143
        %3275 = vmatprep.subr.bf16.mxu0 %v3142
        %3276 = vmatpush2.bf16.msra.mxu0 %v3141
        %3277 = vmatprep.subr.bf16.mxu0 %v3140
        %3278 = vmatpush2.bf16.msra.mxu0 %v3139
        %3279 = vmatprep.subr.bf16.mxu0 %v3138
        %3280 = vmatpush2.bf16.msra.mxu0 %v3137
        %3281 = vmatprep.mubr.bf16.mxu0 %v2738
        %3282 = vmatmul.mubr.bf16.gmra.mxu0 %v2737
        %v3283 = vpop.f32.mrf.mxu0
        %v3284 = vadd.f32 0.0, %v3283
        %v3285 = vpop.f32.mrf.mxu0
        %v3286 = vadd.f32 0.0, %v3285
        %v3287 = vpop.f32.mrf.mxu0
        %v3288 = vadd.f32 0.0, %v3287
        %v3289 = vpop.f32.mrf.mxu0
        %v3290 = vadd.f32 0.0, %v3289
        %3291 = vmatprep.mubr.bf16.mxu0 %v2742
        %3292 = vmatmul.mubr.bf16.gmra.mxu0 %v2741
        %v3293 = vpop.f32.mrf.mxu0
        %v3294 = vadd.f32 0.0, %v3293
        %v3295 = vpop.f32.mrf.mxu0
        %v3296 = vadd.f32 0.0, %v3295
        %v3297 = vpop.f32.mrf.mxu0
        %v3298 = vadd.f32 0.0, %v3297
        %v3299 = vpop.f32.mrf.mxu0
        %v3300 = vadd.f32 0.0, %v3299
        %3301 = vmatprep.mubr.bf16.mxu0 %v2746
        %3302 = vmatmul.mubr.bf16.gmra.mxu0 %v2745
        %v3303 = vpop.f32.mrf.mxu0
        %v3304 = vadd.f32 0.0, %v3303
        %v3305 = vpop.f32.mrf.mxu0
        %v3306 = vadd.f32 0.0, %v3305
        %v3307 = vpop.f32.mrf.mxu0
        %v3308 = vadd.f32 0.0, %v3307
        %v3309 = vpop.f32.mrf.mxu0
        %v3310 = vadd.f32 0.0, %v3309
        %3311 = vmatprep.mubr.bf16.mxu0 %v2750
        %3312 = vmatmul.mubr.bf16.gmra.mxu0 %v2749
        %v3313 = vpop.f32.mrf.mxu0
        %v3314 = vadd.f32 0.0, %v3313
        %v3315 = vpop.f32.mrf.mxu0
        %v3316 = vadd.f32 0.0, %v3315
        %v3317 = vpop.f32.mrf.mxu0
        %v3318 = vadd.f32 0.0, %v3317
        %v3319 = vpop.f32.mrf.mxu0
        %v3320 = vadd.f32 0.0, %v3319
        %3321 = vmatprep.mubr.bf16.mxu0 %v2754
        %3322 = vmatmul.mubr.bf16.gmra.mxu0 %v2753
        %v3323 = vpop.f32.mrf.mxu0
        %v3324 = vadd.f32 0.0, %v3323
        %v3325 = vpop.f32.mrf.mxu0
        %v3326 = vadd.f32 0.0, %v3325
        %v3327 = vpop.f32.mrf.mxu0
        %v3328 = vadd.f32 0.0, %v3327
        %v3329 = vpop.f32.mrf.mxu0
        %v3330 = vadd.f32 0.0, %v3329
        %3331 = vmatprep.mubr.bf16.mxu0 %v2758
        %3332 = vmatmul.mubr.bf16.gmra.mxu0 %v2757
        %v3333 = vpop.f32.mrf.mxu0
        %v3334 = vadd.f32 0.0, %v3333
        %v3335 = vpop.f32.mrf.mxu0
        %v3336 = vadd.f32 0.0, %v3335
        %v3337 = vpop.f32.mrf.mxu0
        %v3338 = vadd.f32 0.0, %v3337
        %v3339 = vpop.f32.mrf.mxu0
        %v3340 = vadd.f32 0.0, %v3339
        %3341 = vmatprep.mubr.bf16.mxu0 %v2762
        %3342 = vmatmul.mubr.bf16.gmra.mxu0 %v2761
        %v3343 = vpop.f32.mrf.mxu0
        %v3344 = vadd.f32 0.0, %v3343
        %v3345 = vpop.f32.mrf.mxu0
        %v3346 = vadd.f32 0.0, %v3345
        %v3347 = vpop.f32.mrf.mxu0
        %v3348 = vadd.f32 0.0, %v3347
        %v3349 = vpop.f32.mrf.mxu0
        %v3350 = vadd.f32 0.0, %v3349
        %3351 = vmatprep.mubr.bf16.mxu0 %v2766
        %3352 = vmatmul.mubr.bf16.gmra.mxu0 %v2765
        %v3353 = vpop.f32.mrf.mxu0
        %v3354 = vadd.f32 0.0, %v3353
        %v3355 = vpop.f32.mrf.mxu0
        %v3356 = vadd.f32 0.0, %v3355
        %v3357 = vpop.f32.mrf.mxu0
        %v3358 = vadd.f32 0.0, %v3357
        %v3359 = vpop.f32.mrf.mxu0
        %v3360 = vadd.f32 0.0, %v3359
        %3361 = vmatprep.mubr.bf16.mxu0 %v2770
        %3362 = vmatmul.mubr.bf16.gmra.mxu0 %v2769
        %v3363 = vpop.f32.mrf.mxu0
        %v3364 = vadd.f32 0.0, %v3363
        %v3365 = vpop.f32.mrf.mxu0
        %v3366 = vadd.f32 0.0, %v3365
        %v3367 = vpop.f32.mrf.mxu0
        %v3368 = vadd.f32 0.0, %v3367
        %v3369 = vpop.f32.mrf.mxu0
        %v3370 = vadd.f32 0.0, %v3369
        %3371 = vmatprep.mubr.bf16.mxu0 %v2774
        %3372 = vmatmul.mubr.bf16.gmra.mxu0 %v2773
        %v3373 = vpop.f32.mrf.mxu0
        %v3374 = vadd.f32 0.0, %v3373
        %v3375 = vpop.f32.mrf.mxu0
        %v3376 = vadd.f32 0.0, %v3375
        %v3377 = vpop.f32.mrf.mxu0
        %v3378 = vadd.f32 0.0, %v3377
        %v3379 = vpop.f32.mrf.mxu0
        %v3380 = vadd.f32 0.0, %v3379
        %3381 = vmatprep.mubr.bf16.mxu0 %v2778
        %3382 = vmatmul.mubr.bf16.gmra.mxu0 %v2777
        %v3383 = vpop.f32.mrf.mxu0
        %v3384 = vadd.f32 0.0, %v3383
        %v3385 = vpop.f32.mrf.mxu0
        %v3386 = vadd.f32 0.0, %v3385
        %v3387 = vpop.f32.mrf.mxu0
        %v3388 = vadd.f32 0.0, %v3387
        %v3389 = vpop.f32.mrf.mxu0
        %v3390 = vadd.f32 0.0, %v3389
        %3391 = vmatprep.mubr.bf16.mxu0 %v2782
        %3392 = vmatmul.mubr.bf16.gmra.mxu0 %v2781
        %v3393 = vpop.f32.mrf.mxu0
        %v3394 = vadd.f32 0.0, %v3393
        %v3395 = vpop.f32.mrf.mxu0
        %v3396 = vadd.f32 0.0, %v3395
        %v3397 = vpop.f32.mrf.mxu0
        %v3398 = vadd.f32 0.0, %v3397
        %v3399 = vpop.f32.mrf.mxu0
        %v3400 = vadd.f32 0.0, %v3399
        %3401 = vmatprep.mubr.bf16.mxu0 %v2786
        %3402 = vmatmul.mubr.bf16.gmra.mxu0 %v2785
        %v3403 = vpop.f32.mrf.mxu0
        %v3404 = vadd.f32 0.0, %v3403
        %v3405 = vpop.f32.mrf.mxu0
        %v3406 = vadd.f32 0.0, %v3405
        %v3407 = vpop.f32.mrf.mxu0
        %v3408 = vadd.f32 0.0, %v3407
        %v3409 = vpop.f32.mrf.mxu0
        %v3410 = vadd.f32 0.0, %v3409
        %3411 = vmatprep.mubr.bf16.mxu0 %v2790
        %3412 = vmatmul.mubr.bf16.gmra.mxu0 %v2789
        %v3413 = vpop.f32.mrf.mxu0
        %v3414 = vadd.f32 0.0, %v3413
        %v3415 = vpop.f32.mrf.mxu0
        %v3416 = vadd.f32 0.0, %v3415
        %v3417 = vpop.f32.mrf.mxu0
        %v3418 = vadd.f32 0.0, %v3417
        %v3419 = vpop.f32.mrf.mxu0
        %v3420 = vadd.f32 0.0, %v3419
        %3421 = vmatprep.mubr.bf16.mxu0 %v2794
        %3422 = vmatmul.mubr.bf16.gmra.mxu0 %v2793
        %v3423 = vpop.f32.mrf.mxu0
        %v3424 = vadd.f32 0.0, %v3423
        %v3425 = vpop.f32.mrf.mxu0
        %v3426 = vadd.f32 0.0, %v3425
        %v3427 = vpop.f32.mrf.mxu0
        %v3428 = vadd.f32 0.0, %v3427
        %v3429 = vpop.f32.mrf.mxu0
        %v3430 = vadd.f32 0.0, %v3429
        %3431 = vmatprep.mubr.bf16.mxu0 %v2798
        %3432 = vmatmul.mubr.bf16.gmra.mxu0 %v2797
        %v3433 = vpop.f32.mrf.mxu0
        %v3434 = vadd.f32 0.0, %v3433
        %v3435 = vpop.f32.mrf.mxu0
        %v3436 = vadd.f32 0.0, %v3435
        %v3437 = vpop.f32.mrf.mxu0
        %v3438 = vadd.f32 0.0, %v3437
        %v3439 = vpop.f32.mrf.mxu0
        %v3440 = vadd.f32 0.0, %v3439
        %3441 = vdwg.mxu0
        %3442 = vmatprep.subr.bf16.mxu0 %v3168
        %3443 = vmatpush1.bf16.msra.mxu0 %v3167
        %3444 = vmatprep.subr.bf16.mxu0 %v3166
        %3445 = vmatpush1.bf16.msra.mxu0 %v3165
        %3446 = vmatprep.subr.bf16.mxu0 %v3164
        %3447 = vmatpush1.bf16.msra.mxu0 %v3163
        %3448 = vmatprep.subr.bf16.mxu0 %v3162
        %3449 = vmatpush1.bf16.msra.mxu0 %v3161
        %3450 = vmatprep.subr.bf16.mxu0 %v3160
        %3451 = vmatpush1.bf16.msra.mxu0 %v3159
        %3452 = vmatprep.subr.bf16.mxu0 %v3158
        %3453 = vmatpush1.bf16.msra.mxu0 %v3157
        %3454 = vmatprep.subr.bf16.mxu0 %v3156
        %3455 = vmatpush1.bf16.msra.mxu0 %v3155
        %3456 = vmatprep.subr.bf16.mxu0 %v3154
        %3457 = vmatpush1.bf16.msra.mxu0 %v3153
        %3458 = vmatprep.subr.bf16.mxu0 %v3184
        %3459 = vmatpush2.bf16.msra.mxu0 %v3183
        %3460 = vmatprep.subr.bf16.mxu0 %v3182
        %3461 = vmatpush2.bf16.msra.mxu0 %v3181
        %3462 = vmatprep.subr.bf16.mxu0 %v3180
        %3463 = vmatpush2.bf16.msra.mxu0 %v3179
        %3464 = vmatprep.subr.bf16.mxu0 %v3178
        %3465 = vmatpush2.bf16.msra.mxu0 %v3177
        %3466 = vmatprep.subr.bf16.mxu0 %v3176
        %3467 = vmatpush2.bf16.msra.mxu0 %v3175
        %3468 = vmatprep.subr.bf16.mxu0 %v3174
        %3469 = vmatpush2.bf16.msra.mxu0 %v3173
        %3470 = vmatprep.subr.bf16.mxu0 %v3172
        %3471 = vmatpush2.bf16.msra.mxu0 %v3171
        %3472 = vmatprep.subr.bf16.mxu0 %v3170
        %3473 = vmatpush2.bf16.msra.mxu0 %v3169
        %3474 = vmatprep.mubr.bf16.mxu0 %v2740
        %3475 = vmatmul.mubr.bf16.gmra.mxu0 %v2739
        %v3476 = vpop.f32.mrf.mxu0
        %v3477 = vadd.f32 %v3284, %v3476
        %v3478 = vpop.f32.mrf.mxu0
        %v3479 = vadd.f32 %v3286, %v3478
        %v3480 = vpop.f32.mrf.mxu0
        %v3481 = vadd.f32 %v3288, %v3480
        %v3482 = vpop.f32.mrf.mxu0
        %v3483 = vadd.f32 %v3290, %v3482
        %3484 = vmatprep.mubr.bf16.mxu0 %v2744
        %3485 = vmatmul.mubr.bf16.gmra.mxu0 %v2743
        %v3486 = vpop.f32.mrf.mxu0
        %v3487 = vadd.f32 %v3294, %v3486
        %v3488 = vpop.f32.mrf.mxu0
        %v3489 = vadd.f32 %v3296, %v3488
        %v3490 = vpop.f32.mrf.mxu0
        %v3491 = vadd.f32 %v3298, %v3490
        %v3492 = vpop.f32.mrf.mxu0
        %v3493 = vadd.f32 %v3300, %v3492
        %3494 = vmatprep.mubr.bf16.mxu0 %v2748
        %3495 = vmatmul.mubr.bf16.gmra.mxu0 %v2747
        %v3496 = vpop.f32.mrf.mxu0
        %v3497 = vadd.f32 %v3304, %v3496
        %v3498 = vpop.f32.mrf.mxu0
        %v3499 = vadd.f32 %v3306, %v3498
        %v3500 = vpop.f32.mrf.mxu0
        %v3501 = vadd.f32 %v3308, %v3500
        %v3502 = vpop.f32.mrf.mxu0
        %v3503 = vadd.f32 %v3310, %v3502
        %3504 = vmatprep.mubr.bf16.mxu0 %v2752
        %3505 = vmatmul.mubr.bf16.gmra.mxu0 %v2751
        %v3506 = vpop.f32.mrf.mxu0
        %v3507 = vadd.f32 %v3314, %v3506
        %v3508 = vpop.f32.mrf.mxu0
        %v3509 = vadd.f32 %v3316, %v3508
        %v3510 = vpop.f32.mrf.mxu0
        %v3511 = vadd.f32 %v3318, %v3510
        %v3512 = vpop.f32.mrf.mxu0
        %v3513 = vadd.f32 %v3320, %v3512
        %3514 = vmatprep.mubr.bf16.mxu0 %v2756
        %3515 = vmatmul.mubr.bf16.gmra.mxu0 %v2755
        %v3516 = vpop.f32.mrf.mxu0
        %v3517 = vadd.f32 %v3324, %v3516
        %v3518 = vpop.f32.mrf.mxu0
        %v3519 = vadd.f32 %v3326, %v3518
        %v3520 = vpop.f32.mrf.mxu0
        %v3521 = vadd.f32 %v3328, %v3520
        %v3522 = vpop.f32.mrf.mxu0
        %v3523 = vadd.f32 %v3330, %v3522
        %3524 = vmatprep.mubr.bf16.mxu0 %v2760
        %3525 = vmatmul.mubr.bf16.gmra.mxu0 %v2759
        %v3526 = vpop.f32.mrf.mxu0
        %v3527 = vadd.f32 %v3334, %v3526
        %v3528 = vpop.f32.mrf.mxu0
        %v3529 = vadd.f32 %v3336, %v3528
        %v3530 = vpop.f32.mrf.mxu0
        %v3531 = vadd.f32 %v3338, %v3530
        %v3532 = vpop.f32.mrf.mxu0
        %v3533 = vadd.f32 %v3340, %v3532
        %3534 = vmatprep.mubr.bf16.mxu0 %v2764
        %3535 = vmatmul.mubr.bf16.gmra.mxu0 %v2763
        %v3536 = vpop.f32.mrf.mxu0
        %v3537 = vadd.f32 %v3344, %v3536
        %v3538 = vpop.f32.mrf.mxu0
        %v3539 = vadd.f32 %v3346, %v3538
        %v3540 = vpop.f32.mrf.mxu0
        %v3541 = vadd.f32 %v3348, %v3540
        %v3542 = vpop.f32.mrf.mxu0
        %v3543 = vadd.f32 %v3350, %v3542
        %3544 = vmatprep.mubr.bf16.mxu0 %v2768
        %3545 = vmatmul.mubr.bf16.gmra.mxu0 %v2767
        %v3546 = vpop.f32.mrf.mxu0
        %v3547 = vadd.f32 %v3354, %v3546
        %v3548 = vpop.f32.mrf.mxu0
        %v3549 = vadd.f32 %v3356, %v3548
        %v3550 = vpop.f32.mrf.mxu0
        %v3551 = vadd.f32 %v3358, %v3550
        %v3552 = vpop.f32.mrf.mxu0
        %v3553 = vadd.f32 %v3360, %v3552
        %3554 = vmatprep.mubr.bf16.mxu0 %v2772
        %3555 = vmatmul.mubr.bf16.gmra.mxu0 %v2771
        %v3556 = vpop.f32.mrf.mxu0
        %v3557 = vadd.f32 %v3364, %v3556
        %v3558 = vpop.f32.mrf.mxu0
        %v3559 = vadd.f32 %v3366, %v3558
        %v3560 = vpop.f32.mrf.mxu0
        %v3561 = vadd.f32 %v3368, %v3560
        %v3562 = vpop.f32.mrf.mxu0
        %v3563 = vadd.f32 %v3370, %v3562
        %3564 = vmatprep.mubr.bf16.mxu0 %v2776
        %3565 = vmatmul.mubr.bf16.gmra.mxu0 %v2775
        %v3566 = vpop.f32.mrf.mxu0
        %v3567 = vadd.f32 %v3374, %v3566
        %v3568 = vpop.f32.mrf.mxu0
        %v3569 = vadd.f32 %v3376, %v3568
        %v3570 = vpop.f32.mrf.mxu0
        %v3571 = vadd.f32 %v3378, %v3570
        %v3572 = vpop.f32.mrf.mxu0
        %v3573 = vadd.f32 %v3380, %v3572
        %3574 = vmatprep.mubr.bf16.mxu0 %v2780
        %3575 = vmatmul.mubr.bf16.gmra.mxu0 %v2779
        %v3576 = vpop.f32.mrf.mxu0
        %v3577 = vadd.f32 %v3384, %v3576
        %v3578 = vpop.f32.mrf.mxu0
        %v3579 = vadd.f32 %v3386, %v3578
        %v3580 = vpop.f32.mrf.mxu0
        %v3581 = vadd.f32 %v3388, %v3580
        %v3582 = vpop.f32.mrf.mxu0
        %v3583 = vadd.f32 %v3390, %v3582
        %3584 = vmatprep.mubr.bf16.mxu0 %v2784
        %3585 = vmatmul.mubr.bf16.gmra.mxu0 %v2783
        %v3586 = vpop.f32.mrf.mxu0
        %v3587 = vadd.f32 %v3394, %v3586
        %v3588 = vpop.f32.mrf.mxu0
        %v3589 = vadd.f32 %v3396, %v3588
        %v3590 = vpop.f32.mrf.mxu0
        %v3591 = vadd.f32 %v3398, %v3590
        %v3592 = vpop.f32.mrf.mxu0
        %v3593 = vadd.f32 %v3400, %v3592
        %3594 = vmatprep.mubr.bf16.mxu0 %v2788
        %3595 = vmatmul.mubr.bf16.gmra.mxu0 %v2787
        %v3596 = vpop.f32.mrf.mxu0
        %v3597 = vadd.f32 %v3404, %v3596
        %v3598 = vpop.f32.mrf.mxu0
        %v3599 = vadd.f32 %v3406, %v3598
        %v3600 = vpop.f32.mrf.mxu0
        %v3601 = vadd.f32 %v3408, %v3600
        %v3602 = vpop.f32.mrf.mxu0
        %v3603 = vadd.f32 %v3410, %v3602
        %3604 = vmatprep.mubr.bf16.mxu0 %v2792
        %3605 = vmatmul.mubr.bf16.gmra.mxu0 %v2791
        %v3606 = vpop.f32.mrf.mxu0
        %v3607 = vadd.f32 %v3414, %v3606
        %v3608 = vpop.f32.mrf.mxu0
        %v3609 = vadd.f32 %v3416, %v3608
        %v3610 = vpop.f32.mrf.mxu0
        %v3611 = vadd.f32 %v3418, %v3610
        %v3612 = vpop.f32.mrf.mxu0
        %v3613 = vadd.f32 %v3420, %v3612
        %3614 = vmatprep.mubr.bf16.mxu0 %v2796
        %3615 = vmatmul.mubr.bf16.gmra.mxu0 %v2795
        %v3616 = vpop.f32.mrf.mxu0
        %v3617 = vadd.f32 %v3424, %v3616
        %v3618 = vpop.f32.mrf.mxu0
        %v3619 = vadd.f32 %v3426, %v3618
        %v3620 = vpop.f32.mrf.mxu0
        %v3621 = vadd.f32 %v3428, %v3620
        %v3622 = vpop.f32.mrf.mxu0
        %v3623 = vadd.f32 %v3430, %v3622
        %3624 = vmatprep.mubr.bf16.mxu0 %v2800
        %3625 = vmatmul.mubr.bf16.gmra.mxu0 %v2799
        %v3626 = vpop.f32.mrf.mxu0
        %v3627 = vadd.f32 %v3434, %v3626
        %v3628 = vpop.f32.mrf.mxu0
        %v3629 = vadd.f32 %v3436, %v3628
        %v3630 = vpop.f32.mrf.mxu0
        %v3631 = vadd.f32 %v3438, %v3630
        %v3632 = vpop.f32.mrf.mxu0
        %v3633 = vadd.f32 %v3440, %v3632
        %3634 = vdwg.mxu0
        %v3635 = vadd.f32 %v2801, %v3477
        %v3636 = vadd.f32 %v2802, %v3479
        %v3637 = vadd.f32 %v2803, %v3481
        %v3638 = vadd.f32 %v2804, %v3483
        %v3639 = vadd.f32 %v2805, %v3487
        %v3640 = vadd.f32 %v2806, %v3489
        %v3641 = vadd.f32 %v2807, %v3491
        %v3642 = vadd.f32 %v2808, %v3493
        %v3643 = vadd.f32 %v2809, %v3497
        %v3644 = vadd.f32 %v2810, %v3499
        %v3645 = vadd.f32 %v2811, %v3501
        %v3646 = vadd.f32 %v2812, %v3503
        %v3647 = vadd.f32 %v2813, %v3507
        %v3648 = vadd.f32 %v2814, %v3509
        %v3649 = vadd.f32 %v2815, %v3511
        %v3650 = vadd.f32 %v2816, %v3513
        %v3651 = vadd.f32 %v2817, %v3517
        %v3652 = vadd.f32 %v2818, %v3519
        %v3653 = vadd.f32 %v2819, %v3521
        %v3654 = vadd.f32 %v2820, %v3523
        %v3655 = vadd.f32 %v2821, %v3527
        %v3656 = vadd.f32 %v2822, %v3529
        %v3657 = vadd.f32 %v2823, %v3531
        %v3658 = vadd.f32 %v2824, %v3533
        %v3659 = vadd.f32 %v2825, %v3537
        %v3660 = vadd.f32 %v2826, %v3539
        %v3661 = vadd.f32 %v2827, %v3541
        %v3662 = vadd.f32 %v2828, %v3543
        %v3663 = vadd.f32 %v2829, %v3547
        %v3664 = vadd.f32 %v2830, %v3549
        %v3665 = vadd.f32 %v2831, %v3551
        %v3666 = vadd.f32 %v2832, %v3553
        %v3667 = vadd.f32 %v2833, %v3557
        %v3668 = vadd.f32 %v2834, %v3559
        %v3669 = vadd.f32 %v2835, %v3561
        %v3670 = vadd.f32 %v2836, %v3563
        %v3671 = vadd.f32 %v2837, %v3567
        %v3672 = vadd.f32 %v2838, %v3569
        %v3673 = vadd.f32 %v2839, %v3571
        %v3674 = vadd.f32 %v2840, %v3573
        %v3675 = vadd.f32 %v2841, %v3577
        %v3676 = vadd.f32 %v2842, %v3579
        %v3677 = vadd.f32 %v2843, %v3581
        %v3678 = vadd.f32 %v2844, %v3583
        %v3679 = vadd.f32 %v2845, %v3587
        %v3680 = vadd.f32 %v2846, %v3589
        %v3681 = vadd.f32 %v2847, %v3591
        %v3682 = vadd.f32 %v2848, %v3593
        %v3683 = vadd.f32 %v2849, %v3597
        %v3684 = vadd.f32 %v2850, %v3599
        %v3685 = vadd.f32 %v2851, %v3601
        %v3686 = vadd.f32 %v2852, %v3603
        %v3687 = vadd.f32 %v2853, %v3607
        %v3688 = vadd.f32 %v2854, %v3609
        %v3689 = vadd.f32 %v2855, %v3611
        %v3690 = vadd.f32 %v2856, %v3613
        %v3691 = vadd.f32 %v2857, %v3617
        %v3692 = vadd.f32 %v2858, %v3619
        %v3693 = vadd.f32 %v2859, %v3621
        %v3694 = vadd.f32 %v2860, %v3623
        %v3695 = vadd.f32 %v2861, %v3627
        %v3696 = vadd.f32 %v2862, %v3629
        %v3697 = vadd.f32 %v2863, %v3631
        %v3698 = vadd.f32 %v2864, %v3633
        %3699 = vst [vmem:[#allocation2] sm:$0xff] %v3635
        %3700 = vst [vmem:[#allocation2 + $0x8] sm:$0xff] %v3636
        %3701 = vst [vmem:[#allocation2 + $0x10] sm:$0xff] %v3637
        %3702 = vst [vmem:[#allocation2 + $0x18] sm:$0xff] %v3638
        %3703 = vst [vmem:[#allocation2 + $0x20] sm:$0xff] %v3639
        %3704 = vst [vmem:[#allocation2 + $0x28] sm:$0xff] %v3640
        %3705 = vst [vmem:[#allocation2 + $0x30] sm:$0xff] %v3641
        %3706 = vst [vmem:[#allocation2 + $0x38] sm:$0xff] %v3642
        %3707 = vst [vmem:[#allocation2 + $0x40] sm:$0xff] %v3643
        %3708 = vst [vmem:[#allocation2 + $0x48] sm:$0xff] %v3644
        %3709 = vst [vmem:[#allocation2 + $0x50] sm:$0xff] %v3645
        %3710 = vst [vmem:[#allocation2 + $0x58] sm:$0xff] %v3646
        %3711 = vst [vmem:[#allocation2 + $0x60] sm:$0xff] %v3647
        %3712 = vst [vmem:[#allocation2 + $0x68] sm:$0xff] %v3648
        %3713 = vst [vmem:[#allocation2 + $0x70] sm:$0xff] %v3649
        %3714 = vst [vmem:[#allocation2 + $0x78] sm:$0xff] %v3650
        %3715 = vst [vmem:[#allocation2 + $0x80] sm:$0xff] %v3651
        %3716 = vst [vmem:[#allocation2 + $0x88] sm:$0xff] %v3652
        %3717 = vst [vmem:[#allocation2 + $0x90] sm:$0xff] %v3653
        %3718 = vst [vmem:[#allocation2 + $0x98] sm:$0xff] %v3654
        %3719 = vst [vmem:[#allocation2 + $0xa0] sm:$0xff] %v3655
        %3720 = vst [vmem:[#allocation2 + $0xa8] sm:$0xff] %v3656
        %3721 = vst [vmem:[#allocation2 + $0xb0] sm:$0xff] %v3657
        %3722 = vst [vmem:[#allocation2 + $0xb8] sm:$0xff] %v3658
        %3723 = vst [vmem:[#allocation2 + $0xc0] sm:$0xff] %v3659
        %3724 = vst [vmem:[#allocation2 + $0xc8] sm:$0xff] %v3660
        %3725 = vst [vmem:[#allocation2 + $0xd0] sm:$0xff] %v3661
        %3726 = vst [vmem:[#allocation2 + $0xd8] sm:$0xff] %v3662
        %3727 = vst [vmem:[#allocation2 + $0xe0] sm:$0xff] %v3663
        %3728 = vst [vmem:[#allocation2 + $0xe8] sm:$0xff] %v3664
        %3729 = vst [vmem:[#allocation2 + $0xf0] sm:$0xff] %v3665
        %3730 = vst [vmem:[#allocation2 + $0xf8] sm:$0xff] %v3666
        %3731 = vst [vmem:[#allocation2 + $0x100] sm:$0xff] %v3667
        %3732 = vst [vmem:[#allocation2 + $0x108] sm:$0xff] %v3668
        %3733 = vst [vmem:[#allocation2 + $0x110] sm:$0xff] %v3669
        %3734 = vst [vmem:[#allocation2 + $0x118] sm:$0xff] %v3670
        %3735 = vst [vmem:[#allocation2 + $0x120] sm:$0xff] %v3671
        %3736 = vst [vmem:[#allocation2 + $0x128] sm:$0xff] %v3672
        %3737 = vst [vmem:[#allocation2 + $0x130] sm:$0xff] %v3673
        %3738 = vst [vmem:[#allocation2 + $0x138] sm:$0xff] %v3674
        %3739 = vst [vmem:[#allocation2 + $0x140] sm:$0xff] %v3675
        %3740 = vst [vmem:[#allocation2 + $0x148] sm:$0xff] %v3676
        %3741 = vst [vmem:[#allocation2 + $0x150] sm:$0xff] %v3677
        %3742 = vst [vmem:[#allocation2 + $0x158] sm:$0xff] %v3678
        %3743 = vst [vmem:[#allocation2 + $0x160] sm:$0xff] %v3679
        %3744 = vst [vmem:[#allocation2 + $0x168] sm:$0xff] %v3680
        %3745 = vst [vmem:[#allocation2 + $0x170] sm:$0xff] %v3681
        %3746 = vst [vmem:[#allocation2 + $0x178] sm:$0xff] %v3682
        %3747 = vst [vmem:[#allocation2 + $0x180] sm:$0xff] %v3683
        %3748 = vst [vmem:[#allocation2 + $0x188] sm:$0xff] %v3684
        %3749 = vst [vmem:[#allocation2 + $0x190] sm:$0xff] %v3685
        %3750 = vst [vmem:[#allocation2 + $0x198] sm:$0xff] %v3686
        %3751 = vst [vmem:[#allocation2 + $0x1a0] sm:$0xff] %v3687
        %3752 = vst [vmem:[#allocation2 + $0x1a8] sm:$0xff] %v3688
        %3753 = vst [vmem:[#allocation2 + $0x1b0] sm:$0xff] %v3689
        %3754 = vst [vmem:[#allocation2 + $0x1b8] sm:$0xff] %v3690
        %3755 = vst [vmem:[#allocation2 + $0x1c0] sm:$0xff] %v3691
        %3756 = vst [vmem:[#allocation2 + $0x1c8] sm:$0xff] %v3692
        %3757 = vst [vmem:[#allocation2 + $0x1d0] sm:$0xff] %v3693
        %3758 = vst [vmem:[#allocation2 + $0x1d8] sm:$0xff] %v3694
        %3759 = vst [vmem:[#allocation2 + $0x1e0] sm:$0xff] %v3695
        %3760 = vst [vmem:[#allocation2 + $0x1e8] sm:$0xff] %v3696
        %3761 = vst [vmem:[#allocation2 + $0x1f0] sm:$0xff] %v3697
        %3762 = vst [vmem:[#allocation2 + $0x1f8] sm:$0xff] %v3698
        %v3763 = vld [vmem:[%s1 + $0x40] sm:$0xff]
        %v3764 = vld [vmem:[%s1 + $0x48] sm:$0xff]
        %v3765 = vld [vmem:[%s1 + $0x50] sm:$0xff]
        %v3766 = vld [vmem:[%s1 + $0x58] sm:$0xff]
        %3767 = vmatprep.subr.mxu0 0.0
        %3768 = vmatpush1.msra.mxu0 0.0
        %3769 = vmatprep.subr.mxu0 0.0
        %3770 = vmatpush1.msra.mxu0 0.0
        %3771 = vmatprep.subr.mxu0 0.0
        %3772 = vmatpush1.msra.mxu0 0.0
        %3773 = vmatprep.subr.mxu0 0.0
        %3774 = vmatpush1.msra.mxu0 0.0
        %3775 = vmatprep.subr.mxu0 0.0
        %3776 = vmatpush1.msra.mxu0 0.0
        %3777 = vmatprep.subr.mxu0 0.0
        %3778 = vmatpush1.msra.mxu0 0.0
        %3779 = vmatprep.subr.mxu0 0.0
        %3780 = vmatpush1.msra.mxu0 0.0
        %3781 = vmatprep.subr.mxu0 0.0
        %3782 = vmatpush1.msra.mxu0 0.0
        %3783 = vmatprep.subr.mxu0 0.0
        %3784 = vmatpush1.msra.mxu0 0.0
        %3785 = vmatprep.subr.mxu0 0.0
        %3786 = vmatpush1.msra.mxu0 0.0
        %3787 = vmatprep.subr.mxu0 0.0
        %3788 = vmatpush1.msra.mxu0 0.0
        %3789 = vmatprep.subr.mxu0 0.0
        %3790 = vmatpush1.msra.mxu0 0.0
        %3791 = vmatprep.subr.mxu0 0.0
        %3792 = vmatpush1.msra.mxu0 0.0
        %3793 = vmatprep.subr.mxu0 0.0
        %3794 = vmatpush1.msra.mxu0 0.0
        %3795 = vmatprep.subr.mxu0 0.0
        %3796 = vmatpush1.msra.mxu0 0.0
        %3797 = vmatprep.subr.mxu0 %v3764
        %3798 = vmatpush1.msra.mxu0 %v3763
        %3799 = vmatprep.subr.mxu0 0.0
        %3800 = vmatpush2.msra.mxu0 0.0
        %3801 = vmatprep.subr.mxu0 0.0
        %3802 = vmatpush2.msra.mxu0 0.0
        %3803 = vmatprep.subr.mxu0 0.0
        %3804 = vmatpush2.msra.mxu0 0.0
        %3805 = vmatprep.subr.mxu0 0.0
        %3806 = vmatpush2.msra.mxu0 0.0
        %3807 = vmatprep.subr.mxu0 0.0
        %3808 = vmatpush2.msra.mxu0 0.0
        %3809 = vmatprep.subr.mxu0 0.0
        %3810 = vmatpush2.msra.mxu0 0.0
        %3811 = vmatprep.subr.mxu0 0.0
        %3812 = vmatpush2.msra.mxu0 0.0
        %3813 = vmatprep.subr.mxu0 0.0
        %3814 = vmatpush2.msra.mxu0 0.0
        %3815 = vmatprep.subr.mxu0 0.0
        %3816 = vmatpush2.msra.mxu0 0.0
        %3817 = vmatprep.subr.mxu0 0.0
        %3818 = vmatpush2.msra.mxu0 0.0
        %3819 = vmatprep.subr.mxu0 0.0
        %3820 = vmatpush2.msra.mxu0 0.0
        %3821 = vmatprep.subr.mxu0 0.0
        %3822 = vmatpush2.msra.mxu0 0.0
        %3823 = vmatprep.subr.mxu0 0.0
        %3824 = vmatpush2.msra.mxu0 0.0
        %3825 = vmatprep.subr.mxu0 0.0
        %3826 = vmatpush2.msra.mxu0 0.0
        %3827 = vmatprep.subr.mxu0 0.0
        %3828 = vmatpush2.msra.mxu0 0.0
        %3829 = vmatprep.subr.mxu0 0.0
        %3830 = vmatpush2.msra.mxu0 0.0
        %3831 = vmatprep.mubr.f32.mxu0 0.0
        %3832 = vmatmul.mubr.f32.gmra.mxu0 %v328
        %v3833 = vpop.f32.mrf.mxu0
        %v3834 = vadd.f32 0.0, %v3833
        %v3835 = vpop.f32.mrf.mxu0
        %v3836 = vadd.f32 0.0, %v3835
        %3837 = vmatprep.mubr.f32.mxu0 0.0
        %3838 = vmatmul.mubr.f32.gmra.mxu0 %v331
        %v3839 = vpop.f32.mrf.mxu0
        %v3840 = vadd.f32 0.0, %v3839
        %v3841 = vpop.f32.mrf.mxu0
        %v3842 = vadd.f32 0.0, %v3841
        %3843 = vmatprep.mubr.f32.mxu0 0.0
        %3844 = vmatmul.mubr.f32.gmra.mxu0 %v334
        %v3845 = vpop.f32.mrf.mxu0
        %v3846 = vadd.f32 0.0, %v3845
        %v3847 = vpop.f32.mrf.mxu0
        %v3848 = vadd.f32 0.0, %v3847
        %3849 = vmatprep.mubr.f32.mxu0 0.0
        %3850 = vmatmul.mubr.f32.gmra.mxu0 %v337
        %v3851 = vpop.f32.mrf.mxu0
        %v3852 = vadd.f32 0.0, %v3851
        %v3853 = vpop.f32.mrf.mxu0
        %v3854 = vadd.f32 0.0, %v3853
        %3855 = vmatprep.mubr.f32.mxu0 0.0
        %3856 = vmatmul.mubr.f32.gmra.mxu0 %v340
        %v3857 = vpop.f32.mrf.mxu0
        %v3858 = vadd.f32 0.0, %v3857
        %v3859 = vpop.f32.mrf.mxu0
        %v3860 = vadd.f32 0.0, %v3859
        %3861 = vmatprep.mubr.f32.mxu0 0.0
        %3862 = vmatmul.mubr.f32.gmra.mxu0 %v343
        %v3863 = vpop.f32.mrf.mxu0
        %v3864 = vadd.f32 0.0, %v3863
        %v3865 = vpop.f32.mrf.mxu0
        %v3866 = vadd.f32 0.0, %v3865
        %3867 = vmatprep.mubr.f32.mxu0 0.0
        %3868 = vmatmul.mubr.f32.gmra.mxu0 %v346
        %v3869 = vpop.f32.mrf.mxu0
        %v3870 = vadd.f32 0.0, %v3869
        %v3871 = vpop.f32.mrf.mxu0
        %v3872 = vadd.f32 0.0, %v3871
        %3873 = vmatprep.mubr.f32.mxu0 0.0
        %3874 = vmatmul.mubr.f32.gmra.mxu0 %v349
        %v3875 = vpop.f32.mrf.mxu0
        %v3876 = vadd.f32 0.0, %v3875
        %v3877 = vpop.f32.mrf.mxu0
        %v3878 = vadd.f32 0.0, %v3877
        %3879 = vmatprep.mubr.f32.mxu0 0.0
        %3880 = vmatmul.mubr.f32.gmra.mxu0 %v352
        %v3881 = vpop.f32.mrf.mxu0
        %v3882 = vadd.f32 0.0, %v3881
        %v3883 = vpop.f32.mrf.mxu0
        %v3884 = vadd.f32 0.0, %v3883
        %3885 = vmatprep.mubr.f32.mxu0 0.0
        %3886 = vmatmul.mubr.f32.gmra.mxu0 %v355
        %v3887 = vpop.f32.mrf.mxu0
        %v3888 = vadd.f32 0.0, %v3887
        %v3889 = vpop.f32.mrf.mxu0
        %v3890 = vadd.f32 0.0, %v3889
        %3891 = vmatprep.mubr.f32.mxu0 0.0
        %3892 = vmatmul.mubr.f32.gmra.mxu0 %v358
        %v3893 = vpop.f32.mrf.mxu0
        %v3894 = vadd.f32 0.0, %v3893
        %v3895 = vpop.f32.mrf.mxu0
        %v3896 = vadd.f32 0.0, %v3895
        %3897 = vmatprep.mubr.f32.mxu0 0.0
        %3898 = vmatmul.mubr.f32.gmra.mxu0 %v361
        %v3899 = vpop.f32.mrf.mxu0
        %v3900 = vadd.f32 0.0, %v3899
        %v3901 = vpop.f32.mrf.mxu0
        %v3902 = vadd.f32 0.0, %v3901
        %3903 = vmatprep.mubr.f32.mxu0 0.0
        %3904 = vmatmul.mubr.f32.gmra.mxu0 %v364
        %v3905 = vpop.f32.mrf.mxu0
        %v3906 = vadd.f32 0.0, %v3905
        %v3907 = vpop.f32.mrf.mxu0
        %v3908 = vadd.f32 0.0, %v3907
        %3909 = vmatprep.mubr.f32.mxu0 0.0
        %3910 = vmatmul.mubr.f32.gmra.mxu0 %v367
        %v3911 = vpop.f32.mrf.mxu0
        %v3912 = vadd.f32 0.0, %v3911
        %v3913 = vpop.f32.mrf.mxu0
        %v3914 = vadd.f32 0.0, %v3913
        %3915 = vmatprep.mubr.f32.mxu0 0.0
        %3916 = vmatmul.mubr.f32.gmra.mxu0 %v370
        %v3917 = vpop.f32.mrf.mxu0
        %v3918 = vadd.f32 0.0, %v3917
        %v3919 = vpop.f32.mrf.mxu0
        %v3920 = vadd.f32 0.0, %v3919
        %3921 = vmatprep.mubr.f32.mxu0 0.0
        %3922 = vmatmul.mubr.f32.gmra.mxu0 %v373
        %v3923 = vpop.f32.mrf.mxu0
        %v3924 = vadd.f32 0.0, %v3923
        %v3925 = vpop.f32.mrf.mxu0
        %v3926 = vadd.f32 0.0, %v3925
        %3927 = vmatprep.mubr.f32.mxu0 0.0
        %3928 = vmatmul.mubr.f32.gmra.mxu0 %v376
        %v3929 = vpop.f32.mrf.mxu0
        %v3930 = vadd.f32 0.0, %v3929
        %v3931 = vpop.f32.mrf.mxu0
        %v3932 = vadd.f32 0.0, %v3931
        %3933 = vmatprep.mubr.f32.mxu0 0.0
        %3934 = vmatmul.mubr.f32.gmra.mxu0 %v379
        %v3935 = vpop.f32.mrf.mxu0
        %v3936 = vadd.f32 0.0, %v3935
        %v3937 = vpop.f32.mrf.mxu0
        %v3938 = vadd.f32 0.0, %v3937
        %3939 = vmatprep.mubr.f32.mxu0 0.0
        %3940 = vmatmul.mubr.f32.gmra.mxu0 %v382
        %v3941 = vpop.f32.mrf.mxu0
        %v3942 = vadd.f32 0.0, %v3941
        %v3943 = vpop.f32.mrf.mxu0
        %v3944 = vadd.f32 0.0, %v3943
        %3945 = vmatprep.mubr.f32.mxu0 0.0
        %3946 = vmatmul.mubr.f32.gmra.mxu0 %v385
        %v3947 = vpop.f32.mrf.mxu0
        %v3948 = vadd.f32 0.0, %v3947
        %v3949 = vpop.f32.mrf.mxu0
        %v3950 = vadd.f32 0.0, %v3949
        %3951 = vmatprep.mubr.f32.mxu0 0.0
        %3952 = vmatmul.mubr.f32.gmra.mxu0 %v388
        %v3953 = vpop.f32.mrf.mxu0
        %v3954 = vadd.f32 0.0, %v3953
        %v3955 = vpop.f32.mrf.mxu0
        %v3956 = vadd.f32 0.0, %v3955
        %3957 = vmatprep.mubr.f32.mxu0 0.0
        %3958 = vmatmul.mubr.f32.gmra.mxu0 %v391
        %v3959 = vpop.f32.mrf.mxu0
        %v3960 = vadd.f32 0.0, %v3959
        %v3961 = vpop.f32.mrf.mxu0
        %v3962 = vadd.f32 0.0, %v3961
        %3963 = vmatprep.mubr.f32.mxu0 0.0
        %3964 = vmatmul.mubr.f32.gmra.mxu0 %v394
        %v3965 = vpop.f32.mrf.mxu0
        %v3966 = vadd.f32 0.0, %v3965
        %v3967 = vpop.f32.mrf.mxu0
        %v3968 = vadd.f32 0.0, %v3967
        %3969 = vmatprep.mubr.f32.mxu0 0.0
        %3970 = vmatmul.mubr.f32.gmra.mxu0 %v397
        %v3971 = vpop.f32.mrf.mxu0
        %v3972 = vadd.f32 0.0, %v3971
        %v3973 = vpop.f32.mrf.mxu0
        %v3974 = vadd.f32 0.0, %v3973
        %3975 = vmatprep.mubr.f32.mxu0 0.0
        %3976 = vmatmul.mubr.f32.gmra.mxu0 %v400
        %v3977 = vpop.f32.mrf.mxu0
        %v3978 = vadd.f32 0.0, %v3977
        %v3979 = vpop.f32.mrf.mxu0
        %v3980 = vadd.f32 0.0, %v3979
        %3981 = vmatprep.mubr.f32.mxu0 0.0
        %3982 = vmatmul.mubr.f32.gmra.mxu0 %v403
        %v3983 = vpop.f32.mrf.mxu0
        %v3984 = vadd.f32 0.0, %v3983
        %v3985 = vpop.f32.mrf.mxu0
        %v3986 = vadd.f32 0.0, %v3985
        %3987 = vmatprep.mubr.f32.mxu0 0.0
        %3988 = vmatmul.mubr.f32.gmra.mxu0 %v406
        %v3989 = vpop.f32.mrf.mxu0
        %v3990 = vadd.f32 0.0, %v3989
        %v3991 = vpop.f32.mrf.mxu0
        %v3992 = vadd.f32 0.0, %v3991
        %3993 = vmatprep.mubr.f32.mxu0 0.0
        %3994 = vmatmul.mubr.f32.gmra.mxu0 %v409
        %v3995 = vpop.f32.mrf.mxu0
        %v3996 = vadd.f32 0.0, %v3995
        %v3997 = vpop.f32.mrf.mxu0
        %v3998 = vadd.f32 0.0, %v3997
        %3999 = vmatprep.mubr.f32.mxu0 0.0
        %4000 = vmatmul.mubr.f32.gmra.mxu0 %v412
        %v4001 = vpop.f32.mrf.mxu0
        %v4002 = vadd.f32 0.0, %v4001
        %v4003 = vpop.f32.mrf.mxu0
        %v4004 = vadd.f32 0.0, %v4003
        %4005 = vmatprep.mubr.f32.mxu0 0.0
        %4006 = vmatmul.mubr.f32.gmra.mxu0 %v415
        %v4007 = vpop.f32.mrf.mxu0
        %v4008 = vadd.f32 0.0, %v4007
        %v4009 = vpop.f32.mrf.mxu0
        %v4010 = vadd.f32 0.0, %v4009
        %4011 = vmatprep.mubr.f32.mxu0 0.0
        %4012 = vmatmul.mubr.f32.gmra.mxu0 %v418
        %v4013 = vpop.f32.mrf.mxu0
        %v4014 = vadd.f32 0.0, %v4013
        %v4015 = vpop.f32.mrf.mxu0
        %v4016 = vadd.f32 0.0, %v4015
        %4017 = vmatprep.mubr.f32.mxu0 0.0
        %4018 = vmatmul.mubr.f32.gmra.mxu0 %v421
        %v4019 = vpop.f32.mrf.mxu0
        %v4020 = vadd.f32 0.0, %v4019
        %v4021 = vpop.f32.mrf.mxu0
        %v4022 = vadd.f32 0.0, %v4021
        %4023 = vdwg.mxu0
        %4024 = vmatprep.subr.mxu0 0.0
        %4025 = vmatpush1.msra.mxu0 0.0
        %4026 = vmatprep.subr.mxu0 0.0
        %4027 = vmatpush1.msra.mxu0 0.0
        %4028 = vmatprep.subr.mxu0 0.0
        %4029 = vmatpush1.msra.mxu0 0.0
        %4030 = vmatprep.subr.mxu0 0.0
        %4031 = vmatpush1.msra.mxu0 0.0
        %4032 = vmatprep.subr.mxu0 0.0
        %4033 = vmatpush1.msra.mxu0 0.0
        %4034 = vmatprep.subr.mxu0 0.0
        %4035 = vmatpush1.msra.mxu0 0.0
        %4036 = vmatprep.subr.mxu0 0.0
        %4037 = vmatpush1.msra.mxu0 0.0
        %4038 = vmatprep.subr.mxu0 0.0
        %4039 = vmatpush1.msra.mxu0 0.0
        %4040 = vmatprep.subr.mxu0 0.0
        %4041 = vmatpush1.msra.mxu0 0.0
        %4042 = vmatprep.subr.mxu0 0.0
        %4043 = vmatpush1.msra.mxu0 0.0
        %4044 = vmatprep.subr.mxu0 0.0
        %4045 = vmatpush1.msra.mxu0 0.0
        %4046 = vmatprep.subr.mxu0 0.0
        %4047 = vmatpush1.msra.mxu0 0.0
        %4048 = vmatprep.subr.mxu0 0.0
        %4049 = vmatpush1.msra.mxu0 0.0
        %4050 = vmatprep.subr.mxu0 0.0
        %4051 = vmatpush1.msra.mxu0 0.0
        %4052 = vmatprep.subr.mxu0 0.0
        %4053 = vmatpush1.msra.mxu0 0.0
        %4054 = vmatprep.subr.mxu0 %v3766
        %4055 = vmatpush1.msra.mxu0 %v3765
        %4056 = vmatprep.subr.mxu0 0.0
        %4057 = vmatpush2.msra.mxu0 0.0
        %4058 = vmatprep.subr.mxu0 0.0
        %4059 = vmatpush2.msra.mxu0 0.0
        %4060 = vmatprep.subr.mxu0 0.0
        %4061 = vmatpush2.msra.mxu0 0.0
        %4062 = vmatprep.subr.mxu0 0.0
        %4063 = vmatpush2.msra.mxu0 0.0
        %4064 = vmatprep.subr.mxu0 0.0
        %4065 = vmatpush2.msra.mxu0 0.0
        %4066 = vmatprep.subr.mxu0 0.0
        %4067 = vmatpush2.msra.mxu0 0.0
        %4068 = vmatprep.subr.mxu0 0.0
        %4069 = vmatpush2.msra.mxu0 0.0
        %4070 = vmatprep.subr.mxu0 0.0
        %4071 = vmatpush2.msra.mxu0 0.0
        %4072 = vmatprep.subr.mxu0 0.0
        %4073 = vmatpush2.msra.mxu0 0.0
        %4074 = vmatprep.subr.mxu0 0.0
        %4075 = vmatpush2.msra.mxu0 0.0
        %4076 = vmatprep.subr.mxu0 0.0
        %4077 = vmatpush2.msra.mxu0 0.0
        %4078 = vmatprep.subr.mxu0 0.0
        %4079 = vmatpush2.msra.mxu0 0.0
        %4080 = vmatprep.subr.mxu0 0.0
        %4081 = vmatpush2.msra.mxu0 0.0
        %4082 = vmatprep.subr.mxu0 0.0
        %4083 = vmatpush2.msra.mxu0 0.0
        %4084 = vmatprep.subr.mxu0 0.0
        %4085 = vmatpush2.msra.mxu0 0.0
        %4086 = vmatprep.subr.mxu0 0.0
        %4087 = vmatpush2.msra.mxu0 0.0
        %4088 = vmatprep.mubr.f32.mxu0 0.0
        %4089 = vmatmul.mubr.f32.gmra.mxu0 %v328
        %v4090 = vpop.f32.mrf.mxu0
        %v4091 = vadd.f32 0.0, %v4090
        %v4092 = vpop.f32.mrf.mxu0
        %v4093 = vadd.f32 0.0, %v4092
        %4094 = vmatprep.mubr.f32.mxu0 0.0
        %4095 = vmatmul.mubr.f32.gmra.mxu0 %v331
        %v4096 = vpop.f32.mrf.mxu0
        %v4097 = vadd.f32 0.0, %v4096
        %v4098 = vpop.f32.mrf.mxu0
        %v4099 = vadd.f32 0.0, %v4098
        %4100 = vmatprep.mubr.f32.mxu0 0.0
        %4101 = vmatmul.mubr.f32.gmra.mxu0 %v334
        %v4102 = vpop.f32.mrf.mxu0
        %v4103 = vadd.f32 0.0, %v4102
        %v4104 = vpop.f32.mrf.mxu0
        %v4105 = vadd.f32 0.0, %v4104
        %4106 = vmatprep.mubr.f32.mxu0 0.0
        %4107 = vmatmul.mubr.f32.gmra.mxu0 %v337
        %v4108 = vpop.f32.mrf.mxu0
        %v4109 = vadd.f32 0.0, %v4108
        %v4110 = vpop.f32.mrf.mxu0
        %v4111 = vadd.f32 0.0, %v4110
        %4112 = vmatprep.mubr.f32.mxu0 0.0
        %4113 = vmatmul.mubr.f32.gmra.mxu0 %v340
        %v4114 = vpop.f32.mrf.mxu0
        %v4115 = vadd.f32 0.0, %v4114
        %v4116 = vpop.f32.mrf.mxu0
        %v4117 = vadd.f32 0.0, %v4116
        %4118 = vmatprep.mubr.f32.mxu0 0.0
        %4119 = vmatmul.mubr.f32.gmra.mxu0 %v343
        %v4120 = vpop.f32.mrf.mxu0
        %v4121 = vadd.f32 0.0, %v4120
        %v4122 = vpop.f32.mrf.mxu0
        %v4123 = vadd.f32 0.0, %v4122
        %4124 = vmatprep.mubr.f32.mxu0 0.0
        %4125 = vmatmul.mubr.f32.gmra.mxu0 %v346
        %v4126 = vpop.f32.mrf.mxu0
        %v4127 = vadd.f32 0.0, %v4126
        %v4128 = vpop.f32.mrf.mxu0
        %v4129 = vadd.f32 0.0, %v4128
        %4130 = vmatprep.mubr.f32.mxu0 0.0
        %4131 = vmatmul.mubr.f32.gmra.mxu0 %v349
        %v4132 = vpop.f32.mrf.mxu0
        %v4133 = vadd.f32 0.0, %v4132
        %v4134 = vpop.f32.mrf.mxu0
        %v4135 = vadd.f32 0.0, %v4134
        %4136 = vmatprep.mubr.f32.mxu0 0.0
        %4137 = vmatmul.mubr.f32.gmra.mxu0 %v352
        %v4138 = vpop.f32.mrf.mxu0
        %v4139 = vadd.f32 0.0, %v4138
        %v4140 = vpop.f32.mrf.mxu0
        %v4141 = vadd.f32 0.0, %v4140
        %4142 = vmatprep.mubr.f32.mxu0 0.0
        %4143 = vmatmul.mubr.f32.gmra.mxu0 %v355
        %v4144 = vpop.f32.mrf.mxu0
        %v4145 = vadd.f32 0.0, %v4144
        %v4146 = vpop.f32.mrf.mxu0
        %v4147 = vadd.f32 0.0, %v4146
        %4148 = vmatprep.mubr.f32.mxu0 0.0
        %4149 = vmatmul.mubr.f32.gmra.mxu0 %v358
        %v4150 = vpop.f32.mrf.mxu0
        %v4151 = vadd.f32 0.0, %v4150
        %v4152 = vpop.f32.mrf.mxu0
        %v4153 = vadd.f32 0.0, %v4152
        %4154 = vmatprep.mubr.f32.mxu0 0.0
        %4155 = vmatmul.mubr.f32.gmra.mxu0 %v361
        %v4156 = vpop.f32.mrf.mxu0
        %v4157 = vadd.f32 0.0, %v4156
        %v4158 = vpop.f32.mrf.mxu0
        %v4159 = vadd.f32 0.0, %v4158
        %4160 = vmatprep.mubr.f32.mxu0 0.0
        %4161 = vmatmul.mubr.f32.gmra.mxu0 %v364
        %v4162 = vpop.f32.mrf.mxu0
        %v4163 = vadd.f32 0.0, %v4162
        %v4164 = vpop.f32.mrf.mxu0
        %v4165 = vadd.f32 0.0, %v4164
        %4166 = vmatprep.mubr.f32.mxu0 0.0
        %4167 = vmatmul.mubr.f32.gmra.mxu0 %v367
        %v4168 = vpop.f32.mrf.mxu0
        %v4169 = vadd.f32 0.0, %v4168
        %v4170 = vpop.f32.mrf.mxu0
        %v4171 = vadd.f32 0.0, %v4170
        %4172 = vmatprep.mubr.f32.mxu0 0.0
        %4173 = vmatmul.mubr.f32.gmra.mxu0 %v370
        %v4174 = vpop.f32.mrf.mxu0
        %v4175 = vadd.f32 0.0, %v4174
        %v4176 = vpop.f32.mrf.mxu0
        %v4177 = vadd.f32 0.0, %v4176
        %4178 = vmatprep.mubr.f32.mxu0 0.0
        %4179 = vmatmul.mubr.f32.gmra.mxu0 %v373
        %v4180 = vpop.f32.mrf.mxu0
        %v4181 = vadd.f32 0.0, %v4180
        %v4182 = vpop.f32.mrf.mxu0
        %v4183 = vadd.f32 0.0, %v4182
        %4184 = vmatprep.mubr.f32.mxu0 0.0
        %4185 = vmatmul.mubr.f32.gmra.mxu0 %v376
        %v4186 = vpop.f32.mrf.mxu0
        %v4187 = vadd.f32 0.0, %v4186
        %v4188 = vpop.f32.mrf.mxu0
        %v4189 = vadd.f32 0.0, %v4188
        %4190 = vmatprep.mubr.f32.mxu0 0.0
        %4191 = vmatmul.mubr.f32.gmra.mxu0 %v379
        %v4192 = vpop.f32.mrf.mxu0
        %v4193 = vadd.f32 0.0, %v4192
        %v4194 = vpop.f32.mrf.mxu0
        %v4195 = vadd.f32 0.0, %v4194
        %4196 = vmatprep.mubr.f32.mxu0 0.0
        %4197 = vmatmul.mubr.f32.gmra.mxu0 %v382
        %v4198 = vpop.f32.mrf.mxu0
        %v4199 = vadd.f32 0.0, %v4198
        %v4200 = vpop.f32.mrf.mxu0
        %v4201 = vadd.f32 0.0, %v4200
        %4202 = vmatprep.mubr.f32.mxu0 0.0
        %4203 = vmatmul.mubr.f32.gmra.mxu0 %v385
        %v4204 = vpop.f32.mrf.mxu0
        %v4205 = vadd.f32 0.0, %v4204
        %v4206 = vpop.f32.mrf.mxu0
        %v4207 = vadd.f32 0.0, %v4206
        %4208 = vmatprep.mubr.f32.mxu0 0.0
        %4209 = vmatmul.mubr.f32.gmra.mxu0 %v388
        %v4210 = vpop.f32.mrf.mxu0
        %v4211 = vadd.f32 0.0, %v4210
        %v4212 = vpop.f32.mrf.mxu0
        %v4213 = vadd.f32 0.0, %v4212
        %4214 = vmatprep.mubr.f32.mxu0 0.0
        %4215 = vmatmul.mubr.f32.gmra.mxu0 %v391
        %v4216 = vpop.f32.mrf.mxu0
        %v4217 = vadd.f32 0.0, %v4216
        %v4218 = vpop.f32.mrf.mxu0
        %v4219 = vadd.f32 0.0, %v4218
        %4220 = vmatprep.mubr.f32.mxu0 0.0
        %4221 = vmatmul.mubr.f32.gmra.mxu0 %v394
        %v4222 = vpop.f32.mrf.mxu0
        %v4223 = vadd.f32 0.0, %v4222
        %v4224 = vpop.f32.mrf.mxu0
        %v4225 = vadd.f32 0.0, %v4224
        %4226 = vmatprep.mubr.f32.mxu0 0.0
        %4227 = vmatmul.mubr.f32.gmra.mxu0 %v397
        %v4228 = vpop.f32.mrf.mxu0
        %v4229 = vadd.f32 0.0, %v4228
        %v4230 = vpop.f32.mrf.mxu0
        %v4231 = vadd.f32 0.0, %v4230
        %4232 = vmatprep.mubr.f32.mxu0 0.0
        %4233 = vmatmul.mubr.f32.gmra.mxu0 %v400
        %v4234 = vpop.f32.mrf.mxu0
        %v4235 = vadd.f32 0.0, %v4234
        %v4236 = vpop.f32.mrf.mxu0
        %v4237 = vadd.f32 0.0, %v4236
        %4238 = vmatprep.mubr.f32.mxu0 0.0
        %4239 = vmatmul.mubr.f32.gmra.mxu0 %v403
        %v4240 = vpop.f32.mrf.mxu0
        %v4241 = vadd.f32 0.0, %v4240
        %v4242 = vpop.f32.mrf.mxu0
        %v4243 = vadd.f32 0.0, %v4242
        %4244 = vmatprep.mubr.f32.mxu0 0.0
        %4245 = vmatmul.mubr.f32.gmra.mxu0 %v406
        %v4246 = vpop.f32.mrf.mxu0
        %v4247 = vadd.f32 0.0, %v4246
        %v4248 = vpop.f32.mrf.mxu0
        %v4249 = vadd.f32 0.0, %v4248
        %4250 = vmatprep.mubr.f32.mxu0 0.0
        %4251 = vmatmul.mubr.f32.gmra.mxu0 %v409
        %v4252 = vpop.f32.mrf.mxu0
        %v4253 = vadd.f32 0.0, %v4252
        %v4254 = vpop.f32.mrf.mxu0
        %v4255 = vadd.f32 0.0, %v4254
        %4256 = vmatprep.mubr.f32.mxu0 0.0
        %4257 = vmatmul.mubr.f32.gmra.mxu0 %v412
        %v4258 = vpop.f32.mrf.mxu0
        %v4259 = vadd.f32 0.0, %v4258
        %v4260 = vpop.f32.mrf.mxu0
        %v4261 = vadd.f32 0.0, %v4260
        %4262 = vmatprep.mubr.f32.mxu0 0.0
        %4263 = vmatmul.mubr.f32.gmra.mxu0 %v415
        %v4264 = vpop.f32.mrf.mxu0
        %v4265 = vadd.f32 0.0, %v4264
        %v4266 = vpop.f32.mrf.mxu0
        %v4267 = vadd.f32 0.0, %v4266
        %4268 = vmatprep.mubr.f32.mxu0 0.0
        %4269 = vmatmul.mubr.f32.gmra.mxu0 %v418
        %v4270 = vpop.f32.mrf.mxu0
        %v4271 = vadd.f32 0.0, %v4270
        %v4272 = vpop.f32.mrf.mxu0
        %v4273 = vadd.f32 0.0, %v4272
        %4274 = vmatprep.mubr.f32.mxu0 0.0
        %4275 = vmatmul.mubr.f32.gmra.mxu0 %v421
        %v4276 = vpop.f32.mrf.mxu0
        %v4277 = vadd.f32 0.0, %v4276
        %v4278 = vpop.f32.mrf.mxu0
        %v4279 = vadd.f32 0.0, %v4278
        %4280 = vdwg.mxu0
        %v4281 = vmax.f32 %v3834, 0.0
        %v4282 = vmax.f32 %v3836, 0.0
        %v4283 = vmax.f32 %v4091, 0.0
        %v4284 = vmax.f32 %v4093, 0.0
        %v4285 = vmax.f32 %v3840, 0.0
        %v4286 = vmax.f32 %v3842, 0.0
        %v4287 = vmax.f32 %v4097, 0.0
        %v4288 = vmax.f32 %v4099, 0.0
        %v4289 = vmax.f32 %v3846, 0.0
        %v4290 = vmax.f32 %v3848, 0.0
        %v4291 = vmax.f32 %v4103, 0.0
        %v4292 = vmax.f32 %v4105, 0.0
        %v4293 = vmax.f32 %v3852, 0.0
        %v4294 = vmax.f32 %v3854, 0.0
        %v4295 = vmax.f32 %v4109, 0.0
        %v4296 = vmax.f32 %v4111, 0.0
        %v4297 = vmax.f32 %v3858, 0.0
        %v4298 = vmax.f32 %v3860, 0.0
        %v4299 = vmax.f32 %v4115, 0.0
        %v4300 = vmax.f32 %v4117, 0.0
        %v4301 = vmax.f32 %v3864, 0.0
        %v4302 = vmax.f32 %v3866, 0.0
        %v4303 = vmax.f32 %v4121, 0.0
        %v4304 = vmax.f32 %v4123, 0.0
        %v4305 = vmax.f32 %v3870, 0.0
        %v4306 = vmax.f32 %v3872, 0.0
        %v4307 = vmax.f32 %v4127, 0.0
        %v4308 = vmax.f32 %v4129, 0.0
        %v4309 = vmax.f32 %v3876, 0.0
        %v4310 = vmax.f32 %v3878, 0.0
        %v4311 = vmax.f32 %v4133, 0.0
        %v4312 = vmax.f32 %v4135, 0.0
        %v4313 = vmax.f32 %v3882, 0.0
        %v4314 = vmax.f32 %v3884, 0.0
        %v4315 = vmax.f32 %v4139, 0.0
        %v4316 = vmax.f32 %v4141, 0.0
        %v4317 = vmax.f32 %v3888, 0.0
        %v4318 = vmax.f32 %v3890, 0.0
        %v4319 = vmax.f32 %v4145, 0.0
        %v4320 = vmax.f32 %v4147, 0.0
        %v4321 = vmax.f32 %v3894, 0.0
        %v4322 = vmax.f32 %v3896, 0.0
        %v4323 = vmax.f32 %v4151, 0.0
        %v4324 = vmax.f32 %v4153, 0.0
        %v4325 = vmax.f32 %v3900, 0.0
        %v4326 = vmax.f32 %v3902, 0.0
        %v4327 = vmax.f32 %v4157, 0.0
        %v4328 = vmax.f32 %v4159, 0.0
        %v4329 = vmax.f32 %v3906, 0.0
        %v4330 = vmax.f32 %v3908, 0.0
        %v4331 = vmax.f32 %v4163, 0.0
        %v4332 = vmax.f32 %v4165, 0.0
        %v4333 = vmax.f32 %v3912, 0.0
        %v4334 = vmax.f32 %v3914, 0.0
        %v4335 = vmax.f32 %v4169, 0.0
        %v4336 = vmax.f32 %v4171, 0.0
        %v4337 = vmax.f32 %v3918, 0.0
        %v4338 = vmax.f32 %v3920, 0.0
        %v4339 = vmax.f32 %v4175, 0.0
        %v4340 = vmax.f32 %v4177, 0.0
        %v4341 = vmax.f32 %v3924, 0.0
        %v4342 = vmax.f32 %v3926, 0.0
        %v4343 = vmax.f32 %v4181, 0.0
        %v4344 = vmax.f32 %v4183, 0.0
        %v4345 = vmax.f32 %v3930, 0.0
        %v4346 = vmax.f32 %v3932, 0.0
        %v4347 = vmax.f32 %v4187, 0.0
        %v4348 = vmax.f32 %v4189, 0.0
        %v4349 = vmax.f32 %v3936, 0.0
        %v4350 = vmax.f32 %v3938, 0.0
        %v4351 = vmax.f32 %v4193, 0.0
        %v4352 = vmax.f32 %v4195, 0.0
        %v4353 = vmax.f32 %v3942, 0.0
        %v4354 = vmax.f32 %v3944, 0.0
        %v4355 = vmax.f32 %v4199, 0.0
        %v4356 = vmax.f32 %v4201, 0.0
        %v4357 = vmax.f32 %v3948, 0.0
        %v4358 = vmax.f32 %v3950, 0.0
        %v4359 = vmax.f32 %v4205, 0.0
        %v4360 = vmax.f32 %v4207, 0.0
        %v4361 = vmax.f32 %v3954, 0.0
        %v4362 = vmax.f32 %v3956, 0.0
        %v4363 = vmax.f32 %v4211, 0.0
        %v4364 = vmax.f32 %v4213, 0.0
        %v4365 = vmax.f32 %v3960, 0.0
        %v4366 = vmax.f32 %v3962, 0.0
        %v4367 = vmax.f32 %v4217, 0.0
        %v4368 = vmax.f32 %v4219, 0.0
        %v4369 = vmax.f32 %v3966, 0.0
        %v4370 = vmax.f32 %v3968, 0.0
        %v4371 = vmax.f32 %v4223, 0.0
        %v4372 = vmax.f32 %v4225, 0.0
        %v4373 = vmax.f32 %v3972, 0.0
        %v4374 = vmax.f32 %v3974, 0.0
        %v4375 = vmax.f32 %v4229, 0.0
        %v4376 = vmax.f32 %v4231, 0.0
        %v4377 = vmax.f32 %v3978, 0.0
        %v4378 = vmax.f32 %v3980, 0.0
        %v4379 = vmax.f32 %v4235, 0.0
        %v4380 = vmax.f32 %v4237, 0.0
        %v4381 = vmax.f32 %v3984, 0.0
        %v4382 = vmax.f32 %v3986, 0.0
        %v4383 = vmax.f32 %v4241, 0.0
        %v4384 = vmax.f32 %v4243, 0.0
        %v4385 = vmax.f32 %v3990, 0.0
        %v4386 = vmax.f32 %v3992, 0.0
        %v4387 = vmax.f32 %v4247, 0.0
        %v4388 = vmax.f32 %v4249, 0.0
        %v4389 = vmax.f32 %v3996, 0.0
        %v4390 = vmax.f32 %v3998, 0.0
        %v4391 = vmax.f32 %v4253, 0.0
        %v4392 = vmax.f32 %v4255, 0.0
        %v4393 = vmax.f32 %v4002, 0.0
        %v4394 = vmax.f32 %v4004, 0.0
        %v4395 = vmax.f32 %v4259, 0.0
        %v4396 = vmax.f32 %v4261, 0.0
        %v4397 = vmax.f32 %v4008, 0.0
        %v4398 = vmax.f32 %v4010, 0.0
        %v4399 = vmax.f32 %v4265, 0.0
        %v4400 = vmax.f32 %v4267, 0.0
        %v4401 = vmax.f32 %v4014, 0.0
        %v4402 = vmax.f32 %v4016, 0.0
        %v4403 = vmax.f32 %v4271, 0.0
        %v4404 = vmax.f32 %v4273, 0.0
        %v4405 = vmax.f32 %v4020, 0.0
        %v4406 = vmax.f32 %v4022, 0.0
        %v4407 = vmax.f32 %v4277, 0.0
        %v4408 = vmax.f32 %v4279, 0.0
        %v4409 = vpack.c.bf16 %v4285, %v4281
        %v4410 = vpack.c.bf16 %v4286, %v4282
        %v4411 = vpack.c.bf16 %v4287, %v4283
        %v4412 = vpack.c.bf16 %v4288, %v4284
        %v4413 = vpack.c.bf16 %v4293, %v4289
        %v4414 = vpack.c.bf16 %v4294, %v4290
        %v4415 = vpack.c.bf16 %v4295, %v4291
        %v4416 = vpack.c.bf16 %v4296, %v4292
        %v4417 = vpack.c.bf16 %v4301, %v4297
        %v4418 = vpack.c.bf16 %v4302, %v4298
        %v4419 = vpack.c.bf16 %v4303, %v4299
        %v4420 = vpack.c.bf16 %v4304, %v4300
        %v4421 = vpack.c.bf16 %v4309, %v4305
        %v4422 = vpack.c.bf16 %v4310, %v4306
        %v4423 = vpack.c.bf16 %v4311, %v4307
        %v4424 = vpack.c.bf16 %v4312, %v4308
        %v4425 = vpack.c.bf16 %v4317, %v4313
        %v4426 = vpack.c.bf16 %v4318, %v4314
        %v4427 = vpack.c.bf16 %v4319, %v4315
        %v4428 = vpack.c.bf16 %v4320, %v4316
        %v4429 = vpack.c.bf16 %v4325, %v4321
        %v4430 = vpack.c.bf16 %v4326, %v4322
        %v4431 = vpack.c.bf16 %v4327, %v4323
        %v4432 = vpack.c.bf16 %v4328, %v4324
        %v4433 = vpack.c.bf16 %v4333, %v4329
        %v4434 = vpack.c.bf16 %v4334, %v4330
        %v4435 = vpack.c.bf16 %v4335, %v4331
        %v4436 = vpack.c.bf16 %v4336, %v4332
        %v4437 = vpack.c.bf16 %v4341, %v4337
        %v4438 = vpack.c.bf16 %v4342, %v4338
        %v4439 = vpack.c.bf16 %v4343, %v4339
        %v4440 = vpack.c.bf16 %v4344, %v4340
        %v4441 = vpack.c.bf16 %v4349, %v4345
        %v4442 = vpack.c.bf16 %v4350, %v4346
        %v4443 = vpack.c.bf16 %v4351, %v4347
        %v4444 = vpack.c.bf16 %v4352, %v4348
        %v4445 = vpack.c.bf16 %v4357, %v4353
        %v4446 = vpack.c.bf16 %v4358, %v4354
        %v4447 = vpack.c.bf16 %v4359, %v4355
        %v4448 = vpack.c.bf16 %v4360, %v4356
        %v4449 = vpack.c.bf16 %v4365, %v4361
        %v4450 = vpack.c.bf16 %v4366, %v4362
        %v4451 = vpack.c.bf16 %v4367, %v4363
        %v4452 = vpack.c.bf16 %v4368, %v4364
        %v4453 = vpack.c.bf16 %v4373, %v4369
        %v4454 = vpack.c.bf16 %v4374, %v4370
        %v4455 = vpack.c.bf16 %v4375, %v4371
        %v4456 = vpack.c.bf16 %v4376, %v4372
        %v4457 = vpack.c.bf16 %v4381, %v4377
        %v4458 = vpack.c.bf16 %v4382, %v4378
        %v4459 = vpack.c.bf16 %v4383, %v4379
        %v4460 = vpack.c.bf16 %v4384, %v4380
        %v4461 = vpack.c.bf16 %v4389, %v4385
        %v4462 = vpack.c.bf16 %v4390, %v4386
        %v4463 = vpack.c.bf16 %v4391, %v4387
        %v4464 = vpack.c.bf16 %v4392, %v4388
        %v4465 = vpack.c.bf16 %v4397, %v4393
        %v4466 = vpack.c.bf16 %v4398, %v4394
        %v4467 = vpack.c.bf16 %v4399, %v4395
        %v4468 = vpack.c.bf16 %v4400, %v4396
        %v4469 = vpack.c.bf16 %v4405, %v4401
        %v4470 = vpack.c.bf16 %v4406, %v4402
        %v4471 = vpack.c.bf16 %v4407, %v4403
        %v4472 = vpack.c.bf16 %v4408, %v4404
        %v4473 = vld [vmem:[#allocation2] sm:$0xff]
        %v4474 = vld [vmem:[#allocation2 + $0x8] sm:$0xff]
        %v4475 = vld [vmem:[#allocation2 + $0x10] sm:$0xff]
        %v4476 = vld [vmem:[#allocation2 + $0x18] sm:$0xff]
        %v4477 = vld [vmem:[#allocation2 + $0x20] sm:$0xff]
        %v4478 = vld [vmem:[#allocation2 + $0x28] sm:$0xff]
        %v4479 = vld [vmem:[#allocation2 + $0x30] sm:$0xff]
        %v4480 = vld [vmem:[#allocation2 + $0x38] sm:$0xff]
        %v4481 = vld [vmem:[#allocation2 + $0x40] sm:$0xff]
        %v4482 = vld [vmem:[#allocation2 + $0x48] sm:$0xff]
        %v4483 = vld [vmem:[#allocation2 + $0x50] sm:$0xff]
        %v4484 = vld [vmem:[#allocation2 + $0x58] sm:$0xff]
        %v4485 = vld [vmem:[#allocation2 + $0x60] sm:$0xff]
        %v4486 = vld [vmem:[#allocation2 + $0x68] sm:$0xff]
        %v4487 = vld [vmem:[#allocation2 + $0x70] sm:$0xff]
        %v4488 = vld [vmem:[#allocation2 + $0x78] sm:$0xff]
        %v4489 = vld [vmem:[#allocation2 + $0x80] sm:$0xff]
        %v4490 = vld [vmem:[#allocation2 + $0x88] sm:$0xff]
        %v4491 = vld [vmem:[#allocation2 + $0x90] sm:$0xff]
        %v4492 = vld [vmem:[#allocation2 + $0x98] sm:$0xff]
        %v4493 = vld [vmem:[#allocation2 + $0xa0] sm:$0xff]
        %v4494 = vld [vmem:[#allocation2 + $0xa8] sm:$0xff]
        %v4495 = vld [vmem:[#allocation2 + $0xb0] sm:$0xff]
        %v4496 = vld [vmem:[#allocation2 + $0xb8] sm:$0xff]
        %v4497 = vld [vmem:[#allocation2 + $0xc0] sm:$0xff]
        %v4498 = vld [vmem:[#allocation2 + $0xc8] sm:$0xff]
        %v4499 = vld [vmem:[#allocation2 + $0xd0] sm:$0xff]
        %v4500 = vld [vmem:[#allocation2 + $0xd8] sm:$0xff]
        %v4501 = vld [vmem:[#allocation2 + $0xe0] sm:$0xff]
        %v4502 = vld [vmem:[#allocation2 + $0xe8] sm:$0xff]
        %v4503 = vld [vmem:[#allocation2 + $0xf0] sm:$0xff]
        %v4504 = vld [vmem:[#allocation2 + $0xf8] sm:$0xff]
        %v4505 = vld [vmem:[#allocation2 + $0x100] sm:$0xff]
        %v4506 = vld [vmem:[#allocation2 + $0x108] sm:$0xff]
        %v4507 = vld [vmem:[#allocation2 + $0x110] sm:$0xff]
        %v4508 = vld [vmem:[#allocation2 + $0x118] sm:$0xff]
        %v4509 = vld [vmem:[#allocation2 + $0x120] sm:$0xff]
        %v4510 = vld [vmem:[#allocation2 + $0x128] sm:$0xff]
        %v4511 = vld [vmem:[#allocation2 + $0x130] sm:$0xff]
        %v4512 = vld [vmem:[#allocation2 + $0x138] sm:$0xff]
        %v4513 = vld [vmem:[#allocation2 + $0x140] sm:$0xff]
        %v4514 = vld [vmem:[#allocation2 + $0x148] sm:$0xff]
        %v4515 = vld [vmem:[#allocation2 + $0x150] sm:$0xff]
        %v4516 = vld [vmem:[#allocation2 + $0x158] sm:$0xff]
        %v4517 = vld [vmem:[#allocation2 + $0x160] sm:$0xff]
        %v4518 = vld [vmem:[#allocation2 + $0x168] sm:$0xff]
        %v4519 = vld [vmem:[#allocation2 + $0x170] sm:$0xff]
        %v4520 = vld [vmem:[#allocation2 + $0x178] sm:$0xff]
        %v4521 = vld [vmem:[#allocation2 + $0x180] sm:$0xff]
        %v4522 = vld [vmem:[#allocation2 + $0x188] sm:$0xff]
        %v4523 = vld [vmem:[#allocation2 + $0x190] sm:$0xff]
        %v4524 = vld [vmem:[#allocation2 + $0x198] sm:$0xff]
        %v4525 = vld [vmem:[#allocation2 + $0x1a0] sm:$0xff]
        %v4526 = vld [vmem:[#allocation2 + $0x1a8] sm:$0xff]
        %v4527 = vld [vmem:[#allocation2 + $0x1b0] sm:$0xff]
        %v4528 = vld [vmem:[#allocation2 + $0x1b8] sm:$0xff]
        %v4529 = vld [vmem:[#allocation2 + $0x1c0] sm:$0xff]
        %v4530 = vld [vmem:[#allocation2 + $0x1c8] sm:$0xff]
        %v4531 = vld [vmem:[#allocation2 + $0x1d0] sm:$0xff]
        %v4532 = vld [vmem:[#allocation2 + $0x1d8] sm:$0xff]
        %v4533 = vld [vmem:[#allocation2 + $0x1e0] sm:$0xff]
        %v4534 = vld [vmem:[#allocation2 + $0x1e8] sm:$0xff]
        %v4535 = vld [vmem:[#allocation2 + $0x1f0] sm:$0xff]
        %v4536 = vld [vmem:[#allocation2 + $0x1f8] sm:$0xff]
        %v4537 = vld [vmem:[#allocation3 + $0x400] sm:$0xff]
        %v4538 = vld [vmem:[#allocation3 + $0x408] sm:$0xff]
        %v4539 = vld [vmem:[#allocation3 + $0x410] sm:$0xff]
        %v4540 = vld [vmem:[#allocation3 + $0x418] sm:$0xff]
        %v4541 = vld [vmem:[#allocation3 + $0x420] sm:$0xff]
        %v4542 = vld [vmem:[#allocation3 + $0x428] sm:$0xff]
        %v4543 = vld [vmem:[#allocation3 + $0x430] sm:$0xff]
        %v4544 = vld [vmem:[#allocation3 + $0x438] sm:$0xff]
        %v4545 = vld [vmem:[#allocation3 + $0x440] sm:$0xff]
        %v4546 = vld [vmem:[#allocation3 + $0x448] sm:$0xff]
        %v4547 = vld [vmem:[#allocation3 + $0x450] sm:$0xff]
        %v4548 = vld [vmem:[#allocation3 + $0x458] sm:$0xff]
        %v4549 = vld [vmem:[#allocation3 + $0x460] sm:$0xff]
        %v4550 = vld [vmem:[#allocation3 + $0x468] sm:$0xff]
        %v4551 = vld [vmem:[#allocation3 + $0x470] sm:$0xff]
        %v4552 = vld [vmem:[#allocation3 + $0x478] sm:$0xff]
        %v4553 = vld [vmem:[#allocation3 + $0x480] sm:$0xff]
        %v4554 = vld [vmem:[#allocation3 + $0x488] sm:$0xff]
        %v4555 = vld [vmem:[#allocation3 + $0x490] sm:$0xff]
        %v4556 = vld [vmem:[#allocation3 + $0x498] sm:$0xff]
        %v4557 = vld [vmem:[#allocation3 + $0x4a0] sm:$0xff]
        %v4558 = vld [vmem:[#allocation3 + $0x4a8] sm:$0xff]
        %v4559 = vld [vmem:[#allocation3 + $0x4b0] sm:$0xff]
        %v4560 = vld [vmem:[#allocation3 + $0x4b8] sm:$0xff]
        %v4561 = vld [vmem:[#allocation3 + $0x4c0] sm:$0xff]
        %v4562 = vld [vmem:[#allocation3 + $0x4c8] sm:$0xff]
        %v4563 = vld [vmem:[#allocation3 + $0x4d0] sm:$0xff]
        %v4564 = vld [vmem:[#allocation3 + $0x4d8] sm:$0xff]
        %v4565 = vld [vmem:[#allocation3 + $0x4e0] sm:$0xff]
        %v4566 = vld [vmem:[#allocation3 + $0x4e8] sm:$0xff]
        %v4567 = vld [vmem:[#allocation3 + $0x4f0] sm:$0xff]
        %v4568 = vld [vmem:[#allocation3 + $0x4f8] sm:$0xff]
        %v4569 = vld [vmem:[#allocation3 + $0x500] sm:$0xff]
        %v4570 = vld [vmem:[#allocation3 + $0x508] sm:$0xff]
        %v4571 = vld [vmem:[#allocation3 + $0x510] sm:$0xff]
        %v4572 = vld [vmem:[#allocation3 + $0x518] sm:$0xff]
        %v4573 = vld [vmem:[#allocation3 + $0x520] sm:$0xff]
        %v4574 = vld [vmem:[#allocation3 + $0x528] sm:$0xff]
        %v4575 = vld [vmem:[#allocation3 + $0x530] sm:$0xff]
        %v4576 = vld [vmem:[#allocation3 + $0x538] sm:$0xff]
        %v4577 = vld [vmem:[#allocation3 + $0x540] sm:$0xff]
        %v4578 = vld [vmem:[#allocation3 + $0x548] sm:$0xff]
        %v4579 = vld [vmem:[#allocation3 + $0x550] sm:$0xff]
        %v4580 = vld [vmem:[#allocation3 + $0x558] sm:$0xff]
        %v4581 = vld [vmem:[#allocation3 + $0x560] sm:$0xff]
        %v4582 = vld [vmem:[#allocation3 + $0x568] sm:$0xff]
        %v4583 = vld [vmem:[#allocation3 + $0x570] sm:$0xff]
        %v4584 = vld [vmem:[#allocation3 + $0x578] sm:$0xff]
        %v4585 = vld [vmem:[#allocation3 + $0x580] sm:$0xff]
        %v4586 = vld [vmem:[#allocation3 + $0x588] sm:$0xff]
        %v4587 = vld [vmem:[#allocation3 + $0x590] sm:$0xff]
        %v4588 = vld [vmem:[#allocation3 + $0x598] sm:$0xff]
        %v4589 = vld [vmem:[#allocation3 + $0x5a0] sm:$0xff]
        %v4590 = vld [vmem:[#allocation3 + $0x5a8] sm:$0xff]
        %v4591 = vld [vmem:[#allocation3 + $0x5b0] sm:$0xff]
        %v4592 = vld [vmem:[#allocation3 + $0x5b8] sm:$0xff]
        %v4593 = vld [vmem:[#allocation3 + $0x5c0] sm:$0xff]
        %v4594 = vld [vmem:[#allocation3 + $0x5c8] sm:$0xff]
        %v4595 = vld [vmem:[#allocation3 + $0x5d0] sm:$0xff]
        %v4596 = vld [vmem:[#allocation3 + $0x5d8] sm:$0xff]
        %v4597 = vld [vmem:[#allocation3 + $0x5e0] sm:$0xff]
        %v4598 = vld [vmem:[#allocation3 + $0x5e8] sm:$0xff]
        %v4599 = vld [vmem:[#allocation3 + $0x5f0] sm:$0xff]
        %v4600 = vld [vmem:[#allocation3 + $0x5f8] sm:$0xff]
        %v4665 = vunpack.c.l.b16 %v4537
        %v4666 = vunpack.c.h.b16 %v4537
        %v4667 = vunpack.c.l.b16 %v4538
        %v4668 = vunpack.c.h.b16 %v4538
        %v4669 = vunpack.c.l.b16 %v4539
        %v4670 = vunpack.c.h.b16 %v4539
        %v4671 = vunpack.c.l.b16 %v4540
        %v4672 = vunpack.c.h.b16 %v4540
        %v4673 = vunpack.c.l.b16 %v4541
        %v4674 = vunpack.c.h.b16 %v4541
        %v4675 = vunpack.c.l.b16 %v4542
        %v4676 = vunpack.c.h.b16 %v4542
        %v4677 = vunpack.c.l.b16 %v4543
        %v4678 = vunpack.c.h.b16 %v4543
        %v4679 = vunpack.c.l.b16 %v4544
        %v4680 = vunpack.c.h.b16 %v4544
        %v4681 = vunpack.c.l.b16 %v4545
        %v4682 = vunpack.c.h.b16 %v4545
        %v4683 = vunpack.c.l.b16 %v4546
        %v4684 = vunpack.c.h.b16 %v4546
        %v4685 = vunpack.c.l.b16 %v4547
        %v4686 = vunpack.c.h.b16 %v4547
        %v4687 = vunpack.c.l.b16 %v4548
        %v4688 = vunpack.c.h.b16 %v4548
        %v4689 = vunpack.c.l.b16 %v4549
        %v4690 = vunpack.c.h.b16 %v4549
        %v4691 = vunpack.c.l.b16 %v4550
        %v4692 = vunpack.c.h.b16 %v4550
        %v4693 = vunpack.c.l.b16 %v4551
        %v4694 = vunpack.c.h.b16 %v4551
        %v4695 = vunpack.c.l.b16 %v4552
        %v4696 = vunpack.c.h.b16 %v4552
        %v4697 = vunpack.c.l.b16 %v4553
        %v4698 = vunpack.c.h.b16 %v4553
        %v4699 = vunpack.c.l.b16 %v4554
        %v4700 = vunpack.c.h.b16 %v4554
        %v4701 = vunpack.c.l.b16 %v4555
        %v4702 = vunpack.c.h.b16 %v4555
        %v4703 = vunpack.c.l.b16 %v4556
        %v4704 = vunpack.c.h.b16 %v4556
        %v4705 = vunpack.c.l.b16 %v4557
        %v4706 = vunpack.c.h.b16 %v4557
        %v4707 = vunpack.c.l.b16 %v4558
        %v4708 = vunpack.c.h.b16 %v4558
        %v4709 = vunpack.c.l.b16 %v4559
        %v4710 = vunpack.c.h.b16 %v4559
        %v4711 = vunpack.c.l.b16 %v4560
        %v4712 = vunpack.c.h.b16 %v4560
        %v4713 = vunpack.c.l.b16 %v4561
        %v4714 = vunpack.c.h.b16 %v4561
        %v4715 = vunpack.c.l.b16 %v4562
        %v4716 = vunpack.c.h.b16 %v4562
        %v4717 = vunpack.c.l.b16 %v4563
        %v4718 = vunpack.c.h.b16 %v4563
        %v4719 = vunpack.c.l.b16 %v4564
        %v4720 = vunpack.c.h.b16 %v4564
        %v4721 = vunpack.c.l.b16 %v4565
        %v4722 = vunpack.c.h.b16 %v4565
        %v4723 = vunpack.c.l.b16 %v4566
        %v4724 = vunpack.c.h.b16 %v4566
        %v4725 = vunpack.c.l.b16 %v4567
        %v4726 = vunpack.c.h.b16 %v4567
        %v4727 = vunpack.c.l.b16 %v4568
        %v4728 = vunpack.c.h.b16 %v4568
        %v4729 = vunpack.c.l.b16 %v4569
        %v4730 = vunpack.c.h.b16 %v4569
        %v4731 = vunpack.c.l.b16 %v4570
        %v4732 = vunpack.c.h.b16 %v4570
        %v4733 = vunpack.c.l.b16 %v4571
        %v4734 = vunpack.c.h.b16 %v4571
        %v4735 = vunpack.c.l.b16 %v4572
        %v4736 = vunpack.c.h.b16 %v4572
        %v4737 = vunpack.c.l.b16 %v4573
        %v4738 = vunpack.c.h.b16 %v4573
        %v4739 = vunpack.c.l.b16 %v4574
        %v4740 = vunpack.c.h.b16 %v4574
        %v4741 = vunpack.c.l.b16 %v4575
        %v4742 = vunpack.c.h.b16 %v4575
        %v4743 = vunpack.c.l.b16 %v4576
        %v4744 = vunpack.c.h.b16 %v4576
        %v4745 = vunpack.c.l.b16 %v4577
        %v4746 = vunpack.c.h.b16 %v4577
        %v4747 = vunpack.c.l.b16 %v4578
        %v4748 = vunpack.c.h.b16 %v4578
        %v4749 = vunpack.c.l.b16 %v4579
        %v4750 = vunpack.c.h.b16 %v4579
        %v4751 = vunpack.c.l.b16 %v4580
        %v4752 = vunpack.c.h.b16 %v4580
        %v4753 = vunpack.c.l.b16 %v4581
        %v4754 = vunpack.c.h.b16 %v4581
        %v4755 = vunpack.c.l.b16 %v4582
        %v4756 = vunpack.c.h.b16 %v4582
        %v4757 = vunpack.c.l.b16 %v4583
        %v4758 = vunpack.c.h.b16 %v4583
        %v4759 = vunpack.c.l.b16 %v4584
        %v4760 = vunpack.c.h.b16 %v4584
        %v4761 = vunpack.c.l.b16 %v4585
        %v4762 = vunpack.c.h.b16 %v4585
        %v4763 = vunpack.c.l.b16 %v4586
        %v4764 = vunpack.c.h.b16 %v4586
        %v4765 = vunpack.c.l.b16 %v4587
        %v4766 = vunpack.c.h.b16 %v4587
        %v4767 = vunpack.c.l.b16 %v4588
        %v4768 = vunpack.c.h.b16 %v4588
        %v4769 = vunpack.c.l.b16 %v4589
        %v4770 = vunpack.c.h.b16 %v4589
        %v4771 = vunpack.c.l.b16 %v4590
        %v4772 = vunpack.c.h.b16 %v4590
        %v4773 = vunpack.c.l.b16 %v4591
        %v4774 = vunpack.c.h.b16 %v4591
        %v4775 = vunpack.c.l.b16 %v4592
        %v4776 = vunpack.c.h.b16 %v4592
        %v4777 = vunpack.c.l.b16 %v4593
        %v4778 = vunpack.c.h.b16 %v4593
        %v4779 = vunpack.c.l.b16 %v4594
        %v4780 = vunpack.c.h.b16 %v4594
        %v4781 = vunpack.c.l.b16 %v4595
        %v4782 = vunpack.c.h.b16 %v4595
        %v4783 = vunpack.c.l.b16 %v4596
        %v4784 = vunpack.c.h.b16 %v4596
        %v4785 = vunpack.c.l.b16 %v4597
        %v4786 = vunpack.c.h.b16 %v4597
        %v4787 = vunpack.c.l.b16 %v4598
        %v4788 = vunpack.c.h.b16 %v4598
        %v4789 = vunpack.c.l.b16 %v4599
        %v4790 = vunpack.c.h.b16 %v4599
        %v4791 = vunpack.c.l.b16 %v4600
        %v4792 = vunpack.c.h.b16 %v4600
        %v4793 = vpack.c.b16 %v4667, %v4665
        %v4794 = vpack.c.b16 %v4668, %v4666
        %v4795 = vpack.c.b16 %v4671, %v4669
        %v4796 = vpack.c.b16 %v4672, %v4670
        %v4797 = vpack.c.b16 %v4675, %v4673
        %v4798 = vpack.c.b16 %v4676, %v4674
        %v4799 = vpack.c.b16 %v4679, %v4677
        %v4800 = vpack.c.b16 %v4680, %v4678
        %v4801 = vpack.c.b16 %v4683, %v4681
        %v4802 = vpack.c.b16 %v4684, %v4682
        %v4803 = vpack.c.b16 %v4687, %v4685
        %v4804 = vpack.c.b16 %v4688, %v4686
        %v4805 = vpack.c.b16 %v4691, %v4689
        %v4806 = vpack.c.b16 %v4692, %v4690
        %v4807 = vpack.c.b16 %v4695, %v4693
        %v4808 = vpack.c.b16 %v4696, %v4694
        %v4809 = vpack.c.b16 %v4699, %v4697
        %v4810 = vpack.c.b16 %v4700, %v4698
        %v4811 = vpack.c.b16 %v4703, %v4701
        %v4812 = vpack.c.b16 %v4704, %v4702
        %v4813 = vpack.c.b16 %v4707, %v4705
        %v4814 = vpack.c.b16 %v4708, %v4706
        %v4815 = vpack.c.b16 %v4711, %v4709
        %v4816 = vpack.c.b16 %v4712, %v4710
        %v4817 = vpack.c.b16 %v4715, %v4713
        %v4818 = vpack.c.b16 %v4716, %v4714
        %v4819 = vpack.c.b16 %v4719, %v4717
        %v4820 = vpack.c.b16 %v4720, %v4718
        %v4821 = vpack.c.b16 %v4723, %v4721
        %v4822 = vpack.c.b16 %v4724, %v4722
        %v4823 = vpack.c.b16 %v4727, %v4725
        %v4824 = vpack.c.b16 %v4728, %v4726
        %v4825 = vpack.c.b16 %v4731, %v4729
        %v4826 = vpack.c.b16 %v4732, %v4730
        %v4827 = vpack.c.b16 %v4735, %v4733
        %v4828 = vpack.c.b16 %v4736, %v4734
        %v4829 = vpack.c.b16 %v4739, %v4737
        %v4830 = vpack.c.b16 %v4740, %v4738
        %v4831 = vpack.c.b16 %v4743, %v4741
        %v4832 = vpack.c.b16 %v4744, %v4742
        %v4833 = vpack.c.b16 %v4747, %v4745
        %v4834 = vpack.c.b16 %v4748, %v4746
        %v4835 = vpack.c.b16 %v4751, %v4749
        %v4836 = vpack.c.b16 %v4752, %v4750
        %v4837 = vpack.c.b16 %v4755, %v4753
        %v4838 = vpack.c.b16 %v4756, %v4754
        %v4839 = vpack.c.b16 %v4759, %v4757
        %v4840 = vpack.c.b16 %v4760, %v4758
        %v4841 = vpack.c.b16 %v4763, %v4761
        %v4842 = vpack.c.b16 %v4764, %v4762
        %v4843 = vpack.c.b16 %v4767, %v4765
        %v4844 = vpack.c.b16 %v4768, %v4766
        %v4845 = vpack.c.b16 %v4771, %v4769
        %v4846 = vpack.c.b16 %v4772, %v4770
        %v4847 = vpack.c.b16 %v4775, %v4773
        %v4848 = vpack.c.b16 %v4776, %v4774
        %v4849 = vpack.c.b16 %v4779, %v4777
        %v4850 = vpack.c.b16 %v4780, %v4778
        %v4851 = vpack.c.b16 %v4783, %v4781
        %v4852 = vpack.c.b16 %v4784, %v4782
        %v4853 = vpack.c.b16 %v4787, %v4785
        %v4854 = vpack.c.b16 %v4788, %v4786
        %v4855 = vpack.c.b16 %v4791, %v4789
        %v4856 = vpack.c.b16 %v4792, %v4790
        %4921 = vmatprep.subr.bf16.mxu0 %v4808
        %4922 = vmatpush1.bf16.msra.mxu0 %v4807
        %4923 = vmatprep.subr.bf16.mxu0 %v4806
        %4924 = vmatpush1.bf16.msra.mxu0 %v4805
        %4925 = vmatprep.subr.bf16.mxu0 %v4804
        %4926 = vmatpush1.bf16.msra.mxu0 %v4803
        %4927 = vmatprep.subr.bf16.mxu0 %v4802
        %4928 = vmatpush1.bf16.msra.mxu0 %v4801
        %4929 = vmatprep.subr.bf16.mxu0 %v4800
        %4930 = vmatpush1.bf16.msra.mxu0 %v4799
        %4931 = vmatprep.subr.bf16.mxu0 %v4798
        %4932 = vmatpush1.bf16.msra.mxu0 %v4797
        %4933 = vmatprep.subr.bf16.mxu0 %v4796
        %4934 = vmatpush1.bf16.msra.mxu0 %v4795
        %4935 = vmatprep.subr.bf16.mxu0 %v4794
        %4936 = vmatpush1.bf16.msra.mxu0 %v4793
        %4937 = vmatprep.subr.bf16.mxu0 %v4824
        %4938 = vmatpush2.bf16.msra.mxu0 %v4823
        %4939 = vmatprep.subr.bf16.mxu0 %v4822
        %4940 = vmatpush2.bf16.msra.mxu0 %v4821
        %4941 = vmatprep.subr.bf16.mxu0 %v4820
        %4942 = vmatpush2.bf16.msra.mxu0 %v4819
        %4943 = vmatprep.subr.bf16.mxu0 %v4818
        %4944 = vmatpush2.bf16.msra.mxu0 %v4817
        %4945 = vmatprep.subr.bf16.mxu0 %v4816
        %4946 = vmatpush2.bf16.msra.mxu0 %v4815
        %4947 = vmatprep.subr.bf16.mxu0 %v4814
        %4948 = vmatpush2.bf16.msra.mxu0 %v4813
        %4949 = vmatprep.subr.bf16.mxu0 %v4812
        %4950 = vmatpush2.bf16.msra.mxu0 %v4811
        %4951 = vmatprep.subr.bf16.mxu0 %v4810
        %4952 = vmatpush2.bf16.msra.mxu0 %v4809
        %4953 = vmatprep.mubr.bf16.mxu0 %v4410
        %4954 = vmatmul.mubr.bf16.gmra.mxu0 %v4409
        %v4955 = vpop.f32.mrf.mxu0
        %v4956 = vadd.f32 0.0, %v4955
        %v4957 = vpop.f32.mrf.mxu0
        %v4958 = vadd.f32 0.0, %v4957
        %v4959 = vpop.f32.mrf.mxu0
        %v4960 = vadd.f32 0.0, %v4959
        %v4961 = vpop.f32.mrf.mxu0
        %v4962 = vadd.f32 0.0, %v4961
        %4963 = vmatprep.mubr.bf16.mxu0 %v4414
        %4964 = vmatmul.mubr.bf16.gmra.mxu0 %v4413
        %v4965 = vpop.f32.mrf.mxu0
        %v4966 = vadd.f32 0.0, %v4965
        %v4967 = vpop.f32.mrf.mxu0
        %v4968 = vadd.f32 0.0, %v4967
        %v4969 = vpop.f32.mrf.mxu0
        %v4970 = vadd.f32 0.0, %v4969
        %v4971 = vpop.f32.mrf.mxu0
        %v4972 = vadd.f32 0.0, %v4971
        %4973 = vmatprep.mubr.bf16.mxu0 %v4418
        %4974 = vmatmul.mubr.bf16.gmra.mxu0 %v4417
        %v4975 = vpop.f32.mrf.mxu0
        %v4976 = vadd.f32 0.0, %v4975
        %v4977 = vpop.f32.mrf.mxu0
        %v4978 = vadd.f32 0.0, %v4977
        %v4979 = vpop.f32.mrf.mxu0
        %v4980 = vadd.f32 0.0, %v4979
        %v4981 = vpop.f32.mrf.mxu0
        %v4982 = vadd.f32 0.0, %v4981
        %4983 = vmatprep.mubr.bf16.mxu0 %v4422
        %4984 = vmatmul.mubr.bf16.gmra.mxu0 %v4421
        %v4985 = vpop.f32.mrf.mxu0
        %v4986 = vadd.f32 0.0, %v4985
        %v4987 = vpop.f32.mrf.mxu0
        %v4988 = vadd.f32 0.0, %v4987
        %v4989 = vpop.f32.mrf.mxu0
        %v4990 = vadd.f32 0.0, %v4989
        %v4991 = vpop.f32.mrf.mxu0
        %v4992 = vadd.f32 0.0, %v4991
        %4993 = vmatprep.mubr.bf16.mxu0 %v4426
        %4994 = vmatmul.mubr.bf16.gmra.mxu0 %v4425
        %v4995 = vpop.f32.mrf.mxu0
        %v4996 = vadd.f32 0.0, %v4995
        %v4997 = vpop.f32.mrf.mxu0
        %v4998 = vadd.f32 0.0, %v4997
        %v4999 = vpop.f32.mrf.mxu0
        %v5000 = vadd.f32 0.0, %v4999
        %v5001 = vpop.f32.mrf.mxu0
        %v5002 = vadd.f32 0.0, %v5001
        %5003 = vmatprep.mubr.bf16.mxu0 %v4430
        %5004 = vmatmul.mubr.bf16.gmra.mxu0 %v4429
        %v5005 = vpop.f32.mrf.mxu0
        %v5006 = vadd.f32 0.0, %v5005
        %v5007 = vpop.f32.mrf.mxu0
        %v5008 = vadd.f32 0.0, %v5007
        %v5009 = vpop.f32.mrf.mxu0
        %v5010 = vadd.f32 0.0, %v5009
        %v5011 = vpop.f32.mrf.mxu0
        %v5012 = vadd.f32 0.0, %v5011
        %5013 = vmatprep.mubr.bf16.mxu0 %v4434
        %5014 = vmatmul.mubr.bf16.gmra.mxu0 %v4433
        %v5015 = vpop.f32.mrf.mxu0
        %v5016 = vadd.f32 0.0, %v5015
        %v5017 = vpop.f32.mrf.mxu0
        %v5018 = vadd.f32 0.0, %v5017
        %v5019 = vpop.f32.mrf.mxu0
        %v5020 = vadd.f32 0.0, %v5019
        %v5021 = vpop.f32.mrf.mxu0
        %v5022 = vadd.f32 0.0, %v5021
        %5023 = vmatprep.mubr.bf16.mxu0 %v4438
        %5024 = vmatmul.mubr.bf16.gmra.mxu0 %v4437
        %v5025 = vpop.f32.mrf.mxu0
        %v5026 = vadd.f32 0.0, %v5025
        %v5027 = vpop.f32.mrf.mxu0
        %v5028 = vadd.f32 0.0, %v5027
        %v5029 = vpop.f32.mrf.mxu0
        %v5030 = vadd.f32 0.0, %v5029
        %v5031 = vpop.f32.mrf.mxu0
        %v5032 = vadd.f32 0.0, %v5031
        %5033 = vmatprep.mubr.bf16.mxu0 %v4442
        %5034 = vmatmul.mubr.bf16.gmra.mxu0 %v4441
        %v5035 = vpop.f32.mrf.mxu0
        %v5036 = vadd.f32 0.0, %v5035
        %v5037 = vpop.f32.mrf.mxu0
        %v5038 = vadd.f32 0.0, %v5037
        %v5039 = vpop.f32.mrf.mxu0
        %v5040 = vadd.f32 0.0, %v5039
        %v5041 = vpop.f32.mrf.mxu0
        %v5042 = vadd.f32 0.0, %v5041
        %5043 = vmatprep.mubr.bf16.mxu0 %v4446
        %5044 = vmatmul.mubr.bf16.gmra.mxu0 %v4445
        %v5045 = vpop.f32.mrf.mxu0
        %v5046 = vadd.f32 0.0, %v5045
        %v5047 = vpop.f32.mrf.mxu0
        %v5048 = vadd.f32 0.0, %v5047
        %v5049 = vpop.f32.mrf.mxu0
        %v5050 = vadd.f32 0.0, %v5049
        %v5051 = vpop.f32.mrf.mxu0
        %v5052 = vadd.f32 0.0, %v5051
        %5053 = vmatprep.mubr.bf16.mxu0 %v4450
        %5054 = vmatmul.mubr.bf16.gmra.mxu0 %v4449
        %v5055 = vpop.f32.mrf.mxu0
        %v5056 = vadd.f32 0.0, %v5055
        %v5057 = vpop.f32.mrf.mxu0
        %v5058 = vadd.f32 0.0, %v5057
        %v5059 = vpop.f32.mrf.mxu0
        %v5060 = vadd.f32 0.0, %v5059
        %v5061 = vpop.f32.mrf.mxu0
        %v5062 = vadd.f32 0.0, %v5061
        %5063 = vmatprep.mubr.bf16.mxu0 %v4454
        %5064 = vmatmul.mubr.bf16.gmra.mxu0 %v4453
        %v5065 = vpop.f32.mrf.mxu0
        %v5066 = vadd.f32 0.0, %v5065
        %v5067 = vpop.f32.mrf.mxu0
        %v5068 = vadd.f32 0.0, %v5067
        %v5069 = vpop.f32.mrf.mxu0
        %v5070 = vadd.f32 0.0, %v5069
        %v5071 = vpop.f32.mrf.mxu0
        %v5072 = vadd.f32 0.0, %v5071
        %5073 = vmatprep.mubr.bf16.mxu0 %v4458
        %5074 = vmatmul.mubr.bf16.gmra.mxu0 %v4457
        %v5075 = vpop.f32.mrf.mxu0
        %v5076 = vadd.f32 0.0, %v5075
        %v5077 = vpop.f32.mrf.mxu0
        %v5078 = vadd.f32 0.0, %v5077
        %v5079 = vpop.f32.mrf.mxu0
        %v5080 = vadd.f32 0.0, %v5079
        %v5081 = vpop.f32.mrf.mxu0
        %v5082 = vadd.f32 0.0, %v5081
        %5083 = vmatprep.mubr.bf16.mxu0 %v4462
        %5084 = vmatmul.mubr.bf16.gmra.mxu0 %v4461
        %v5085 = vpop.f32.mrf.mxu0
        %v5086 = vadd.f32 0.0, %v5085
        %v5087 = vpop.f32.mrf.mxu0
        %v5088 = vadd.f32 0.0, %v5087
        %v5089 = vpop.f32.mrf.mxu0
        %v5090 = vadd.f32 0.0, %v5089
        %v5091 = vpop.f32.mrf.mxu0
        %v5092 = vadd.f32 0.0, %v5091
        %5093 = vmatprep.mubr.bf16.mxu0 %v4466
        %5094 = vmatmul.mubr.bf16.gmra.mxu0 %v4465
        %v5095 = vpop.f32.mrf.mxu0
        %v5096 = vadd.f32 0.0, %v5095
        %v5097 = vpop.f32.mrf.mxu0
        %v5098 = vadd.f32 0.0, %v5097
        %v5099 = vpop.f32.mrf.mxu0
        %v5100 = vadd.f32 0.0, %v5099
        %v5101 = vpop.f32.mrf.mxu0
        %v5102 = vadd.f32 0.0, %v5101
        %5103 = vmatprep.mubr.bf16.mxu0 %v4470
        %5104 = vmatmul.mubr.bf16.gmra.mxu0 %v4469
        %v5105 = vpop.f32.mrf.mxu0
        %v5106 = vadd.f32 0.0, %v5105
        %v5107 = vpop.f32.mrf.mxu0
        %v5108 = vadd.f32 0.0, %v5107
        %v5109 = vpop.f32.mrf.mxu0
        %v5110 = vadd.f32 0.0, %v5109
        %v5111 = vpop.f32.mrf.mxu0
        %v5112 = vadd.f32 0.0, %v5111
        %5113 = vdwg.mxu0
        %5114 = vmatprep.subr.bf16.mxu0 %v4840
        %5115 = vmatpush1.bf16.msra.mxu0 %v4839
        %5116 = vmatprep.subr.bf16.mxu0 %v4838
        %5117 = vmatpush1.bf16.msra.mxu0 %v4837
        %5118 = vmatprep.subr.bf16.mxu0 %v4836
        %5119 = vmatpush1.bf16.msra.mxu0 %v4835
        %5120 = vmatprep.subr.bf16.mxu0 %v4834
        %5121 = vmatpush1.bf16.msra.mxu0 %v4833
        %5122 = vmatprep.subr.bf16.mxu0 %v4832
        %5123 = vmatpush1.bf16.msra.mxu0 %v4831
        %5124 = vmatprep.subr.bf16.mxu0 %v4830
        %5125 = vmatpush1.bf16.msra.mxu0 %v4829
        %5126 = vmatprep.subr.bf16.mxu0 %v4828
        %5127 = vmatpush1.bf16.msra.mxu0 %v4827
        %5128 = vmatprep.subr.bf16.mxu0 %v4826
        %5129 = vmatpush1.bf16.msra.mxu0 %v4825
        %5130 = vmatprep.subr.bf16.mxu0 %v4856
        %5131 = vmatpush2.bf16.msra.mxu0 %v4855
        %5132 = vmatprep.subr.bf16.mxu0 %v4854
        %5133 = vmatpush2.bf16.msra.mxu0 %v4853
        %5134 = vmatprep.subr.bf16.mxu0 %v4852
        %5135 = vmatpush2.bf16.msra.mxu0 %v4851
        %5136 = vmatprep.subr.bf16.mxu0 %v4850
        %5137 = vmatpush2.bf16.msra.mxu0 %v4849
        %5138 = vmatprep.subr.bf16.mxu0 %v4848
        %5139 = vmatpush2.bf16.msra.mxu0 %v4847
        %5140 = vmatprep.subr.bf16.mxu0 %v4846
        %5141 = vmatpush2.bf16.msra.mxu0 %v4845
        %5142 = vmatprep.subr.bf16.mxu0 %v4844
        %5143 = vmatpush2.bf16.msra.mxu0 %v4843
        %5144 = vmatprep.subr.bf16.mxu0 %v4842
        %5145 = vmatpush2.bf16.msra.mxu0 %v4841
        %5146 = vmatprep.mubr.bf16.mxu0 %v4412
        %5147 = vmatmul.mubr.bf16.gmra.mxu0 %v4411
        %v5148 = vpop.f32.mrf.mxu0
        %v5149 = vadd.f32 %v4956, %v5148
        %v5150 = vpop.f32.mrf.mxu0
        %v5151 = vadd.f32 %v4958, %v5150
        %v5152 = vpop.f32.mrf.mxu0
        %v5153 = vadd.f32 %v4960, %v5152
        %v5154 = vpop.f32.mrf.mxu0
        %v5155 = vadd.f32 %v4962, %v5154
        %5156 = vmatprep.mubr.bf16.mxu0 %v4416
        %5157 = vmatmul.mubr.bf16.gmra.mxu0 %v4415
        %v5158 = vpop.f32.mrf.mxu0
        %v5159 = vadd.f32 %v4966, %v5158
        %v5160 = vpop.f32.mrf.mxu0
        %v5161 = vadd.f32 %v4968, %v5160
        %v5162 = vpop.f32.mrf.mxu0
        %v5163 = vadd.f32 %v4970, %v5162
        %v5164 = vpop.f32.mrf.mxu0
        %v5165 = vadd.f32 %v4972, %v5164
        %5166 = vmatprep.mubr.bf16.mxu0 %v4420
        %5167 = vmatmul.mubr.bf16.gmra.mxu0 %v4419
        %v5168 = vpop.f32.mrf.mxu0
        %v5169 = vadd.f32 %v4976, %v5168
        %v5170 = vpop.f32.mrf.mxu0
        %v5171 = vadd.f32 %v4978, %v5170
        %v5172 = vpop.f32.mrf.mxu0
        %v5173 = vadd.f32 %v4980, %v5172
        %v5174 = vpop.f32.mrf.mxu0
        %v5175 = vadd.f32 %v4982, %v5174
        %5176 = vmatprep.mubr.bf16.mxu0 %v4424
        %5177 = vmatmul.mubr.bf16.gmra.mxu0 %v4423
        %v5178 = vpop.f32.mrf.mxu0
        %v5179 = vadd.f32 %v4986, %v5178
        %v5180 = vpop.f32.mrf.mxu0
        %v5181 = vadd.f32 %v4988, %v5180
        %v5182 = vpop.f32.mrf.mxu0
        %v5183 = vadd.f32 %v4990, %v5182
        %v5184 = vpop.f32.mrf.mxu0
        %v5185 = vadd.f32 %v4992, %v5184
        %5186 = vmatprep.mubr.bf16.mxu0 %v4428
        %5187 = vmatmul.mubr.bf16.gmra.mxu0 %v4427
        %v5188 = vpop.f32.mrf.mxu0
        %v5189 = vadd.f32 %v4996, %v5188
        %v5190 = vpop.f32.mrf.mxu0
        %v5191 = vadd.f32 %v4998, %v5190
        %v5192 = vpop.f32.mrf.mxu0
        %v5193 = vadd.f32 %v5000, %v5192
        %v5194 = vpop.f32.mrf.mxu0
        %v5195 = vadd.f32 %v5002, %v5194
        %5196 = vmatprep.mubr.bf16.mxu0 %v4432
        %5197 = vmatmul.mubr.bf16.gmra.mxu0 %v4431
        %v5198 = vpop.f32.mrf.mxu0
        %v5199 = vadd.f32 %v5006, %v5198
        %v5200 = vpop.f32.mrf.mxu0
        %v5201 = vadd.f32 %v5008, %v5200
        %v5202 = vpop.f32.mrf.mxu0
        %v5203 = vadd.f32 %v5010, %v5202
        %v5204 = vpop.f32.mrf.mxu0
        %v5205 = vadd.f32 %v5012, %v5204
        %5206 = vmatprep.mubr.bf16.mxu0 %v4436
        %5207 = vmatmul.mubr.bf16.gmra.mxu0 %v4435
        %v5208 = vpop.f32.mrf.mxu0
        %v5209 = vadd.f32 %v5016, %v5208
        %v5210 = vpop.f32.mrf.mxu0
        %v5211 = vadd.f32 %v5018, %v5210
        %v5212 = vpop.f32.mrf.mxu0
        %v5213 = vadd.f32 %v5020, %v5212
        %v5214 = vpop.f32.mrf.mxu0
        %v5215 = vadd.f32 %v5022, %v5214
        %5216 = vmatprep.mubr.bf16.mxu0 %v4440
        %5217 = vmatmul.mubr.bf16.gmra.mxu0 %v4439
        %v5218 = vpop.f32.mrf.mxu0
        %v5219 = vadd.f32 %v5026, %v5218
        %v5220 = vpop.f32.mrf.mxu0
        %v5221 = vadd.f32 %v5028, %v5220
        %v5222 = vpop.f32.mrf.mxu0
        %v5223 = vadd.f32 %v5030, %v5222
        %v5224 = vpop.f32.mrf.mxu0
        %v5225 = vadd.f32 %v5032, %v5224
        %5226 = vmatprep.mubr.bf16.mxu0 %v4444
        %5227 = vmatmul.mubr.bf16.gmra.mxu0 %v4443
        %v5228 = vpop.f32.mrf.mxu0
        %v5229 = vadd.f32 %v5036, %v5228
        %v5230 = vpop.f32.mrf.mxu0
        %v5231 = vadd.f32 %v5038, %v5230
        %v5232 = vpop.f32.mrf.mxu0
        %v5233 = vadd.f32 %v5040, %v5232
        %v5234 = vpop.f32.mrf.mxu0
        %v5235 = vadd.f32 %v5042, %v5234
        %5236 = vmatprep.mubr.bf16.mxu0 %v4448
        %5237 = vmatmul.mubr.bf16.gmra.mxu0 %v4447
        %v5238 = vpop.f32.mrf.mxu0
        %v5239 = vadd.f32 %v5046, %v5238
        %v5240 = vpop.f32.mrf.mxu0
        %v5241 = vadd.f32 %v5048, %v5240
        %v5242 = vpop.f32.mrf.mxu0
        %v5243 = vadd.f32 %v5050, %v5242
        %v5244 = vpop.f32.mrf.mxu0
        %v5245 = vadd.f32 %v5052, %v5244
        %5246 = vmatprep.mubr.bf16.mxu0 %v4452
        %5247 = vmatmul.mubr.bf16.gmra.mxu0 %v4451
        %v5248 = vpop.f32.mrf.mxu0
        %v5249 = vadd.f32 %v5056, %v5248
        %v5250 = vpop.f32.mrf.mxu0
        %v5251 = vadd.f32 %v5058, %v5250
        %v5252 = vpop.f32.mrf.mxu0
        %v5253 = vadd.f32 %v5060, %v5252
        %v5254 = vpop.f32.mrf.mxu0
        %v5255 = vadd.f32 %v5062, %v5254
        %5256 = vmatprep.mubr.bf16.mxu0 %v4456
        %5257 = vmatmul.mubr.bf16.gmra.mxu0 %v4455
        %v5258 = vpop.f32.mrf.mxu0
        %v5259 = vadd.f32 %v5066, %v5258
        %v5260 = vpop.f32.mrf.mxu0
        %v5261 = vadd.f32 %v5068, %v5260
        %v5262 = vpop.f32.mrf.mxu0
        %v5263 = vadd.f32 %v5070, %v5262
        %v5264 = vpop.f32.mrf.mxu0
        %v5265 = vadd.f32 %v5072, %v5264
        %5266 = vmatprep.mubr.bf16.mxu0 %v4460
        %5267 = vmatmul.mubr.bf16.gmra.mxu0 %v4459
        %v5268 = vpop.f32.mrf.mxu0
        %v5269 = vadd.f32 %v5076, %v5268
        %v5270 = vpop.f32.mrf.mxu0
        %v5271 = vadd.f32 %v5078, %v5270
        %v5272 = vpop.f32.mrf.mxu0
        %v5273 = vadd.f32 %v5080, %v5272
        %v5274 = vpop.f32.mrf.mxu0
        %v5275 = vadd.f32 %v5082, %v5274
        %5276 = vmatprep.mubr.bf16.mxu0 %v4464
        %5277 = vmatmul.mubr.bf16.gmra.mxu0 %v4463
        %v5278 = vpop.f32.mrf.mxu0
        %v5279 = vadd.f32 %v5086, %v5278
        %v5280 = vpop.f32.mrf.mxu0
        %v5281 = vadd.f32 %v5088, %v5280
        %v5282 = vpop.f32.mrf.mxu0
        %v5283 = vadd.f32 %v5090, %v5282
        %v5284 = vpop.f32.mrf.mxu0
        %v5285 = vadd.f32 %v5092, %v5284
        %5286 = vmatprep.mubr.bf16.mxu0 %v4468
        %5287 = vmatmul.mubr.bf16.gmra.mxu0 %v4467
        %v5288 = vpop.f32.mrf.mxu0
        %v5289 = vadd.f32 %v5096, %v5288
        %v5290 = vpop.f32.mrf.mxu0
        %v5291 = vadd.f32 %v5098, %v5290
        %v5292 = vpop.f32.mrf.mxu0
        %v5293 = vadd.f32 %v5100, %v5292
        %v5294 = vpop.f32.mrf.mxu0
        %v5295 = vadd.f32 %v5102, %v5294
        %5296 = vmatprep.mubr.bf16.mxu0 %v4472
        %5297 = vmatmul.mubr.bf16.gmra.mxu0 %v4471
        %v5298 = vpop.f32.mrf.mxu0
        %v5299 = vadd.f32 %v5106, %v5298
        %v5300 = vpop.f32.mrf.mxu0
        %v5301 = vadd.f32 %v5108, %v5300
        %v5302 = vpop.f32.mrf.mxu0
        %v5303 = vadd.f32 %v5110, %v5302
        %v5304 = vpop.f32.mrf.mxu0
        %v5305 = vadd.f32 %v5112, %v5304
        %5306 = vdwg.mxu0
        %v5307 = vadd.f32 %v4473, %v5149
        %v5308 = vadd.f32 %v4474, %v5151
        %v5309 = vadd.f32 %v4475, %v5153
        %v5310 = vadd.f32 %v4476, %v5155
        %v5311 = vadd.f32 %v4477, %v5159
        %v5312 = vadd.f32 %v4478, %v5161
        %v5313 = vadd.f32 %v4479, %v5163
        %v5314 = vadd.f32 %v4480, %v5165
        %v5315 = vadd.f32 %v4481, %v5169
        %v5316 = vadd.f32 %v4482, %v5171
        %v5317 = vadd.f32 %v4483, %v5173
        %v5318 = vadd.f32 %v4484, %v5175
        %v5319 = vadd.f32 %v4485, %v5179
        %v5320 = vadd.f32 %v4486, %v5181
        %v5321 = vadd.f32 %v4487, %v5183
        %v5322 = vadd.f32 %v4488, %v5185
        %v5323 = vadd.f32 %v4489, %v5189
        %v5324 = vadd.f32 %v4490, %v5191
        %v5325 = vadd.f32 %v4491, %v5193
        %v5326 = vadd.f32 %v4492, %v5195
        %v5327 = vadd.f32 %v4493, %v5199
        %v5328 = vadd.f32 %v4494, %v5201
        %v5329 = vadd.f32 %v4495, %v5203
        %v5330 = vadd.f32 %v4496, %v5205
        %v5331 = vadd.f32 %v4497, %v5209
        %v5332 = vadd.f32 %v4498, %v5211
        %v5333 = vadd.f32 %v4499, %v5213
        %v5334 = vadd.f32 %v4500, %v5215
        %v5335 = vadd.f32 %v4501, %v5219
        %v5336 = vadd.f32 %v4502, %v5221
        %v5337 = vadd.f32 %v4503, %v5223
        %v5338 = vadd.f32 %v4504, %v5225
        %v5339 = vadd.f32 %v4505, %v5229
        %v5340 = vadd.f32 %v4506, %v5231
        %v5341 = vadd.f32 %v4507, %v5233
        %v5342 = vadd.f32 %v4508, %v5235
        %v5343 = vadd.f32 %v4509, %v5239
        %v5344 = vadd.f32 %v4510, %v5241
        %v5345 = vadd.f32 %v4511, %v5243
        %v5346 = vadd.f32 %v4512, %v5245
        %v5347 = vadd.f32 %v4513, %v5249
        %v5348 = vadd.f32 %v4514, %v5251
        %v5349 = vadd.f32 %v4515, %v5253
        %v5350 = vadd.f32 %v4516, %v5255
        %v5351 = vadd.f32 %v4517, %v5259
        %v5352 = vadd.f32 %v4518, %v5261
        %v5353 = vadd.f32 %v4519, %v5263
        %v5354 = vadd.f32 %v4520, %v5265
        %v5355 = vadd.f32 %v4521, %v5269
        %v5356 = vadd.f32 %v4522, %v5271
        %v5357 = vadd.f32 %v4523, %v5273
        %v5358 = vadd.f32 %v4524, %v5275
        %v5359 = vadd.f32 %v4525, %v5279
        %v5360 = vadd.f32 %v4526, %v5281
        %v5361 = vadd.f32 %v4527, %v5283
        %v5362 = vadd.f32 %v4528, %v5285
        %v5363 = vadd.f32 %v4529, %v5289
        %v5364 = vadd.f32 %v4530, %v5291
        %v5365 = vadd.f32 %v4531, %v5293
        %v5366 = vadd.f32 %v4532, %v5295
        %v5367 = vadd.f32 %v4533, %v5299
        %v5368 = vadd.f32 %v4534, %v5301
        %v5369 = vadd.f32 %v4535, %v5303
        %v5370 = vadd.f32 %v4536, %v5305
        %5371 = vst [vmem:[#allocation2] sm:$0xff] %v5307
        %5372 = vst [vmem:[#allocation2 + $0x8] sm:$0xff] %v5308
        %5373 = vst [vmem:[#allocation2 + $0x10] sm:$0xff] %v5309
        %5374 = vst [vmem:[#allocation2 + $0x18] sm:$0xff] %v5310
        %5375 = vst [vmem:[#allocation2 + $0x20] sm:$0xff] %v5311
        %5376 = vst [vmem:[#allocation2 + $0x28] sm:$0xff] %v5312
        %5377 = vst [vmem:[#allocation2 + $0x30] sm:$0xff] %v5313
        %5378 = vst [vmem:[#allocation2 + $0x38] sm:$0xff] %v5314
        %5379 = vst [vmem:[#allocation2 + $0x40] sm:$0xff] %v5315
        %5380 = vst [vmem:[#allocation2 + $0x48] sm:$0xff] %v5316
        %5381 = vst [vmem:[#allocation2 + $0x50] sm:$0xff] %v5317
        %5382 = vst [vmem:[#allocation2 + $0x58] sm:$0xff] %v5318
        %5383 = vst [vmem:[#allocation2 + $0x60] sm:$0xff] %v5319
        %5384 = vst [vmem:[#allocation2 + $0x68] sm:$0xff] %v5320
        %5385 = vst [vmem:[#allocation2 + $0x70] sm:$0xff] %v5321
        %5386 = vst [vmem:[#allocation2 + $0x78] sm:$0xff] %v5322
        %5387 = vst [vmem:[#allocation2 + $0x80] sm:$0xff] %v5323
        %5388 = vst [vmem:[#allocation2 + $0x88] sm:$0xff] %v5324
        %5389 = vst [vmem:[#allocation2 + $0x90] sm:$0xff] %v5325
        %5390 = vst [vmem:[#allocation2 + $0x98] sm:$0xff] %v5326
        %5391 = vst [vmem:[#allocation2 + $0xa0] sm:$0xff] %v5327
        %5392 = vst [vmem:[#allocation2 + $0xa8] sm:$0xff] %v5328
        %5393 = vst [vmem:[#allocation2 + $0xb0] sm:$0xff] %v5329
        %5394 = vst [vmem:[#allocation2 + $0xb8] sm:$0xff] %v5330
        %5395 = vst [vmem:[#allocation2 + $0xc0] sm:$0xff] %v5331
        %5396 = vst [vmem:[#allocation2 + $0xc8] sm:$0xff] %v5332
        %5397 = vst [vmem:[#allocation2 + $0xd0] sm:$0xff] %v5333
        %5398 = vst [vmem:[#allocation2 + $0xd8] sm:$0xff] %v5334
        %5399 = vst [vmem:[#allocation2 + $0xe0] sm:$0xff] %v5335
        %5400 = vst [vmem:[#allocation2 + $0xe8] sm:$0xff] %v5336
        %5401 = vst [vmem:[#allocation2 + $0xf0] sm:$0xff] %v5337
        %5402 = vst [vmem:[#allocation2 + $0xf8] sm:$0xff] %v5338
        %5403 = vst [vmem:[#allocation2 + $0x100] sm:$0xff] %v5339
        %5404 = vst [vmem:[#allocation2 + $0x108] sm:$0xff] %v5340
        %5405 = vst [vmem:[#allocation2 + $0x110] sm:$0xff] %v5341
        %5406 = vst [vmem:[#allocation2 + $0x118] sm:$0xff] %v5342
        %5407 = vst [vmem:[#allocation2 + $0x120] sm:$0xff] %v5343
        %5408 = vst [vmem:[#allocation2 + $0x128] sm:$0xff] %v5344
        %5409 = vst [vmem:[#allocation2 + $0x130] sm:$0xff] %v5345
        %5410 = vst [vmem:[#allocation2 + $0x138] sm:$0xff] %v5346
        %5411 = vst [vmem:[#allocation2 + $0x140] sm:$0xff] %v5347
        %5412 = vst [vmem:[#allocation2 + $0x148] sm:$0xff] %v5348
        %5413 = vst [vmem:[#allocation2 + $0x150] sm:$0xff] %v5349
        %5414 = vst [vmem:[#allocation2 + $0x158] sm:$0xff] %v5350
        %5415 = vst [vmem:[#allocation2 + $0x160] sm:$0xff] %v5351
        %5416 = vst [vmem:[#allocation2 + $0x168] sm:$0xff] %v5352
        %5417 = vst [vmem:[#allocation2 + $0x170] sm:$0xff] %v5353
        %5418 = vst [vmem:[#allocation2 + $0x178] sm:$0xff] %v5354
        %5419 = vst [vmem:[#allocation2 + $0x180] sm:$0xff] %v5355
        %5420 = vst [vmem:[#allocation2 + $0x188] sm:$0xff] %v5356
        %5421 = vst [vmem:[#allocation2 + $0x190] sm:$0xff] %v5357
        %5422 = vst [vmem:[#allocation2 + $0x198] sm:$0xff] %v5358
        %5423 = vst [vmem:[#allocation2 + $0x1a0] sm:$0xff] %v5359
        %5424 = vst [vmem:[#allocation2 + $0x1a8] sm:$0xff] %v5360
        %5425 = vst [vmem:[#allocation2 + $0x1b0] sm:$0xff] %v5361
        %5426 = vst [vmem:[#allocation2 + $0x1b8] sm:$0xff] %v5362
        %5427 = vst [vmem:[#allocation2 + $0x1c0] sm:$0xff] %v5363
        %5428 = vst [vmem:[#allocation2 + $0x1c8] sm:$0xff] %v5364
        %5429 = vst [vmem:[#allocation2 + $0x1d0] sm:$0xff] %v5365
        %5430 = vst [vmem:[#allocation2 + $0x1d8] sm:$0xff] %v5366
        %5431 = vst [vmem:[#allocation2 + $0x1e0] sm:$0xff] %v5367
        %5432 = vst [vmem:[#allocation2 + $0x1e8] sm:$0xff] %v5368
        %5433 = vst [vmem:[#allocation2 + $0x1f0] sm:$0xff] %v5369
        %5434 = vst [vmem:[#allocation2 + $0x1f8] sm:$0xff] %v5370
        %v5435 = vld [vmem:[%s1 + $0x60] sm:$0xff]
        %v5436 = vld [vmem:[%s1 + $0x68] sm:$0xff]
        %v5437 = vld [vmem:[%s1 + $0x70] sm:$0xff]
        %v5438 = vld [vmem:[%s1 + $0x78] sm:$0xff]
        %5439 = vmatprep.subr.mxu0 0.0
        %5440 = vmatpush1.msra.mxu0 0.0
        %5441 = vmatprep.subr.mxu0 0.0
        %5442 = vmatpush1.msra.mxu0 0.0
        %5443 = vmatprep.subr.mxu0 0.0
        %5444 = vmatpush1.msra.mxu0 0.0
        %5445 = vmatprep.subr.mxu0 0.0
        %5446 = vmatpush1.msra.mxu0 0.0
        %5447 = vmatprep.subr.mxu0 0.0
        %5448 = vmatpush1.msra.mxu0 0.0
        %5449 = vmatprep.subr.mxu0 0.0
        %5450 = vmatpush1.msra.mxu0 0.0
        %5451 = vmatprep.subr.mxu0 0.0
        %5452 = vmatpush1.msra.mxu0 0.0
        %5453 = vmatprep.subr.mxu0 0.0
        %5454 = vmatpush1.msra.mxu0 0.0
        %5455 = vmatprep.subr.mxu0 0.0
        %5456 = vmatpush1.msra.mxu0 0.0
        %5457 = vmatprep.subr.mxu0 0.0
        %5458 = vmatpush1.msra.mxu0 0.0
        %5459 = vmatprep.subr.mxu0 0.0
        %5460 = vmatpush1.msra.mxu0 0.0
        %5461 = vmatprep.subr.mxu0 0.0
        %5462 = vmatpush1.msra.mxu0 0.0
        %5463 = vmatprep.subr.mxu0 0.0
        %5464 = vmatpush1.msra.mxu0 0.0
        %5465 = vmatprep.subr.mxu0 0.0
        %5466 = vmatpush1.msra.mxu0 0.0
        %5467 = vmatprep.subr.mxu0 0.0
        %5468 = vmatpush1.msra.mxu0 0.0
        %5469 = vmatprep.subr.mxu0 %v5436
        %5470 = vmatpush1.msra.mxu0 %v5435
        %5471 = vmatprep.subr.mxu0 0.0
        %5472 = vmatpush2.msra.mxu0 0.0
        %5473 = vmatprep.subr.mxu0 0.0
        %5474 = vmatpush2.msra.mxu0 0.0
        %5475 = vmatprep.subr.mxu0 0.0
        %5476 = vmatpush2.msra.mxu0 0.0
        %5477 = vmatprep.subr.mxu0 0.0
        %5478 = vmatpush2.msra.mxu0 0.0
        %5479 = vmatprep.subr.mxu0 0.0
        %5480 = vmatpush2.msra.mxu0 0.0
        %5481 = vmatprep.subr.mxu0 0.0
        %5482 = vmatpush2.msra.mxu0 0.0
        %5483 = vmatprep.subr.mxu0 0.0
        %5484 = vmatpush2.msra.mxu0 0.0
        %5485 = vmatprep.subr.mxu0 0.0
        %5486 = vmatpush2.msra.mxu0 0.0
        %5487 = vmatprep.subr.mxu0 0.0
        %5488 = vmatpush2.msra.mxu0 0.0
        %5489 = vmatprep.subr.mxu0 0.0
        %5490 = vmatpush2.msra.mxu0 0.0
        %5491 = vmatprep.subr.mxu0 0.0
        %5492 = vmatpush2.msra.mxu0 0.0
        %5493 = vmatprep.subr.mxu0 0.0
        %5494 = vmatpush2.msra.mxu0 0.0
        %5495 = vmatprep.subr.mxu0 0.0
        %5496 = vmatpush2.msra.mxu0 0.0
        %5497 = vmatprep.subr.mxu0 0.0
        %5498 = vmatpush2.msra.mxu0 0.0
        %5499 = vmatprep.subr.mxu0 0.0
        %5500 = vmatpush2.msra.mxu0 0.0
        %5501 = vmatprep.subr.mxu0 0.0
        %5502 = vmatpush2.msra.mxu0 0.0
        %5503 = vmatprep.mubr.f32.mxu0 0.0
        %5504 = vmatmul.mubr.f32.gmra.mxu0 %v328
        %v5505 = vpop.f32.mrf.mxu0
        %v5506 = vadd.f32 0.0, %v5505
        %v5507 = vpop.f32.mrf.mxu0
        %v5508 = vadd.f32 0.0, %v5507
        %5509 = vmatprep.mubr.f32.mxu0 0.0
        %5510 = vmatmul.mubr.f32.gmra.mxu0 %v331
        %v5511 = vpop.f32.mrf.mxu0
        %v5512 = vadd.f32 0.0, %v5511
        %v5513 = vpop.f32.mrf.mxu0
        %v5514 = vadd.f32 0.0, %v5513
        %5515 = vmatprep.mubr.f32.mxu0 0.0
        %5516 = vmatmul.mubr.f32.gmra.mxu0 %v334
        %v5517 = vpop.f32.mrf.mxu0
        %v5518 = vadd.f32 0.0, %v5517
        %v5519 = vpop.f32.mrf.mxu0
        %v5520 = vadd.f32 0.0, %v5519
        %5521 = vmatprep.mubr.f32.mxu0 0.0
        %5522 = vmatmul.mubr.f32.gmra.mxu0 %v337
        %v5523 = vpop.f32.mrf.mxu0
        %v5524 = vadd.f32 0.0, %v5523
        %v5525 = vpop.f32.mrf.mxu0
        %v5526 = vadd.f32 0.0, %v5525
        %5527 = vmatprep.mubr.f32.mxu0 0.0
        %5528 = vmatmul.mubr.f32.gmra.mxu0 %v340
        %v5529 = vpop.f32.mrf.mxu0
        %v5530 = vadd.f32 0.0, %v5529
        %v5531 = vpop.f32.mrf.mxu0
        %v5532 = vadd.f32 0.0, %v5531
        %5533 = vmatprep.mubr.f32.mxu0 0.0
        %5534 = vmatmul.mubr.f32.gmra.mxu0 %v343
        %v5535 = vpop.f32.mrf.mxu0
        %v5536 = vadd.f32 0.0, %v5535
        %v5537 = vpop.f32.mrf.mxu0
        %v5538 = vadd.f32 0.0, %v5537
        %5539 = vmatprep.mubr.f32.mxu0 0.0
        %5540 = vmatmul.mubr.f32.gmra.mxu0 %v346
        %v5541 = vpop.f32.mrf.mxu0
        %v5542 = vadd.f32 0.0, %v5541
        %v5543 = vpop.f32.mrf.mxu0
        %v5544 = vadd.f32 0.0, %v5543
        %5545 = vmatprep.mubr.f32.mxu0 0.0
        %5546 = vmatmul.mubr.f32.gmra.mxu0 %v349
        %v5547 = vpop.f32.mrf.mxu0
        %v5548 = vadd.f32 0.0, %v5547
        %v5549 = vpop.f32.mrf.mxu0
        %v5550 = vadd.f32 0.0, %v5549
        %5551 = vmatprep.mubr.f32.mxu0 0.0
        %5552 = vmatmul.mubr.f32.gmra.mxu0 %v352
        %v5553 = vpop.f32.mrf.mxu0
        %v5554 = vadd.f32 0.0, %v5553
        %v5555 = vpop.f32.mrf.mxu0
        %v5556 = vadd.f32 0.0, %v5555
        %5557 = vmatprep.mubr.f32.mxu0 0.0
        %5558 = vmatmul.mubr.f32.gmra.mxu0 %v355
        %v5559 = vpop.f32.mrf.mxu0
        %v5560 = vadd.f32 0.0, %v5559
        %v5561 = vpop.f32.mrf.mxu0
        %v5562 = vadd.f32 0.0, %v5561
        %5563 = vmatprep.mubr.f32.mxu0 0.0
        %5564 = vmatmul.mubr.f32.gmra.mxu0 %v358
        %v5565 = vpop.f32.mrf.mxu0
        %v5566 = vadd.f32 0.0, %v5565
        %v5567 = vpop.f32.mrf.mxu0
        %v5568 = vadd.f32 0.0, %v5567
        %5569 = vmatprep.mubr.f32.mxu0 0.0
        %5570 = vmatmul.mubr.f32.gmra.mxu0 %v361
        %v5571 = vpop.f32.mrf.mxu0
        %v5572 = vadd.f32 0.0, %v5571
        %v5573 = vpop.f32.mrf.mxu0
        %v5574 = vadd.f32 0.0, %v5573
        %5575 = vmatprep.mubr.f32.mxu0 0.0
        %5576 = vmatmul.mubr.f32.gmra.mxu0 %v364
        %v5577 = vpop.f32.mrf.mxu0
        %v5578 = vadd.f32 0.0, %v5577
        %v5579 = vpop.f32.mrf.mxu0
        %v5580 = vadd.f32 0.0, %v5579
        %5581 = vmatprep.mubr.f32.mxu0 0.0
        %5582 = vmatmul.mubr.f32.gmra.mxu0 %v367
        %v5583 = vpop.f32.mrf.mxu0
        %v5584 = vadd.f32 0.0, %v5583
        %v5585 = vpop.f32.mrf.mxu0
        %v5586 = vadd.f32 0.0, %v5585
        %5587 = vmatprep.mubr.f32.mxu0 0.0
        %5588 = vmatmul.mubr.f32.gmra.mxu0 %v370
        %v5589 = vpop.f32.mrf.mxu0
        %v5590 = vadd.f32 0.0, %v5589
        %v5591 = vpop.f32.mrf.mxu0
        %v5592 = vadd.f32 0.0, %v5591
        %5593 = vmatprep.mubr.f32.mxu0 0.0
        %5594 = vmatmul.mubr.f32.gmra.mxu0 %v373
        %v5595 = vpop.f32.mrf.mxu0
        %v5596 = vadd.f32 0.0, %v5595
        %v5597 = vpop.f32.mrf.mxu0
        %v5598 = vadd.f32 0.0, %v5597
        %5599 = vmatprep.mubr.f32.mxu0 0.0
        %5600 = vmatmul.mubr.f32.gmra.mxu0 %v376
        %v5601 = vpop.f32.mrf.mxu0
        %v5602 = vadd.f32 0.0, %v5601
        %v5603 = vpop.f32.mrf.mxu0
        %v5604 = vadd.f32 0.0, %v5603
        %5605 = vmatprep.mubr.f32.mxu0 0.0
        %5606 = vmatmul.mubr.f32.gmra.mxu0 %v379
        %v5607 = vpop.f32.mrf.mxu0
        %v5608 = vadd.f32 0.0, %v5607
        %v5609 = vpop.f32.mrf.mxu0
        %v5610 = vadd.f32 0.0, %v5609
        %5611 = vmatprep.mubr.f32.mxu0 0.0
        %5612 = vmatmul.mubr.f32.gmra.mxu0 %v382
        %v5613 = vpop.f32.mrf.mxu0
        %v5614 = vadd.f32 0.0, %v5613
        %v5615 = vpop.f32.mrf.mxu0
        %v5616 = vadd.f32 0.0, %v5615
        %5617 = vmatprep.mubr.f32.mxu0 0.0
        %5618 = vmatmul.mubr.f32.gmra.mxu0 %v385
        %v5619 = vpop.f32.mrf.mxu0
        %v5620 = vadd.f32 0.0, %v5619
        %v5621 = vpop.f32.mrf.mxu0
        %v5622 = vadd.f32 0.0, %v5621
        %5623 = vmatprep.mubr.f32.mxu0 0.0
        %5624 = vmatmul.mubr.f32.gmra.mxu0 %v388
        %v5625 = vpop.f32.mrf.mxu0
        %v5626 = vadd.f32 0.0, %v5625
        %v5627 = vpop.f32.mrf.mxu0
        %v5628 = vadd.f32 0.0, %v5627
        %5629 = vmatprep.mubr.f32.mxu0 0.0
        %5630 = vmatmul.mubr.f32.gmra.mxu0 %v391
        %v5631 = vpop.f32.mrf.mxu0
        %v5632 = vadd.f32 0.0, %v5631
        %v5633 = vpop.f32.mrf.mxu0
        %v5634 = vadd.f32 0.0, %v5633
        %5635 = vmatprep.mubr.f32.mxu0 0.0
        %5636 = vmatmul.mubr.f32.gmra.mxu0 %v394
        %v5637 = vpop.f32.mrf.mxu0
        %v5638 = vadd.f32 0.0, %v5637
        %v5639 = vpop.f32.mrf.mxu0
        %v5640 = vadd.f32 0.0, %v5639
        %5641 = vmatprep.mubr.f32.mxu0 0.0
        %5642 = vmatmul.mubr.f32.gmra.mxu0 %v397
        %v5643 = vpop.f32.mrf.mxu0
        %v5644 = vadd.f32 0.0, %v5643
        %v5645 = vpop.f32.mrf.mxu0
        %v5646 = vadd.f32 0.0, %v5645
        %5647 = vmatprep.mubr.f32.mxu0 0.0
        %5648 = vmatmul.mubr.f32.gmra.mxu0 %v400
        %v5649 = vpop.f32.mrf.mxu0
        %v5650 = vadd.f32 0.0, %v5649
        %v5651 = vpop.f32.mrf.mxu0
        %v5652 = vadd.f32 0.0, %v5651
        %5653 = vmatprep.mubr.f32.mxu0 0.0
        %5654 = vmatmul.mubr.f32.gmra.mxu0 %v403
        %v5655 = vpop.f32.mrf.mxu0
        %v5656 = vadd.f32 0.0, %v5655
        %v5657 = vpop.f32.mrf.mxu0
        %v5658 = vadd.f32 0.0, %v5657
        %5659 = vmatprep.mubr.f32.mxu0 0.0
        %5660 = vmatmul.mubr.f32.gmra.mxu0 %v406
        %v5661 = vpop.f32.mrf.mxu0
        %v5662 = vadd.f32 0.0, %v5661
        %v5663 = vpop.f32.mrf.mxu0
        %v5664 = vadd.f32 0.0, %v5663
        %5665 = vmatprep.mubr.f32.mxu0 0.0
        %5666 = vmatmul.mubr.f32.gmra.mxu0 %v409
        %v5667 = vpop.f32.mrf.mxu0
        %v5668 = vadd.f32 0.0, %v5667
        %v5669 = vpop.f32.mrf.mxu0
        %v5670 = vadd.f32 0.0, %v5669
        %5671 = vmatprep.mubr.f32.mxu0 0.0
        %5672 = vmatmul.mubr.f32.gmra.mxu0 %v412
        %v5673 = vpop.f32.mrf.mxu0
        %v5674 = vadd.f32 0.0, %v5673
        %v5675 = vpop.f32.mrf.mxu0
        %v5676 = vadd.f32 0.0, %v5675
        %5677 = vmatprep.mubr.f32.mxu0 0.0
        %5678 = vmatmul.mubr.f32.gmra.mxu0 %v415
        %v5679 = vpop.f32.mrf.mxu0
        %v5680 = vadd.f32 0.0, %v5679
        %v5681 = vpop.f32.mrf.mxu0
        %v5682 = vadd.f32 0.0, %v5681
        %5683 = vmatprep.mubr.f32.mxu0 0.0
        %5684 = vmatmul.mubr.f32.gmra.mxu0 %v418
        %v5685 = vpop.f32.mrf.mxu0
        %v5686 = vadd.f32 0.0, %v5685
        %v5687 = vpop.f32.mrf.mxu0
        %v5688 = vadd.f32 0.0, %v5687
        %5689 = vmatprep.mubr.f32.mxu0 0.0
        %5690 = vmatmul.mubr.f32.gmra.mxu0 %v421
        %v5691 = vpop.f32.mrf.mxu0
        %v5692 = vadd.f32 0.0, %v5691
        %v5693 = vpop.f32.mrf.mxu0
        %v5694 = vadd.f32 0.0, %v5693
        %5695 = vdwg.mxu0
        %5696 = vmatprep.subr.mxu0 0.0
        %5697 = vmatpush1.msra.mxu0 0.0
        %5698 = vmatprep.subr.mxu0 0.0
        %5699 = vmatpush1.msra.mxu0 0.0
        %5700 = vmatprep.subr.mxu0 0.0
        %5701 = vmatpush1.msra.mxu0 0.0
        %5702 = vmatprep.subr.mxu0 0.0
        %5703 = vmatpush1.msra.mxu0 0.0
        %5704 = vmatprep.subr.mxu0 0.0
        %5705 = vmatpush1.msra.mxu0 0.0
        %5706 = vmatprep.subr.mxu0 0.0
        %5707 = vmatpush1.msra.mxu0 0.0
        %5708 = vmatprep.subr.mxu0 0.0
        %5709 = vmatpush1.msra.mxu0 0.0
        %5710 = vmatprep.subr.mxu0 0.0
        %5711 = vmatpush1.msra.mxu0 0.0
        %5712 = vmatprep.subr.mxu0 0.0
        %5713 = vmatpush1.msra.mxu0 0.0
        %5714 = vmatprep.subr.mxu0 0.0
        %5715 = vmatpush1.msra.mxu0 0.0
        %5716 = vmatprep.subr.mxu0 0.0
        %5717 = vmatpush1.msra.mxu0 0.0
        %5718 = vmatprep.subr.mxu0 0.0
        %5719 = vmatpush1.msra.mxu0 0.0
        %5720 = vmatprep.subr.mxu0 0.0
        %5721 = vmatpush1.msra.mxu0 0.0
        %5722 = vmatprep.subr.mxu0 0.0
        %5723 = vmatpush1.msra.mxu0 0.0
        %5724 = vmatprep.subr.mxu0 0.0
        %5725 = vmatpush1.msra.mxu0 0.0
        %5726 = vmatprep.subr.mxu0 %v5438
        %5727 = vmatpush1.msra.mxu0 %v5437
        %5728 = vmatprep.subr.mxu0 0.0
        %5729 = vmatpush2.msra.mxu0 0.0
        %5730 = vmatprep.subr.mxu0 0.0
        %5731 = vmatpush2.msra.mxu0 0.0
        %5732 = vmatprep.subr.mxu0 0.0
        %5733 = vmatpush2.msra.mxu0 0.0
        %5734 = vmatprep.subr.mxu0 0.0
        %5735 = vmatpush2.msra.mxu0 0.0
        %5736 = vmatprep.subr.mxu0 0.0
        %5737 = vmatpush2.msra.mxu0 0.0
        %5738 = vmatprep.subr.mxu0 0.0
        %5739 = vmatpush2.msra.mxu0 0.0
        %5740 = vmatprep.subr.mxu0 0.0
        %5741 = vmatpush2.msra.mxu0 0.0
        %5742 = vmatprep.subr.mxu0 0.0
        %5743 = vmatpush2.msra.mxu0 0.0
        %5744 = vmatprep.subr.mxu0 0.0
        %5745 = vmatpush2.msra.mxu0 0.0
        %5746 = vmatprep.subr.mxu0 0.0
        %5747 = vmatpush2.msra.mxu0 0.0
        %5748 = vmatprep.subr.mxu0 0.0
        %5749 = vmatpush2.msra.mxu0 0.0
        %5750 = vmatprep.subr.mxu0 0.0
        %5751 = vmatpush2.msra.mxu0 0.0
        %5752 = vmatprep.subr.mxu0 0.0
        %5753 = vmatpush2.msra.mxu0 0.0
        %5754 = vmatprep.subr.mxu0 0.0
        %5755 = vmatpush2.msra.mxu0 0.0
        %5756 = vmatprep.subr.mxu0 0.0
        %5757 = vmatpush2.msra.mxu0 0.0
        %5758 = vmatprep.subr.mxu0 0.0
        %5759 = vmatpush2.msra.mxu0 0.0
        %5760 = vmatprep.mubr.f32.mxu0 0.0
        %5761 = vmatmul.mubr.f32.gmra.mxu0 %v328
        %v5762 = vpop.f32.mrf.mxu0
        %v5763 = vadd.f32 0.0, %v5762
        %v5764 = vpop.f32.mrf.mxu0
        %v5765 = vadd.f32 0.0, %v5764
        %5766 = vmatprep.mubr.f32.mxu0 0.0
        %5767 = vmatmul.mubr.f32.gmra.mxu0 %v331
        %v5768 = vpop.f32.mrf.mxu0
        %v5769 = vadd.f32 0.0, %v5768
        %v5770 = vpop.f32.mrf.mxu0
        %v5771 = vadd.f32 0.0, %v5770
        %5772 = vmatprep.mubr.f32.mxu0 0.0
        %5773 = vmatmul.mubr.f32.gmra.mxu0 %v334
        %v5774 = vpop.f32.mrf.mxu0
        %v5775 = vadd.f32 0.0, %v5774
        %v5776 = vpop.f32.mrf.mxu0
        %v5777 = vadd.f32 0.0, %v5776
        %5778 = vmatprep.mubr.f32.mxu0 0.0
        %5779 = vmatmul.mubr.f32.gmra.mxu0 %v337
        %v5780 = vpop.f32.mrf.mxu0
        %v5781 = vadd.f32 0.0, %v5780
        %v5782 = vpop.f32.mrf.mxu0
        %v5783 = vadd.f32 0.0, %v5782
        %5784 = vmatprep.mubr.f32.mxu0 0.0
        %5785 = vmatmul.mubr.f32.gmra.mxu0 %v340
        %v5786 = vpop.f32.mrf.mxu0
        %v5787 = vadd.f32 0.0, %v5786
        %v5788 = vpop.f32.mrf.mxu0
        %v5789 = vadd.f32 0.0, %v5788
        %5790 = vmatprep.mubr.f32.mxu0 0.0
        %5791 = vmatmul.mubr.f32.gmra.mxu0 %v343
        %v5792 = vpop.f32.mrf.mxu0
        %v5793 = vadd.f32 0.0, %v5792
        %v5794 = vpop.f32.mrf.mxu0
        %v5795 = vadd.f32 0.0, %v5794
        %5796 = vmatprep.mubr.f32.mxu0 0.0
        %5797 = vmatmul.mubr.f32.gmra.mxu0 %v346
        %v5798 = vpop.f32.mrf.mxu0
        %v5799 = vadd.f32 0.0, %v5798
        %v5800 = vpop.f32.mrf.mxu0
        %v5801 = vadd.f32 0.0, %v5800
        %5802 = vmatprep.mubr.f32.mxu0 0.0
        %5803 = vmatmul.mubr.f32.gmra.mxu0 %v349
        %v5804 = vpop.f32.mrf.mxu0
        %v5805 = vadd.f32 0.0, %v5804
        %v5806 = vpop.f32.mrf.mxu0
        %v5807 = vadd.f32 0.0, %v5806
        %5808 = vmatprep.mubr.f32.mxu0 0.0
        %5809 = vmatmul.mubr.f32.gmra.mxu0 %v352
        %v5810 = vpop.f32.mrf.mxu0
        %v5811 = vadd.f32 0.0, %v5810
        %v5812 = vpop.f32.mrf.mxu0
        %v5813 = vadd.f32 0.0, %v5812
        %5814 = vmatprep.mubr.f32.mxu0 0.0
        %5815 = vmatmul.mubr.f32.gmra.mxu0 %v355
        %v5816 = vpop.f32.mrf.mxu0
        %v5817 = vadd.f32 0.0, %v5816
        %v5818 = vpop.f32.mrf.mxu0
        %v5819 = vadd.f32 0.0, %v5818
        %5820 = vmatprep.mubr.f32.mxu0 0.0
        %5821 = vmatmul.mubr.f32.gmra.mxu0 %v358
        %v5822 = vpop.f32.mrf.mxu0
        %v5823 = vadd.f32 0.0, %v5822
        %v5824 = vpop.f32.mrf.mxu0
        %v5825 = vadd.f32 0.0, %v5824
        %5826 = vmatprep.mubr.f32.mxu0 0.0
        %5827 = vmatmul.mubr.f32.gmra.mxu0 %v361
        %v5828 = vpop.f32.mrf.mxu0
        %v5829 = vadd.f32 0.0, %v5828
        %v5830 = vpop.f32.mrf.mxu0
        %v5831 = vadd.f32 0.0, %v5830
        %5832 = vmatprep.mubr.f32.mxu0 0.0
        %5833 = vmatmul.mubr.f32.gmra.mxu0 %v364
        %v5834 = vpop.f32.mrf.mxu0
        %v5835 = vadd.f32 0.0, %v5834
        %v5836 = vpop.f32.mrf.mxu0
        %v5837 = vadd.f32 0.0, %v5836
        %5838 = vmatprep.mubr.f32.mxu0 0.0
        %5839 = vmatmul.mubr.f32.gmra.mxu0 %v367
        %v5840 = vpop.f32.mrf.mxu0
        %v5841 = vadd.f32 0.0, %v5840
        %v5842 = vpop.f32.mrf.mxu0
        %v5843 = vadd.f32 0.0, %v5842
        %5844 = vmatprep.mubr.f32.mxu0 0.0
        %5845 = vmatmul.mubr.f32.gmra.mxu0 %v370
        %v5846 = vpop.f32.mrf.mxu0
        %v5847 = vadd.f32 0.0, %v5846
        %v5848 = vpop.f32.mrf.mxu0
        %v5849 = vadd.f32 0.0, %v5848
        %5850 = vmatprep.mubr.f32.mxu0 0.0
        %5851 = vmatmul.mubr.f32.gmra.mxu0 %v373
        %v5852 = vpop.f32.mrf.mxu0
        %v5853 = vadd.f32 0.0, %v5852
        %v5854 = vpop.f32.mrf.mxu0
        %v5855 = vadd.f32 0.0, %v5854
        %5856 = vmatprep.mubr.f32.mxu0 0.0
        %5857 = vmatmul.mubr.f32.gmra.mxu0 %v376
        %v5858 = vpop.f32.mrf.mxu0
        %v5859 = vadd.f32 0.0, %v5858
        %v5860 = vpop.f32.mrf.mxu0
        %v5861 = vadd.f32 0.0, %v5860
        %5862 = vmatprep.mubr.f32.mxu0 0.0
        %5863 = vmatmul.mubr.f32.gmra.mxu0 %v379
        %v5864 = vpop.f32.mrf.mxu0
        %v5865 = vadd.f32 0.0, %v5864
        %v5866 = vpop.f32.mrf.mxu0
        %v5867 = vadd.f32 0.0, %v5866
        %5868 = vmatprep.mubr.f32.mxu0 0.0
        %5869 = vmatmul.mubr.f32.gmra.mxu0 %v382
        %v5870 = vpop.f32.mrf.mxu0
        %v5871 = vadd.f32 0.0, %v5870
        %v5872 = vpop.f32.mrf.mxu0
        %v5873 = vadd.f32 0.0, %v5872
        %5874 = vmatprep.mubr.f32.mxu0 0.0
        %5875 = vmatmul.mubr.f32.gmra.mxu0 %v385
        %v5876 = vpop.f32.mrf.mxu0
        %v5877 = vadd.f32 0.0, %v5876
        %v5878 = vpop.f32.mrf.mxu0
        %v5879 = vadd.f32 0.0, %v5878
        %5880 = vmatprep.mubr.f32.mxu0 0.0
        %5881 = vmatmul.mubr.f32.gmra.mxu0 %v388
        %v5882 = vpop.f32.mrf.mxu0
        %v5883 = vadd.f32 0.0, %v5882
        %v5884 = vpop.f32.mrf.mxu0
        %v5885 = vadd.f32 0.0, %v5884
        %5886 = vmatprep.mubr.f32.mxu0 0.0
        %5887 = vmatmul.mubr.f32.gmra.mxu0 %v391
        %v5888 = vpop.f32.mrf.mxu0
        %v5889 = vadd.f32 0.0, %v5888
        %v5890 = vpop.f32.mrf.mxu0
        %v5891 = vadd.f32 0.0, %v5890
        %5892 = vmatprep.mubr.f32.mxu0 0.0
        %5893 = vmatmul.mubr.f32.gmra.mxu0 %v394
        %v5894 = vpop.f32.mrf.mxu0
        %v5895 = vadd.f32 0.0, %v5894
        %v5896 = vpop.f32.mrf.mxu0
        %v5897 = vadd.f32 0.0, %v5896
        %5898 = vmatprep.mubr.f32.mxu0 0.0
        %5899 = vmatmul.mubr.f32.gmra.mxu0 %v397
        %v5900 = vpop.f32.mrf.mxu0
        %v5901 = vadd.f32 0.0, %v5900
        %v5902 = vpop.f32.mrf.mxu0
        %v5903 = vadd.f32 0.0, %v5902
        %5904 = vmatprep.mubr.f32.mxu0 0.0
        %5905 = vmatmul.mubr.f32.gmra.mxu0 %v400
        %v5906 = vpop.f32.mrf.mxu0
        %v5907 = vadd.f32 0.0, %v5906
        %v5908 = vpop.f32.mrf.mxu0
        %v5909 = vadd.f32 0.0, %v5908
        %5910 = vmatprep.mubr.f32.mxu0 0.0
        %5911 = vmatmul.mubr.f32.gmra.mxu0 %v403
        %v5912 = vpop.f32.mrf.mxu0
        %v5913 = vadd.f32 0.0, %v5912
        %v5914 = vpop.f32.mrf.mxu0
        %v5915 = vadd.f32 0.0, %v5914
        %5916 = vmatprep.mubr.f32.mxu0 0.0
        %5917 = vmatmul.mubr.f32.gmra.mxu0 %v406
        %v5918 = vpop.f32.mrf.mxu0
        %v5919 = vadd.f32 0.0, %v5918
        %v5920 = vpop.f32.mrf.mxu0
        %v5921 = vadd.f32 0.0, %v5920
        %5922 = vmatprep.mubr.f32.mxu0 0.0
        %5923 = vmatmul.mubr.f32.gmra.mxu0 %v409
        %v5924 = vpop.f32.mrf.mxu0
        %v5925 = vadd.f32 0.0, %v5924
        %v5926 = vpop.f32.mrf.mxu0
        %v5927 = vadd.f32 0.0, %v5926
        %5928 = vmatprep.mubr.f32.mxu0 0.0
        %5929 = vmatmul.mubr.f32.gmra.mxu0 %v412
        %v5930 = vpop.f32.mrf.mxu0
        %v5931 = vadd.f32 0.0, %v5930
        %v5932 = vpop.f32.mrf.mxu0
        %v5933 = vadd.f32 0.0, %v5932
        %5934 = vmatprep.mubr.f32.mxu0 0.0
        %5935 = vmatmul.mubr.f32.gmra.mxu0 %v415
        %v5936 = vpop.f32.mrf.mxu0
        %v5937 = vadd.f32 0.0, %v5936
        %v5938 = vpop.f32.mrf.mxu0
        %v5939 = vadd.f32 0.0, %v5938
        %5940 = vmatprep.mubr.f32.mxu0 0.0
        %5941 = vmatmul.mubr.f32.gmra.mxu0 %v418
        %v5942 = vpop.f32.mrf.mxu0
        %v5943 = vadd.f32 0.0, %v5942
        %v5944 = vpop.f32.mrf.mxu0
        %v5945 = vadd.f32 0.0, %v5944
        %5946 = vmatprep.mubr.f32.mxu0 0.0
        %5947 = vmatmul.mubr.f32.gmra.mxu0 %v421
        %v5948 = vpop.f32.mrf.mxu0
        %v5949 = vadd.f32 0.0, %v5948
        %v5950 = vpop.f32.mrf.mxu0
        %v5951 = vadd.f32 0.0, %v5950
        %5952 = vdwg.mxu0
        %v5953 = vmax.f32 %v5506, 0.0
        %v5954 = vmax.f32 %v5508, 0.0
        %v5955 = vmax.f32 %v5763, 0.0
        %v5956 = vmax.f32 %v5765, 0.0
        %v5957 = vmax.f32 %v5512, 0.0
        %v5958 = vmax.f32 %v5514, 0.0
        %v5959 = vmax.f32 %v5769, 0.0
        %v5960 = vmax.f32 %v5771, 0.0
        %v5961 = vmax.f32 %v5518, 0.0
        %v5962 = vmax.f32 %v5520, 0.0
        %v5963 = vmax.f32 %v5775, 0.0
        %v5964 = vmax.f32 %v5777, 0.0
        %v5965 = vmax.f32 %v5524, 0.0
        %v5966 = vmax.f32 %v5526, 0.0
        %v5967 = vmax.f32 %v5781, 0.0
        %v5968 = vmax.f32 %v5783, 0.0
        %v5969 = vmax.f32 %v5530, 0.0
        %v5970 = vmax.f32 %v5532, 0.0
        %v5971 = vmax.f32 %v5787, 0.0
        %v5972 = vmax.f32 %v5789, 0.0
        %v5973 = vmax.f32 %v5536, 0.0
        %v5974 = vmax.f32 %v5538, 0.0
        %v5975 = vmax.f32 %v5793, 0.0
        %v5976 = vmax.f32 %v5795, 0.0
        %v5977 = vmax.f32 %v5542, 0.0
        %v5978 = vmax.f32 %v5544, 0.0
        %v5979 = vmax.f32 %v5799, 0.0
        %v5980 = vmax.f32 %v5801, 0.0
        %v5981 = vmax.f32 %v5548, 0.0
        %v5982 = vmax.f32 %v5550, 0.0
        %v5983 = vmax.f32 %v5805, 0.0
        %v5984 = vmax.f32 %v5807, 0.0
        %v5985 = vmax.f32 %v5554, 0.0
        %v5986 = vmax.f32 %v5556, 0.0
        %v5987 = vmax.f32 %v5811, 0.0
        %v5988 = vmax.f32 %v5813, 0.0
        %v5989 = vmax.f32 %v5560, 0.0
        %v5990 = vmax.f32 %v5562, 0.0
        %v5991 = vmax.f32 %v5817, 0.0
        %v5992 = vmax.f32 %v5819, 0.0
        %v5993 = vmax.f32 %v5566, 0.0
        %v5994 = vmax.f32 %v5568, 0.0
        %v5995 = vmax.f32 %v5823, 0.0
        %v5996 = vmax.f32 %v5825, 0.0
        %v5997 = vmax.f32 %v5572, 0.0
        %v5998 = vmax.f32 %v5574, 0.0
        %v5999 = vmax.f32 %v5829, 0.0
        %v6000 = vmax.f32 %v5831, 0.0
        %v6001 = vmax.f32 %v5578, 0.0
        %v6002 = vmax.f32 %v5580, 0.0
        %v6003 = vmax.f32 %v5835, 0.0
        %v6004 = vmax.f32 %v5837, 0.0
        %v6005 = vmax.f32 %v5584, 0.0
        %v6006 = vmax.f32 %v5586, 0.0
        %v6007 = vmax.f32 %v5841, 0.0
        %v6008 = vmax.f32 %v5843, 0.0
        %v6009 = vmax.f32 %v5590, 0.0
        %v6010 = vmax.f32 %v5592, 0.0
        %v6011 = vmax.f32 %v5847, 0.0
        %v6012 = vmax.f32 %v5849, 0.0
        %v6013 = vmax.f32 %v5596, 0.0
        %v6014 = vmax.f32 %v5598, 0.0
        %v6015 = vmax.f32 %v5853, 0.0
        %v6016 = vmax.f32 %v5855, 0.0
        %v6017 = vmax.f32 %v5602, 0.0
        %v6018 = vmax.f32 %v5604, 0.0
        %v6019 = vmax.f32 %v5859, 0.0
        %v6020 = vmax.f32 %v5861, 0.0
        %v6021 = vmax.f32 %v5608, 0.0
        %v6022 = vmax.f32 %v5610, 0.0
        %v6023 = vmax.f32 %v5865, 0.0
        %v6024 = vmax.f32 %v5867, 0.0
        %v6025 = vmax.f32 %v5614, 0.0
        %v6026 = vmax.f32 %v5616, 0.0
        %v6027 = vmax.f32 %v5871, 0.0
        %v6028 = vmax.f32 %v5873, 0.0
        %v6029 = vmax.f32 %v5620, 0.0
        %v6030 = vmax.f32 %v5622, 0.0
        %v6031 = vmax.f32 %v5877, 0.0
        %v6032 = vmax.f32 %v5879, 0.0
        %v6033 = vmax.f32 %v5626, 0.0
        %v6034 = vmax.f32 %v5628, 0.0
        %v6035 = vmax.f32 %v5883, 0.0
        %v6036 = vmax.f32 %v5885, 0.0
        %v6037 = vmax.f32 %v5632, 0.0
        %v6038 = vmax.f32 %v5634, 0.0
        %v6039 = vmax.f32 %v5889, 0.0
        %v6040 = vmax.f32 %v5891, 0.0
        %v6041 = vmax.f32 %v5638, 0.0
        %v6042 = vmax.f32 %v5640, 0.0
        %v6043 = vmax.f32 %v5895, 0.0
        %v6044 = vmax.f32 %v5897, 0.0
        %v6045 = vmax.f32 %v5644, 0.0
        %v6046 = vmax.f32 %v5646, 0.0
        %v6047 = vmax.f32 %v5901, 0.0
        %v6048 = vmax.f32 %v5903, 0.0
        %v6049 = vmax.f32 %v5650, 0.0
        %v6050 = vmax.f32 %v5652, 0.0
        %v6051 = vmax.f32 %v5907, 0.0
        %v6052 = vmax.f32 %v5909, 0.0
        %v6053 = vmax.f32 %v5656, 0.0
        %v6054 = vmax.f32 %v5658, 0.0
        %v6055 = vmax.f32 %v5913, 0.0
        %v6056 = vmax.f32 %v5915, 0.0
        %v6057 = vmax.f32 %v5662, 0.0
        %v6058 = vmax.f32 %v5664, 0.0
        %v6059 = vmax.f32 %v5919, 0.0
        %v6060 = vmax.f32 %v5921, 0.0
        %v6061 = vmax.f32 %v5668, 0.0
        %v6062 = vmax.f32 %v5670, 0.0
        %v6063 = vmax.f32 %v5925, 0.0
        %v6064 = vmax.f32 %v5927, 0.0
        %v6065 = vmax.f32 %v5674, 0.0
        %v6066 = vmax.f32 %v5676, 0.0
        %v6067 = vmax.f32 %v5931, 0.0
        %v6068 = vmax.f32 %v5933, 0.0
        %v6069 = vmax.f32 %v5680, 0.0
        %v6070 = vmax.f32 %v5682, 0.0
        %v6071 = vmax.f32 %v5937, 0.0
        %v6072 = vmax.f32 %v5939, 0.0
        %v6073 = vmax.f32 %v5686, 0.0
        %v6074 = vmax.f32 %v5688, 0.0
        %v6075 = vmax.f32 %v5943, 0.0
        %v6076 = vmax.f32 %v5945, 0.0
        %v6077 = vmax.f32 %v5692, 0.0
        %v6078 = vmax.f32 %v5694, 0.0
        %v6079 = vmax.f32 %v5949, 0.0
        %v6080 = vmax.f32 %v5951, 0.0
        %v6081 = vpack.c.bf16 %v5957, %v5953
        %v6082 = vpack.c.bf16 %v5958, %v5954
        %v6083 = vpack.c.bf16 %v5959, %v5955
        %v6084 = vpack.c.bf16 %v5960, %v5956
        %v6085 = vpack.c.bf16 %v5965, %v5961
        %v6086 = vpack.c.bf16 %v5966, %v5962
        %v6087 = vpack.c.bf16 %v5967, %v5963
        %v6088 = vpack.c.bf16 %v5968, %v5964
        %v6089 = vpack.c.bf16 %v5973, %v5969
        %v6090 = vpack.c.bf16 %v5974, %v5970
        %v6091 = vpack.c.bf16 %v5975, %v5971
        %v6092 = vpack.c.bf16 %v5976, %v5972
        %v6093 = vpack.c.bf16 %v5981, %v5977
        %v6094 = vpack.c.bf16 %v5982, %v5978
        %v6095 = vpack.c.bf16 %v5983, %v5979
        %v6096 = vpack.c.bf16 %v5984, %v5980
        %v6097 = vpack.c.bf16 %v5989, %v5985
        %v6098 = vpack.c.bf16 %v5990, %v5986
        %v6099 = vpack.c.bf16 %v5991, %v5987
        %v6100 = vpack.c.bf16 %v5992, %v5988
        %v6101 = vpack.c.bf16 %v5997, %v5993
        %v6102 = vpack.c.bf16 %v5998, %v5994
        %v6103 = vpack.c.bf16 %v5999, %v5995
        %v6104 = vpack.c.bf16 %v6000, %v5996
        %v6105 = vpack.c.bf16 %v6005, %v6001
        %v6106 = vpack.c.bf16 %v6006, %v6002
        %v6107 = vpack.c.bf16 %v6007, %v6003
        %v6108 = vpack.c.bf16 %v6008, %v6004
        %v6109 = vpack.c.bf16 %v6013, %v6009
        %v6110 = vpack.c.bf16 %v6014, %v6010
        %v6111 = vpack.c.bf16 %v6015, %v6011
        %v6112 = vpack.c.bf16 %v6016, %v6012
        %v6113 = vpack.c.bf16 %v6021, %v6017
        %v6114 = vpack.c.bf16 %v6022, %v6018
        %v6115 = vpack.c.bf16 %v6023, %v6019
        %v6116 = vpack.c.bf16 %v6024, %v6020
        %v6117 = vpack.c.bf16 %v6029, %v6025
        %v6118 = vpack.c.bf16 %v6030, %v6026
        %v6119 = vpack.c.bf16 %v6031, %v6027
        %v6120 = vpack.c.bf16 %v6032, %v6028
        %v6121 = vpack.c.bf16 %v6037, %v6033
        %v6122 = vpack.c.bf16 %v6038, %v6034
        %v6123 = vpack.c.bf16 %v6039, %v6035
        %v6124 = vpack.c.bf16 %v6040, %v6036
        %v6125 = vpack.c.bf16 %v6045, %v6041
        %v6126 = vpack.c.bf16 %v6046, %v6042
        %v6127 = vpack.c.bf16 %v6047, %v6043
        %v6128 = vpack.c.bf16 %v6048, %v6044
        %v6129 = vpack.c.bf16 %v6053, %v6049
        %v6130 = vpack.c.bf16 %v6054, %v6050
        %v6131 = vpack.c.bf16 %v6055, %v6051
        %v6132 = vpack.c.bf16 %v6056, %v6052
        %v6133 = vpack.c.bf16 %v6061, %v6057
        %v6134 = vpack.c.bf16 %v6062, %v6058
        %v6135 = vpack.c.bf16 %v6063, %v6059
        %v6136 = vpack.c.bf16 %v6064, %v6060
        %v6137 = vpack.c.bf16 %v6069, %v6065
        %v6138 = vpack.c.bf16 %v6070, %v6066
        %v6139 = vpack.c.bf16 %v6071, %v6067
        %v6140 = vpack.c.bf16 %v6072, %v6068
        %v6141 = vpack.c.bf16 %v6077, %v6073
        %v6142 = vpack.c.bf16 %v6078, %v6074
        %v6143 = vpack.c.bf16 %v6079, %v6075
        %v6144 = vpack.c.bf16 %v6080, %v6076
        %v6145 = vld [vmem:[#allocation2] sm:$0xff]
        %v6146 = vld [vmem:[#allocation2 + $0x8] sm:$0xff]
        %v6147 = vld [vmem:[#allocation2 + $0x10] sm:$0xff]
        %v6148 = vld [vmem:[#allocation2 + $0x18] sm:$0xff]
        %v6149 = vld [vmem:[#allocation2 + $0x20] sm:$0xff]
        %v6150 = vld [vmem:[#allocation2 + $0x28] sm:$0xff]
        %v6151 = vld [vmem:[#allocation2 + $0x30] sm:$0xff]
        %v6152 = vld [vmem:[#allocation2 + $0x38] sm:$0xff]
        %v6153 = vld [vmem:[#allocation2 + $0x40] sm:$0xff]
        %v6154 = vld [vmem:[#allocation2 + $0x48] sm:$0xff]
        %v6155 = vld [vmem:[#allocation2 + $0x50] sm:$0xff]
        %v6156 = vld [vmem:[#allocation2 + $0x58] sm:$0xff]
        %v6157 = vld [vmem:[#allocation2 + $0x60] sm:$0xff]
        %v6158 = vld [vmem:[#allocation2 + $0x68] sm:$0xff]
        %v6159 = vld [vmem:[#allocation2 + $0x70] sm:$0xff]
        %v6160 = vld [vmem:[#allocation2 + $0x78] sm:$0xff]
        %v6161 = vld [vmem:[#allocation2 + $0x80] sm:$0xff]
        %v6162 = vld [vmem:[#allocation2 + $0x88] sm:$0xff]
        %v6163 = vld [vmem:[#allocation2 + $0x90] sm:$0xff]
        %v6164 = vld [vmem:[#allocation2 + $0x98] sm:$0xff]
        %v6165 = vld [vmem:[#allocation2 + $0xa0] sm:$0xff]
        %v6166 = vld [vmem:[#allocation2 + $0xa8] sm:$0xff]
        %v6167 = vld [vmem:[#allocation2 + $0xb0] sm:$0xff]
        %v6168 = vld [vmem:[#allocation2 + $0xb8] sm:$0xff]
        %v6169 = vld [vmem:[#allocation2 + $0xc0] sm:$0xff]
        %v6170 = vld [vmem:[#allocation2 + $0xc8] sm:$0xff]
        %v6171 = vld [vmem:[#allocation2 + $0xd0] sm:$0xff]
        %v6172 = vld [vmem:[#allocation2 + $0xd8] sm:$0xff]
        %v6173 = vld [vmem:[#allocation2 + $0xe0] sm:$0xff]
        %v6174 = vld [vmem:[#allocation2 + $0xe8] sm:$0xff]
        %v6175 = vld [vmem:[#allocation2 + $0xf0] sm:$0xff]
        %v6176 = vld [vmem:[#allocation2 + $0xf8] sm:$0xff]
        %v6177 = vld [vmem:[#allocation2 + $0x100] sm:$0xff]
        %v6178 = vld [vmem:[#allocation2 + $0x108] sm:$0xff]
        %v6179 = vld [vmem:[#allocation2 + $0x110] sm:$0xff]
        %v6180 = vld [vmem:[#allocation2 + $0x118] sm:$0xff]
        %v6181 = vld [vmem:[#allocation2 + $0x120] sm:$0xff]
        %v6182 = vld [vmem:[#allocation2 + $0x128] sm:$0xff]
        %v6183 = vld [vmem:[#allocation2 + $0x130] sm:$0xff]
        %v6184 = vld [vmem:[#allocation2 + $0x138] sm:$0xff]
        %v6185 = vld [vmem:[#allocation2 + $0x140] sm:$0xff]
        %v6186 = vld [vmem:[#allocation2 + $0x148] sm:$0xff]
        %v6187 = vld [vmem:[#allocation2 + $0x150] sm:$0xff]
        %v6188 = vld [vmem:[#allocation2 + $0x158] sm:$0xff]
        %v6189 = vld [vmem:[#allocation2 + $0x160] sm:$0xff]
        %v6190 = vld [vmem:[#allocation2 + $0x168] sm:$0xff]
        %v6191 = vld [vmem:[#allocation2 + $0x170] sm:$0xff]
        %v6192 = vld [vmem:[#allocation2 + $0x178] sm:$0xff]
        %v6193 = vld [vmem:[#allocation2 + $0x180] sm:$0xff]
        %v6194 = vld [vmem:[#allocation2 + $0x188] sm:$0xff]
        %v6195 = vld [vmem:[#allocation2 + $0x190] sm:$0xff]
        %v6196 = vld [vmem:[#allocation2 + $0x198] sm:$0xff]
        %v6197 = vld [vmem:[#allocation2 + $0x1a0] sm:$0xff]
        %v6198 = vld [vmem:[#allocation2 + $0x1a8] sm:$0xff]
        %v6199 = vld [vmem:[#allocation2 + $0x1b0] sm:$0xff]
        %v6200 = vld [vmem:[#allocation2 + $0x1b8] sm:$0xff]
        %v6201 = vld [vmem:[#allocation2 + $0x1c0] sm:$0xff]
        %v6202 = vld [vmem:[#allocation2 + $0x1c8] sm:$0xff]
        %v6203 = vld [vmem:[#allocation2 + $0x1d0] sm:$0xff]
        %v6204 = vld [vmem:[#allocation2 + $0x1d8] sm:$0xff]
        %v6205 = vld [vmem:[#allocation2 + $0x1e0] sm:$0xff]
        %v6206 = vld [vmem:[#allocation2 + $0x1e8] sm:$0xff]
        %v6207 = vld [vmem:[#allocation2 + $0x1f0] sm:$0xff]
        %v6208 = vld [vmem:[#allocation2 + $0x1f8] sm:$0xff]
        %v6209 = vld [vmem:[#allocation3 + $0x600] sm:$0xff]
        %v6210 = vld [vmem:[#allocation3 + $0x608] sm:$0xff]
        %v6211 = vld [vmem:[#allocation3 + $0x610] sm:$0xff]
        %v6212 = vld [vmem:[#allocation3 + $0x618] sm:$0xff]
        %v6213 = vld [vmem:[#allocation3 + $0x620] sm:$0xff]
        %v6214 = vld [vmem:[#allocation3 + $0x628] sm:$0xff]
        %v6215 = vld [vmem:[#allocation3 + $0x630] sm:$0xff]
        %v6216 = vld [vmem:[#allocation3 + $0x638] sm:$0xff]
        %v6217 = vld [vmem:[#allocation3 + $0x640] sm:$0xff]
        %v6218 = vld [vmem:[#allocation3 + $0x648] sm:$0xff]
        %v6219 = vld [vmem:[#allocation3 + $0x650] sm:$0xff]
        %v6220 = vld [vmem:[#allocation3 + $0x658] sm:$0xff]
        %v6221 = vld [vmem:[#allocation3 + $0x660] sm:$0xff]
        %v6222 = vld [vmem:[#allocation3 + $0x668] sm:$0xff]
        %v6223 = vld [vmem:[#allocation3 + $0x670] sm:$0xff]
        %v6224 = vld [vmem:[#allocation3 + $0x678] sm:$0xff]
        %v6225 = vld [vmem:[#allocation3 + $0x680] sm:$0xff]
        %v6226 = vld [vmem:[#allocation3 + $0x688] sm:$0xff]
        %v6227 = vld [vmem:[#allocation3 + $0x690] sm:$0xff]
        %v6228 = vld [vmem:[#allocation3 + $0x698] sm:$0xff]
        %v6229 = vld [vmem:[#allocation3 + $0x6a0] sm:$0xff]
        %v6230 = vld [vmem:[#allocation3 + $0x6a8] sm:$0xff]
        %v6231 = vld [vmem:[#allocation3 + $0x6b0] sm:$0xff]
        %v6232 = vld [vmem:[#allocation3 + $0x6b8] sm:$0xff]
        %v6233 = vld [vmem:[#allocation3 + $0x6c0] sm:$0xff]
        %v6234 = vld [vmem:[#allocation3 + $0x6c8] sm:$0xff]
        %v6235 = vld [vmem:[#allocation3 + $0x6d0] sm:$0xff]
        %v6236 = vld [vmem:[#allocation3 + $0x6d8] sm:$0xff]
        %v6237 = vld [vmem:[#allocation3 + $0x6e0] sm:$0xff]
        %v6238 = vld [vmem:[#allocation3 + $0x6e8] sm:$0xff]
        %v6239 = vld [vmem:[#allocation3 + $0x6f0] sm:$0xff]
        %v6240 = vld [vmem:[#allocation3 + $0x6f8] sm:$0xff]
        %v6241 = vld [vmem:[#allocation3 + $0x700] sm:$0xff]
        %v6242 = vld [vmem:[#allocation3 + $0x708] sm:$0xff]
        %v6243 = vld [vmem:[#allocation3 + $0x710] sm:$0xff]
        %v6244 = vld [vmem:[#allocation3 + $0x718] sm:$0xff]
        %v6245 = vld [vmem:[#allocation3 + $0x720] sm:$0xff]
        %v6246 = vld [vmem:[#allocation3 + $0x728] sm:$0xff]
        %v6247 = vld [vmem:[#allocation3 + $0x730] sm:$0xff]
        %v6248 = vld [vmem:[#allocation3 + $0x738] sm:$0xff]
        %v6249 = vld [vmem:[#allocation3 + $0x740] sm:$0xff]
        %v6250 = vld [vmem:[#allocation3 + $0x748] sm:$0xff]
        %v6251 = vld [vmem:[#allocation3 + $0x750] sm:$0xff]
        %v6252 = vld [vmem:[#allocation3 + $0x758] sm:$0xff]
        %v6253 = vld [vmem:[#allocation3 + $0x760] sm:$0xff]
        %v6254 = vld [vmem:[#allocation3 + $0x768] sm:$0xff]
        %v6255 = vld [vmem:[#allocation3 + $0x770] sm:$0xff]
        %v6256 = vld [vmem:[#allocation3 + $0x778] sm:$0xff]
        %v6257 = vld [vmem:[#allocation3 + $0x780] sm:$0xff]
        %v6258 = vld [vmem:[#allocation3 + $0x788] sm:$0xff]
        %v6259 = vld [vmem:[#allocation3 + $0x790] sm:$0xff]
        %v6260 = vld [vmem:[#allocation3 + $0x798] sm:$0xff]
        %v6261 = vld [vmem:[#allocation3 + $0x7a0] sm:$0xff]
        %v6262 = vld [vmem:[#allocation3 + $0x7a8] sm:$0xff]
        %v6263 = vld [vmem:[#allocation3 + $0x7b0] sm:$0xff]
        %v6264 = vld [vmem:[#allocation3 + $0x7b8] sm:$0xff]
        %v6265 = vld [vmem:[#allocation3 + $0x7c0] sm:$0xff]
        %v6266 = vld [vmem:[#allocation3 + $0x7c8] sm:$0xff]
        %v6267 = vld [vmem:[#allocation3 + $0x7d0] sm:$0xff]
        %v6268 = vld [vmem:[#allocation3 + $0x7d8] sm:$0xff]
        %v6269 = vld [vmem:[#allocation3 + $0x7e0] sm:$0xff]
        %v6270 = vld [vmem:[#allocation3 + $0x7e8] sm:$0xff]
        %v6271 = vld [vmem:[#allocation3 + $0x7f0] sm:$0xff]
        %v6272 = vld [vmem:[#allocation3 + $0x7f8] sm:$0xff]
        %v6337 = vunpack.c.l.b16 %v6209
        %v6338 = vunpack.c.h.b16 %v6209
        %v6339 = vunpack.c.l.b16 %v6210
        %v6340 = vunpack.c.h.b16 %v6210
        %v6341 = vunpack.c.l.b16 %v6211
        %v6342 = vunpack.c.h.b16 %v6211
        %v6343 = vunpack.c.l.b16 %v6212
        %v6344 = vunpack.c.h.b16 %v6212
        %v6345 = vunpack.c.l.b16 %v6213
        %v6346 = vunpack.c.h.b16 %v6213
        %v6347 = vunpack.c.l.b16 %v6214
        %v6348 = vunpack.c.h.b16 %v6214
        %v6349 = vunpack.c.l.b16 %v6215
        %v6350 = vunpack.c.h.b16 %v6215
        %v6351 = vunpack.c.l.b16 %v6216
        %v6352 = vunpack.c.h.b16 %v6216
        %v6353 = vunpack.c.l.b16 %v6217
        %v6354 = vunpack.c.h.b16 %v6217
        %v6355 = vunpack.c.l.b16 %v6218
        %v6356 = vunpack.c.h.b16 %v6218
        %v6357 = vunpack.c.l.b16 %v6219
        %v6358 = vunpack.c.h.b16 %v6219
        %v6359 = vunpack.c.l.b16 %v6220
        %v6360 = vunpack.c.h.b16 %v6220
        %v6361 = vunpack.c.l.b16 %v6221
        %v6362 = vunpack.c.h.b16 %v6221
        %v6363 = vunpack.c.l.b16 %v6222
        %v6364 = vunpack.c.h.b16 %v6222
        %v6365 = vunpack.c.l.b16 %v6223
        %v6366 = vunpack.c.h.b16 %v6223
        %v6367 = vunpack.c.l.b16 %v6224
        %v6368 = vunpack.c.h.b16 %v6224
        %v6369 = vunpack.c.l.b16 %v6225
        %v6370 = vunpack.c.h.b16 %v6225
        %v6371 = vunpack.c.l.b16 %v6226
        %v6372 = vunpack.c.h.b16 %v6226
        %v6373 = vunpack.c.l.b16 %v6227
        %v6374 = vunpack.c.h.b16 %v6227
        %v6375 = vunpack.c.l.b16 %v6228
        %v6376 = vunpack.c.h.b16 %v6228
        %v6377 = vunpack.c.l.b16 %v6229
        %v6378 = vunpack.c.h.b16 %v6229
        %v6379 = vunpack.c.l.b16 %v6230
        %v6380 = vunpack.c.h.b16 %v6230
        %v6381 = vunpack.c.l.b16 %v6231
        %v6382 = vunpack.c.h.b16 %v6231
        %v6383 = vunpack.c.l.b16 %v6232
        %v6384 = vunpack.c.h.b16 %v6232
        %v6385 = vunpack.c.l.b16 %v6233
        %v6386 = vunpack.c.h.b16 %v6233
        %v6387 = vunpack.c.l.b16 %v6234
        %v6388 = vunpack.c.h.b16 %v6234
        %v6389 = vunpack.c.l.b16 %v6235
        %v6390 = vunpack.c.h.b16 %v6235
        %v6391 = vunpack.c.l.b16 %v6236
        %v6392 = vunpack.c.h.b16 %v6236
        %v6393 = vunpack.c.l.b16 %v6237
        %v6394 = vunpack.c.h.b16 %v6237
        %v6395 = vunpack.c.l.b16 %v6238
        %v6396 = vunpack.c.h.b16 %v6238
        %v6397 = vunpack.c.l.b16 %v6239
        %v6398 = vunpack.c.h.b16 %v6239
        %v6399 = vunpack.c.l.b16 %v6240
        %v6400 = vunpack.c.h.b16 %v6240
        %v6401 = vunpack.c.l.b16 %v6241
        %v6402 = vunpack.c.h.b16 %v6241
        %v6403 = vunpack.c.l.b16 %v6242
        %v6404 = vunpack.c.h.b16 %v6242
        %v6405 = vunpack.c.l.b16 %v6243
        %v6406 = vunpack.c.h.b16 %v6243
        %v6407 = vunpack.c.l.b16 %v6244
        %v6408 = vunpack.c.h.b16 %v6244
        %v6409 = vunpack.c.l.b16 %v6245
        %v6410 = vunpack.c.h.b16 %v6245
        %v6411 = vunpack.c.l.b16 %v6246
        %v6412 = vunpack.c.h.b16 %v6246
        %v6413 = vunpack.c.l.b16 %v6247
        %v6414 = vunpack.c.h.b16 %v6247
        %v6415 = vunpack.c.l.b16 %v6248
        %v6416 = vunpack.c.h.b16 %v6248
        %v6417 = vunpack.c.l.b16 %v6249
        %v6418 = vunpack.c.h.b16 %v6249
        %v6419 = vunpack.c.l.b16 %v6250
        %v6420 = vunpack.c.h.b16 %v6250
        %v6421 = vunpack.c.l.b16 %v6251
        %v6422 = vunpack.c.h.b16 %v6251
        %v6423 = vunpack.c.l.b16 %v6252
        %v6424 = vunpack.c.h.b16 %v6252
        %v6425 = vunpack.c.l.b16 %v6253
        %v6426 = vunpack.c.h.b16 %v6253
        %v6427 = vunpack.c.l.b16 %v6254
        %v6428 = vunpack.c.h.b16 %v6254
        %v6429 = vunpack.c.l.b16 %v6255
        %v6430 = vunpack.c.h.b16 %v6255
        %v6431 = vunpack.c.l.b16 %v6256
        %v6432 = vunpack.c.h.b16 %v6256
        %v6433 = vunpack.c.l.b16 %v6257
        %v6434 = vunpack.c.h.b16 %v6257
        %v6435 = vunpack.c.l.b16 %v6258
        %v6436 = vunpack.c.h.b16 %v6258
        %v6437 = vunpack.c.l.b16 %v6259
        %v6438 = vunpack.c.h.b16 %v6259
        %v6439 = vunpack.c.l.b16 %v6260
        %v6440 = vunpack.c.h.b16 %v6260
        %v6441 = vunpack.c.l.b16 %v6261
        %v6442 = vunpack.c.h.b16 %v6261
        %v6443 = vunpack.c.l.b16 %v6262
        %v6444 = vunpack.c.h.b16 %v6262
        %v6445 = vunpack.c.l.b16 %v6263
        %v6446 = vunpack.c.h.b16 %v6263
        %v6447 = vunpack.c.l.b16 %v6264
        %v6448 = vunpack.c.h.b16 %v6264
        %v6449 = vunpack.c.l.b16 %v6265
        %v6450 = vunpack.c.h.b16 %v6265
        %v6451 = vunpack.c.l.b16 %v6266
        %v6452 = vunpack.c.h.b16 %v6266
        %v6453 = vunpack.c.l.b16 %v6267
        %v6454 = vunpack.c.h.b16 %v6267
        %v6455 = vunpack.c.l.b16 %v6268
        %v6456 = vunpack.c.h.b16 %v6268
        %v6457 = vunpack.c.l.b16 %v6269
        %v6458 = vunpack.c.h.b16 %v6269
        %v6459 = vunpack.c.l.b16 %v6270
        %v6460 = vunpack.c.h.b16 %v6270
        %v6461 = vunpack.c.l.b16 %v6271
        %v6462 = vunpack.c.h.b16 %v6271
        %v6463 = vunpack.c.l.b16 %v6272
        %v6464 = vunpack.c.h.b16 %v6272
        %v6465 = vpack.c.b16 %v6339, %v6337
        %v6466 = vpack.c.b16 %v6340, %v6338
        %v6467 = vpack.c.b16 %v6343, %v6341
        %v6468 = vpack.c.b16 %v6344, %v6342
        %v6469 = vpack.c.b16 %v6347, %v6345
        %v6470 = vpack.c.b16 %v6348, %v6346
        %v6471 = vpack.c.b16 %v6351, %v6349
        %v6472 = vpack.c.b16 %v6352, %v6350
        %v6473 = vpack.c.b16 %v6355, %v6353
        %v6474 = vpack.c.b16 %v6356, %v6354
        %v6475 = vpack.c.b16 %v6359, %v6357
        %v6476 = vpack.c.b16 %v6360, %v6358
        %v6477 = vpack.c.b16 %v6363, %v6361
        %v6478 = vpack.c.b16 %v6364, %v6362
        %v6479 = vpack.c.b16 %v6367, %v6365
        %v6480 = vpack.c.b16 %v6368, %v6366
        %v6481 = vpack.c.b16 %v6371, %v6369
        %v6482 = vpack.c.b16 %v6372, %v6370
        %v6483 = vpack.c.b16 %v6375, %v6373
        %v6484 = vpack.c.b16 %v6376, %v6374
        %v6485 = vpack.c.b16 %v6379, %v6377
        %v6486 = vpack.c.b16 %v6380, %v6378
        %v6487 = vpack.c.b16 %v6383, %v6381
        %v6488 = vpack.c.b16 %v6384, %v6382
        %v6489 = vpack.c.b16 %v6387, %v6385
        %v6490 = vpack.c.b16 %v6388, %v6386
        %v6491 = vpack.c.b16 %v6391, %v6389
        %v6492 = vpack.c.b16 %v6392, %v6390
        %v6493 = vpack.c.b16 %v6395, %v6393
        %v6494 = vpack.c.b16 %v6396, %v6394
        %v6495 = vpack.c.b16 %v6399, %v6397
        %v6496 = vpack.c.b16 %v6400, %v6398
        %v6497 = vpack.c.b16 %v6403, %v6401
        %v6498 = vpack.c.b16 %v6404, %v6402
        %v6499 = vpack.c.b16 %v6407, %v6405
        %v6500 = vpack.c.b16 %v6408, %v6406
        %v6501 = vpack.c.b16 %v6411, %v6409
        %v6502 = vpack.c.b16 %v6412, %v6410
        %v6503 = vpack.c.b16 %v6415, %v6413
        %v6504 = vpack.c.b16 %v6416, %v6414
        %v6505 = vpack.c.b16 %v6419, %v6417
        %v6506 = vpack.c.b16 %v6420, %v6418
        %v6507 = vpack.c.b16 %v6423, %v6421
        %v6508 = vpack.c.b16 %v6424, %v6422
        %v6509 = vpack.c.b16 %v6427, %v6425
        %v6510 = vpack.c.b16 %v6428, %v6426
        %v6511 = vpack.c.b16 %v6431, %v6429
        %v6512 = vpack.c.b16 %v6432, %v6430
        %v6513 = vpack.c.b16 %v6435, %v6433
        %v6514 = vpack.c.b16 %v6436, %v6434
        %v6515 = vpack.c.b16 %v6439, %v6437
        %v6516 = vpack.c.b16 %v6440, %v6438
        %v6517 = vpack.c.b16 %v6443, %v6441
        %v6518 = vpack.c.b16 %v6444, %v6442
        %v6519 = vpack.c.b16 %v6447, %v6445
        %v6520 = vpack.c.b16 %v6448, %v6446
        %v6521 = vpack.c.b16 %v6451, %v6449
        %v6522 = vpack.c.b16 %v6452, %v6450
        %v6523 = vpack.c.b16 %v6455, %v6453
        %v6524 = vpack.c.b16 %v6456, %v6454
        %v6525 = vpack.c.b16 %v6459, %v6457
        %v6526 = vpack.c.b16 %v6460, %v6458
        %v6527 = vpack.c.b16 %v6463, %v6461
        %v6528 = vpack.c.b16 %v6464, %v6462
        %6593 = vmatprep.subr.bf16.mxu0 %v6480
        %6594 = vmatpush1.bf16.msra.mxu0 %v6479
        %6595 = vmatprep.subr.bf16.mxu0 %v6478
        %6596 = vmatpush1.bf16.msra.mxu0 %v6477
        %6597 = vmatprep.subr.bf16.mxu0 %v6476
        %6598 = vmatpush1.bf16.msra.mxu0 %v6475
        %6599 = vmatprep.subr.bf16.mxu0 %v6474
        %6600 = vmatpush1.bf16.msra.mxu0 %v6473
        %6601 = vmatprep.subr.bf16.mxu0 %v6472
        %6602 = vmatpush1.bf16.msra.mxu0 %v6471
        %6603 = vmatprep.subr.bf16.mxu0 %v6470
        %6604 = vmatpush1.bf16.msra.mxu0 %v6469
        %6605 = vmatprep.subr.bf16.mxu0 %v6468
        %6606 = vmatpush1.bf16.msra.mxu0 %v6467
        %6607 = vmatprep.subr.bf16.mxu0 %v6466
        %6608 = vmatpush1.bf16.msra.mxu0 %v6465
        %6609 = vmatprep.subr.bf16.mxu0 %v6496
        %6610 = vmatpush2.bf16.msra.mxu0 %v6495
        %6611 = vmatprep.subr.bf16.mxu0 %v6494
        %6612 = vmatpush2.bf16.msra.mxu0 %v6493
        %6613 = vmatprep.subr.bf16.mxu0 %v6492
        %6614 = vmatpush2.bf16.msra.mxu0 %v6491
        %6615 = vmatprep.subr.bf16.mxu0 %v6490
        %6616 = vmatpush2.bf16.msra.mxu0 %v6489
        %6617 = vmatprep.subr.bf16.mxu0 %v6488
        %6618 = vmatpush2.bf16.msra.mxu0 %v6487
        %6619 = vmatprep.subr.bf16.mxu0 %v6486
        %6620 = vmatpush2.bf16.msra.mxu0 %v6485
        %6621 = vmatprep.subr.bf16.mxu0 %v6484
        %6622 = vmatpush2.bf16.msra.mxu0 %v6483
        %6623 = vmatprep.subr.bf16.mxu0 %v6482
        %6624 = vmatpush2.bf16.msra.mxu0 %v6481
        %6625 = vmatprep.mubr.bf16.mxu0 %v6082
        %6626 = vmatmul.mubr.bf16.gmra.mxu0 %v6081
        %v6627 = vpop.f32.mrf.mxu0
        %v6628 = vadd.f32 0.0, %v6627
        %v6629 = vpop.f32.mrf.mxu0
        %v6630 = vadd.f32 0.0, %v6629
        %v6631 = vpop.f32.mrf.mxu0
        %v6632 = vadd.f32 0.0, %v6631
        %v6633 = vpop.f32.mrf.mxu0
        %v6634 = vadd.f32 0.0, %v6633
        %6635 = vmatprep.mubr.bf16.mxu0 %v6086
        %6636 = vmatmul.mubr.bf16.gmra.mxu0 %v6085
        %v6637 = vpop.f32.mrf.mxu0
        %v6638 = vadd.f32 0.0, %v6637
        %v6639 = vpop.f32.mrf.mxu0
        %v6640 = vadd.f32 0.0, %v6639
        %v6641 = vpop.f32.mrf.mxu0
        %v6642 = vadd.f32 0.0, %v6641
        %v6643 = vpop.f32.mrf.mxu0
        %v6644 = vadd.f32 0.0, %v6643
        %6645 = vmatprep.mubr.bf16.mxu0 %v6090
        %6646 = vmatmul.mubr.bf16.gmra.mxu0 %v6089
        %v6647 = vpop.f32.mrf.mxu0
        %v6648 = vadd.f32 0.0, %v6647
        %v6649 = vpop.f32.mrf.mxu0
        %v6650 = vadd.f32 0.0, %v6649
        %v6651 = vpop.f32.mrf.mxu0
        %v6652 = vadd.f32 0.0, %v6651
        %v6653 = vpop.f32.mrf.mxu0
        %v6654 = vadd.f32 0.0, %v6653
        %6655 = vmatprep.mubr.bf16.mxu0 %v6094
        %6656 = vmatmul.mubr.bf16.gmra.mxu0 %v6093
        %v6657 = vpop.f32.mrf.mxu0
        %v6658 = vadd.f32 0.0, %v6657
        %v6659 = vpop.f32.mrf.mxu0
        %v6660 = vadd.f32 0.0, %v6659
        %v6661 = vpop.f32.mrf.mxu0
        %v6662 = vadd.f32 0.0, %v6661
        %v6663 = vpop.f32.mrf.mxu0
        %v6664 = vadd.f32 0.0, %v6663
        %6665 = vmatprep.mubr.bf16.mxu0 %v6098
        %6666 = vmatmul.mubr.bf16.gmra.mxu0 %v6097
        %v6667 = vpop.f32.mrf.mxu0
        %v6668 = vadd.f32 0.0, %v6667
        %v6669 = vpop.f32.mrf.mxu0
        %v6670 = vadd.f32 0.0, %v6669
        %v6671 = vpop.f32.mrf.mxu0
        %v6672 = vadd.f32 0.0, %v6671
        %v6673 = vpop.f32.mrf.mxu0
        %v6674 = vadd.f32 0.0, %v6673
        %6675 = vmatprep.mubr.bf16.mxu0 %v6102
        %6676 = vmatmul.mubr.bf16.gmra.mxu0 %v6101
        %v6677 = vpop.f32.mrf.mxu0
        %v6678 = vadd.f32 0.0, %v6677
        %v6679 = vpop.f32.mrf.mxu0
        %v6680 = vadd.f32 0.0, %v6679
        %v6681 = vpop.f32.mrf.mxu0
        %v6682 = vadd.f32 0.0, %v6681
        %v6683 = vpop.f32.mrf.mxu0
        %v6684 = vadd.f32 0.0, %v6683
        %6685 = vmatprep.mubr.bf16.mxu0 %v6106
        %6686 = vmatmul.mubr.bf16.gmra.mxu0 %v6105
        %v6687 = vpop.f32.mrf.mxu0
        %v6688 = vadd.f32 0.0, %v6687
        %v6689 = vpop.f32.mrf.mxu0
        %v6690 = vadd.f32 0.0, %v6689
        %v6691 = vpop.f32.mrf.mxu0
        %v6692 = vadd.f32 0.0, %v6691
        %v6693 = vpop.f32.mrf.mxu0
        %v6694 = vadd.f32 0.0, %v6693
        %6695 = vmatprep.mubr.bf16.mxu0 %v6110
        %6696 = vmatmul.mubr.bf16.gmra.mxu0 %v6109
        %v6697 = vpop.f32.mrf.mxu0
        %v6698 = vadd.f32 0.0, %v6697
        %v6699 = vpop.f32.mrf.mxu0
        %v6700 = vadd.f32 0.0, %v6699
        %v6701 = vpop.f32.mrf.mxu0
        %v6702 = vadd.f32 0.0, %v6701
        %v6703 = vpop.f32.mrf.mxu0
        %v6704 = vadd.f32 0.0, %v6703
        %6705 = vmatprep.mubr.bf16.mxu0 %v6114
        %6706 = vmatmul.mubr.bf16.gmra.mxu0 %v6113
        %v6707 = vpop.f32.mrf.mxu0
        %v6708 = vadd.f32 0.0, %v6707
        %v6709 = vpop.f32.mrf.mxu0
        %v6710 = vadd.f32 0.0, %v6709
        %v6711 = vpop.f32.mrf.mxu0
        %v6712 = vadd.f32 0.0, %v6711
        %v6713 = vpop.f32.mrf.mxu0
        %v6714 = vadd.f32 0.0, %v6713
        %6715 = vmatprep.mubr.bf16.mxu0 %v6118
        %6716 = vmatmul.mubr.bf16.gmra.mxu0 %v6117
        %v6717 = vpop.f32.mrf.mxu0
        %v6718 = vadd.f32 0.0, %v6717
        %v6719 = vpop.f32.mrf.mxu0
        %v6720 = vadd.f32 0.0, %v6719
        %v6721 = vpop.f32.mrf.mxu0
        %v6722 = vadd.f32 0.0, %v6721
        %v6723 = vpop.f32.mrf.mxu0
        %v6724 = vadd.f32 0.0, %v6723
        %6725 = vmatprep.mubr.bf16.mxu0 %v6122
        %6726 = vmatmul.mubr.bf16.gmra.mxu0 %v6121
        %v6727 = vpop.f32.mrf.mxu0
        %v6728 = vadd.f32 0.0, %v6727
        %v6729 = vpop.f32.mrf.mxu0
        %v6730 = vadd.f32 0.0, %v6729
        %v6731 = vpop.f32.mrf.mxu0
        %v6732 = vadd.f32 0.0, %v6731
        %v6733 = vpop.f32.mrf.mxu0
        %v6734 = vadd.f32 0.0, %v6733
        %6735 = vmatprep.mubr.bf16.mxu0 %v6126
        %6736 = vmatmul.mubr.bf16.gmra.mxu0 %v6125
        %v6737 = vpop.f32.mrf.mxu0
        %v6738 = vadd.f32 0.0, %v6737
        %v6739 = vpop.f32.mrf.mxu0
        %v6740 = vadd.f32 0.0, %v6739
        %v6741 = vpop.f32.mrf.mxu0
        %v6742 = vadd.f32 0.0, %v6741
        %v6743 = vpop.f32.mrf.mxu0
        %v6744 = vadd.f32 0.0, %v6743
        %6745 = vmatprep.mubr.bf16.mxu0 %v6130
        %6746 = vmatmul.mubr.bf16.gmra.mxu0 %v6129
        %v6747 = vpop.f32.mrf.mxu0
        %v6748 = vadd.f32 0.0, %v6747
        %v6749 = vpop.f32.mrf.mxu0
        %v6750 = vadd.f32 0.0, %v6749
        %v6751 = vpop.f32.mrf.mxu0
        %v6752 = vadd.f32 0.0, %v6751
        %v6753 = vpop.f32.mrf.mxu0
        %v6754 = vadd.f32 0.0, %v6753
        %6755 = vmatprep.mubr.bf16.mxu0 %v6134
        %6756 = vmatmul.mubr.bf16.gmra.mxu0 %v6133
        %v6757 = vpop.f32.mrf.mxu0
        %v6758 = vadd.f32 0.0, %v6757
        %v6759 = vpop.f32.mrf.mxu0
        %v6760 = vadd.f32 0.0, %v6759
        %v6761 = vpop.f32.mrf.mxu0
        %v6762 = vadd.f32 0.0, %v6761
        %v6763 = vpop.f32.mrf.mxu0
        %v6764 = vadd.f32 0.0, %v6763
        %6765 = vmatprep.mubr.bf16.mxu0 %v6138
        %6766 = vmatmul.mubr.bf16.gmra.mxu0 %v6137
        %v6767 = vpop.f32.mrf.mxu0
        %v6768 = vadd.f32 0.0, %v6767
        %v6769 = vpop.f32.mrf.mxu0
        %v6770 = vadd.f32 0.0, %v6769
        %v6771 = vpop.f32.mrf.mxu0
        %v6772 = vadd.f32 0.0, %v6771
        %v6773 = vpop.f32.mrf.mxu0
        %v6774 = vadd.f32 0.0, %v6773
        %6775 = vmatprep.mubr.bf16.mxu0 %v6142
        %6776 = vmatmul.mubr.bf16.gmra.mxu0 %v6141
        %v6777 = vpop.f32.mrf.mxu0
        %v6778 = vadd.f32 0.0, %v6777
        %v6779 = vpop.f32.mrf.mxu0
        %v6780 = vadd.f32 0.0, %v6779
        %v6781 = vpop.f32.mrf.mxu0
        %v6782 = vadd.f32 0.0, %v6781
        %v6783 = vpop.f32.mrf.mxu0
        %v6784 = vadd.f32 0.0, %v6783
        %6785 = vdwg.mxu0
        %6786 = vmatprep.subr.bf16.mxu0 %v6512
        %6787 = vmatpush1.bf16.msra.mxu0 %v6511
        %6788 = vmatprep.subr.bf16.mxu0 %v6510
        %6789 = vmatpush1.bf16.msra.mxu0 %v6509
        %6790 = vmatprep.subr.bf16.mxu0 %v6508
        %6791 = vmatpush1.bf16.msra.mxu0 %v6507
        %6792 = vmatprep.subr.bf16.mxu0 %v6506
        %6793 = vmatpush1.bf16.msra.mxu0 %v6505
        %6794 = vmatprep.subr.bf16.mxu0 %v6504
        %6795 = vmatpush1.bf16.msra.mxu0 %v6503
        %6796 = vmatprep.subr.bf16.mxu0 %v6502
        %6797 = vmatpush1.bf16.msra.mxu0 %v6501
        %6798 = vmatprep.subr.bf16.mxu0 %v6500
        %6799 = vmatpush1.bf16.msra.mxu0 %v6499
        %6800 = vmatprep.subr.bf16.mxu0 %v6498
        %6801 = vmatpush1.bf16.msra.mxu0 %v6497
        %6802 = vmatprep.subr.bf16.mxu0 %v6528
        %6803 = vmatpush2.bf16.msra.mxu0 %v6527
        %6804 = vmatprep.subr.bf16.mxu0 %v6526
        %6805 = vmatpush2.bf16.msra.mxu0 %v6525
        %6806 = vmatprep.subr.bf16.mxu0 %v6524
        %6807 = vmatpush2.bf16.msra.mxu0 %v6523
        %6808 = vmatprep.subr.bf16.mxu0 %v6522
        %6809 = vmatpush2.bf16.msra.mxu0 %v6521
        %6810 = vmatprep.subr.bf16.mxu0 %v6520
        %6811 = vmatpush2.bf16.msra.mxu0 %v6519
        %6812 = vmatprep.subr.bf16.mxu0 %v6518
        %6813 = vmatpush2.bf16.msra.mxu0 %v6517
        %6814 = vmatprep.subr.bf16.mxu0 %v6516
        %6815 = vmatpush2.bf16.msra.mxu0 %v6515
        %6816 = vmatprep.subr.bf16.mxu0 %v6514
        %6817 = vmatpush2.bf16.msra.mxu0 %v6513
        %6818 = vmatprep.mubr.bf16.mxu0 %v6084
        %6819 = vmatmul.mubr.bf16.gmra.mxu0 %v6083
        %v6820 = vpop.f32.mrf.mxu0
        %v6821 = vadd.f32 %v6628, %v6820
        %v6822 = vpop.f32.mrf.mxu0
        %v6823 = vadd.f32 %v6630, %v6822
        %v6824 = vpop.f32.mrf.mxu0
        %v6825 = vadd.f32 %v6632, %v6824
        %v6826 = vpop.f32.mrf.mxu0
        %v6827 = vadd.f32 %v6634, %v6826
        %6828 = vmatprep.mubr.bf16.mxu0 %v6088
        %6829 = vmatmul.mubr.bf16.gmra.mxu0 %v6087
        %v6830 = vpop.f32.mrf.mxu0
        %v6831 = vadd.f32 %v6638, %v6830
        %v6832 = vpop.f32.mrf.mxu0
        %v6833 = vadd.f32 %v6640, %v6832
        %v6834 = vpop.f32.mrf.mxu0
        %v6835 = vadd.f32 %v6642, %v6834
        %v6836 = vpop.f32.mrf.mxu0
        %v6837 = vadd.f32 %v6644, %v6836
        %6838 = vmatprep.mubr.bf16.mxu0 %v6092
        %6839 = vmatmul.mubr.bf16.gmra.mxu0 %v6091
        %v6840 = vpop.f32.mrf.mxu0
        %v6841 = vadd.f32 %v6648, %v6840
        %v6842 = vpop.f32.mrf.mxu0
        %v6843 = vadd.f32 %v6650, %v6842
        %v6844 = vpop.f32.mrf.mxu0
        %v6845 = vadd.f32 %v6652, %v6844
        %v6846 = vpop.f32.mrf.mxu0
        %v6847 = vadd.f32 %v6654, %v6846
        %6848 = vmatprep.mubr.bf16.mxu0 %v6096
        %6849 = vmatmul.mubr.bf16.gmra.mxu0 %v6095
        %v6850 = vpop.f32.mrf.mxu0
        %v6851 = vadd.f32 %v6658, %v6850
        %v6852 = vpop.f32.mrf.mxu0
        %v6853 = vadd.f32 %v6660, %v6852
        %v6854 = vpop.f32.mrf.mxu0
        %v6855 = vadd.f32 %v6662, %v6854
        %v6856 = vpop.f32.mrf.mxu0
        %v6857 = vadd.f32 %v6664, %v6856
        %6858 = vmatprep.mubr.bf16.mxu0 %v6100
        %6859 = vmatmul.mubr.bf16.gmra.mxu0 %v6099
        %v6860 = vpop.f32.mrf.mxu0
        %v6861 = vadd.f32 %v6668, %v6860
        %v6862 = vpop.f32.mrf.mxu0
        %v6863 = vadd.f32 %v6670, %v6862
        %v6864 = vpop.f32.mrf.mxu0
        %v6865 = vadd.f32 %v6672, %v6864
        %v6866 = vpop.f32.mrf.mxu0
        %v6867 = vadd.f32 %v6674, %v6866
        %6868 = vmatprep.mubr.bf16.mxu0 %v6104
        %6869 = vmatmul.mubr.bf16.gmra.mxu0 %v6103
        %v6870 = vpop.f32.mrf.mxu0
        %v6871 = vadd.f32 %v6678, %v6870
        %v6872 = vpop.f32.mrf.mxu0
        %v6873 = vadd.f32 %v6680, %v6872
        %v6874 = vpop.f32.mrf.mxu0
        %v6875 = vadd.f32 %v6682, %v6874
        %v6876 = vpop.f32.mrf.mxu0
        %v6877 = vadd.f32 %v6684, %v6876
        %6878 = vmatprep.mubr.bf16.mxu0 %v6108
        %6879 = vmatmul.mubr.bf16.gmra.mxu0 %v6107
        %v6880 = vpop.f32.mrf.mxu0
        %v6881 = vadd.f32 %v6688, %v6880
        %v6882 = vpop.f32.mrf.mxu0
        %v6883 = vadd.f32 %v6690, %v6882
        %v6884 = vpop.f32.mrf.mxu0
        %v6885 = vadd.f32 %v6692, %v6884
        %v6886 = vpop.f32.mrf.mxu0
        %v6887 = vadd.f32 %v6694, %v6886
        %6888 = vmatprep.mubr.bf16.mxu0 %v6112
        %6889 = vmatmul.mubr.bf16.gmra.mxu0 %v6111
        %v6890 = vpop.f32.mrf.mxu0
        %v6891 = vadd.f32 %v6698, %v6890
        %v6892 = vpop.f32.mrf.mxu0
        %v6893 = vadd.f32 %v6700, %v6892
        %v6894 = vpop.f32.mrf.mxu0
        %v6895 = vadd.f32 %v6702, %v6894
        %v6896 = vpop.f32.mrf.mxu0
        %v6897 = vadd.f32 %v6704, %v6896
        %6898 = vmatprep.mubr.bf16.mxu0 %v6116
        %6899 = vmatmul.mubr.bf16.gmra.mxu0 %v6115
        %v6900 = vpop.f32.mrf.mxu0
        %v6901 = vadd.f32 %v6708, %v6900
        %v6902 = vpop.f32.mrf.mxu0
        %v6903 = vadd.f32 %v6710, %v6902
        %v6904 = vpop.f32.mrf.mxu0
        %v6905 = vadd.f32 %v6712, %v6904
        %v6906 = vpop.f32.mrf.mxu0
        %v6907 = vadd.f32 %v6714, %v6906
        %6908 = vmatprep.mubr.bf16.mxu0 %v6120
        %6909 = vmatmul.mubr.bf16.gmra.mxu0 %v6119
        %v6910 = vpop.f32.mrf.mxu0
        %v6911 = vadd.f32 %v6718, %v6910
        %v6912 = vpop.f32.mrf.mxu0
        %v6913 = vadd.f32 %v6720, %v6912
        %v6914 = vpop.f32.mrf.mxu0
        %v6915 = vadd.f32 %v6722, %v6914
        %v6916 = vpop.f32.mrf.mxu0
        %v6917 = vadd.f32 %v6724, %v6916
        %6918 = vmatprep.mubr.bf16.mxu0 %v6124
        %6919 = vmatmul.mubr.bf16.gmra.mxu0 %v6123
        %v6920 = vpop.f32.mrf.mxu0
        %v6921 = vadd.f32 %v6728, %v6920
        %v6922 = vpop.f32.mrf.mxu0
        %v6923 = vadd.f32 %v6730, %v6922
        %v6924 = vpop.f32.mrf.mxu0
        %v6925 = vadd.f32 %v6732, %v6924
        %v6926 = vpop.f32.mrf.mxu0
        %v6927 = vadd.f32 %v6734, %v6926
        %6928 = vmatprep.mubr.bf16.mxu0 %v6128
        %6929 = vmatmul.mubr.bf16.gmra.mxu0 %v6127
        %v6930 = vpop.f32.mrf.mxu0
        %v6931 = vadd.f32 %v6738, %v6930
        %v6932 = vpop.f32.mrf.mxu0
        %v6933 = vadd.f32 %v6740, %v6932
        %v6934 = vpop.f32.mrf.mxu0
        %v6935 = vadd.f32 %v6742, %v6934
        %v6936 = vpop.f32.mrf.mxu0
        %v6937 = vadd.f32 %v6744, %v6936
        %6938 = vmatprep.mubr.bf16.mxu0 %v6132
        %6939 = vmatmul.mubr.bf16.gmra.mxu0 %v6131
        %v6940 = vpop.f32.mrf.mxu0
        %v6941 = vadd.f32 %v6748, %v6940
        %v6942 = vpop.f32.mrf.mxu0
        %v6943 = vadd.f32 %v6750, %v6942
        %v6944 = vpop.f32.mrf.mxu0
        %v6945 = vadd.f32 %v6752, %v6944
        %v6946 = vpop.f32.mrf.mxu0
        %v6947 = vadd.f32 %v6754, %v6946
        %6948 = vmatprep.mubr.bf16.mxu0 %v6136
        %6949 = vmatmul.mubr.bf16.gmra.mxu0 %v6135
        %v6950 = vpop.f32.mrf.mxu0
        %v6951 = vadd.f32 %v6758, %v6950
        %v6952 = vpop.f32.mrf.mxu0
        %v6953 = vadd.f32 %v6760, %v6952
        %v6954 = vpop.f32.mrf.mxu0
        %v6955 = vadd.f32 %v6762, %v6954
        %v6956 = vpop.f32.mrf.mxu0
        %v6957 = vadd.f32 %v6764, %v6956
        %6958 = vmatprep.mubr.bf16.mxu0 %v6140
        %6959 = vmatmul.mubr.bf16.gmra.mxu0 %v6139
        %v6960 = vpop.f32.mrf.mxu0
        %v6961 = vadd.f32 %v6768, %v6960
        %v6962 = vpop.f32.mrf.mxu0
        %v6963 = vadd.f32 %v6770, %v6962
        %v6964 = vpop.f32.mrf.mxu0
        %v6965 = vadd.f32 %v6772, %v6964
        %v6966 = vpop.f32.mrf.mxu0
        %v6967 = vadd.f32 %v6774, %v6966
        %6968 = vmatprep.mubr.bf16.mxu0 %v6144
        %6969 = vmatmul.mubr.bf16.gmra.mxu0 %v6143
        %v6970 = vpop.f32.mrf.mxu0
        %v6971 = vadd.f32 %v6778, %v6970
        %v6972 = vpop.f32.mrf.mxu0
        %v6973 = vadd.f32 %v6780, %v6972
        %v6974 = vpop.f32.mrf.mxu0
        %v6975 = vadd.f32 %v6782, %v6974
        %v6976 = vpop.f32.mrf.mxu0
        %v6977 = vadd.f32 %v6784, %v6976
        %6978 = vdwg.mxu0
        %v6979 = vadd.f32 %v6145, %v6821
        %v6980 = vadd.f32 %v6146, %v6823
        %v6981 = vadd.f32 %v6147, %v6825
        %v6982 = vadd.f32 %v6148, %v6827
        %v6983 = vadd.f32 %v6149, %v6831
        %v6984 = vadd.f32 %v6150, %v6833
        %v6985 = vadd.f32 %v6151, %v6835
        %v6986 = vadd.f32 %v6152, %v6837
        %v6987 = vadd.f32 %v6153, %v6841
        %v6988 = vadd.f32 %v6154, %v6843
        %v6989 = vadd.f32 %v6155, %v6845
        %v6990 = vadd.f32 %v6156, %v6847
        %v6991 = vadd.f32 %v6157, %v6851
        %v6992 = vadd.f32 %v6158, %v6853
        %v6993 = vadd.f32 %v6159, %v6855
        %v6994 = vadd.f32 %v6160, %v6857
        %v6995 = vadd.f32 %v6161, %v6861
        %v6996 = vadd.f32 %v6162, %v6863
        %v6997 = vadd.f32 %v6163, %v6865
        %v6998 = vadd.f32 %v6164, %v6867
        %v6999 = vadd.f32 %v6165, %v6871
        %v7000 = vadd.f32 %v6166, %v6873
        %v7001 = vadd.f32 %v6167, %v6875
        %v7002 = vadd.f32 %v6168, %v6877
        %v7003 = vadd.f32 %v6169, %v6881
        %v7004 = vadd.f32 %v6170, %v6883
        %v7005 = vadd.f32 %v6171, %v6885
        %v7006 = vadd.f32 %v6172, %v6887
        %v7007 = vadd.f32 %v6173, %v6891
        %v7008 = vadd.f32 %v6174, %v6893
        %v7009 = vadd.f32 %v6175, %v6895
        %v7010 = vadd.f32 %v6176, %v6897
        %v7011 = vadd.f32 %v6177, %v6901
        %v7012 = vadd.f32 %v6178, %v6903
        %v7013 = vadd.f32 %v6179, %v6905
        %v7014 = vadd.f32 %v6180, %v6907
        %v7015 = vadd.f32 %v6181, %v6911
        %v7016 = vadd.f32 %v6182, %v6913
        %v7017 = vadd.f32 %v6183, %v6915
        %v7018 = vadd.f32 %v6184, %v6917
        %v7019 = vadd.f32 %v6185, %v6921
        %v7020 = vadd.f32 %v6186, %v6923
        %v7021 = vadd.f32 %v6187, %v6925
        %v7022 = vadd.f32 %v6188, %v6927
        %v7023 = vadd.f32 %v6189, %v6931
        %v7024 = vadd.f32 %v6190, %v6933
        %v7025 = vadd.f32 %v6191, %v6935
        %v7026 = vadd.f32 %v6192, %v6937
        %v7027 = vadd.f32 %v6193, %v6941
        %v7028 = vadd.f32 %v6194, %v6943
        %v7029 = vadd.f32 %v6195, %v6945
        %v7030 = vadd.f32 %v6196, %v6947
        %v7031 = vadd.f32 %v6197, %v6951
        %v7032 = vadd.f32 %v6198, %v6953
        %v7033 = vadd.f32 %v6199, %v6955
        %v7034 = vadd.f32 %v6200, %v6957
        %v7035 = vadd.f32 %v6201, %v6961
        %v7036 = vadd.f32 %v6202, %v6963
        %v7037 = vadd.f32 %v6203, %v6965
        %v7038 = vadd.f32 %v6204, %v6967
        %v7039 = vadd.f32 %v6205, %v6971
        %v7040 = vadd.f32 %v6206, %v6973
        %v7041 = vadd.f32 %v6207, %v6975
        %v7042 = vadd.f32 %v6208, %v6977
        %7043 = vst [vmem:[#allocation2] sm:$0xff] %v6979
        %7044 = vst [vmem:[#allocation2 + $0x8] sm:$0xff] %v6980
        %7045 = vst [vmem:[#allocation2 + $0x10] sm:$0xff] %v6981
        %7046 = vst [vmem:[#allocation2 + $0x18] sm:$0xff] %v6982
        %7047 = vst [vmem:[#allocation2 + $0x20] sm:$0xff] %v6983
        %7048 = vst [vmem:[#allocation2 + $0x28] sm:$0xff] %v6984
        %7049 = vst [vmem:[#allocation2 + $0x30] sm:$0xff] %v6985
        %7050 = vst [vmem:[#allocation2 + $0x38] sm:$0xff] %v6986
        %7051 = vst [vmem:[#allocation2 + $0x40] sm:$0xff] %v6987
        %7052 = vst [vmem:[#allocation2 + $0x48] sm:$0xff] %v6988
        %7053 = vst [vmem:[#allocation2 + $0x50] sm:$0xff] %v6989
        %7054 = vst [vmem:[#allocation2 + $0x58] sm:$0xff] %v6990
        %7055 = vst [vmem:[#allocation2 + $0x60] sm:$0xff] %v6991
        %7056 = vst [vmem:[#allocation2 + $0x68] sm:$0xff] %v6992
        %7057 = vst [vmem:[#allocation2 + $0x70] sm:$0xff] %v6993
        %7058 = vst [vmem:[#allocation2 + $0x78] sm:$0xff] %v6994
        %7059 = vst [vmem:[#allocation2 + $0x80] sm:$0xff] %v6995
        %7060 = vst [vmem:[#allocation2 + $0x88] sm:$0xff] %v6996
        %7061 = vst [vmem:[#allocation2 + $0x90] sm:$0xff] %v6997
        %7062 = vst [vmem:[#allocation2 + $0x98] sm:$0xff] %v6998
        %7063 = vst [vmem:[#allocation2 + $0xa0] sm:$0xff] %v6999
        %7064 = vst [vmem:[#allocation2 + $0xa8] sm:$0xff] %v7000
        %7065 = vst [vmem:[#allocation2 + $0xb0] sm:$0xff] %v7001
        %7066 = vst [vmem:[#allocation2 + $0xb8] sm:$0xff] %v7002
        %7067 = vst [vmem:[#allocation2 + $0xc0] sm:$0xff] %v7003
        %7068 = vst [vmem:[#allocation2 + $0xc8] sm:$0xff] %v7004
        %7069 = vst [vmem:[#allocation2 + $0xd0] sm:$0xff] %v7005
        %7070 = vst [vmem:[#allocation2 + $0xd8] sm:$0xff] %v7006
        %7071 = vst [vmem:[#allocation2 + $0xe0] sm:$0xff] %v7007
        %7072 = vst [vmem:[#allocation2 + $0xe8] sm:$0xff] %v7008
        %7073 = vst [vmem:[#allocation2 + $0xf0] sm:$0xff] %v7009
        %7074 = vst [vmem:[#allocation2 + $0xf8] sm:$0xff] %v7010
        %7075 = vst [vmem:[#allocation2 + $0x100] sm:$0xff] %v7011
        %7076 = vst [vmem:[#allocation2 + $0x108] sm:$0xff] %v7012
        %7077 = vst [vmem:[#allocation2 + $0x110] sm:$0xff] %v7013
        %7078 = vst [vmem:[#allocation2 + $0x118] sm:$0xff] %v7014
        %7079 = vst [vmem:[#allocation2 + $0x120] sm:$0xff] %v7015
        %7080 = vst [vmem:[#allocation2 + $0x128] sm:$0xff] %v7016
        %7081 = vst [vmem:[#allocation2 + $0x130] sm:$0xff] %v7017
        %7082 = vst [vmem:[#allocation2 + $0x138] sm:$0xff] %v7018
        %7083 = vst [vmem:[#allocation2 + $0x140] sm:$0xff] %v7019
        %7084 = vst [vmem:[#allocation2 + $0x148] sm:$0xff] %v7020
        %7085 = vst [vmem:[#allocation2 + $0x150] sm:$0xff] %v7021
        %7086 = vst [vmem:[#allocation2 + $0x158] sm:$0xff] %v7022
        %7087 = vst [vmem:[#allocation2 + $0x160] sm:$0xff] %v7023
        %7088 = vst [vmem:[#allocation2 + $0x168] sm:$0xff] %v7024
        %7089 = vst [vmem:[#allocation2 + $0x170] sm:$0xff] %v7025
        %7090 = vst [vmem:[#allocation2 + $0x178] sm:$0xff] %v7026
        %7091 = vst [vmem:[#allocation2 + $0x180] sm:$0xff] %v7027
        %7092 = vst [vmem:[#allocation2 + $0x188] sm:$0xff] %v7028
        %7093 = vst [vmem:[#allocation2 + $0x190] sm:$0xff] %v7029
        %7094 = vst [vmem:[#allocation2 + $0x198] sm:$0xff] %v7030
        %7095 = vst [vmem:[#allocation2 + $0x1a0] sm:$0xff] %v7031
        %7096 = vst [vmem:[#allocation2 + $0x1a8] sm:$0xff] %v7032
        %7097 = vst [vmem:[#allocation2 + $0x1b0] sm:$0xff] %v7033
        %7098 = vst [vmem:[#allocation2 + $0x1b8] sm:$0xff] %v7034
        %7099 = vst [vmem:[#allocation2 + $0x1c0] sm:$0xff] %v7035
        %7100 = vst [vmem:[#allocation2 + $0x1c8] sm:$0xff] %v7036
        %7101 = vst [vmem:[#allocation2 + $0x1d0] sm:$0xff] %v7037
        %7102 = vst [vmem:[#allocation2 + $0x1d8] sm:$0xff] %v7038
        %7103 = vst [vmem:[#allocation2 + $0x1e0] sm:$0xff] %v7039
        %7104 = vst [vmem:[#allocation2 + $0x1e8] sm:$0xff] %v7040
        %7105 = vst [vmem:[#allocation2 + $0x1f0] sm:$0xff] %v7041
        %7106 = vst [vmem:[#allocation2 + $0x1f8] sm:$0xff] %v7042
        %v7107 = vld [vmem:[#allocation2] sm:$0xff]
        %v7108 = vld [vmem:[#allocation2 + $0x8] sm:$0xff]
        %v7109 = vld [vmem:[#allocation2 + $0x10] sm:$0xff]
        %v7110 = vld [vmem:[#allocation2 + $0x18] sm:$0xff]
        %v7111 = vld [vmem:[#allocation2 + $0x20] sm:$0xff]
        %v7112 = vld [vmem:[#allocation2 + $0x28] sm:$0xff]
        %v7113 = vld [vmem:[#allocation2 + $0x30] sm:$0xff]
        %v7114 = vld [vmem:[#allocation2 + $0x38] sm:$0xff]
        %v7115 = vld [vmem:[#allocation2 + $0x40] sm:$0xff]
        %v7116 = vld [vmem:[#allocation2 + $0x48] sm:$0xff]
        %v7117 = vld [vmem:[#allocation2 + $0x50] sm:$0xff]
        %v7118 = vld [vmem:[#allocation2 + $0x58] sm:$0xff]
        %v7119 = vld [vmem:[#allocation2 + $0x60] sm:$0xff]
        %v7120 = vld [vmem:[#allocation2 + $0x68] sm:$0xff]
        %v7121 = vld [vmem:[#allocation2 + $0x70] sm:$0xff]
        %v7122 = vld [vmem:[#allocation2 + $0x78] sm:$0xff]
        %v7123 = vld [vmem:[#allocation2 + $0x80] sm:$0xff]
        %v7124 = vld [vmem:[#allocation2 + $0x88] sm:$0xff]
        %v7125 = vld [vmem:[#allocation2 + $0x90] sm:$0xff]
        %v7126 = vld [vmem:[#allocation2 + $0x98] sm:$0xff]
        %v7127 = vld [vmem:[#allocation2 + $0xa0] sm:$0xff]
        %v7128 = vld [vmem:[#allocation2 + $0xa8] sm:$0xff]
        %v7129 = vld [vmem:[#allocation2 + $0xb0] sm:$0xff]
        %v7130 = vld [vmem:[#allocation2 + $0xb8] sm:$0xff]
        %v7131 = vld [vmem:[#allocation2 + $0xc0] sm:$0xff]
        %v7132 = vld [vmem:[#allocation2 + $0xc8] sm:$0xff]
        %v7133 = vld [vmem:[#allocation2 + $0xd0] sm:$0xff]
        %v7134 = vld [vmem:[#allocation2 + $0xd8] sm:$0xff]
        %v7135 = vld [vmem:[#allocation2 + $0xe0] sm:$0xff]
        %v7136 = vld [vmem:[#allocation2 + $0xe8] sm:$0xff]
        %v7137 = vld [vmem:[#allocation2 + $0xf0] sm:$0xff]
        %v7138 = vld [vmem:[#allocation2 + $0xf8] sm:$0xff]
        %v7139 = vld [vmem:[#allocation2 + $0x100] sm:$0xff]
        %v7140 = vld [vmem:[#allocation2 + $0x108] sm:$0xff]
        %v7141 = vld [vmem:[#allocation2 + $0x110] sm:$0xff]
        %v7142 = vld [vmem:[#allocation2 + $0x118] sm:$0xff]
        %v7143 = vld [vmem:[#allocation2 + $0x120] sm:$0xff]
        %v7144 = vld [vmem:[#allocation2 + $0x128] sm:$0xff]
        %v7145 = vld [vmem:[#allocation2 + $0x130] sm:$0xff]
        %v7146 = vld [vmem:[#allocation2 + $0x138] sm:$0xff]
        %v7147 = vld [vmem:[#allocation2 + $0x140] sm:$0xff]
        %v7148 = vld [vmem:[#allocation2 + $0x148] sm:$0xff]
        %v7149 = vld [vmem:[#allocation2 + $0x150] sm:$0xff]
        %v7150 = vld [vmem:[#allocation2 + $0x158] sm:$0xff]
        %v7151 = vld [vmem:[#allocation2 + $0x160] sm:$0xff]
        %v7152 = vld [vmem:[#allocation2 + $0x168] sm:$0xff]
        %v7153 = vld [vmem:[#allocation2 + $0x170] sm:$0xff]
        %v7154 = vld [vmem:[#allocation2 + $0x178] sm:$0xff]
        %v7155 = vld [vmem:[#allocation2 + $0x180] sm:$0xff]
        %v7156 = vld [vmem:[#allocation2 + $0x188] sm:$0xff]
        %v7157 = vld [vmem:[#allocation2 + $0x190] sm:$0xff]
        %v7158 = vld [vmem:[#allocation2 + $0x198] sm:$0xff]
        %v7159 = vld [vmem:[#allocation2 + $0x1a0] sm:$0xff]
        %v7160 = vld [vmem:[#allocation2 + $0x1a8] sm:$0xff]
        %v7161 = vld [vmem:[#allocation2 + $0x1b0] sm:$0xff]
        %v7162 = vld [vmem:[#allocation2 + $0x1b8] sm:$0xff]
        %v7163 = vld [vmem:[#allocation2 + $0x1c0] sm:$0xff]
        %v7164 = vld [vmem:[#allocation2 + $0x1c8] sm:$0xff]
        %v7165 = vld [vmem:[#allocation2 + $0x1d0] sm:$0xff]
        %v7166 = vld [vmem:[#allocation2 + $0x1d8] sm:$0xff]
        %v7167 = vld [vmem:[#allocation2 + $0x1e0] sm:$0xff]
        %v7168 = vld [vmem:[#allocation2 + $0x1e8] sm:$0xff]
        %v7169 = vld [vmem:[#allocation2 + $0x1f0] sm:$0xff]
        %v7170 = vld [vmem:[#allocation2 + $0x1f8] sm:$0xff]
        %7171 = vst [vmem:[%s206] sm:$0xff] %v7107
        %7172 = vst [vmem:[%s206 + $0x8] sm:$0xff] %v7108
        %7173 = vst [vmem:[%s206 + $0x10] sm:$0xff] %v7109
        %7174 = vst [vmem:[%s206 + $0x18] sm:$0xff] %v7110
        %7175 = vst [vmem:[%s206 + $0x20] sm:$0xff] %v7111
        %7176 = vst [vmem:[%s206 + $0x28] sm:$0xff] %v7112
        %7177 = vst [vmem:[%s206 + $0x30] sm:$0xff] %v7113
        %7178 = vst [vmem:[%s206 + $0x38] sm:$0xff] %v7114
        %7179 = vst [vmem:[%s206 + $0x40] sm:$0xff] %v7115
        %7180 = vst [vmem:[%s206 + $0x48] sm:$0xff] %v7116
        %7181 = vst [vmem:[%s206 + $0x50] sm:$0xff] %v7117
        %7182 = vst [vmem:[%s206 + $0x58] sm:$0xff] %v7118
        %7183 = vst [vmem:[%s206 + $0x60] sm:$0xff] %v7119
        %7184 = vst [vmem:[%s206 + $0x68] sm:$0xff] %v7120
        %7185 = vst [vmem:[%s206 + $0x70] sm:$0xff] %v7121
        %7186 = vst [vmem:[%s206 + $0x78] sm:$0xff] %v7122
        %7187 = vst [vmem:[%s206 + $0x80] sm:$0xff] %v7123
        %7188 = vst [vmem:[%s206 + $0x88] sm:$0xff] %v7124
        %7189 = vst [vmem:[%s206 + $0x90] sm:$0xff] %v7125
        %7190 = vst [vmem:[%s206 + $0x98] sm:$0xff] %v7126
        %7191 = vst [vmem:[%s206 + $0xa0] sm:$0xff] %v7127
        %7192 = vst [vmem:[%s206 + $0xa8] sm:$0xff] %v7128
        %7193 = vst [vmem:[%s206 + $0xb0] sm:$0xff] %v7129
        %7194 = vst [vmem:[%s206 + $0xb8] sm:$0xff] %v7130
        %7195 = vst [vmem:[%s206 + $0xc0] sm:$0xff] %v7131
        %7196 = vst [vmem:[%s206 + $0xc8] sm:$0xff] %v7132
        %7197 = vst [vmem:[%s206 + $0xd0] sm:$0xff] %v7133
        %7198 = vst [vmem:[%s206 + $0xd8] sm:$0xff] %v7134
        %7199 = vst [vmem:[%s206 + $0xe0] sm:$0xff] %v7135
        %7200 = vst [vmem:[%s206 + $0xe8] sm:$0xff] %v7136
        %7201 = vst [vmem:[%s206 + $0xf0] sm:$0xff] %v7137
        %7202 = vst [vmem:[%s206 + $0xf8] sm:$0xff] %v7138
        %7203 = vst [vmem:[%s206 + $0x100] sm:$0xff] %v7139
        %7204 = vst [vmem:[%s206 + $0x108] sm:$0xff] %v7140
        %7205 = vst [vmem:[%s206 + $0x110] sm:$0xff] %v7141
        %7206 = vst [vmem:[%s206 + $0x118] sm:$0xff] %v7142
        %7207 = vst [vmem:[%s206 + $0x120] sm:$0xff] %v7143
        %7208 = vst [vmem:[%s206 + $0x128] sm:$0xff] %v7144
        %7209 = vst [vmem:[%s206 + $0x130] sm:$0xff] %v7145
        %7210 = vst [vmem:[%s206 + $0x138] sm:$0xff] %v7146
        %7211 = vst [vmem:[%s206 + $0x140] sm:$0xff] %v7147
        %7212 = vst [vmem:[%s206 + $0x148] sm:$0xff] %v7148
        %7213 = vst [vmem:[%s206 + $0x150] sm:$0xff] %v7149
        %7214 = vst [vmem:[%s206 + $0x158] sm:$0xff] %v7150
        %7215 = vst [vmem:[%s206 + $0x160] sm:$0xff] %v7151
        %7216 = vst [vmem:[%s206 + $0x168] sm:$0xff] %v7152
        %7217 = vst [vmem:[%s206 + $0x170] sm:$0xff] %v7153
        %7218 = vst [vmem:[%s206 + $0x178] sm:$0xff] %v7154
        %7219 = vst [vmem:[%s206 + $0x180] sm:$0xff] %v7155
        %7220 = vst [vmem:[%s206 + $0x188] sm:$0xff] %v7156
        %7221 = vst [vmem:[%s206 + $0x190] sm:$0xff] %v7157
        %7222 = vst [vmem:[%s206 + $0x198] sm:$0xff] %v7158
        %7223 = vst [vmem:[%s206 + $0x1a0] sm:$0xff] %v7159
        %7224 = vst [vmem:[%s206 + $0x1a8] sm:$0xff] %v7160
        %7225 = vst [vmem:[%s206 + $0x1b0] sm:$0xff] %v7161
        %7226 = vst [vmem:[%s206 + $0x1b8] sm:$0xff] %v7162
        %7227 = vst [vmem:[%s206 + $0x1c0] sm:$0xff] %v7163
        %7228 = vst [vmem:[%s206 + $0x1c8] sm:$0xff] %v7164
        %7229 = vst [vmem:[%s206 + $0x1d0] sm:$0xff] %v7165
        %7230 = vst [vmem:[%s206 + $0x1d8] sm:$0xff] %v7166
        %7231 = vst [vmem:[%s206 + $0x1e0] sm:$0xff] %v7167
        %7232 = vst [vmem:[%s206 + $0x1e8] sm:$0xff] %v7168
        %7233 = vst [vmem:[%s206 + $0x1f0] sm:$0xff] %v7169
        %7234 = vst [vmem:[%s206 + $0x1f8] sm:$0xff] %v7170
        %s7235 = sand.u32 %s116, 1
        %s7236 = scalar_lea.sflag [#allocation5], %s7235
        %s7237 = sand.u32 %s116, 1
        %s7238 = smul.addr %s7237, 512
        %s7239 = scalar_lea.vmem [#allocation6], %s7238
        // Predicated region
        $region41: #{tpu_custom_call.1} parent=35 // pred_check
          %p7240 = pneg %p126
        $region42: #{tpu_custom_call.1} parent=35 // pred_check_branch
          %7242 = sbr.rel (%p7240) target = $region44
        $region43: #{tpu_custom_call.1} parent=35 // pred_region
          %s7243 = smul.u32 32, %s19
          %s7245 = ssub.s32 8192, 8192
          %7246 = vsyncadd %s7236, %s7245
          %s7247 = smul.addr %s7243, 2
          %s7248 = smul.addr %s7247, 128
          %s7249 = scalar_lea.hbm %s4, %s7248
          %s7250 = sshll.u32 %s7239, 4
          %s7251 = int_to_ptr.vmem [resolvable:$true] %s7250
          %7256 = dma.vmem_to_hbm [thread:$0]  %s7251, 8192, %s7249, %s7236, 256, 256, 16
        $region44: #{tpu_custom_call.1} parent=35 // pred_fallthru
          _
      $region36: #{tpu_custom_call.1} parent=5 // pred_fallthru
        _
      %p7257 = scmp.le.s32.totalorder 2, %s14
      // Predicated region
      $region45: #{tpu_custom_call.1} parent=5 // pred_check
        %p7258 = pneg %p7257
      $region46: #{tpu_custom_call.1} parent=5 // pred_check_branch
        %7260 = sbr.rel (%p7258) target = $region48
      $region47: #{tpu_custom_call.1} parent=5 // pred_region
        %s7261 = ssub.s32 %s14, 2
        // Predicated region
        $region49: #{tpu_custom_call.1} parent=47 // pred_check
          %p7262 = pneg %p132
        $region50: #{tpu_custom_call.1} parent=47 // pred_check_branch
          %7264 = sbr.rel (%p7262) target = $region52
        $region51: #{tpu_custom_call.1} parent=47 // pred_region
          %s7265 = sand.u32 %s117, 1
          %s7266 = scalar_lea.sflag [#allocation5], %s7265
          %s7267 = sand.u32 %s117, 1
          %s7268 = smul.addr %s7267, 512
          %s7269 = scalar_lea.vmem [#allocation6], %s7268
          %7270 = dma.done %s7266, 8192
        $region52: #{tpu_custom_call.1} parent=47 // pred_fallthru
          _
      $region48: #{tpu_custom_call.1} parent=5 // pred_fallthru
        _
    $region6: #{tpu_custom_call.1} parent=1 // loop_footer
      %s18 = sadd.s32 1, %s14
    $region7: #{tpu_custom_call.1} parent=1 // loop_footer_branch
      %13 = sbr.rel target = $region3
    $region8: #{tpu_custom_call.1} parent=1 // loop_exit
      _
    %7271 = vsyncpa [#allocation4], 1
    %s7272 = scalar_lea.sflag [#allocation4], 1
    %7273 = vsyncpa %s7272, 1
    %7274 = vsyncpa [#allocation5], 1
    %s7275 = scalar_lea.sflag [#allocation5], 1
    %7276 = vsyncpa %s7275, 1

</llo_original>
